<compile_context>
chip_gen: v7x
topology: tpu7x:2x2x1
jax: 0.10.0
libtpu: 0.0.40
codegen_flags: <defaults>
</compile_context>

<pallas_src>
from functools import partial

import jax
import jax.numpy as jnp
from jax.experimental import pallas as pl
from jax.experimental.pallas import tpu as pltpu


def _round_up(v, m):
    return ((v + m - 1) // m) * m


# ----------------------------------------------------------------------------
# Kernel: one grid step = TB windows.  Everything on the hot path (LayerNorm,
# qkv projection, per-head RMSNorm, q@k^T, +bias, softmax, attn@v, output
# projection) happens inside the kernel.
# ----------------------------------------------------------------------------
def _attention_kernel(x_ref, ln_w_ref, ln_b_ref, wqkv_ref, qg_ref, kg_ref,
                      seg_ref, bias_ref, wout_ref, o_ref, acc_ref,
                      *, heads, dim_head, tb, n_pad):
    dim = x_ref.shape[-1]
    dim_inner = heads * dim_head
    tbn = tb * n_pad

    # ---- LayerNorm (fp32, eps=1e-5) on the flattened (tb*n_pad, dim) rows.
    #      (n_pad % 8 == 0, so this reshape is a tile-aligned no-op relayout.)
    x = x_ref[...].reshape(tbn, dim).astype(jnp.float32)
    mean = jnp.mean(x, axis=-1, keepdims=True)
    xc = x - mean
    var = jnp.mean(xc * xc, axis=-1, keepdims=True)
    x_ln = xc * jax.lax.rsqrt(var + 1e-5)
    x_ln = x_ln * ln_w_ref[...] + ln_b_ref[...]

    # ---- qkv projection: bf16 operands on the MXU, fp32 accumulation.
    qkv = jnp.dot(x_ln.astype(jnp.bfloat16), wqkv_ref[...],
                  preferred_element_type=jnp.float32)          # (tbn, 3*di) f32
    q_all = qkv[:, 0:dim_inner]
    k_all = qkv[:, dim_inner:2 * dim_inner]
    v_all = qkv[:, 2 * dim_inner:3 * dim_inner]

    # ---- per-head RMSNorm done full-width: segmented sum-of-squares and the
    #      head->channel broadcast both go through tiny matmuls with the 0/1
    #      segment matrix, avoiding 16-lane per-head slicing for the stats.
    #      gamma already has the sqrt(dim_head) scale folded in.
    seg = seg_ref[...]                                         # (di, heads) f32

    def rms_norm(t, gamma_full):
        ss = jax.lax.dot_general(t * t, seg, (((1,), (0,)), ((), ())),
                                 preferred_element_type=jnp.float32)   # (tbn, heads)
        inv = jax.lax.rsqrt(jnp.maximum(ss, 1e-24))            # 1/max(||t||, 1e-12)
        inv_full = jax.lax.dot_general(inv, seg, (((1,), (1,)), ((), ())),
                                       preferred_element_type=jnp.float32)  # (tbn, di)
        return t * inv_full * gamma_full

    q3 = rms_norm(q_all, qg_ref[...]).astype(jnp.bfloat16).reshape(tb, n_pad, dim_inner)
    k3 = rms_norm(k_all, kg_ref[...]).astype(jnp.bfloat16).reshape(tb, n_pad, dim_inner)
    v3 = v_all.astype(jnp.bfloat16).reshape(tb, n_pad, dim_inner)

    # ---- per-head attention, batched over the tb windows in one einsum.
    for h in range(heads):                                     # static unroll
        sl = slice(h * dim_head, (h + 1) * dim_head)
        sim = jnp.einsum('bid,bjd->bij', q3[:, :, sl], k3[:, :, sl],
                         preferred_element_type=jnp.float32)   # (tb, np, np) f32
        sim = sim + bias_ref[h].astype(jnp.float32)            # rel-pos bias (+mask)
        m = jnp.max(sim, axis=-1, keepdims=True)
        p = jnp.exp(sim - m)
        s = jnp.sum(p, axis=-1, keepdims=True)
        oh = jnp.einsum('bij,bjd->bid', p.astype(jnp.bfloat16), v3[:, :, sl],
                        preferred_element_type=jnp.float32)    # (tb, np, dh) f32
        # normalize after attn@v: n*dim_head multiplies instead of n*n
        acc_ref[:, :, sl] = oh * pl.reciprocal(s, approx=True)

    # ---- single output projection with K = dim_inner (instead of per-head
    #      K = dim_head partial matmuls + serial accumulation).
    out = jnp.dot(acc_ref[...].astype(jnp.bfloat16).reshape(tbn, dim_inner),
                  wout_ref[...], preferred_element_type=jnp.float32)
    o_ref[...] = out.reshape(tb, n_pad, dim).astype(o_ref.dtype)


def attention_pallas(x, params, rel_bias, *, heads, dim_head, window_batch=4):
    b, n, dim = x.shape
    dim_inner = heads * dim_head

    tb = int(window_batch)
    n_pad = _round_up(n, 8)          # tile-aligned sequence length
    b_pad = _round_up(b, tb)         # ragged last tile handled by zero padding

    x_pad = jnp.pad(x, ((0, b_pad - b), (0, n_pad - n), (0, 0)))

    # Relative-position bias, padded: padded key columns get a large negative
    # bias so real queries assign them zero attention weight; padded query
    # rows produce finite garbage that is sliced off below.  Stored bf16.
    bias_pad = jnp.full((heads, n_pad, n_pad), -1e9, jnp.float32)
    bias_pad = bias_pad.at[:, :n, :n].set(rel_bias.astype(jnp.float32))
    bias_pad = bias_pad.astype(jnp.bfloat16)

    # Fold the RMSNorm scale sqrt(dim_head) into gamma; flatten head-major.
    qg_full = (dim_head ** 0.5 * params["q_gamma"]).reshape(1, dim_inner).astype(jnp.float32)
    kg_full = (dim_head ** 0.5 * params["k_gamma"]).reshape(1, dim_inner).astype(jnp.float32)

    # 0/1 segment matrix mapping channels -> heads for the segmented RMS stats.
    seg = (jnp.arange(dim_inner)[:, None] // dim_head ==
           jnp.arange(heads)[None, :]).astype(jnp.float32)

    # MXU weights in bf16 (fp32 accumulation happens inside the kernel).
    wqkv_bf = params["wqkv"].astype(jnp.bfloat16)
    wout_bf = params["w_out"].astype(jnp.bfloat16)

    kernel = partial(_attention_kernel, heads=heads, dim_head=dim_head,
                     tb=tb, n_pad=n_pad)

    out = pl.pallas_call(
        kernel,
        out_shape=jax.ShapeDtypeStruct((b_pad, n_pad, dim), x.dtype),
        grid=(b_pad // tb,),
        in_specs=[
            pl.BlockSpec((tb, n_pad, dim), lambda i: (i, 0, 0)),       # x tile
            pl.BlockSpec((1, dim), lambda i: (0, 0)),                  # ln weight
            pl.BlockSpec((1, dim), lambda i: (0, 0)),                  # ln bias
            pl.BlockSpec((dim, 3 * dim_inner), lambda i: (0, 0)),      # W_qkv (bf16)
            pl.BlockSpec((1, dim_inner), lambda i: (0, 0)),            # q gamma*scale
            pl.BlockSpec((1, dim_inner), lambda i: (0, 0)),            # k gamma*scale
            pl.BlockSpec((dim_inner, heads), lambda i: (0, 0)),        # segment matrix
            pl.BlockSpec((heads, n_pad, n_pad), lambda i: (0, 0, 0)),  # rel bias (bf16)
            pl.BlockSpec((dim_inner, dim), lambda i: (0, 0)),          # W_out (bf16)
        ],
        out_specs=pl.BlockSpec((tb, n_pad, dim), lambda i: (i, 0, 0)),
        # per-step head-output assembly buffer (sized for tb; keep tb modest
        # on v7x where VMEM is 64 MiB vs 128 MiB on v5e/v6e).
        scratch_shapes=[pltpu.VMEM((tb, n_pad, dim_inner), jnp.float32)],
        compiler_params=pltpu.CompilerParams(
            dimension_semantics=("parallel",)),   # shards grid across v7x's 2 TCs
    )(x_pad, params["ln_w"], params["ln_b"], wqkv_bf, qg_full, kg_full,
      seg, bias_pad, wout_bf)

    return out[:b, :n, :]


# ----------------------------------------------------------------------------
# Glue: relative position index table + embedding gather (done in plain JAX).
# ----------------------------------------------------------------------------
def make_rel_pos_indices(window_size, num_registers):
    w = window_size
    num_rel = (2 * w - 1) ** 2
    pos = jnp.arange(w)
    gi, gj = jnp.meshgrid(pos, pos, indexing="ij")
    grid = jnp.stack([gi, gj], axis=0).reshape(2, -1).T          # (w*w, 2)
    rel = grid[:, None, :] - grid[None, :, :] + (w - 1)          # (w2, w2, 2)
    idx = (rel * jnp.array([2 * w - 1, 1])).sum(-1)              # (w2, w2)
    idx = jnp.pad(idx, ((num_registers, 0), (num_registers, 0)),
                  constant_values=num_rel)
    return idx                                                   # (n, n)


# ----------------------------------------------------------------------------
# Pure-JAX reference (fp32) for a sanity check.
# ----------------------------------------------------------------------------
def reference(x, params, rel_bias, *, heads, dim_head):
    b, n, dim = x.shape
    mean = x.mean(-1, keepdims=True)
    var = ((x - mean) ** 2).mean(-1, keepdims=True)
    xn = (x - mean) / jnp.sqrt(var + 1e-5)
    xn = xn * params["ln_w"][0] + params["ln_b"][0]
    qkv = xn @ params["wqkv"]
    q, k, v = jnp.split(qkv, 3, axis=-1)

    def split_heads(t):
        return t.reshape(b, n, heads, dim_head).transpose(0, 2, 1, 3)

    q, k, v = map(split_heads, (q, k, v))

    def rms(t, g):
        t = t / jnp.maximum(
            jnp.sqrt(jnp.sum(t * t, -1, keepdims=True)), 1e-12)
        return t * (dim_head ** 0.5) * g

    q = rms(q, params["q_gamma"])
    k = rms(k, params["k_gamma"])
    sim = jnp.einsum("bhid,bhjd->bhij", q, k) + rel_bias
    attn = jax.nn.softmax(sim, axis=-1)
    out = jnp.einsum("bhij,bhjd->bhid", attn, v)
    out = out.transpose(0, 2, 1, 3).reshape(b, n, heads * dim_head)
    return out @ params["w_out"]


if __name__ == "__main__":
    # Small, module-consistent shapes (batch chosen NOT divisible by the
    # window_batch tile to exercise the ragged-tile padding path).
    batch = 6
    dim = 64
    heads = 4
    dim_head = 16          # dim % dim_head == 0
    window_size = 8
    num_registers = 1
    n = window_size * window_size + num_registers            # 65
    dim_inner = heads * dim_head
    num_rel = (2 * window_size - 1) ** 2

    key = jax.random.PRNGKey(0)
    ks = jax.random.split(key, 8)

    # Deterministic synthetic parameters (shapes from the module __init__).
    params = {
        "ln_w": (1.0 + 0.1 * jax.random.normal(ks[0], (1, dim))).astype(jnp.float32),
        "ln_b": (0.1 * jax.random.normal(ks[1], (1, dim))).astype(jnp.float32),
        "wqkv": (jax.random.normal(ks[2], (dim, 3 * dim_inner)) /
                 jnp.sqrt(dim)).astype(jnp.float32),
        "q_gamma": (1.0 + 0.1 * jax.random.normal(ks[3], (heads, 1, dim_head))
                    ).astype(jnp.float32),
        "k_gamma": (1.0 + 0.1 * jax.random.normal(ks[4], (heads, 1, dim_head))
                    ).astype(jnp.float32),
        "w_out": (jax.random.normal(ks[5], (dim_inner, dim)) /
                  jnp.sqrt(dim_inner)).astype(jnp.float32),
    }
    bias_table = (0.02 * jax.random.normal(ks[6], (num_rel + 1, heads))
                  ).astype(jnp.float32)

    # Embedding lookup (data-dependent gather) done as host-side glue.
    # TODO(synk): FiLM conditioning branch (cond_dim) not implemented (cond_dim=None);
    # dropout is identity at eval time.
    rel_idx = make_rel_pos_indices(window_size, num_registers)       # (n, n)
    rel_bias = bias_table[rel_idx]                                   # (n, n, h)
    rel_bias = jnp.transpose(rel_bias, (2, 0, 1)).astype(jnp.float32)  # (h, n, n)

    x = jax.random.normal(ks[7], (batch, n, dim), dtype=jnp.float32)

    out = attention_pallas(x, params, rel_bias, heads=heads, dim_head=dim_head,
                           window_batch=4)
    out = jax.block_until_ready(out)

    ref = reference(x, params, rel_bias, heads=heads, dim_head=dim_head)
    diff = out - ref
    max_diff = float(jnp.max(jnp.abs(diff)))
    rel_l2 = float(jnp.linalg.norm(diff) / jnp.linalg.norm(ref))
    assert out.shape == (batch, n, dim)
    # bf16 MXU operands (fp32 accumulation): expect ~1e-2 typical error.
    assert rel_l2 < 5e-2, f"mismatch vs reference: rel L2 = {rel_l2}"
    assert max_diff < 1.5e-1, f"mismatch vs reference: max|diff| = {max_diff}"

    print("KERNEL_OK")
</pallas_src>

<mosaic_0001>
module attributes {stable_mosaic.version = 11 : i64} {
  func.func @_attention_kernel(%arg0: i32, %arg1: memref<4x72x64xf32, #tpu.memory_space<vmem>>, %arg2: memref<1x64xf32, #tpu.memory_space<vmem>>, %arg3: memref<1x64xf32, #tpu.memory_space<vmem>>, %arg4: memref<64x192xbf16, #tpu.memory_space<vmem>>, %arg5: memref<1x64xf32, #tpu.memory_space<vmem>>, %arg6: memref<1x64xf32, #tpu.memory_space<vmem>>, %arg7: memref<64x4xf32, #tpu.memory_space<vmem>>, %arg8: memref<4x72x72xbf16, #tpu.memory_space<vmem>>, %arg9: memref<64x64xbf16, #tpu.memory_space<vmem>>, %arg10: memref<4x72x64xf32, #tpu.memory_space<vmem>>, %arg11: memref<4x72x64xf32, #tpu.memory_space<vmem>>) attributes {dimension_semantics = [#tpu.dimension_semantics<parallel>], iteration_bounds = array<i64: 2>, scalar_prefetch = 0 : i64, scratch_operands = 1 : i64, tpu.core_type = #tpu.core_type<tc>, window_params = [{transform_indices = @transform_0, window_bounds = array<i64: 4, 72, 64>}, {pipeline_mode = #tpu.pipeline_mode<synchronous>, transform_indices = @transform_1, window_bounds = array<i64: 1, 64>}, {pipeline_mode = #tpu.pipeline_mode<synchronous>, transform_indices = @transform_2, window_bounds = array<i64: 1, 64>}, {pipeline_mode = #tpu.pipeline_mode<synchronous>, transform_indices = @transform_3, window_bounds = array<i64: 64, 192>}, {pipeline_mode = #tpu.pipeline_mode<synchronous>, transform_indices = @transform_4, window_bounds = array<i64: 1, 64>}, {pipeline_mode = #tpu.pipeline_mode<synchronous>, transform_indices = @transform_5, window_bounds = array<i64: 1, 64>}, {pipeline_mode = #tpu.pipeline_mode<synchronous>, transform_indices = @transform_6, window_bounds = array<i64: 64, 4>}, {pipeline_mode = #tpu.pipeline_mode<synchronous>, transform_indices = @transform_7, window_bounds = array<i64: 4, 72, 72>}, {pipeline_mode = #tpu.pipeline_mode<synchronous>, transform_indices = @transform_8, window_bounds = array<i64: 64, 64>}, {transform_indices = @transform_9, window_bounds = array<i64: 4, 72, 64>}]} {
    %c0 = arith.constant 0 : index
    %c0_0 = arith.constant 0 : index
    %c0_1 = arith.constant 0 : index
    %0 = vector.load %arg1[%c0, %c0_0, %c0_1] : memref<4x72x64xf32, #tpu.memory_space<vmem>>, vector<4x72x64xf32>
    %1 = vector.shape_cast %0 : vector<4x72x64xf32> to vector<288x64xf32>
    %cst = arith.constant dense<0.000000e+00> : vector<288xf32>
    %2 = vector.multi_reduction <add>, %1, %cst [1] : vector<288x64xf32> to vector<288xf32>
    %3 = vector.shape_cast %2 : vector<288xf32> to vector<288x1xf32>
    %cst_2 = arith.constant 6.400000e+01 : f32
    %4 = vector.broadcast %cst_2 : f32 to vector<288x1xf32>
    %5 = arith.divf %3, %4 : vector<288x1xf32>
    %6 = vector.broadcast %5 : vector<288x1xf32> to vector<288x64xf32>
    %7 = arith.subf %1, %6 : vector<288x64xf32>
    %8 = arith.mulf %7, %7 : vector<288x64xf32>
    %cst_3 = arith.constant dense<0.000000e+00> : vector<288xf32>
    %9 = vector.multi_reduction <add>, %8, %cst_3 [1] : vector<288x64xf32> to vector<288xf32>
    %10 = vector.shape_cast %9 : vector<288xf32> to vector<288x1xf32>
    %cst_4 = arith.constant 6.400000e+01 : f32
    %11 = vector.broadcast %cst_4 : f32 to vector<288x1xf32>
    %12 = arith.divf %10, %11 : vector<288x1xf32>
    %cst_5 = arith.constant 9.99999974E-6 : f32
    %13 = vector.broadcast %cst_5 : f32 to vector<288x1xf32>
    %14 = arith.addf %12, %13 : vector<288x1xf32>
    %15 = math.rsqrt %14 : vector<288x1xf32>
    %16 = vector.broadcast %15 : vector<288x1xf32> to vector<288x64xf32>
    %17 = arith.mulf %7, %16 : vector<288x64xf32>
    %c0_6 = arith.constant 0 : index
    %c0_7 = arith.constant 0 : index
    %18 = vector.load %arg2[%c0_6, %c0_7] : memref<1x64xf32, #tpu.memory_space<vmem>>, vector<1x64xf32>
    %19 = vector.broadcast %18 : vector<1x64xf32> to vector<288x64xf32>
    %20 = arith.mulf %17, %19 : vector<288x64xf32>
    %c0_8 = arith.constant 0 : index
    %c0_9 = arith.constant 0 : index
    %21 = vector.load %arg3[%c0_8, %c0_9] : memref<1x64xf32, #tpu.memory_space<vmem>>, vector<1x64xf32>
    %22 = vector.broadcast %21 : vector<1x64xf32> to vector<288x64xf32>
    %23 = arith.addf %20, %22 : vector<288x64xf32>
    %24 = arith.truncf %23 : vector<288x64xf32> to vector<288x64xbf16>
    %c0_10 = arith.constant 0 : index
    %c0_11 = arith.constant 0 : index
    %25 = vector.load %arg4[%c0_10, %c0_11] : memref<64x192xbf16, #tpu.memory_space<vmem>>, vector<64x192xbf16>
    %cst_12 = arith.constant dense<0.000000e+00> : vector<288x192xf32>
    %26 = tpu.matmul %24, %25, %cst_12 {dimension_numbers = #tpu.dot_dimension_numbers<[1], [0], [0], [1], [0, 0, 1, 1], [], []>} : vector<288x64xbf16>, vector<64x192xbf16>, vector<288x192xf32> -> vector<288x192xf32>
    %27 = vector.extract_strided_slice %26 {offsets = [0, 0], sizes = [288, 64], strides = [1, 1]} : vector<288x192xf32> to vector<288x64xf32>
    %28 = vector.extract_strided_slice %26 {offsets = [0, 64], sizes = [288, 64], strides = [1, 1]} : vector<288x192xf32> to vector<288x64xf32>
    %29 = vector.extract_strided_slice %26 {offsets = [0, 128], sizes = [288, 64], strides = [1, 1]} : vector<288x192xf32> to vector<288x64xf32>
    %c0_13 = arith.constant 0 : index
    %c0_14 = arith.constant 0 : index
    %30 = vector.load %arg7[%c0_13, %c0_14] : memref<64x4xf32, #tpu.memory_space<vmem>>, vector<64x4xf32>
    %c0_15 = arith.constant 0 : index
    %c0_16 = arith.constant 0 : index
    %31 = vector.load %arg5[%c0_15, %c0_16] : memref<1x64xf32, #tpu.memory_space<vmem>>, vector<1x64xf32>
    %32 = arith.mulf %27, %27 : vector<288x64xf32>
    %cst_17 = arith.constant dense<0.000000e+00> : vector<288x4xf32>
    %33 = tpu.matmul %32, %30, %cst_17 {dimension_numbers = #tpu.dot_dimension_numbers<[1], [0], [0], [1], [0, 0, 1, 1], [], []>} : vector<288x64xf32>, vector<64x4xf32>, vector<288x4xf32> -> vector<288x4xf32>
    %cst_18 = arith.constant 1.000000e-24 : f32
    %34 = vector.broadcast %cst_18 : f32 to vector<288x4xf32>
    %35 = arith.maximumf %33, %34 : vector<288x4xf32>
    %36 = math.rsqrt %35 : vector<288x4xf32>
    %cst_19 = arith.constant dense<0.000000e+00> : vector<288x64xf32>
    %37 = tpu.matmul %36, %30, %cst_19 {dimension_numbers = #tpu.dot_dimension_numbers<[1], [1], [0], [0], [0, 0, 1, 0], [], []>} : vector<288x4xf32>, vector<64x4xf32>, vector<288x64xf32> -> vector<288x64xf32>
    %38 = arith.mulf %27, %37 : vector<288x64xf32>
    %39 = vector.broadcast %31 : vector<1x64xf32> to vector<288x64xf32>
    %40 = arith.mulf %38, %39 : vector<288x64xf32>
    %41 = arith.truncf %40 : vector<288x64xf32> to vector<288x64xbf16>
    %42 = vector.shape_cast %41 : vector<288x64xbf16> to vector<4x72x64xbf16>
    %c0_20 = arith.constant 0 : index
    %c0_21 = arith.constant 0 : index
    %43 = vector.load %arg6[%c0_20, %c0_21] : memref<1x64xf32, #tpu.memory_space<vmem>>, vector<1x64xf32>
    %44 = arith.mulf %28, %28 : vector<288x64xf32>
    %cst_22 = arith.constant dense<0.000000e+00> : vector<288x4xf32>
    %45 = tpu.matmul %44, %30, %cst_22 {dimension_numbers = #tpu.dot_dimension_numbers<[1], [0], [0], [1], [0, 0, 1, 1], [], []>} : vector<288x64xf32>, vector<64x4xf32>, vector<288x4xf32> -> vector<288x4xf32>
    %cst_23 = arith.constant 1.000000e-24 : f32
    %46 = vector.broadcast %cst_23 : f32 to vector<288x4xf32>
    %47 = arith.maximumf %45, %46 : vector<288x4xf32>
    %48 = math.rsqrt %47 : vector<288x4xf32>
    %cst_24 = arith.constant dense<0.000000e+00> : vector<288x64xf32>
    %49 = tpu.matmul %48, %30, %cst_24 {dimension_numbers = #tpu.dot_dimension_numbers<[1], [1], [0], [0], [0, 0, 1, 0], [], []>} : vector<288x4xf32>, vector<64x4xf32>, vector<288x64xf32> -> vector<288x64xf32>
    %50 = arith.mulf %28, %49 : vector<288x64xf32>
    %51 = vector.broadcast %43 : vector<1x64xf32> to vector<288x64xf32>
    %52 = arith.mulf %50, %51 : vector<288x64xf32>
    %53 = arith.truncf %52 : vector<288x64xf32> to vector<288x64xbf16>
    %54 = vector.shape_cast %53 : vector<288x64xbf16> to vector<4x72x64xbf16>
    %55 = arith.truncf %29 : vector<288x64xf32> to vector<288x64xbf16>
    %56 = vector.shape_cast %55 : vector<288x64xbf16> to vector<4x72x64xbf16>
    %57 = vector.extract_strided_slice %42 {offsets = [0, 0, 0], sizes = [4, 72, 16], strides = [1, 1, 1]} : vector<4x72x64xbf16> to vector<4x72x16xbf16>
    %58 = vector.extract_strided_slice %54 {offsets = [0, 0, 0], sizes = [4, 72, 16], strides = [1, 1, 1]} : vector<4x72x64xbf16> to vector<4x72x16xbf16>
    "tpu.trace_start"() <{level = 10 : i32, message = "bid,bjd->bij"}> : () -> ()
    %cst_25 = arith.constant dense<0.000000e+00> : vector<4x72x72xf32>
    %59 = tpu.matmul %57, %58, %cst_25 {dimension_numbers = #tpu.dot_dimension_numbers<[2], [2], [1], [1], [0, 0, 0, 1, 1, 1], [0], [0]>} : vector<4x72x16xbf16>, vector<4x72x16xbf16>, vector<4x72x72xf32> -> vector<4x72x72xf32>
    "tpu.trace_stop"() : () -> ()
    %c0_26 = arith.constant 0 : index
    %c0_27 = arith.constant 0 : index
    %c0_28 = arith.constant 0 : index
    %60 = vector.load %arg8[%c0_26, %c0_27, %c0_28] : memref<4x72x72xbf16, #tpu.memory_space<vmem>>, vector<1x72x72xbf16>
    %61 = vector.shape_cast %60 : vector<1x72x72xbf16> to vector<72x72xbf16>
    %62 = arith.extf %61 : vector<72x72xbf16> to vector<72x72xf32>
    %63 = vector.shape_cast %62 : vector<72x72xf32> to vector<1x72x72xf32>
    %64 = vector.broadcast %63 : vector<1x72x72xf32> to vector<4x72x72xf32>
    %65 = arith.addf %59, %64 : vector<4x72x72xf32>
    %cst_29 = arith.constant dense<0xFF800000> : vector<4x72xf32>
    %66 = vector.multi_reduction <maximumf>, %65, %cst_29 [2] : vector<4x72x72xf32> to vector<4x72xf32>
    %67 = vector.shape_cast %66 : vector<4x72xf32> to vector<4x72x1xf32>
    %68 = vector.broadcast %67 : vector<4x72x1xf32> to vector<4x72x72xf32>
    %69 = arith.subf %65, %68 : vector<4x72x72xf32>
    %70 = math.exp %69 : vector<4x72x72xf32>
    %cst_30 = arith.constant dense<0.000000e+00> : vector<4x72xf32>
    %71 = vector.multi_reduction <add>, %70, %cst_30 [2] : vector<4x72x72xf32> to vector<4x72xf32>
    %72 = vector.shape_cast %71 : vector<4x72xf32> to vector<4x72x1xf32>
    %73 = arith.truncf %70 : vector<4x72x72xf32> to vector<4x72x72xbf16>
    %74 = vector.extract_strided_slice %56 {offsets = [0, 0, 0], sizes = [4, 72, 16], strides = [1, 1, 1]} : vector<4x72x64xbf16> to vector<4x72x16xbf16>
    "tpu.trace_start"() <{level = 10 : i32, message = "bij,bjd->bid"}> : () -> ()
    %cst_31 = arith.constant dense<0.000000e+00> : vector<4x72x16xf32>
    %75 = tpu.matmul %73, %74, %cst_31 {dimension_numbers = #tpu.dot_dimension_numbers<[2], [1], [1], [2], [0, 0, 0, 1, 1, 2], [0], [0]>} : vector<4x72x72xbf16>, vector<4x72x16xbf16>, vector<4x72x16xf32> -> vector<4x72x16xf32>
    "tpu.trace_stop"() : () -> ()
    %76 = tpu.reciprocal %72 {approx = true} : vector<4x72x1xf32> -> vector<4x72x1xf32>
    %77 = vector.broadcast %76 : vector<4x72x1xf32> to vector<4x72x16xf32>
    %78 = arith.mulf %75, %77 : vector<4x72x16xf32>
    %c0_32 = arith.constant 0 : index
    %c0_33 = arith.constant 0 : index
    %c0_34 = arith.constant 0 : index
    %79 = vector.load %arg11[%c0_32, %c0_33, %c0_34] : memref<4x72x64xf32, #tpu.memory_space<vmem>>, vector<4x72x16xf32>
    tpu.vector_store %arg11[%c0_32, %c0_33, %c0_34], %78 {strides = array<i32>} : memref<4x72x64xf32, #tpu.memory_space<vmem>>, vector<4x72x16xf32>,
    %80 = vector.extract_strided_slice %42 {offsets = [0, 0, 16], sizes = [4, 72, 16], strides = [1, 1, 1]} : vector<4x72x64xbf16> to vector<4x72x16xbf16>
    %81 = vector.extract_strided_slice %54 {offsets = [0, 0, 16], sizes = [4, 72, 16], strides = [1, 1, 1]} : vector<4x72x64xbf16> to vector<4x72x16xbf16>
    "tpu.trace_start"() <{level = 10 : i32, message = "bid,bjd->bij"}> : () -> ()
    %cst_35 = arith.constant dense<0.000000e+00> : vector<4x72x72xf32>
    %82 = tpu.matmul %80, %81, %cst_35 {dimension_numbers = #tpu.dot_dimension_numbers<[2], [2], [1], [1], [0, 0, 0, 1, 1, 1], [0], [0]>} : vector<4x72x16xbf16>, vector<4x72x16xbf16>, vector<4x72x72xf32> -> vector<4x72x72xf32>
    "tpu.trace_stop"() : () -> ()
    %c1 = arith.constant 1 : index
    %c0_36 = arith.constant 0 : index
    %c0_37 = arith.constant 0 : index
    %83 = vector.load %arg8[%c1, %c0_36, %c0_37] : memref<4x72x72xbf16, #tpu.memory_space<vmem>>, vector<1x72x72xbf16>
    %84 = vector.shape_cast %83 : vector<1x72x72xbf16> to vector<72x72xbf16>
    %85 = arith.extf %84 : vector<72x72xbf16> to vector<72x72xf32>
    %86 = vector.shape_cast %85 : vector<72x72xf32> to vector<1x72x72xf32>
    %87 = vector.broadcast %86 : vector<1x72x72xf32> to vector<4x72x72xf32>
    %88 = arith.addf %82, %87 : vector<4x72x72xf32>
    %cst_38 = arith.constant dense<0xFF800000> : vector<4x72xf32>
    %89 = vector.multi_reduction <maximumf>, %88, %cst_38 [2] : vector<4x72x72xf32> to vector<4x72xf32>
    %90 = vector.shape_cast %89 : vector<4x72xf32> to vector<4x72x1xf32>
    %91 = vector.broadcast %90 : vector<4x72x1xf32> to vector<4x72x72xf32>
    %92 = arith.subf %88, %91 : vector<4x72x72xf32>
    %93 = math.exp %92 : vector<4x72x72xf32>
    %cst_39 = arith.constant dense<0.000000e+00> : vector<4x72xf32>
    %94 = vector.multi_reduction <add>, %93, %cst_39 [2] : vector<4x72x72xf32> to vector<4x72xf32>
    %95 = vector.shape_cast %94 : vector<4x72xf32> to vector<4x72x1xf32>
    %96 = arith.truncf %93 : vector<4x72x72xf32> to vector<4x72x72xbf16>
    %97 = vector.extract_strided_slice %56 {offsets = [0, 0, 16], sizes = [4, 72, 16], strides = [1, 1, 1]} : vector<4x72x64xbf16> to vector<4x72x16xbf16>
    "tpu.trace_start"() <{level = 10 : i32, message = "bij,bjd->bid"}> : () -> ()
    %cst_40 = arith.constant dense<0.000000e+00> : vector<4x72x16xf32>
    %98 = tpu.matmul %96, %97, %cst_40 {dimension_numbers = #tpu.dot_dimension_numbers<[2], [1], [1], [2], [0, 0, 0, 1, 1, 2], [0], [0]>} : vector<4x72x72xbf16>, vector<4x72x16xbf16>, vector<4x72x16xf32> -> vector<4x72x16xf32>
    "tpu.trace_stop"() : () -> ()
    %99 = tpu.reciprocal %95 {approx = true} : vector<4x72x1xf32> -> vector<4x72x1xf32>
    %100 = vector.broadcast %99 : vector<4x72x1xf32> to vector<4x72x16xf32>
    %101 = arith.mulf %98, %100 : vector<4x72x16xf32>
    %c0_41 = arith.constant 0 : index
    %c0_42 = arith.constant 0 : index
    %c16 = arith.constant 16 : index
    %102 = vector.load %arg11[%c0_41, %c0_42, %c16] : memref<4x72x64xf32, #tpu.memory_space<vmem>>, vector<4x72x16xf32>
    tpu.vector_store %arg11[%c0_41, %c0_42, %c16], %101 {strides = array<i32>} : memref<4x72x64xf32, #tpu.memory_space<vmem>>, vector<4x72x16xf32>,
    %103 = vector.extract_strided_slice %42 {offsets = [0, 0, 32], sizes = [4, 72, 16], strides = [1, 1, 1]} : vector<4x72x64xbf16> to vector<4x72x16xbf16>
    %104 = vector.extract_strided_slice %54 {offsets = [0, 0, 32], sizes = [4, 72, 16], strides = [1, 1, 1]} : vector<4x72x64xbf16> to vector<4x72x16xbf16>
    "tpu.trace_start"() <{level = 10 : i32, message = "bid,bjd->bij"}> : () -> ()
    %cst_43 = arith.constant dense<0.000000e+00> : vector<4x72x72xf32>
    %105 = tpu.matmul %103, %104, %cst_43 {dimension_numbers = #tpu.dot_dimension_numbers<[2], [2], [1], [1], [0, 0, 0, 1, 1, 1], [0], [0]>} : vector<4x72x16xbf16>, vector<4x72x16xbf16>, vector<4x72x72xf32> -> vector<4x72x72xf32>
    "tpu.trace_stop"() : () -> ()
    %c2 = arith.constant 2 : index
    %c0_44 = arith.constant 0 : index
    %c0_45 = arith.constant 0 : index
    %106 = vector.load %arg8[%c2, %c0_44, %c0_45] : memref<4x72x72xbf16, #tpu.memory_space<vmem>>, vector<1x72x72xbf16>
    %107 = vector.shape_cast %106 : vector<1x72x72xbf16> to vector<72x72xbf16>
    %108 = arith.extf %107 : vector<72x72xbf16> to vector<72x72xf32>
    %109 = vector.shape_cast %108 : vector<72x72xf32> to vector<1x72x72xf32>
    %110 = vector.broadcast %109 : vector<1x72x72xf32> to vector<4x72x72xf32>
    %111 = arith.addf %105, %110 : vector<4x72x72xf32>
    %cst_46 = arith.constant dense<0xFF800000> : vector<4x72xf32>
    %112 = vector.multi_reduction <maximumf>, %111, %cst_46 [2] : vector<4x72x72xf32> to vector<4x72xf32>
    %113 = vector.shape_cast %112 : vector<4x72xf32> to vector<4x72x1xf32>
    %114 = vector.broadcast %113 : vector<4x72x1xf32> to vector<4x72x72xf32>
    %115 = arith.subf %111, %114 : vector<4x72x72xf32>
    %116 = math.exp %115 : vector<4x72x72xf32>
    %cst_47 = arith.constant dense<0.000000e+00> : vector<4x72xf32>
    %117 = vector.multi_reduction <add>, %116, %cst_47 [2] : vector<4x72x72xf32> to vector<4x72xf32>
    %118 = vector.shape_cast %117 : vector<4x72xf32> to vector<4x72x1xf32>
    %119 = arith.truncf %116 : vector<4x72x72xf32> to vector<4x72x72xbf16>
    %120 = vector.extract_strided_slice %56 {offsets = [0, 0, 32], sizes = [4, 72, 16], strides = [1, 1, 1]} : vector<4x72x64xbf16> to vector<4x72x16xbf16>
    "tpu.trace_start"() <{level = 10 : i32, message = "bij,bjd->bid"}> : () -> ()
    %cst_48 = arith.constant dense<0.000000e+00> : vector<4x72x16xf32>
    %121 = tpu.matmul %119, %120, %cst_48 {dimension_numbers = #tpu.dot_dimension_numbers<[2], [1], [1], [2], [0, 0, 0, 1, 1, 2], [0], [0]>} : vector<4x72x72xbf16>, vector<4x72x16xbf16>, vector<4x72x16xf32> -> vector<4x72x16xf32>
    "tpu.trace_stop"() : () -> ()
    %122 = tpu.reciprocal %118 {approx = true} : vector<4x72x1xf32> -> vector<4x72x1xf32>
    %123 = vector.broadcast %122 : vector<4x72x1xf32> to vector<4x72x16xf32>
    %124 = arith.mulf %121, %123 : vector<4x72x16xf32>
    %c0_49 = arith.constant 0 : index
    %c0_50 = arith.constant 0 : index
    %c32 = arith.constant 32 : index
    %125 = vector.load %arg11[%c0_49, %c0_50, %c32] : memref<4x72x64xf32, #tpu.memory_space<vmem>>, vector<4x72x16xf32>
    tpu.vector_store %arg11[%c0_49, %c0_50, %c32], %124 {strides = array<i32>} : memref<4x72x64xf32, #tpu.memory_space<vmem>>, vector<4x72x16xf32>,
    %126 = vector.extract_strided_slice %42 {offsets = [0, 0, 48], sizes = [4, 72, 16], strides = [1, 1, 1]} : vector<4x72x64xbf16> to vector<4x72x16xbf16>
    %127 = vector.extract_strided_slice %54 {offsets = [0, 0, 48], sizes = [4, 72, 16], strides = [1, 1, 1]} : vector<4x72x64xbf16> to vector<4x72x16xbf16>
    "tpu.trace_start"() <{level = 10 : i32, message = "bid,bjd->bij"}> : () -> ()
    %cst_51 = arith.constant dense<0.000000e+00> : vector<4x72x72xf32>
    %128 = tpu.matmul %126, %127, %cst_51 {dimension_numbers = #tpu.dot_dimension_numbers<[2], [2], [1], [1], [0, 0, 0, 1, 1, 1], [0], [0]>} : vector<4x72x16xbf16>, vector<4x72x16xbf16>, vector<4x72x72xf32> -> vector<4x72x72xf32>
    "tpu.trace_stop"() : () -> ()
    %c3 = arith.constant 3 : index
    %c0_52 = arith.constant 0 : index
    %c0_53 = arith.constant 0 : index
    %129 = vector.load %arg8[%c3, %c0_52, %c0_53] : memref<4x72x72xbf16, #tpu.memory_space<vmem>>, vector<1x72x72xbf16>
    %130 = vector.shape_cast %129 : vector<1x72x72xbf16> to vector<72x72xbf16>
    %131 = arith.extf %130 : vector<72x72xbf16> to vector<72x72xf32>
    %132 = vector.shape_cast %131 : vector<72x72xf32> to vector<1x72x72xf32>
    %133 = vector.broadcast %132 : vector<1x72x72xf32> to vector<4x72x72xf32>
    %134 = arith.addf %128, %133 : vector<4x72x72xf32>
    %cst_54 = arith.constant dense<0xFF800000> : vector<4x72xf32>
    %135 = vector.multi_reduction <maximumf>, %134, %cst_54 [2] : vector<4x72x72xf32> to vector<4x72xf32>
    %136 = vector.shape_cast %135 : vector<4x72xf32> to vector<4x72x1xf32>
    %137 = vector.broadcast %136 : vector<4x72x1xf32> to vector<4x72x72xf32>
    %138 = arith.subf %134, %137 : vector<4x72x72xf32>
    %139 = math.exp %138 : vector<4x72x72xf32>
    %cst_55 = arith.constant dense<0.000000e+00> : vector<4x72xf32>
    %140 = vector.multi_reduction <add>, %139, %cst_55 [2] : vector<4x72x72xf32> to vector<4x72xf32>
    %141 = vector.shape_cast %140 : vector<4x72xf32> to vector<4x72x1xf32>
    %142 = arith.truncf %139 : vector<4x72x72xf32> to vector<4x72x72xbf16>
    %143 = vector.extract_strided_slice %56 {offsets = [0, 0, 48], sizes = [4, 72, 16], strides = [1, 1, 1]} : vector<4x72x64xbf16> to vector<4x72x16xbf16>
    "tpu.trace_start"() <{level = 10 : i32, message = "bij,bjd->bid"}> : () -> ()
    %cst_56 = arith.constant dense<0.000000e+00> : vector<4x72x16xf32>
    %144 = tpu.matmul %142, %143, %cst_56 {dimension_numbers = #tpu.dot_dimension_numbers<[2], [1], [1], [2], [0, 0, 0, 1, 1, 2], [0], [0]>} : vector<4x72x72xbf16>, vector<4x72x16xbf16>, vector<4x72x16xf32> -> vector<4x72x16xf32>
    "tpu.trace_stop"() : () -> ()
    %145 = tpu.reciprocal %141 {approx = true} : vector<4x72x1xf32> -> vector<4x72x1xf32>
    %146 = vector.broadcast %145 : vector<4x72x1xf32> to vector<4x72x16xf32>
    %147 = arith.mulf %144, %146 : vector<4x72x16xf32>
    %c0_57 = arith.constant 0 : index
    %c0_58 = arith.constant 0 : index
    %c48 = arith.constant 48 : index
    %148 = vector.load %arg11[%c0_57, %c0_58, %c48] : memref<4x72x64xf32, #tpu.memory_space<vmem>>, vector<4x72x16xf32>
    tpu.vector_store %arg11[%c0_57, %c0_58, %c48], %147 {strides = array<i32>} : memref<4x72x64xf32, #tpu.memory_space<vmem>>, vector<4x72x16xf32>,
    %c0_59 = arith.constant 0 : index
    %c0_60 = arith.constant 0 : index
    %c0_61 = arith.constant 0 : index
    %149 = vector.load %arg11[%c0_59, %c0_60, %c0_61] : memref<4x72x64xf32, #tpu.memory_space<vmem>>, vector<4x72x64xf32>
    %150 = arith.truncf %149 : vector<4x72x64xf32> to vector<4x72x64xbf16>
    %151 = vector.shape_cast %150 : vector<4x72x64xbf16> to vector<288x64xbf16>
    %c0_62 = arith.constant 0 : index
    %c0_63 = arith.constant 0 : index
    %152 = vector.load %arg9[%c0_62, %c0_63] : memref<64x64xbf16, #tpu.memory_space<vmem>>, vector<64x64xbf16>
    %cst_64 = arith.constant dense<0.000000e+00> : vector<288x64xf32>
    %153 = tpu.matmul %151, %152, %cst_64 {dimension_numbers = #tpu.dot_dimension_numbers<[1], [0], [0], [1], [0, 0, 1, 1], [], []>} : vector<288x64xbf16>, vector<64x64xbf16>, vector<288x64xf32> -> vector<288x64xf32>
    %154 = vector.shape_cast %153 : vector<288x64xf32> to vector<4x72x64xf32>
    %c0_65 = arith.constant 0 : index
    %c0_66 = arith.constant 0 : index
    %c0_67 = arith.constant 0 : index
    %155 = vector.load %arg10[%c0_65, %c0_66, %c0_67] : memref<4x72x64xf32, #tpu.memory_space<vmem>>, vector<4x72x64xf32>
    tpu.vector_store %arg10[%c0_65, %c0_66, %c0_67], %154 {strides = array<i32>} : memref<4x72x64xf32, #tpu.memory_space<vmem>>, vector<4x72x64xf32>,
    return
  }
  func.func @transform_0(%arg0: i32) -> (i32, i32, i32) {
    %c0_i32 = arith.constant 0 : i32
    %c0_i32_0 = arith.constant 0 : i32
    %c0_i32_1 = arith.constant 0 : i32
    return %arg0, %c0_i32, %c0_i32_0 : i32, i32, i32
  }
  func.func @transform_1(%arg0: i32) -> (i32, i32) {
    %c0_i32 = arith.constant 0 : i32
    %c0_i32_0 = arith.constant 0 : i32
    %c0_i32_1 = arith.constant 0 : i32
    return %c0_i32, %c0_i32_0 : i32, i32
  }
  func.func @transform_2(%arg0: i32) -> (i32, i32) {
    %c0_i32 = arith.constant 0 : i32
    %c0_i32_0 = arith.constant 0 : i32
    %c0_i32_1 = arith.constant 0 : i32
    return %c0_i32, %c0_i32_0 : i32, i32
  }
  func.func @transform_3(%arg0: i32) -> (i32, i32) {
    %c0_i32 = arith.constant 0 : i32
    %c0_i32_0 = arith.constant 0 : i32
    %c0_i32_1 = arith.constant 0 : i32
    return %c0_i32, %c0_i32_0 : i32, i32
  }
  func.func @transform_4(%arg0: i32) -> (i32, i32) {
    %c0_i32 = arith.constant 0 : i32
    %c0_i32_0 = arith.constant 0 : i32
    %c0_i32_1 = arith.constant 0 : i32
    return %c0_i32, %c0_i32_0 : i32, i32
  }
  func.func @transform_5(%arg0: i32) -> (i32, i32) {
    %c0_i32 = arith.constant 0 : i32
    %c0_i32_0 = arith.constant 0 : i32
    %c0_i32_1 = arith.constant 0 : i32
    return %c0_i32, %c0_i32_0 : i32, i32
  }
  func.func @transform_6(%arg0: i32) -> (i32, i32) {
    %c0_i32 = arith.constant 0 : i32
    %c0_i32_0 = arith.constant 0 : i32
    %c0_i32_1 = arith.constant 0 : i32
    return %c0_i32, %c0_i32_0 : i32, i32
  }
  func.func @transform_7(%arg0: i32) -> (i32, i32, i32) {
    %c0_i32 = arith.constant 0 : i32
    %c0_i32_0 = arith.constant 0 : i32
    %c0_i32_1 = arith.constant 0 : i32
    %c0_i32_2 = arith.constant 0 : i32
    return %c0_i32, %c0_i32_0, %c0_i32_1 : i32, i32, i32
  }
  func.func @transform_8(%arg0: i32) -> (i32, i32) {
    %c0_i32 = arith.constant 0 : i32
    %c0_i32_0 = arith.constant 0 : i32
    %c0_i32_1 = arith.constant 0 : i32
    return %c0_i32, %c0_i32_0 : i32, i32
  }
  func.func @transform_9(%arg0: i32) -> (i32, i32, i32) {
    %c0_i32 = arith.constant 0 : i32
    %c0_i32_0 = arith.constant 0 : i32
    %c0_i32_1 = arith.constant 0 : i32
    return %arg0, %c0_i32, %c0_i32_0 : i32, i32, i32
  }
}

</mosaic_0001>

<llo_original>
// kernel: tpu_custom_call.1
$region0: #{tpu_custom_call.1}
  #allocation0 [shape = 'u32[]', space=smem, size = 0x4, offset = 0x4, fixed_abs, tag = 'smem constant byte address 0x4 - core index']
  #allocation1 [shape = 'u32[144,128]{1,0:T(1,128)}', space=vmem, size = 0x12000, scoped, tag = 'internal scratch']
  #allocation2 [shape = 'f32[4,72,64]{2,1,0:T(8,128)}', space=vmem, size = 0x24000, scoped, tag = 'scratch operand']
  %s0 = inlined_call_operand.vmem [shape: f32[8,72,64], index: 0, kind: input, shape index: {}]
  %s1 = inlined_call_operand.vmem [shape: f32[1,64], index: 1, kind: input, shape index: {}]
  %s2 = inlined_call_operand.vmem [shape: f32[1,64], index: 2, kind: input, shape index: {}]
  %s3 = inlined_call_operand.vmem [shape: bf16[64,192], index: 3, kind: input, shape index: {}]
  %s4 = inlined_call_operand.vmem [shape: f32[1,64], index: 4, kind: input, shape index: {}]
  %s5 = inlined_call_operand.vmem [shape: f32[1,64], index: 5, kind: input, shape index: {}]
  %s6 = inlined_call_operand.vmem [shape: f32[64,4], index: 6, kind: input, shape index: {}]
  %s7 = inlined_call_operand.vmem [shape: bf16[4,72,72], index: 7, kind: input, shape index: {}]
  %s8 = inlined_call_operand.vmem [shape: bf16[64,64], index: 8, kind: input, shape index: {}]
  %s9 = inlined_call_operand.vmem [shape: f32[8,72,64], index: 9, kind: output, shape index: {}]
  %s10 = sld [smem:[#allocation0]]
  $region69: #{tpu_custom_call.1} parent=0
    _
  %s12 = ssub.s32 1, %s10
  %s13 = scalar_select 0, %s12, %s10
  loop: start=0, step=1, limit=4
  $region2: #{tpu_custom_call.1} parent=0 // loop_pre_header
    _
  $region3: #{tpu_custom_call.1} parent=0 // loop_header
    %s15 = sphi 0, %s19
    %p16 = scmp.ge.s32.totalorder %s15, 4
    %s25 = sphi 0, %s27
    %s28 = sphi 0, %s25
    %s29 = sphi 0, %s28
    %s45 = sphi 0, %s29
    %s49 = sphi 0, %s49
    %s51 = sphi 0, %s49
    %s52 = sphi 0, %s51
    %s66 = sphi 0, %s52
    %s70 = sphi 0, %s70
    %s72 = sphi 0, %s70
    %s73 = sphi 0, %s72
    %s87 = sphi 0, %s73
    %s91 = sphi 0, %s91
    %s93 = sphi 0, %s91
    %s94 = sphi 0, %s93
    %s108 = sphi 0, %s94
    %s112 = sphi 0, %s112
    %s114 = sphi 0, %s112
    %s115 = sphi 0, %s114
    %s129 = sphi 0, %s115
    %s133 = sphi 0, %s133
    %s135 = sphi 0, %s133
    %s136 = sphi 0, %s135
    %s150 = sphi 0, %s136
    %s154 = sphi 0, %s154
    %s156 = sphi 0, %s154
    %s157 = sphi 0, %s156
    %s171 = sphi 0, %s157
    %s175 = sphi 0, %s175
    %s177 = sphi 0, %s175
    %s178 = sphi 0, %s177
    %s192 = sphi 0, %s178
    %s196 = sphi 0, %s196
    %s198 = sphi 0, %s196
    %s199 = sphi 0, %s198
    %s213 = sphi 0, %s199
    %s219 = sphi 0, %s221
    %s222 = sphi 0, %s219
    %s223 = sphi 0, %s222
    %s239 = sphi 0, %s223
  $region4: #{tpu_custom_call.1} parent=0 // loop_header_branch
    %18 = sbr.rel (%p16) target = $region8
  $region5: #{tpu_custom_call.1} parent=0 // loop_body
    %s20 = ssub.s32 %s15, 1
    %s21 = ssub.s32 %s15, 2
    %s22 = sadd.s32 %s15, 1
    %s23 = ssub.s32 %s15, %s22
    %p24 = scmp.eq.s32.totalorder %s23, 0
    %s26 = sadd.s32 %s25, 1
    %s27 = scalar_select %p24, %s25, %s26
    %p30 = pneg %p24
    %p31 = scmp.eq.s32.totalorder %s15, 1
    %p32 = por %p30, %p31
    %p33 = scmp.ne.s32.totalorder %s25, %s28
    %p34 = scmp.eq.s32.totalorder %s15, 0
    %p35 = por %p33, %p34
    %p36 = scmp.ne.s32.totalorder %s25, %s28
    %p37 = scmp.eq.s32.totalorder %s20, 1
    %p38 = por %p36, %p37
    %p39 = scmp.ne.s32.totalorder %s28, %s29
    %p40 = scmp.eq.s32.totalorder %s20, 0
    %p41 = por %p39, %p40
    %p42 = scmp.ne.s32.totalorder %s28, %s29
    %p43 = scmp.eq.s32.totalorder %s21, 1
    %p44 = por %p42, %p43
    %p46 = scmp.ne.s32.totalorder %s29, %s45
    %p47 = scmp.eq.s32.totalorder %s21, 0
    %p48 = por %p46, %p47
    %s50 = sadd.s32 %s49, 1
    %p53 = scmp.eq.s32.totalorder %s15, 1
    %p54 = scmp.ne.s32.totalorder %s49, %s51
    %p55 = scmp.eq.s32.totalorder %s15, 0
    %p56 = por %p54, %p55
    %p57 = scmp.ne.s32.totalorder %s49, %s51
    %p58 = scmp.eq.s32.totalorder %s20, 1
    %p59 = por %p57, %p58
    %p60 = scmp.ne.s32.totalorder %s51, %s52
    %p61 = scmp.eq.s32.totalorder %s20, 0
    %p62 = por %p60, %p61
    %p63 = scmp.ne.s32.totalorder %s51, %s52
    %p64 = scmp.eq.s32.totalorder %s21, 1
    %p65 = por %p63, %p64
    %p67 = scmp.ne.s32.totalorder %s52, %s66
    %p68 = scmp.eq.s32.totalorder %s21, 0
    %p69 = por %p67, %p68
    %s71 = sadd.s32 %s70, 1
    %p74 = scmp.eq.s32.totalorder %s15, 1
    %p75 = scmp.ne.s32.totalorder %s70, %s72
    %p76 = scmp.eq.s32.totalorder %s15, 0
    %p77 = por %p75, %p76
    %p78 = scmp.ne.s32.totalorder %s70, %s72
    %p79 = scmp.eq.s32.totalorder %s20, 1
    %p80 = por %p78, %p79
    %p81 = scmp.ne.s32.totalorder %s72, %s73
    %p82 = scmp.eq.s32.totalorder %s20, 0
    %p83 = por %p81, %p82
    %p84 = scmp.ne.s32.totalorder %s72, %s73
    %p85 = scmp.eq.s32.totalorder %s21, 1
    %p86 = por %p84, %p85
    %p88 = scmp.ne.s32.totalorder %s73, %s87
    %p89 = scmp.eq.s32.totalorder %s21, 0
    %p90 = por %p88, %p89
    %s92 = sadd.s32 %s91, 1
    %p95 = scmp.eq.s32.totalorder %s15, 1
    %p96 = scmp.ne.s32.totalorder %s91, %s93
    %p97 = scmp.eq.s32.totalorder %s15, 0
    %p98 = por %p96, %p97
    %p99 = scmp.ne.s32.totalorder %s91, %s93
    %p100 = scmp.eq.s32.totalorder %s20, 1
    %p101 = por %p99, %p100
    %p102 = scmp.ne.s32.totalorder %s93, %s94
    %p103 = scmp.eq.s32.totalorder %s20, 0
    %p104 = por %p102, %p103
    %p105 = scmp.ne.s32.totalorder %s93, %s94
    %p106 = scmp.eq.s32.totalorder %s21, 1
    %p107 = por %p105, %p106
    %p109 = scmp.ne.s32.totalorder %s94, %s108
    %p110 = scmp.eq.s32.totalorder %s21, 0
    %p111 = por %p109, %p110
    %s113 = sadd.s32 %s112, 1
    %p116 = scmp.eq.s32.totalorder %s15, 1
    %p117 = scmp.ne.s32.totalorder %s112, %s114
    %p118 = scmp.eq.s32.totalorder %s15, 0
    %p119 = por %p117, %p118
    %p120 = scmp.ne.s32.totalorder %s112, %s114
    %p121 = scmp.eq.s32.totalorder %s20, 1
    %p122 = por %p120, %p121
    %p123 = scmp.ne.s32.totalorder %s114, %s115
    %p124 = scmp.eq.s32.totalorder %s20, 0
    %p125 = por %p123, %p124
    %p126 = scmp.ne.s32.totalorder %s114, %s115
    %p127 = scmp.eq.s32.totalorder %s21, 1
    %p128 = por %p126, %p127
    %p130 = scmp.ne.s32.totalorder %s115, %s129
    %p131 = scmp.eq.s32.totalorder %s21, 0
    %p132 = por %p130, %p131
    %s134 = sadd.s32 %s133, 1
    %p137 = scmp.eq.s32.totalorder %s15, 1
    %p138 = scmp.ne.s32.totalorder %s133, %s135
    %p139 = scmp.eq.s32.totalorder %s15, 0
    %p140 = por %p138, %p139
    %p141 = scmp.ne.s32.totalorder %s133, %s135
    %p142 = scmp.eq.s32.totalorder %s20, 1
    %p143 = por %p141, %p142
    %p144 = scmp.ne.s32.totalorder %s135, %s136
    %p145 = scmp.eq.s32.totalorder %s20, 0
    %p146 = por %p144, %p145
    %p147 = scmp.ne.s32.totalorder %s135, %s136
    %p148 = scmp.eq.s32.totalorder %s21, 1
    %p149 = por %p147, %p148
    %p151 = scmp.ne.s32.totalorder %s136, %s150
    %p152 = scmp.eq.s32.totalorder %s21, 0
    %p153 = por %p151, %p152
    %s155 = sadd.s32 %s154, 1
    %p158 = scmp.eq.s32.totalorder %s15, 1
    %p159 = scmp.ne.s32.totalorder %s154, %s156
    %p160 = scmp.eq.s32.totalorder %s15, 0
    %p161 = por %p159, %p160
    %p162 = scmp.ne.s32.totalorder %s154, %s156
    %p163 = scmp.eq.s32.totalorder %s20, 1
    %p164 = por %p162, %p163
    %p165 = scmp.ne.s32.totalorder %s156, %s157
    %p166 = scmp.eq.s32.totalorder %s20, 0
    %p167 = por %p165, %p166
    %p168 = scmp.ne.s32.totalorder %s156, %s157
    %p169 = scmp.eq.s32.totalorder %s21, 1
    %p170 = por %p168, %p169
    %p172 = scmp.ne.s32.totalorder %s157, %s171
    %p173 = scmp.eq.s32.totalorder %s21, 0
    %p174 = por %p172, %p173
    %s176 = sadd.s32 %s175, 1
    %p179 = scmp.eq.s32.totalorder %s15, 1
    %p180 = scmp.ne.s32.totalorder %s175, %s177
    %p181 = scmp.eq.s32.totalorder %s15, 0
    %p182 = por %p180, %p181
    %p183 = scmp.ne.s32.totalorder %s175, %s177
    %p184 = scmp.eq.s32.totalorder %s20, 1
    %p185 = por %p183, %p184
    %p186 = scmp.ne.s32.totalorder %s177, %s178
    %p187 = scmp.eq.s32.totalorder %s20, 0
    %p188 = por %p186, %p187
    %p189 = scmp.ne.s32.totalorder %s177, %s178
    %p190 = scmp.eq.s32.totalorder %s21, 1
    %p191 = por %p189, %p190
    %p193 = scmp.ne.s32.totalorder %s178, %s192
    %p194 = scmp.eq.s32.totalorder %s21, 0
    %p195 = por %p193, %p194
    %s197 = sadd.s32 %s196, 1
    %p200 = scmp.eq.s32.totalorder %s15, 1
    %p201 = scmp.ne.s32.totalorder %s196, %s198
    %p202 = scmp.eq.s32.totalorder %s15, 0
    %p203 = por %p201, %p202
    %p204 = scmp.ne.s32.totalorder %s196, %s198
    %p205 = scmp.eq.s32.totalorder %s20, 1
    %p206 = por %p204, %p205
    %p207 = scmp.ne.s32.totalorder %s198, %s199
    %p208 = scmp.eq.s32.totalorder %s20, 0
    %p209 = por %p207, %p208
    %p210 = scmp.ne.s32.totalorder %s198, %s199
    %p211 = scmp.eq.s32.totalorder %s21, 1
    %p212 = por %p210, %p211
    %p214 = scmp.ne.s32.totalorder %s199, %s213
    %p215 = scmp.eq.s32.totalorder %s21, 0
    %p216 = por %p214, %p215
    %s217 = ssub.s32 %s15, %s22
    %p218 = scmp.eq.s32.totalorder %s217, 0
    %s220 = sadd.s32 %s219, 1
    %s221 = scalar_select %p218, %s219, %s220
    %p224 = pneg %p218
    %p225 = scmp.eq.s32.totalorder %s15, 1
    %p226 = por %p224, %p225
    %p227 = scmp.ne.s32.totalorder %s219, %s222
    %p228 = scmp.eq.s32.totalorder %s15, 0
    %p229 = por %p227, %p228
    %p230 = scmp.ne.s32.totalorder %s219, %s222
    %p231 = scmp.eq.s32.totalorder %s20, 1
    %p232 = por %p230, %p231
    %p233 = scmp.ne.s32.totalorder %s222, %s223
    %p234 = scmp.eq.s32.totalorder %s20, 0
    %p235 = por %p233, %p234
    %p236 = scmp.ne.s32.totalorder %s222, %s223
    %p237 = scmp.eq.s32.totalorder %s21, 1
    %p238 = por %p236, %p237
    %p240 = scmp.ne.s32.totalorder %s223, %s239
    %p241 = scmp.eq.s32.totalorder %s21, 0
    %p242 = por %p240, %p241
    %p243 = scmp.le.s32.totalorder 1, %s15
    %p244 = scmp.lt.s32.totalorder %s15, 3
    %p245 = pnand %p243, %p244
    %p246 = pneg %p245
    // Predicated region
    $region9: #{tpu_custom_call.1} parent=5 // pred_check
      _
    $region10: #{tpu_custom_call.1} parent=5 // pred_check_branch
      %248 = sbr.rel (%p245) target = $region12
    $region11: #{tpu_custom_call.1} parent=5 // pred_region
      %s249 = ssub.s32 %s15, 1
      // Predicated region
      $region13: #{tpu_custom_call.1} parent=11 // pred_check
        %p250 = pneg %p62
      $region14: #{tpu_custom_call.1} parent=11 // pred_check_branch
        %252 = sbr.rel (%p250) target = $region16
      $region15: #{tpu_custom_call.1} parent=11 // pred_region
        _
      $region16: #{tpu_custom_call.1} parent=11 // pred_fallthru
        _
      // Predicated region
      $region17: #{tpu_custom_call.1} parent=11 // pred_check
        %p253 = pneg %p83
      $region18: #{tpu_custom_call.1} parent=11 // pred_check_branch
        %255 = sbr.rel (%p253) target = $region20
      $region19: #{tpu_custom_call.1} parent=11 // pred_region
        _
      $region20: #{tpu_custom_call.1} parent=11 // pred_fallthru
        _
      // Predicated region
      $region21: #{tpu_custom_call.1} parent=11 // pred_check
        %p256 = pneg %p104
      $region22: #{tpu_custom_call.1} parent=11 // pred_check_branch
        %258 = sbr.rel (%p256) target = $region24
      $region23: #{tpu_custom_call.1} parent=11 // pred_region
        _
      $region24: #{tpu_custom_call.1} parent=11 // pred_fallthru
        _
      // Predicated region
      $region25: #{tpu_custom_call.1} parent=11 // pred_check
        %p259 = pneg %p125
      $region26: #{tpu_custom_call.1} parent=11 // pred_check_branch
        %261 = sbr.rel (%p259) target = $region28
      $region27: #{tpu_custom_call.1} parent=11 // pred_region
        _
      $region28: #{tpu_custom_call.1} parent=11 // pred_fallthru
        _
      // Predicated region
      $region29: #{tpu_custom_call.1} parent=11 // pred_check
        %p262 = pneg %p146
      $region30: #{tpu_custom_call.1} parent=11 // pred_check_branch
        %264 = sbr.rel (%p262) target = $region32
      $region31: #{tpu_custom_call.1} parent=11 // pred_region
        _
      $region32: #{tpu_custom_call.1} parent=11 // pred_fallthru
        _
      // Predicated region
      $region33: #{tpu_custom_call.1} parent=11 // pred_check
        %p265 = pneg %p167
      $region34: #{tpu_custom_call.1} parent=11 // pred_check_branch
        %267 = sbr.rel (%p265) target = $region36
      $region35: #{tpu_custom_call.1} parent=11 // pred_region
        _
      $region36: #{tpu_custom_call.1} parent=11 // pred_fallthru
        _
      // Predicated region
      $region37: #{tpu_custom_call.1} parent=11 // pred_check
        %p268 = pneg %p188
      $region38: #{tpu_custom_call.1} parent=11 // pred_check_branch
        %270 = sbr.rel (%p268) target = $region40
      $region39: #{tpu_custom_call.1} parent=11 // pred_region
        _
      $region40: #{tpu_custom_call.1} parent=11 // pred_fallthru
        _
      // Predicated region
      $region41: #{tpu_custom_call.1} parent=11 // pred_check
        %p271 = pneg %p209
      $region42: #{tpu_custom_call.1} parent=11 // pred_check_branch
        %273 = sbr.rel (%p271) target = $region44
      $region43: #{tpu_custom_call.1} parent=11 // pred_region
        _
      $region44: #{tpu_custom_call.1} parent=11 // pred_fallthru
        _
    $region12: #{tpu_custom_call.1} parent=5 // pred_fallthru
      _
    %p274 = scmp.lt.s32.totalorder %s15, 2
    // Predicated region
    $region45: #{tpu_custom_call.1} parent=5 // pred_check
      %p275 = pneg %p274
    $region46: #{tpu_custom_call.1} parent=5 // pred_check_branch
      %277 = sbr.rel (%p275) target = $region48
    $region47: #{tpu_custom_call.1} parent=5 // pred_region
      // Predicated region
      $region49: #{tpu_custom_call.1} parent=47 // pred_check
        %p278 = pneg %p35
      $region50: #{tpu_custom_call.1} parent=47 // pred_check_branch
        %280 = sbr.rel (%p278) target = $region52
      $region51: #{tpu_custom_call.1} parent=47 // pred_region
        %s281 = smul.u32 4, %s15
        %p282 = scmp.lt.s32.totalorder %s281, 7
        %s283 = scalar_select %p282, %s281, 7
        %s284 = smul.addr %s283, 9
        %s285 = smul.addr %s284, 8
        %s286 = scalar_lea.vmem %s0, %s285
        %s287 = smul.u32 4, %s15
      $region52: #{tpu_custom_call.1} parent=47 // pred_fallthru
        _
    $region48: #{tpu_custom_call.1} parent=5 // pred_fallthru
      _
    %p288 = scmp.le.s32.totalorder 1, %s15
    %p289 = scmp.lt.s32.totalorder %s15, 3
    %p290 = pnand %p288, %p289
    %p291 = pneg %p290
    // Predicated region
    $region53: #{tpu_custom_call.1} parent=5 // pred_check
      _
    $region54: #{tpu_custom_call.1} parent=5 // pred_check_branch
      %293 = sbr.rel (%p290) target = $region56
    $region55: #{tpu_custom_call.1} parent=5 // pred_region
      %s294 = ssub.s32 %s15, 1
      %s295 = smul.u32 4, %s20
      %p296 = scmp.lt.s32.totalorder %s295, 7
      %s297 = scalar_select %p296, %s295, 7
      %s298 = smul.addr %s297, 9
      %s299 = smul.addr %s298, 8
      %s300 = scalar_lea.vmem %s0, %s299
      %p301 = pneg %p41
      %p302 = pneg %p38
      %p303 = pneg %p62
      %p304 = pneg %p59
      %p305 = pneg %p83
      %p306 = pneg %p80
      %p307 = pneg %p104
      %p308 = pneg %p101
      %p309 = pneg %p125
      %p310 = pneg %p122
      %p311 = pneg %p146
      %p312 = pneg %p143
      %p313 = pneg %p167
      %p314 = pneg %p164
      %p315 = pneg %p188
      %p316 = pneg %p185
      %p317 = pneg %p209
      %p318 = pneg %p206
      %p319 = pneg %p235
      %p320 = pneg %p232
      %s321 = smul.u32 4, %s20
      %p322 = scmp.lt.s32.totalorder %s321, 7
      %s323 = scalar_select %p322, %s321, 7
      %s324 = smul.addr %s323, 9
      %s325 = smul.addr %s324, 8
      %s326 = scalar_lea.vmem %s9, %s325
      %s327 = smul.u32 4, %s20
      %p328 = scmp.lt.s32.totalorder %s327, 7
      %s329 = scalar_select %p328, %s327, 7
      %s330 = smul.addr %s329, 9
      %s331 = smul.addr %s330, 8
      %s332 = scalar_lea.vmem %s0, %s331
      %s333 = smul.u32 4, %s20
      %s334 = smul.u32 4, %s20
      %p335 = scmp.lt.s32.totalorder %s334, 7
      %s336 = scalar_select %p335, %s334, 7
      %s337 = smul.addr %s336, 9
      %s338 = smul.addr %s337, 8
      %s339 = scalar_lea.vmem %s9, %s338
      %s340 = smul.u32 4, %s20
      %v342 = vld [vmem:[%s332] sm:$0xff]
      %v343 = vld [vmem:[%s332 + $0x8] sm:$0xff]
      %v344 = vld [vmem:[%s332 + $0x10] sm:$0xff]
      %v345 = vld [vmem:[%s332 + $0x18] sm:$0xff]
      %v346 = vld [vmem:[%s332 + $0x20] sm:$0xff]
      %v347 = vld [vmem:[%s332 + $0x28] sm:$0xff]
      %v348 = vld [vmem:[%s332 + $0x30] sm:$0xff]
      %v349 = vld [vmem:[%s332 + $0x38] sm:$0xff]
      %v350 = vld [vmem:[%s332 + $0x40] sm:$0xff]
      %v351 = vld [vmem:[%s332 + $0x48] sm:$0xff]
      %v352 = vld [vmem:[%s332 + $0x50] sm:$0xff]
      %v353 = vld [vmem:[%s332 + $0x58] sm:$0xff]
      %v354 = vld [vmem:[%s332 + $0x60] sm:$0xff]
      %v355 = vld [vmem:[%s332 + $0x68] sm:$0xff]
      %v356 = vld [vmem:[%s332 + $0x70] sm:$0xff]
      %v357 = vld [vmem:[%s332 + $0x78] sm:$0xff]
      %v358 = vld [vmem:[%s332 + $0x80] sm:$0xff]
      %v359 = vld [vmem:[%s332 + $0x88] sm:$0xff]
      %v360 = vld [vmem:[%s332 + $0x90] sm:$0xff]
      %v361 = vld [vmem:[%s332 + $0x98] sm:$0xff]
      %v362 = vld [vmem:[%s332 + $0xa0] sm:$0xff]
      %v363 = vld [vmem:[%s332 + $0xa8] sm:$0xff]
      %v364 = vld [vmem:[%s332 + $0xb0] sm:$0xff]
      %v365 = vld [vmem:[%s332 + $0xb8] sm:$0xff]
      %v366 = vld [vmem:[%s332 + $0xc0] sm:$0xff]
      %v367 = vld [vmem:[%s332 + $0xc8] sm:$0xff]
      %v368 = vld [vmem:[%s332 + $0xd0] sm:$0xff]
      %v369 = vld [vmem:[%s332 + $0xd8] sm:$0xff]
      %v370 = vld [vmem:[%s332 + $0xe0] sm:$0xff]
      %v371 = vld [vmem:[%s332 + $0xe8] sm:$0xff]
      %v372 = vld [vmem:[%s332 + $0xf0] sm:$0xff]
      %v373 = vld [vmem:[%s332 + $0xf8] sm:$0xff]
      %v374 = vld [vmem:[%s332 + $0x100] sm:$0xff]
      %v375 = vld [vmem:[%s332 + $0x108] sm:$0xff]
      %v376 = vld [vmem:[%s332 + $0x110] sm:$0xff]
      %v377 = vld [vmem:[%s332 + $0x118] sm:$0xff]
      %vm378 = vcmask 523264
      %v379 = vsel %vm378, %v342, 0.0
      %380 = vadd.xlane.f32.xlu0 %v379
      %v381 = vpop.xlane.xlu0 %380
      %v382 = vsel %vm378, %v343, 0.0
      %383 = vadd.xlane.f32.xlu0 %v382
      %v384 = vpop.xlane.xlu0 %383
      %v385 = vsel %vm378, %v344, 0.0
      %386 = vadd.xlane.f32.xlu0 %v385
      %v387 = vpop.xlane.xlu0 %386
      %v388 = vsel %vm378, %v345, 0.0
      %389 = vadd.xlane.f32.xlu0 %v388
      %v390 = vpop.xlane.xlu0 %389
      %v391 = vsel %vm378, %v346, 0.0
      %392 = vadd.xlane.f32.xlu0 %v391
      %v393 = vpop.xlane.xlu0 %392
      %v394 = vsel %vm378, %v347, 0.0
      %395 = vadd.xlane.f32.xlu0 %v394
      %v396 = vpop.xlane.xlu0 %395
      %v397 = vsel %vm378, %v348, 0.0
      %398 = vadd.xlane.f32.xlu0 %v397
      %v399 = vpop.xlane.xlu0 %398
      %v400 = vsel %vm378, %v349, 0.0
      %401 = vadd.xlane.f32.xlu0 %v400
      %v402 = vpop.xlane.xlu0 %401
      %v403 = vsel %vm378, %v350, 0.0
      %404 = vadd.xlane.f32.xlu0 %v403
      %v405 = vpop.xlane.xlu0 %404
      %v406 = vsel %vm378, %v351, 0.0
      %407 = vadd.xlane.f32.xlu0 %v406
      %v408 = vpop.xlane.xlu0 %407
      %v409 = vsel %vm378, %v352, 0.0
      %410 = vadd.xlane.f32.xlu0 %v409
      %v411 = vpop.xlane.xlu0 %410
      %v412 = vsel %vm378, %v353, 0.0
      %413 = vadd.xlane.f32.xlu0 %v412
      %v414 = vpop.xlane.xlu0 %413
      %v415 = vsel %vm378, %v354, 0.0
      %416 = vadd.xlane.f32.xlu0 %v415
      %v417 = vpop.xlane.xlu0 %416
      %v418 = vsel %vm378, %v355, 0.0
      %419 = vadd.xlane.f32.xlu0 %v418
      %v420 = vpop.xlane.xlu0 %419
      %v421 = vsel %vm378, %v356, 0.0
      %422 = vadd.xlane.f32.xlu0 %v421
      %v423 = vpop.xlane.xlu0 %422
      %v424 = vsel %vm378, %v357, 0.0
      %425 = vadd.xlane.f32.xlu0 %v424
      %v426 = vpop.xlane.xlu0 %425
      %v427 = vsel %vm378, %v358, 0.0
      %428 = vadd.xlane.f32.xlu0 %v427
      %v429 = vpop.xlane.xlu0 %428
      %v430 = vsel %vm378, %v359, 0.0
      %431 = vadd.xlane.f32.xlu0 %v430
      %v432 = vpop.xlane.xlu0 %431
      %v433 = vsel %vm378, %v360, 0.0
      %434 = vadd.xlane.f32.xlu0 %v433
      %v435 = vpop.xlane.xlu0 %434
      %v436 = vsel %vm378, %v361, 0.0
      %437 = vadd.xlane.f32.xlu0 %v436
      %v438 = vpop.xlane.xlu0 %437
      %v439 = vsel %vm378, %v362, 0.0
      %440 = vadd.xlane.f32.xlu0 %v439
      %v441 = vpop.xlane.xlu0 %440
      %v442 = vsel %vm378, %v363, 0.0
      %443 = vadd.xlane.f32.xlu0 %v442
      %v444 = vpop.xlane.xlu0 %443
      %v445 = vsel %vm378, %v364, 0.0
      %446 = vadd.xlane.f32.xlu0 %v445
      %v447 = vpop.xlane.xlu0 %446
      %v448 = vsel %vm378, %v365, 0.0
      %449 = vadd.xlane.f32.xlu0 %v448
      %v450 = vpop.xlane.xlu0 %449
      %v451 = vsel %vm378, %v366, 0.0
      %452 = vadd.xlane.f32.xlu0 %v451
      %v453 = vpop.xlane.xlu0 %452
      %v454 = vsel %vm378, %v367, 0.0
      %455 = vadd.xlane.f32.xlu0 %v454
      %v456 = vpop.xlane.xlu0 %455
      %v457 = vsel %vm378, %v368, 0.0
      %458 = vadd.xlane.f32.xlu0 %v457
      %v459 = vpop.xlane.xlu0 %458
      %v460 = vsel %vm378, %v369, 0.0
      %461 = vadd.xlane.f32.xlu0 %v460
      %v462 = vpop.xlane.xlu0 %461
      %v463 = vsel %vm378, %v370, 0.0
      %464 = vadd.xlane.f32.xlu0 %v463
      %v465 = vpop.xlane.xlu0 %464
      %v466 = vsel %vm378, %v371, 0.0
      %467 = vadd.xlane.f32.xlu0 %v466
      %v468 = vpop.xlane.xlu0 %467
      %v469 = vsel %vm378, %v372, 0.0
      %470 = vadd.xlane.f32.xlu0 %v469
      %v471 = vpop.xlane.xlu0 %470
      %v472 = vsel %vm378, %v373, 0.0
      %473 = vadd.xlane.f32.xlu0 %v472
      %v474 = vpop.xlane.xlu0 %473
      %v475 = vsel %vm378, %v374, 0.0
      %476 = vadd.xlane.f32.xlu0 %v475
      %v477 = vpop.xlane.xlu0 %476
      %v478 = vsel %vm378, %v375, 0.0
      %479 = vadd.xlane.f32.xlu0 %v478
      %v480 = vpop.xlane.xlu0 %479
      %v481 = vsel %vm378, %v376, 0.0
      %482 = vadd.xlane.f32.xlu0 %v481
      %v483 = vpop.xlane.xlu0 %482
      %v484 = vsel %vm378, %v377, 0.0
      %485 = vadd.xlane.f32.xlu0 %v484
      %v486 = vpop.xlane.xlu0 %485
      %v487 = vrcp.pop 64.0
      %v488 = vmul.f32 %v381, %v487
      %v489 = vmul.f32 %v384, %v487
      %v490 = vmul.f32 %v387, %v487
      %v491 = vmul.f32 %v390, %v487
      %v492 = vmul.f32 %v393, %v487
      %v493 = vmul.f32 %v396, %v487
      %v494 = vmul.f32 %v399, %v487
      %v495 = vmul.f32 %v402, %v487
      %v496 = vmul.f32 %v405, %v487
      %v497 = vmul.f32 %v408, %v487
      %v498 = vmul.f32 %v411, %v487
      %v499 = vmul.f32 %v414, %v487
      %v500 = vmul.f32 %v417, %v487
      %v501 = vmul.f32 %v420, %v487
      %v502 = vmul.f32 %v423, %v487
      %v503 = vmul.f32 %v426, %v487
      %v504 = vmul.f32 %v429, %v487
      %v505 = vmul.f32 %v432, %v487
      %v506 = vmul.f32 %v435, %v487
      %v507 = vmul.f32 %v438, %v487
      %v508 = vmul.f32 %v441, %v487
      %v509 = vmul.f32 %v444, %v487
      %v510 = vmul.f32 %v447, %v487
      %v511 = vmul.f32 %v450, %v487
      %v512 = vmul.f32 %v453, %v487
      %v513 = vmul.f32 %v456, %v487
      %v514 = vmul.f32 %v459, %v487
      %v515 = vmul.f32 %v462, %v487
      %v516 = vmul.f32 %v465, %v487
      %v517 = vmul.f32 %v468, %v487
      %v518 = vmul.f32 %v471, %v487
      %v519 = vmul.f32 %v474, %v487
      %v520 = vmul.f32 %v477, %v487
      %v521 = vmul.f32 %v480, %v487
      %v522 = vmul.f32 %v483, %v487
      %v523 = vmul.f32 %v486, %v487
      %v524 = vsub.f32 %v342, %v488
      %v525 = vsub.f32 %v343, %v489
      %v526 = vsub.f32 %v344, %v490
      %v527 = vsub.f32 %v345, %v491
      %v528 = vsub.f32 %v346, %v492
      %v529 = vsub.f32 %v347, %v493
      %v530 = vsub.f32 %v348, %v494
      %v531 = vsub.f32 %v349, %v495
      %v532 = vsub.f32 %v350, %v496
      %v533 = vsub.f32 %v351, %v497
      %v534 = vsub.f32 %v352, %v498
      %v535 = vsub.f32 %v353, %v499
      %v536 = vsub.f32 %v354, %v500
      %v537 = vsub.f32 %v355, %v501
      %v538 = vsub.f32 %v356, %v502
      %v539 = vsub.f32 %v357, %v503
      %v540 = vsub.f32 %v358, %v504
      %v541 = vsub.f32 %v359, %v505
      %v542 = vsub.f32 %v360, %v506
      %v543 = vsub.f32 %v361, %v507
      %v544 = vsub.f32 %v362, %v508
      %v545 = vsub.f32 %v363, %v509
      %v546 = vsub.f32 %v364, %v510
      %v547 = vsub.f32 %v365, %v511
      %v548 = vsub.f32 %v366, %v512
      %v549 = vsub.f32 %v367, %v513
      %v550 = vsub.f32 %v368, %v514
      %v551 = vsub.f32 %v369, %v515
      %v552 = vsub.f32 %v370, %v516
      %v553 = vsub.f32 %v371, %v517
      %v554 = vsub.f32 %v372, %v518
      %v555 = vsub.f32 %v373, %v519
      %v556 = vsub.f32 %v374, %v520
      %v557 = vsub.f32 %v375, %v521
      %v558 = vsub.f32 %v376, %v522
      %v559 = vsub.f32 %v377, %v523
      %v560 = vmul.f32 %v524, %v524
      %v561 = vmul.f32 %v525, %v525
      %v562 = vmul.f32 %v526, %v526
      %v563 = vmul.f32 %v527, %v527
      %v564 = vmul.f32 %v528, %v528
      %v565 = vmul.f32 %v529, %v529
      %v566 = vmul.f32 %v530, %v530
      %v567 = vmul.f32 %v531, %v531
      %v568 = vmul.f32 %v532, %v532
      %v569 = vmul.f32 %v533, %v533
      %v570 = vmul.f32 %v534, %v534
      %v571 = vmul.f32 %v535, %v535
      %v572 = vmul.f32 %v536, %v536
      %v573 = vmul.f32 %v537, %v537
      %v574 = vmul.f32 %v538, %v538
      %v575 = vmul.f32 %v539, %v539
      %v576 = vmul.f32 %v540, %v540
      %v577 = vmul.f32 %v541, %v541
      %v578 = vmul.f32 %v542, %v542
      %v579 = vmul.f32 %v543, %v543
      %v580 = vmul.f32 %v544, %v544
      %v581 = vmul.f32 %v545, %v545
      %v582 = vmul.f32 %v546, %v546
      %v583 = vmul.f32 %v547, %v547
      %v584 = vmul.f32 %v548, %v548
      %v585 = vmul.f32 %v549, %v549
      %v586 = vmul.f32 %v550, %v550
      %v587 = vmul.f32 %v551, %v551
      %v588 = vmul.f32 %v552, %v552
      %v589 = vmul.f32 %v553, %v553
      %v590 = vmul.f32 %v554, %v554
      %v591 = vmul.f32 %v555, %v555
      %v592 = vmul.f32 %v556, %v556
      %v593 = vmul.f32 %v557, %v557
      %v594 = vmul.f32 %v558, %v558
      %v595 = vmul.f32 %v559, %v559
      %v596 = vsel %vm378, %v560, 0.0
      %597 = vadd.xlane.f32.xlu0 %v596
      %v598 = vpop.xlane.xlu0 %597
      %v599 = vsel %vm378, %v561, 0.0
      %600 = vadd.xlane.f32.xlu0 %v599
      %v601 = vpop.xlane.xlu0 %600
      %v602 = vsel %vm378, %v562, 0.0
      %603 = vadd.xlane.f32.xlu0 %v602
      %v604 = vpop.xlane.xlu0 %603
      %v605 = vsel %vm378, %v563, 0.0
      %606 = vadd.xlane.f32.xlu0 %v605
      %v607 = vpop.xlane.xlu0 %606
      %v608 = vsel %vm378, %v564, 0.0
      %609 = vadd.xlane.f32.xlu0 %v608
      %v610 = vpop.xlane.xlu0 %609
      %v611 = vsel %vm378, %v565, 0.0
      %612 = vadd.xlane.f32.xlu0 %v611
      %v613 = vpop.xlane.xlu0 %612
      %v614 = vsel %vm378, %v566, 0.0
      %615 = vadd.xlane.f32.xlu0 %v614
      %v616 = vpop.xlane.xlu0 %615
      %v617 = vsel %vm378, %v567, 0.0
      %618 = vadd.xlane.f32.xlu0 %v617
      %v619 = vpop.xlane.xlu0 %618
      %v620 = vsel %vm378, %v568, 0.0
      %621 = vadd.xlane.f32.xlu0 %v620
      %v622 = vpop.xlane.xlu0 %621
      %v623 = vsel %vm378, %v569, 0.0
      %624 = vadd.xlane.f32.xlu0 %v623
      %v625 = vpop.xlane.xlu0 %624
      %v626 = vsel %vm378, %v570, 0.0
      %627 = vadd.xlane.f32.xlu0 %v626
      %v628 = vpop.xlane.xlu0 %627
      %v629 = vsel %vm378, %v571, 0.0
      %630 = vadd.xlane.f32.xlu0 %v629
      %v631 = vpop.xlane.xlu0 %630
      %v632 = vsel %vm378, %v572, 0.0
      %633 = vadd.xlane.f32.xlu0 %v632
      %v634 = vpop.xlane.xlu0 %633
      %v635 = vsel %vm378, %v573, 0.0
      %636 = vadd.xlane.f32.xlu0 %v635
      %v637 = vpop.xlane.xlu0 %636
      %v638 = vsel %vm378, %v574, 0.0
      %639 = vadd.xlane.f32.xlu0 %v638
      %v640 = vpop.xlane.xlu0 %639
      %v641 = vsel %vm378, %v575, 0.0
      %642 = vadd.xlane.f32.xlu0 %v641
      %v643 = vpop.xlane.xlu0 %642
      %v644 = vsel %vm378, %v576, 0.0
      %645 = vadd.xlane.f32.xlu0 %v644
      %v646 = vpop.xlane.xlu0 %645
      %v647 = vsel %vm378, %v577, 0.0
      %648 = vadd.xlane.f32.xlu0 %v647
      %v649 = vpop.xlane.xlu0 %648
      %v650 = vsel %vm378, %v578, 0.0
      %651 = vadd.xlane.f32.xlu0 %v650
      %v652 = vpop.xlane.xlu0 %651
      %v653 = vsel %vm378, %v579, 0.0
      %654 = vadd.xlane.f32.xlu0 %v653
      %v655 = vpop.xlane.xlu0 %654
      %v656 = vsel %vm378, %v580, 0.0
      %657 = vadd.xlane.f32.xlu0 %v656
      %v658 = vpop.xlane.xlu0 %657
      %v659 = vsel %vm378, %v581, 0.0
      %660 = vadd.xlane.f32.xlu0 %v659
      %v661 = vpop.xlane.xlu0 %660
      %v662 = vsel %vm378, %v582, 0.0
      %663 = vadd.xlane.f32.xlu0 %v662
      %v664 = vpop.xlane.xlu0 %663
      %v665 = vsel %vm378, %v583, 0.0
      %666 = vadd.xlane.f32.xlu0 %v665
      %v667 = vpop.xlane.xlu0 %666
      %v668 = vsel %vm378, %v584, 0.0
      %669 = vadd.xlane.f32.xlu0 %v668
      %v670 = vpop.xlane.xlu0 %669
      %v671 = vsel %vm378, %v585, 0.0
      %672 = vadd.xlane.f32.xlu0 %v671
      %v673 = vpop.xlane.xlu0 %672
      %v674 = vsel %vm378, %v586, 0.0
      %675 = vadd.xlane.f32.xlu0 %v674
      %v676 = vpop.xlane.xlu0 %675
      %v677 = vsel %vm378, %v587, 0.0
      %678 = vadd.xlane.f32.xlu0 %v677
      %v679 = vpop.xlane.xlu0 %678
      %v680 = vsel %vm378, %v588, 0.0
      %681 = vadd.xlane.f32.xlu0 %v680
      %v682 = vpop.xlane.xlu0 %681
      %v683 = vsel %vm378, %v589, 0.0
      %684 = vadd.xlane.f32.xlu0 %v683
      %v685 = vpop.xlane.xlu0 %684
      %v686 = vsel %vm378, %v590, 0.0
      %687 = vadd.xlane.f32.xlu0 %v686
      %v688 = vpop.xlane.xlu0 %687
      %v689 = vsel %vm378, %v591, 0.0
      %690 = vadd.xlane.f32.xlu0 %v689
      %v691 = vpop.xlane.xlu0 %690
      %v692 = vsel %vm378, %v592, 0.0
      %693 = vadd.xlane.f32.xlu0 %v692
      %v694 = vpop.xlane.xlu0 %693
      %v695 = vsel %vm378, %v593, 0.0
      %696 = vadd.xlane.f32.xlu0 %v695
      %v697 = vpop.xlane.xlu0 %696
      %v698 = vsel %vm378, %v594, 0.0
      %699 = vadd.xlane.f32.xlu0 %v698
      %v700 = vpop.xlane.xlu0 %699
      %v701 = vsel %vm378, %v595, 0.0
      %702 = vadd.xlane.f32.xlu0 %v701
      %v703 = vpop.xlane.xlu0 %702
      %v704 = vmul.f32 %v598, %v487
      %v705 = vmul.f32 %v601, %v487
      %v706 = vmul.f32 %v604, %v487
      %v707 = vmul.f32 %v607, %v487
      %v708 = vmul.f32 %v610, %v487
      %v709 = vmul.f32 %v613, %v487
      %v710 = vmul.f32 %v616, %v487
      %v711 = vmul.f32 %v619, %v487
      %v712 = vmul.f32 %v622, %v487
      %v713 = vmul.f32 %v625, %v487
      %v714 = vmul.f32 %v628, %v487
      %v715 = vmul.f32 %v631, %v487
      %v716 = vmul.f32 %v634, %v487
      %v717 = vmul.f32 %v637, %v487
      %v718 = vmul.f32 %v640, %v487
      %v719 = vmul.f32 %v643, %v487
      %v720 = vmul.f32 %v646, %v487
      %v721 = vmul.f32 %v649, %v487
      %v722 = vmul.f32 %v652, %v487
      %v723 = vmul.f32 %v655, %v487
      %v724 = vmul.f32 %v658, %v487
      %v725 = vmul.f32 %v661, %v487
      %v726 = vmul.f32 %v664, %v487
      %v727 = vmul.f32 %v667, %v487
      %v728 = vmul.f32 %v670, %v487
      %v729 = vmul.f32 %v673, %v487
      %v730 = vmul.f32 %v676, %v487
      %v731 = vmul.f32 %v679, %v487
      %v732 = vmul.f32 %v682, %v487
      %v733 = vmul.f32 %v685, %v487
      %v734 = vmul.f32 %v688, %v487
      %v735 = vmul.f32 %v691, %v487
      %v736 = vmul.f32 %v694, %v487
      %v737 = vmul.f32 %v697, %v487
      %v738 = vmul.f32 %v700, %v487
      %v739 = vmul.f32 %v703, %v487
      %v740 = vadd.f32 %v704, 1e-05
      %v741 = vadd.f32 %v705, 1e-05
      %v742 = vadd.f32 %v706, 1e-05
      %v743 = vadd.f32 %v707, 1e-05
      %v744 = vadd.f32 %v708, 1e-05
      %v745 = vadd.f32 %v709, 1e-05
      %v746 = vadd.f32 %v710, 1e-05
      %v747 = vadd.f32 %v711, 1e-05
      %v748 = vadd.f32 %v712, 1e-05
      %v749 = vadd.f32 %v713, 1e-05
      %v750 = vadd.f32 %v714, 1e-05
      %v751 = vadd.f32 %v715, 1e-05
      %v752 = vadd.f32 %v716, 1e-05
      %v753 = vadd.f32 %v717, 1e-05
      %v754 = vadd.f32 %v718, 1e-05
      %v755 = vadd.f32 %v719, 1e-05
      %v756 = vadd.f32 %v720, 1e-05
      %v757 = vadd.f32 %v721, 1e-05
      %v758 = vadd.f32 %v722, 1e-05
      %v759 = vadd.f32 %v723, 1e-05
      %v760 = vadd.f32 %v724, 1e-05
      %v761 = vadd.f32 %v725, 1e-05
      %v762 = vadd.f32 %v726, 1e-05
      %v763 = vadd.f32 %v727, 1e-05
      %v764 = vadd.f32 %v728, 1e-05
      %v765 = vadd.f32 %v729, 1e-05
      %v766 = vadd.f32 %v730, 1e-05
      %v767 = vadd.f32 %v731, 1e-05
      %v768 = vadd.f32 %v732, 1e-05
      %v769 = vadd.f32 %v733, 1e-05
      %v770 = vadd.f32 %v734, 1e-05
      %v771 = vadd.f32 %v735, 1e-05
      %v772 = vadd.f32 %v736, 1e-05
      %v773 = vadd.f32 %v737, 1e-05
      %v774 = vadd.f32 %v738, 1e-05
      %v775 = vadd.f32 %v739, 1e-05
      %v776 = vrsqrt.pop %v740
      %v777 = vrsqrt.pop %v741
      %v778 = vrsqrt.pop %v742
      %v779 = vrsqrt.pop %v743
      %v780 = vrsqrt.pop %v744
      %v781 = vrsqrt.pop %v745
      %v782 = vrsqrt.pop %v746
      %v783 = vrsqrt.pop %v747
      %v784 = vrsqrt.pop %v748
      %v785 = vrsqrt.pop %v749
      %v786 = vrsqrt.pop %v750
      %v787 = vrsqrt.pop %v751
      %v788 = vrsqrt.pop %v752
      %v789 = vrsqrt.pop %v753
      %v790 = vrsqrt.pop %v754
      %v791 = vrsqrt.pop %v755
      %v792 = vrsqrt.pop %v756
      %v793 = vrsqrt.pop %v757
      %v794 = vrsqrt.pop %v758
      %v795 = vrsqrt.pop %v759
      %v796 = vrsqrt.pop %v760
      %v797 = vrsqrt.pop %v761
      %v798 = vrsqrt.pop %v762
      %v799 = vrsqrt.pop %v763
      %v800 = vrsqrt.pop %v764
      %v801 = vrsqrt.pop %v765
      %v802 = vrsqrt.pop %v766
      %v803 = vrsqrt.pop %v767
      %v804 = vrsqrt.pop %v768
      %v805 = vrsqrt.pop %v769
      %v806 = vrsqrt.pop %v770
      %v807 = vrsqrt.pop %v771
      %v808 = vrsqrt.pop %v772
      %v809 = vrsqrt.pop %v773
      %v810 = vrsqrt.pop %v774
      %v811 = vrsqrt.pop %v775
      %v812 = vmul.f32 %v524, %v776
      %v813 = vmul.f32 %v525, %v777
      %v814 = vmul.f32 %v526, %v778
      %v815 = vmul.f32 %v527, %v779
      %v816 = vmul.f32 %v528, %v780
      %v817 = vmul.f32 %v529, %v781
      %v818 = vmul.f32 %v530, %v782
      %v819 = vmul.f32 %v531, %v783
      %v820 = vmul.f32 %v532, %v784
      %v821 = vmul.f32 %v533, %v785
      %v822 = vmul.f32 %v534, %v786
      %v823 = vmul.f32 %v535, %v787
      %v824 = vmul.f32 %v536, %v788
      %v825 = vmul.f32 %v537, %v789
      %v826 = vmul.f32 %v538, %v790
      %v827 = vmul.f32 %v539, %v791
      %v828 = vmul.f32 %v540, %v792
      %v829 = vmul.f32 %v541, %v793
      %v830 = vmul.f32 %v542, %v794
      %v831 = vmul.f32 %v543, %v795
      %v832 = vmul.f32 %v544, %v796
      %v833 = vmul.f32 %v545, %v797
      %v834 = vmul.f32 %v546, %v798
      %v835 = vmul.f32 %v547, %v799
      %v836 = vmul.f32 %v548, %v800
      %v837 = vmul.f32 %v549, %v801
      %v838 = vmul.f32 %v550, %v802
      %v839 = vmul.f32 %v551, %v803
      %v840 = vmul.f32 %v552, %v804
      %v841 = vmul.f32 %v553, %v805
      %v842 = vmul.f32 %v554, %v806
      %v843 = vmul.f32 %v555, %v807
      %v844 = vmul.f32 %v556, %v808
      %v845 = vmul.f32 %v557, %v809
      %v846 = vmul.f32 %v558, %v810
      %v847 = vmul.f32 %v559, %v811
      %v848 = vld [vmem:[%s1] sm:$0x1]
      %v850 = vlaneseq
      %v851 = vshrl.u32 %v850, 7
      %v852 = vsub.s32 0, %v851
      %v853 = vrot.slane %v848, %v852
      %v855 = vmul.f32 %v812, %v853
      %v856 = vmul.f32 %v813, %v853
      %v857 = vmul.f32 %v814, %v853
      %v858 = vmul.f32 %v815, %v853
      %v859 = vmul.f32 %v816, %v853
      %v860 = vmul.f32 %v817, %v853
      %v861 = vmul.f32 %v818, %v853
      %v862 = vmul.f32 %v819, %v853
      %v863 = vmul.f32 %v820, %v853
      %v864 = vmul.f32 %v821, %v853
      %v865 = vmul.f32 %v822, %v853
      %v866 = vmul.f32 %v823, %v853
      %v867 = vmul.f32 %v824, %v853
      %v868 = vmul.f32 %v825, %v853
      %v869 = vmul.f32 %v826, %v853
      %v870 = vmul.f32 %v827, %v853
      %v871 = vmul.f32 %v828, %v853
      %v872 = vmul.f32 %v829, %v853
      %v873 = vmul.f32 %v830, %v853
      %v874 = vmul.f32 %v831, %v853
      %v875 = vmul.f32 %v832, %v853
      %v876 = vmul.f32 %v833, %v853
      %v877 = vmul.f32 %v834, %v853
      %v878 = vmul.f32 %v835, %v853
      %v879 = vmul.f32 %v836, %v853
      %v880 = vmul.f32 %v837, %v853
      %v881 = vmul.f32 %v838, %v853
      %v882 = vmul.f32 %v839, %v853
      %v883 = vmul.f32 %v840, %v853
      %v884 = vmul.f32 %v841, %v853
      %v885 = vmul.f32 %v842, %v853
      %v886 = vmul.f32 %v843, %v853
      %v887 = vmul.f32 %v844, %v853
      %v888 = vmul.f32 %v845, %v853
      %v889 = vmul.f32 %v846, %v853
      %v890 = vmul.f32 %v847, %v853
      %v891 = vld [vmem:[%s2] sm:$0x1]
      %v893 = vlaneseq
      %v894 = vshrl.u32 %v893, 7
      %v895 = vsub.s32 0, %v894
      %v896 = vrot.slane %v891, %v895
      %v898 = vadd.f32 %v855, %v896
      %v899 = vadd.f32 %v856, %v896
      %v900 = vadd.f32 %v857, %v896
      %v901 = vadd.f32 %v858, %v896
      %v902 = vadd.f32 %v859, %v896
      %v903 = vadd.f32 %v860, %v896
      %v904 = vadd.f32 %v861, %v896
      %v905 = vadd.f32 %v862, %v896
      %v906 = vadd.f32 %v863, %v896
      %v907 = vadd.f32 %v864, %v896
      %v908 = vadd.f32 %v865, %v896
      %v909 = vadd.f32 %v866, %v896
      %v910 = vadd.f32 %v867, %v896
      %v911 = vadd.f32 %v868, %v896
      %v912 = vadd.f32 %v869, %v896
      %v913 = vadd.f32 %v870, %v896
      %v914 = vadd.f32 %v871, %v896
      %v915 = vadd.f32 %v872, %v896
      %v916 = vadd.f32 %v873, %v896
      %v917 = vadd.f32 %v874, %v896
      %v918 = vadd.f32 %v875, %v896
      %v919 = vadd.f32 %v876, %v896
      %v920 = vadd.f32 %v877, %v896
      %v921 = vadd.f32 %v878, %v896
      %v922 = vadd.f32 %v879, %v896
      %v923 = vadd.f32 %v880, %v896
      %v924 = vadd.f32 %v881, %v896
      %v925 = vadd.f32 %v882, %v896
      %v926 = vadd.f32 %v883, %v896
      %v927 = vadd.f32 %v884, %v896
      %v928 = vadd.f32 %v885, %v896
      %v929 = vadd.f32 %v886, %v896
      %v930 = vadd.f32 %v887, %v896
      %v931 = vadd.f32 %v888, %v896
      %v932 = vadd.f32 %v889, %v896
      %v933 = vadd.f32 %v890, %v896
      %v934 = vpack.c.bf16 %v899, %v898
      %v935 = vpack.c.bf16 %v901, %v900
      %v936 = vpack.c.bf16 %v903, %v902
      %v937 = vpack.c.bf16 %v905, %v904
      %v938 = vpack.c.bf16 %v907, %v906
      %v939 = vpack.c.bf16 %v909, %v908
      %v940 = vpack.c.bf16 %v911, %v910
      %v941 = vpack.c.bf16 %v913, %v912
      %v942 = vpack.c.bf16 %v915, %v914
      %v943 = vpack.c.bf16 %v917, %v916
      %v944 = vpack.c.bf16 %v919, %v918
      %v945 = vpack.c.bf16 %v921, %v920
      %v946 = vpack.c.bf16 %v923, %v922
      %v947 = vpack.c.bf16 %v925, %v924
      %v948 = vpack.c.bf16 %v927, %v926
      %v949 = vpack.c.bf16 %v929, %v928
      %v950 = vpack.c.bf16 %v931, %v930
      %v951 = vpack.c.bf16 %v933, %v932
      %v952 = vld [vmem:[%s3] sm:$0xff]
      %v953 = vld [vmem:[%s3 + $0x8] sm:$0xff]
      %v954 = vld [vmem:[%s3 + $0x10] sm:$0xff]
      %v955 = vld [vmem:[%s3 + $0x18] sm:$0xff]
      %v956 = vld [vmem:[%s3 + $0x20] sm:$0xff]
      %v957 = vld [vmem:[%s3 + $0x28] sm:$0xff]
      %v958 = vld [vmem:[%s3 + $0x30] sm:$0xff]
      %v959 = vld [vmem:[%s3 + $0x38] sm:$0xff]
      %v968 = vunpack.c.l.b16 %v952
      %v969 = vunpack.c.h.b16 %v952
      %v970 = vunpack.c.l.b16 %v953
      %v971 = vunpack.c.h.b16 %v953
      %v972 = vunpack.c.l.b16 %v954
      %v973 = vunpack.c.h.b16 %v954
      %v974 = vunpack.c.l.b16 %v955
      %v975 = vunpack.c.h.b16 %v955
      %v976 = vunpack.c.l.b16 %v956
      %v977 = vunpack.c.h.b16 %v956
      %v978 = vunpack.c.l.b16 %v957
      %v979 = vunpack.c.h.b16 %v957
      %v980 = vunpack.c.l.b16 %v958
      %v981 = vunpack.c.h.b16 %v958
      %v982 = vunpack.c.l.b16 %v959
      %v983 = vunpack.c.h.b16 %v959
      %v984 = vpack.c.b16 %v970, %v968
      %v985 = vpack.c.b16 %v971, %v969
      %v986 = vpack.c.b16 %v974, %v972
      %v987 = vpack.c.b16 %v975, %v973
      %v988 = vpack.c.b16 %v978, %v976
      %v989 = vpack.c.b16 %v979, %v977
      %v990 = vpack.c.b16 %v982, %v980
      %v991 = vpack.c.b16 %v983, %v981
      %v1001 = vsel %vm378, %v934, 0
      %v1004 = vsel %vm378, %v935, 0
      %v1007 = vsel %vm378, %v936, 0
      %v1010 = vsel %vm378, %v937, 0
      %v1013 = vsel %vm378, %v938, 0
      %v1016 = vsel %vm378, %v939, 0
      %v1019 = vsel %vm378, %v940, 0
      %v1022 = vsel %vm378, %v941, 0
      %v1025 = vsel %vm378, %v942, 0
      %v1028 = vsel %vm378, %v943, 0
      %v1031 = vsel %vm378, %v944, 0
      %v1034 = vsel %vm378, %v945, 0
      %v1037 = vsel %vm378, %v946, 0
      %v1040 = vsel %vm378, %v947, 0
      %v1043 = vsel %vm378, %v948, 0
      %v1046 = vsel %vm378, %v949, 0
      %v1049 = vsel %vm378, %v950, 0
      %v1052 = vsel %vm378, %v951, 0
      %1054 = vmatprep.subr.bf16.mxu0 %v985
      %1055 = vmatpush1.bf16.msra.mxu0 %v984
      %1056 = vmatprep.subr.bf16.mxu0 %v987
      %1057 = vmatpush1.bf16.msra.mxu0 %v986
      %1058 = vmatprep.subr.bf16.mxu0 %v989
      %1059 = vmatpush1.bf16.msra.mxu0 %v988
      %1060 = vmatprep.subr.bf16.mxu0 %v991
      %1061 = vmatpush1.bf16.msra.mxu0 %v990
      %1062 = vmatprep.subr.bf16.mxu0 0
      %1063 = vmatpush1.bf16.msra.mxu0 0
      %1064 = vmatprep.subr.bf16.mxu0 0
      %1065 = vmatpush1.bf16.msra.mxu0 0
      %1066 = vmatprep.subr.bf16.mxu0 0
      %1067 = vmatpush1.bf16.msra.mxu0 0
      %1068 = vmatprep.subr.bf16.mxu0 0
      %1069 = vmatpush1.bf16.msra.mxu0 0
      %1070 = vmatprep.subr.bf16.mxu0 0
      %1071 = vmatpush1.bf16.msra.mxu0 0
      %1072 = vmatprep.subr.bf16.mxu0 0
      %1073 = vmatpush1.bf16.msra.mxu0 0
      %1074 = vmatprep.subr.bf16.mxu0 0
      %1075 = vmatpush1.bf16.msra.mxu0 0
      %1076 = vmatprep.subr.bf16.mxu0 0
      %1077 = vmatpush1.bf16.msra.mxu0 0
      %1078 = vmatprep.subr.bf16.mxu0 0
      %1079 = vmatpush1.bf16.msra.mxu0 0
      %1080 = vmatprep.subr.bf16.mxu0 0
      %1081 = vmatpush1.bf16.msra.mxu0 0
      %1082 = vmatprep.subr.bf16.mxu0 0
      %1083 = vmatpush1.bf16.msra.mxu0 0
      %1084 = vmatprep.subr.bf16.mxu0 0
      %1085 = vmatpush1.bf16.msra.mxu0 0
      %1086 = vmatprep.mubr.bf16.mxu0 0
      %1087 = vmatmul.mubr.bf16.gmra.mrb[0].mxu0 %v1001
      %v1088 = vpop.f32.mrb[0].mxu0
      %v1089 = vadd.f32 0.0, %v1088
      %v1090 = vpop.f32.mrb[0].mxu0
      %v1091 = vadd.f32 0.0, %v1090
      %v1092 = vpop.f32.mrb[0].mxu0
      %v1093 = vadd.f32 0.0, %v1092
      %v1094 = vpop.f32.mrb[0].mxu0
      %v1095 = vadd.f32 0.0, %v1094
      %1096 = vmatprep.mubr.bf16.mxu0 0
      %1097 = vmatmul.mubr.bf16.gmra.mrb[0].mxu0 %v1004
      %v1098 = vpop.f32.mrb[0].mxu0
      %v1099 = vadd.f32 0.0, %v1098
      %v1100 = vpop.f32.mrb[0].mxu0
      %v1101 = vadd.f32 0.0, %v1100
      %v1102 = vpop.f32.mrb[0].mxu0
      %v1103 = vadd.f32 0.0, %v1102
      %v1104 = vpop.f32.mrb[0].mxu0
      %v1105 = vadd.f32 0.0, %v1104
      %1106 = vmatprep.mubr.bf16.mxu0 0
      %1107 = vmatmul.mubr.bf16.gmra.mrb[0].mxu0 %v1007
      %v1108 = vpop.f32.mrb[0].mxu0
      %v1109 = vadd.f32 0.0, %v1108
      %v1110 = vpop.f32.mrb[0].mxu0
      %v1111 = vadd.f32 0.0, %v1110
      %v1112 = vpop.f32.mrb[0].mxu0
      %v1113 = vadd.f32 0.0, %v1112
      %v1114 = vpop.f32.mrb[0].mxu0
      %v1115 = vadd.f32 0.0, %v1114
      %1116 = vmatprep.mubr.bf16.mxu0 0
      %1117 = vmatmul.mubr.bf16.gmra.mrb[0].mxu0 %v1010
      %v1118 = vpop.f32.mrb[0].mxu0
      %v1119 = vadd.f32 0.0, %v1118
      %v1120 = vpop.f32.mrb[0].mxu0
      %v1121 = vadd.f32 0.0, %v1120
      %v1122 = vpop.f32.mrb[0].mxu0
      %v1123 = vadd.f32 0.0, %v1122
      %v1124 = vpop.f32.mrb[0].mxu0
      %v1125 = vadd.f32 0.0, %v1124
      %1126 = vmatprep.mubr.bf16.mxu0 0
      %1127 = vmatmul.mubr.bf16.gmra.mrb[0].mxu0 %v1013
      %v1128 = vpop.f32.mrb[0].mxu0
      %v1129 = vadd.f32 0.0, %v1128
      %v1130 = vpop.f32.mrb[0].mxu0
      %v1131 = vadd.f32 0.0, %v1130
      %v1132 = vpop.f32.mrb[0].mxu0
      %v1133 = vadd.f32 0.0, %v1132
      %v1134 = vpop.f32.mrb[0].mxu0
      %v1135 = vadd.f32 0.0, %v1134
      %1136 = vmatprep.mubr.bf16.mxu0 0
      %1137 = vmatmul.mubr.bf16.gmra.mrb[0].mxu0 %v1016
      %v1138 = vpop.f32.mrb[0].mxu0
      %v1139 = vadd.f32 0.0, %v1138
      %v1140 = vpop.f32.mrb[0].mxu0
      %v1141 = vadd.f32 0.0, %v1140
      %v1142 = vpop.f32.mrb[0].mxu0
      %v1143 = vadd.f32 0.0, %v1142
      %v1144 = vpop.f32.mrb[0].mxu0
      %v1145 = vadd.f32 0.0, %v1144
      %1146 = vmatprep.mubr.bf16.mxu0 0
      %1147 = vmatmul.mubr.bf16.gmra.mrb[0].mxu0 %v1019
      %v1148 = vpop.f32.mrb[0].mxu0
      %v1149 = vadd.f32 0.0, %v1148
      %v1150 = vpop.f32.mrb[0].mxu0
      %v1151 = vadd.f32 0.0, %v1150
      %v1152 = vpop.f32.mrb[0].mxu0
      %v1153 = vadd.f32 0.0, %v1152
      %v1154 = vpop.f32.mrb[0].mxu0
      %v1155 = vadd.f32 0.0, %v1154
      %1156 = vmatprep.mubr.bf16.mxu0 0
      %1157 = vmatmul.mubr.bf16.gmra.mrb[0].mxu0 %v1022
      %v1158 = vpop.f32.mrb[0].mxu0
      %v1159 = vadd.f32 0.0, %v1158
      %v1160 = vpop.f32.mrb[0].mxu0
      %v1161 = vadd.f32 0.0, %v1160
      %v1162 = vpop.f32.mrb[0].mxu0
      %v1163 = vadd.f32 0.0, %v1162
      %v1164 = vpop.f32.mrb[0].mxu0
      %v1165 = vadd.f32 0.0, %v1164
      %1166 = vmatprep.mubr.bf16.mxu0 0
      %1167 = vmatmul.mubr.bf16.gmra.mrb[0].mxu0 %v1025
      %v1168 = vpop.f32.mrb[0].mxu0
      %v1169 = vadd.f32 0.0, %v1168
      %v1170 = vpop.f32.mrb[0].mxu0
      %v1171 = vadd.f32 0.0, %v1170
      %v1172 = vpop.f32.mrb[0].mxu0
      %v1173 = vadd.f32 0.0, %v1172
      %v1174 = vpop.f32.mrb[0].mxu0
      %v1175 = vadd.f32 0.0, %v1174
      %1176 = vmatprep.mubr.bf16.mxu0 0
      %1177 = vmatmul.mubr.bf16.gmra.mrb[0].mxu0 %v1028
      %v1178 = vpop.f32.mrb[0].mxu0
      %v1179 = vadd.f32 0.0, %v1178
      %v1180 = vpop.f32.mrb[0].mxu0
      %v1181 = vadd.f32 0.0, %v1180
      %v1182 = vpop.f32.mrb[0].mxu0
      %v1183 = vadd.f32 0.0, %v1182
      %v1184 = vpop.f32.mrb[0].mxu0
      %v1185 = vadd.f32 0.0, %v1184
      %1186 = vmatprep.mubr.bf16.mxu0 0
      %1187 = vmatmul.mubr.bf16.gmra.mrb[0].mxu0 %v1031
      %v1188 = vpop.f32.mrb[0].mxu0
      %v1189 = vadd.f32 0.0, %v1188
      %v1190 = vpop.f32.mrb[0].mxu0
      %v1191 = vadd.f32 0.0, %v1190
      %v1192 = vpop.f32.mrb[0].mxu0
      %v1193 = vadd.f32 0.0, %v1192
      %v1194 = vpop.f32.mrb[0].mxu0
      %v1195 = vadd.f32 0.0, %v1194
      %1196 = vmatprep.mubr.bf16.mxu0 0
      %1197 = vmatmul.mubr.bf16.gmra.mrb[0].mxu0 %v1034
      %v1198 = vpop.f32.mrb[0].mxu0
      %v1199 = vadd.f32 0.0, %v1198
      %v1200 = vpop.f32.mrb[0].mxu0
      %v1201 = vadd.f32 0.0, %v1200
      %v1202 = vpop.f32.mrb[0].mxu0
      %v1203 = vadd.f32 0.0, %v1202
      %v1204 = vpop.f32.mrb[0].mxu0
      %v1205 = vadd.f32 0.0, %v1204
      %1206 = vmatprep.mubr.bf16.mxu0 0
      %1207 = vmatmul.mubr.bf16.gmra.mrb[0].mxu0 %v1037
      %v1208 = vpop.f32.mrb[0].mxu0
      %v1209 = vadd.f32 0.0, %v1208
      %v1210 = vpop.f32.mrb[0].mxu0
      %v1211 = vadd.f32 0.0, %v1210
      %v1212 = vpop.f32.mrb[0].mxu0
      %v1213 = vadd.f32 0.0, %v1212
      %v1214 = vpop.f32.mrb[0].mxu0
      %v1215 = vadd.f32 0.0, %v1214
      %1216 = vmatprep.mubr.bf16.mxu0 0
      %1217 = vmatmul.mubr.bf16.gmra.mrb[0].mxu0 %v1040
      %v1218 = vpop.f32.mrb[0].mxu0
      %v1219 = vadd.f32 0.0, %v1218
      %v1220 = vpop.f32.mrb[0].mxu0
      %v1221 = vadd.f32 0.0, %v1220
      %v1222 = vpop.f32.mrb[0].mxu0
      %v1223 = vadd.f32 0.0, %v1222
      %v1224 = vpop.f32.mrb[0].mxu0
      %v1225 = vadd.f32 0.0, %v1224
      %1226 = vmatprep.mubr.bf16.mxu0 0
      %1227 = vmatmul.mubr.bf16.gmra.mrb[0].mxu0 %v1043
      %v1228 = vpop.f32.mrb[0].mxu0
      %v1229 = vadd.f32 0.0, %v1228
      %v1230 = vpop.f32.mrb[0].mxu0
      %v1231 = vadd.f32 0.0, %v1230
      %v1232 = vpop.f32.mrb[0].mxu0
      %v1233 = vadd.f32 0.0, %v1232
      %v1234 = vpop.f32.mrb[0].mxu0
      %v1235 = vadd.f32 0.0, %v1234
      %1236 = vmatprep.mubr.bf16.mxu0 0
      %1237 = vmatmul.mubr.bf16.gmra.mrb[0].mxu0 %v1046
      %v1238 = vpop.f32.mrb[0].mxu0
      %v1239 = vadd.f32 0.0, %v1238
      %v1240 = vpop.f32.mrb[0].mxu0
      %v1241 = vadd.f32 0.0, %v1240
      %v1242 = vpop.f32.mrb[0].mxu0
      %v1243 = vadd.f32 0.0, %v1242
      %v1244 = vpop.f32.mrb[0].mxu0
      %v1245 = vadd.f32 0.0, %v1244
      %1246 = vmatprep.mubr.bf16.mxu0 0
      %1247 = vmatmul.mubr.bf16.gmra.mrb[0].mxu0 %v1049
      %v1248 = vpop.f32.mrb[0].mxu0
      %v1249 = vadd.f32 0.0, %v1248
      %v1250 = vpop.f32.mrb[0].mxu0
      %v1251 = vadd.f32 0.0, %v1250
      %v1252 = vpop.f32.mrb[0].mxu0
      %v1253 = vadd.f32 0.0, %v1252
      %v1254 = vpop.f32.mrb[0].mxu0
      %v1255 = vadd.f32 0.0, %v1254
      %1256 = vmatprep.mubr.bf16.mxu0 0
      %1257 = vmatmul.mubr.bf16.gmra.mrb[0].mxu0 %v1052
      %v1258 = vpop.f32.mrb[0].mxu0
      %v1259 = vadd.f32 0.0, %v1258
      %v1260 = vpop.f32.mrb[0].mxu0
      %v1261 = vadd.f32 0.0, %v1260
      %v1262 = vpop.f32.mrb[0].mxu0
      %v1263 = vadd.f32 0.0, %v1262
      %v1264 = vpop.f32.mrb[0].mxu0
      %v1265 = vadd.f32 0.0, %v1264
      %1266 = vdwg.mxu0
      %v1267 = vld [vmem:[%s6] sm:$0xff]
      %v1268 = vld [vmem:[%s6 + $0x8] sm:$0xff]
      %v1269 = vld [vmem:[%s6 + $0x10] sm:$0xff]
      %v1270 = vld [vmem:[%s6 + $0x18] sm:$0xff]
      %v1271 = vld [vmem:[%s6 + $0x20] sm:$0xff]
      %v1272 = vld [vmem:[%s6 + $0x28] sm:$0xff]
      %v1273 = vld [vmem:[%s6 + $0x30] sm:$0xff]
      %v1274 = vld [vmem:[%s6 + $0x38] sm:$0xff]
      %v1275 = vld [vmem:[%s4] sm:$0x1]
      %v1276 = vmul.f32 %v1089, %v1089
      %v1277 = vmul.f32 %v1093, %v1093
      %v1278 = vmul.f32 %v1099, %v1099
      %v1279 = vmul.f32 %v1103, %v1103
      %v1280 = vmul.f32 %v1109, %v1109
      %v1281 = vmul.f32 %v1113, %v1113
      %v1282 = vmul.f32 %v1119, %v1119
      %v1283 = vmul.f32 %v1123, %v1123
      %v1284 = vmul.f32 %v1129, %v1129
      %v1285 = vmul.f32 %v1133, %v1133
      %v1286 = vmul.f32 %v1139, %v1139
      %v1287 = vmul.f32 %v1143, %v1143
      %v1288 = vmul.f32 %v1149, %v1149
      %v1289 = vmul.f32 %v1153, %v1153
      %v1290 = vmul.f32 %v1159, %v1159
      %v1291 = vmul.f32 %v1163, %v1163
      %v1292 = vmul.f32 %v1169, %v1169
      %v1293 = vmul.f32 %v1173, %v1173
      %v1294 = vmul.f32 %v1179, %v1179
      %v1295 = vmul.f32 %v1183, %v1183
      %v1296 = vmul.f32 %v1189, %v1189
      %v1297 = vmul.f32 %v1193, %v1193
      %v1298 = vmul.f32 %v1199, %v1199
      %v1299 = vmul.f32 %v1203, %v1203
      %v1300 = vmul.f32 %v1209, %v1209
      %v1301 = vmul.f32 %v1213, %v1213
      %v1302 = vmul.f32 %v1219, %v1219
      %v1303 = vmul.f32 %v1223, %v1223
      %v1304 = vmul.f32 %v1229, %v1229
      %v1305 = vmul.f32 %v1233, %v1233
      %v1306 = vmul.f32 %v1239, %v1239
      %v1307 = vmul.f32 %v1243, %v1243
      %v1308 = vmul.f32 %v1249, %v1249
      %v1309 = vmul.f32 %v1253, %v1253
      %v1310 = vmul.f32 %v1259, %v1259
      %v1311 = vmul.f32 %v1263, %v1263
      %v1313 = vsel %vm378, %v1276, 0
      %v1316 = vsel %vm378, %v1277, 0
      %v1319 = vsel %vm378, %v1278, 0
      %v1322 = vsel %vm378, %v1279, 0
      %v1325 = vsel %vm378, %v1280, 0
      %v1328 = vsel %vm378, %v1281, 0
      %v1331 = vsel %vm378, %v1282, 0
      %v1334 = vsel %vm378, %v1283, 0
      %v1337 = vsel %vm378, %v1284, 0
      %v1340 = vsel %vm378, %v1285, 0
      %v1343 = vsel %vm378, %v1286, 0
      %v1346 = vsel %vm378, %v1287, 0
      %v1349 = vsel %vm378, %v1288, 0
      %v1352 = vsel %vm378, %v1289, 0
      %v1355 = vsel %vm378, %v1290, 0
      %v1358 = vsel %vm378, %v1291, 0
      %v1361 = vsel %vm378, %v1292, 0
      %v1364 = vsel %vm378, %v1293, 0
      %v1367 = vsel %vm378, %v1294, 0
      %v1370 = vsel %vm378, %v1295, 0
      %v1373 = vsel %vm378, %v1296, 0
      %v1376 = vsel %vm378, %v1297, 0
      %v1379 = vsel %vm378, %v1298, 0
      %v1382 = vsel %vm378, %v1299, 0
      %v1385 = vsel %vm378, %v1300, 0
      %v1388 = vsel %vm378, %v1301, 0
      %v1391 = vsel %vm378, %v1302, 0
      %v1394 = vsel %vm378, %v1303, 0
      %v1397 = vsel %vm378, %v1304, 0
      %v1400 = vsel %vm378, %v1305, 0
      %v1403 = vsel %vm378, %v1306, 0
      %v1406 = vsel %vm378, %v1307, 0
      %v1409 = vsel %vm378, %v1308, 0
      %v1412 = vsel %vm378, %v1309, 0
      %v1415 = vsel %vm378, %v1310, 0
      %v1418 = vsel %vm378, %v1311, 0
      %1420 = vmatprep.subr.mxu0 0.0
      %1421 = vmatpush1.msra.mxu0 %v1267
      %1422 = vmatprep.subr.mxu0 0.0
      %1423 = vmatpush1.msra.mxu0 %v1268
      %1424 = vmatprep.subr.mxu0 0.0
      %1425 = vmatpush1.msra.mxu0 %v1269
      %1426 = vmatprep.subr.mxu0 0.0
      %1427 = vmatpush1.msra.mxu0 %v1270
      %1428 = vmatprep.subr.mxu0 0.0
      %1429 = vmatpush1.msra.mxu0 %v1271
      %1430 = vmatprep.subr.mxu0 0.0
      %1431 = vmatpush1.msra.mxu0 %v1272
      %1432 = vmatprep.subr.mxu0 0.0
      %1433 = vmatpush1.msra.mxu0 %v1273
      %1434 = vmatprep.subr.mxu0 0.0
      %1435 = vmatpush1.msra.mxu0 %v1274
      %1436 = vmatprep.subr.mxu0 0.0
      %1437 = vmatpush1.msra.mxu0 0.0
      %1438 = vmatprep.subr.mxu0 0.0
      %1439 = vmatpush1.msra.mxu0 0.0
      %1440 = vmatprep.subr.mxu0 0.0
      %1441 = vmatpush1.msra.mxu0 0.0
      %1442 = vmatprep.subr.mxu0 0.0
      %1443 = vmatpush1.msra.mxu0 0.0
      %1444 = vmatprep.subr.mxu0 0.0
      %1445 = vmatpush1.msra.mxu0 0.0
      %1446 = vmatprep.subr.mxu0 0.0
      %1447 = vmatpush1.msra.mxu0 0.0
      %1448 = vmatprep.subr.mxu0 0.0
      %1449 = vmatpush1.msra.mxu0 0.0
      %1450 = vmatprep.subr.mxu0 0.0
      %1451 = vmatpush1.msra.mxu0 0.0
      %1452 = vmatprep.subr.mxu0 0.0
      %1453 = vmatpush1.msra.mxu0 0.0
      %1454 = vmatprep.subr.mxu0 0.0
      %1455 = vmatpush1.msra.mxu0 0.0
      %1456 = vmatprep.subr.mxu0 0.0
      %1457 = vmatpush1.msra.mxu0 0.0
      %1458 = vmatprep.subr.mxu0 0.0
      %1459 = vmatpush1.msra.mxu0 0.0
      %1460 = vmatprep.subr.mxu0 0.0
      %1461 = vmatpush1.msra.mxu0 0.0
      %1462 = vmatprep.subr.mxu0 0.0
      %1463 = vmatpush1.msra.mxu0 0.0
      %1464 = vmatprep.subr.mxu0 0.0
      %1465 = vmatpush1.msra.mxu0 0.0
      %1466 = vmatprep.subr.mxu0 0.0
      %1467 = vmatpush1.msra.mxu0 0.0
      %1468 = vmatprep.subr.mxu0 0.0
      %1469 = vmatpush1.msra.mxu0 0.0
      %1470 = vmatprep.subr.mxu0 0.0
      %1471 = vmatpush1.msra.mxu0 0.0
      %1472 = vmatprep.subr.mxu0 0.0
      %1473 = vmatpush1.msra.mxu0 0.0
      %1474 = vmatprep.subr.mxu0 0.0
      %1475 = vmatpush1.msra.mxu0 0.0
      %1476 = vmatprep.subr.mxu0 0.0
      %1477 = vmatpush1.msra.mxu0 0.0
      %1478 = vmatprep.subr.mxu0 0.0
      %1479 = vmatpush1.msra.mxu0 0.0
      %1480 = vmatprep.subr.mxu0 0.0
      %1481 = vmatpush1.msra.mxu0 0.0
      %1482 = vmatprep.subr.mxu0 0.0
      %1483 = vmatpush1.msra.mxu0 0.0
      %1484 = vmatprep.mubr.f32.mxu0 0.0
      %1485 = vmatmul.mubr.f32.gmra.mrb[0].mxu0 %v1313
      %v1486 = vpop.f32.mrb[0].mxu0
      %v1487 = vadd.f32 0.0, %v1486
      %v1488 = vpop.f32.mrb[0].mxu0
      %1489 = vmatprep.mubr.f32.mxu0 0.0
      %1490 = vmatmul.mubr.f32.gmra.mrb[0].mxu0 %v1316
      %v1491 = vpop.f32.mrb[0].mxu0
      %v1492 = vadd.f32 0.0, %v1491
      %v1493 = vpop.f32.mrb[0].mxu0
      %1494 = vmatprep.mubr.f32.mxu0 0.0
      %1495 = vmatmul.mubr.f32.gmra.mrb[0].mxu0 %v1319
      %v1496 = vpop.f32.mrb[0].mxu0
      %v1497 = vadd.f32 0.0, %v1496
      %v1498 = vpop.f32.mrb[0].mxu0
      %1499 = vmatprep.mubr.f32.mxu0 0.0
      %1500 = vmatmul.mubr.f32.gmra.mrb[0].mxu0 %v1322
      %v1501 = vpop.f32.mrb[0].mxu0
      %v1502 = vadd.f32 0.0, %v1501
      %v1503 = vpop.f32.mrb[0].mxu0
      %1504 = vmatprep.mubr.f32.mxu0 0.0
      %1505 = vmatmul.mubr.f32.gmra.mrb[0].mxu0 %v1325
      %v1506 = vpop.f32.mrb[0].mxu0
      %v1507 = vadd.f32 0.0, %v1506
      %v1508 = vpop.f32.mrb[0].mxu0
      %1509 = vmatprep.mubr.f32.mxu0 0.0
      %1510 = vmatmul.mubr.f32.gmra.mrb[0].mxu0 %v1328
      %v1511 = vpop.f32.mrb[0].mxu0
      %v1512 = vadd.f32 0.0, %v1511
      %v1513 = vpop.f32.mrb[0].mxu0
      %1514 = vmatprep.mubr.f32.mxu0 0.0
      %1515 = vmatmul.mubr.f32.gmra.mrb[0].mxu0 %v1331
      %v1516 = vpop.f32.mrb[0].mxu0
      %v1517 = vadd.f32 0.0, %v1516
      %v1518 = vpop.f32.mrb[0].mxu0
      %1519 = vmatprep.mubr.f32.mxu0 0.0
      %1520 = vmatmul.mubr.f32.gmra.mrb[0].mxu0 %v1334
      %v1521 = vpop.f32.mrb[0].mxu0
      %v1522 = vadd.f32 0.0, %v1521
      %v1523 = vpop.f32.mrb[0].mxu0
      %1524 = vmatprep.mubr.f32.mxu0 0.0
      %1525 = vmatmul.mubr.f32.gmra.mrb[0].mxu0 %v1337
      %v1526 = vpop.f32.mrb[0].mxu0
      %v1527 = vadd.f32 0.0, %v1526
      %v1528 = vpop.f32.mrb[0].mxu0
      %1529 = vmatprep.mubr.f32.mxu0 0.0
      %1530 = vmatmul.mubr.f32.gmra.mrb[0].mxu0 %v1340
      %v1531 = vpop.f32.mrb[0].mxu0
      %v1532 = vadd.f32 0.0, %v1531
      %v1533 = vpop.f32.mrb[0].mxu0
      %1534 = vmatprep.mubr.f32.mxu0 0.0
      %1535 = vmatmul.mubr.f32.gmra.mrb[0].mxu0 %v1343
      %v1536 = vpop.f32.mrb[0].mxu0
      %v1537 = vadd.f32 0.0, %v1536
      %v1538 = vpop.f32.mrb[0].mxu0
      %1539 = vmatprep.mubr.f32.mxu0 0.0
      %1540 = vmatmul.mubr.f32.gmra.mrb[0].mxu0 %v1346
      %v1541 = vpop.f32.mrb[0].mxu0
      %v1542 = vadd.f32 0.0, %v1541
      %v1543 = vpop.f32.mrb[0].mxu0
      %1544 = vmatprep.mubr.f32.mxu0 0.0
      %1545 = vmatmul.mubr.f32.gmra.mrb[0].mxu0 %v1349
      %v1546 = vpop.f32.mrb[0].mxu0
      %v1547 = vadd.f32 0.0, %v1546
      %v1548 = vpop.f32.mrb[0].mxu0
      %1549 = vmatprep.mubr.f32.mxu0 0.0
      %1550 = vmatmul.mubr.f32.gmra.mrb[0].mxu0 %v1352
      %v1551 = vpop.f32.mrb[0].mxu0
      %v1552 = vadd.f32 0.0, %v1551
      %v1553 = vpop.f32.mrb[0].mxu0
      %1554 = vmatprep.mubr.f32.mxu0 0.0
      %1555 = vmatmul.mubr.f32.gmra.mrb[0].mxu0 %v1355
      %v1556 = vpop.f32.mrb[0].mxu0
      %v1557 = vadd.f32 0.0, %v1556
      %v1558 = vpop.f32.mrb[0].mxu0
      %1559 = vmatprep.mubr.f32.mxu0 0.0
      %1560 = vmatmul.mubr.f32.gmra.mrb[0].mxu0 %v1358
      %v1561 = vpop.f32.mrb[0].mxu0
      %v1562 = vadd.f32 0.0, %v1561
      %v1563 = vpop.f32.mrb[0].mxu0
      %1564 = vmatprep.mubr.f32.mxu0 0.0
      %1565 = vmatmul.mubr.f32.gmra.mrb[0].mxu0 %v1361
      %v1566 = vpop.f32.mrb[0].mxu0
      %v1567 = vadd.f32 0.0, %v1566
      %v1568 = vpop.f32.mrb[0].mxu0
      %1569 = vmatprep.mubr.f32.mxu0 0.0
      %1570 = vmatmul.mubr.f32.gmra.mrb[0].mxu0 %v1364
      %v1571 = vpop.f32.mrb[0].mxu0
      %v1572 = vadd.f32 0.0, %v1571
      %v1573 = vpop.f32.mrb[0].mxu0
      %1574 = vmatprep.mubr.f32.mxu0 0.0
      %1575 = vmatmul.mubr.f32.gmra.mrb[0].mxu0 %v1367
      %v1576 = vpop.f32.mrb[0].mxu0
      %v1577 = vadd.f32 0.0, %v1576
      %v1578 = vpop.f32.mrb[0].mxu0
      %1579 = vmatprep.mubr.f32.mxu0 0.0
      %1580 = vmatmul.mubr.f32.gmra.mrb[0].mxu0 %v1370
      %v1581 = vpop.f32.mrb[0].mxu0
      %v1582 = vadd.f32 0.0, %v1581
      %v1583 = vpop.f32.mrb[0].mxu0
      %1584 = vmatprep.mubr.f32.mxu0 0.0
      %1585 = vmatmul.mubr.f32.gmra.mrb[0].mxu0 %v1373
      %v1586 = vpop.f32.mrb[0].mxu0
      %v1587 = vadd.f32 0.0, %v1586
      %v1588 = vpop.f32.mrb[0].mxu0
      %1589 = vmatprep.mubr.f32.mxu0 0.0
      %1590 = vmatmul.mubr.f32.gmra.mrb[0].mxu0 %v1376
      %v1591 = vpop.f32.mrb[0].mxu0
      %v1592 = vadd.f32 0.0, %v1591
      %v1593 = vpop.f32.mrb[0].mxu0
      %1594 = vmatprep.mubr.f32.mxu0 0.0
      %1595 = vmatmul.mubr.f32.gmra.mrb[0].mxu0 %v1379
      %v1596 = vpop.f32.mrb[0].mxu0
      %v1597 = vadd.f32 0.0, %v1596
      %v1598 = vpop.f32.mrb[0].mxu0
      %1599 = vmatprep.mubr.f32.mxu0 0.0
      %1600 = vmatmul.mubr.f32.gmra.mrb[0].mxu0 %v1382
      %v1601 = vpop.f32.mrb[0].mxu0
      %v1602 = vadd.f32 0.0, %v1601
      %v1603 = vpop.f32.mrb[0].mxu0
      %1604 = vmatprep.mubr.f32.mxu0 0.0
      %1605 = vmatmul.mubr.f32.gmra.mrb[0].mxu0 %v1385
      %v1606 = vpop.f32.mrb[0].mxu0
      %v1607 = vadd.f32 0.0, %v1606
      %v1608 = vpop.f32.mrb[0].mxu0
      %1609 = vmatprep.mubr.f32.mxu0 0.0
      %1610 = vmatmul.mubr.f32.gmra.mrb[0].mxu0 %v1388
      %v1611 = vpop.f32.mrb[0].mxu0
      %v1612 = vadd.f32 0.0, %v1611
      %v1613 = vpop.f32.mrb[0].mxu0
      %1614 = vmatprep.mubr.f32.mxu0 0.0
      %1615 = vmatmul.mubr.f32.gmra.mrb[0].mxu0 %v1391
      %v1616 = vpop.f32.mrb[0].mxu0
      %v1617 = vadd.f32 0.0, %v1616
      %v1618 = vpop.f32.mrb[0].mxu0
      %1619 = vmatprep.mubr.f32.mxu0 0.0
      %1620 = vmatmul.mubr.f32.gmra.mrb[0].mxu0 %v1394
      %v1621 = vpop.f32.mrb[0].mxu0
      %v1622 = vadd.f32 0.0, %v1621
      %v1623 = vpop.f32.mrb[0].mxu0
      %1624 = vmatprep.mubr.f32.mxu0 0.0
      %1625 = vmatmul.mubr.f32.gmra.mrb[0].mxu0 %v1397
      %v1626 = vpop.f32.mrb[0].mxu0
      %v1627 = vadd.f32 0.0, %v1626
      %v1628 = vpop.f32.mrb[0].mxu0
      %1629 = vmatprep.mubr.f32.mxu0 0.0
      %1630 = vmatmul.mubr.f32.gmra.mrb[0].mxu0 %v1400
      %v1631 = vpop.f32.mrb[0].mxu0
      %v1632 = vadd.f32 0.0, %v1631
      %v1633 = vpop.f32.mrb[0].mxu0
      %1634 = vmatprep.mubr.f32.mxu0 0.0
      %1635 = vmatmul.mubr.f32.gmra.mrb[0].mxu0 %v1403
      %v1636 = vpop.f32.mrb[0].mxu0
      %v1637 = vadd.f32 0.0, %v1636
      %v1638 = vpop.f32.mrb[0].mxu0
      %1639 = vmatprep.mubr.f32.mxu0 0.0
      %1640 = vmatmul.mubr.f32.gmra.mrb[0].mxu0 %v1406
      %v1641 = vpop.f32.mrb[0].mxu0
      %v1642 = vadd.f32 0.0, %v1641
      %v1643 = vpop.f32.mrb[0].mxu0
      %1644 = vmatprep.mubr.f32.mxu0 0.0
      %1645 = vmatmul.mubr.f32.gmra.mrb[0].mxu0 %v1409
      %v1646 = vpop.f32.mrb[0].mxu0
      %v1647 = vadd.f32 0.0, %v1646
      %v1648 = vpop.f32.mrb[0].mxu0
      %1649 = vmatprep.mubr.f32.mxu0 0.0
      %1650 = vmatmul.mubr.f32.gmra.mrb[0].mxu0 %v1412
      %v1651 = vpop.f32.mrb[0].mxu0
      %v1652 = vadd.f32 0.0, %v1651
      %v1653 = vpop.f32.mrb[0].mxu0
      %1654 = vmatprep.mubr.f32.mxu0 0.0
      %1655 = vmatmul.mubr.f32.gmra.mrb[0].mxu0 %v1415
      %v1656 = vpop.f32.mrb[0].mxu0
      %v1657 = vadd.f32 0.0, %v1656
      %v1658 = vpop.f32.mrb[0].mxu0
      %1659 = vmatprep.mubr.f32.mxu0 0.0
      %1660 = vmatmul.mubr.f32.gmra.mrb[0].mxu0 %v1418
      %v1661 = vpop.f32.mrb[0].mxu0
      %v1662 = vadd.f32 0.0, %v1661
      %v1663 = vpop.f32.mrb[0].mxu0
      %1664 = vdwg.mxu0
      %v1665 = vmax.f32 %v1487, 1e-24
      %v1666 = vmax.f32 %v1492, 1e-24
      %v1667 = vmax.f32 %v1497, 1e-24
      %v1668 = vmax.f32 %v1502, 1e-24
      %v1669 = vmax.f32 %v1507, 1e-24
      %v1670 = vmax.f32 %v1512, 1e-24
      %v1671 = vmax.f32 %v1517, 1e-24
      %v1672 = vmax.f32 %v1522, 1e-24
      %v1673 = vmax.f32 %v1527, 1e-24
      %v1674 = vmax.f32 %v1532, 1e-24
      %v1675 = vmax.f32 %v1537, 1e-24
      %v1676 = vmax.f32 %v1542, 1e-24
      %v1677 = vmax.f32 %v1547, 1e-24
      %v1678 = vmax.f32 %v1552, 1e-24
      %v1679 = vmax.f32 %v1557, 1e-24
      %v1680 = vmax.f32 %v1562, 1e-24
      %v1681 = vmax.f32 %v1567, 1e-24
      %v1682 = vmax.f32 %v1572, 1e-24
      %v1683 = vmax.f32 %v1577, 1e-24
      %v1684 = vmax.f32 %v1582, 1e-24
      %v1685 = vmax.f32 %v1587, 1e-24
      %v1686 = vmax.f32 %v1592, 1e-24
      %v1687 = vmax.f32 %v1597, 1e-24
      %v1688 = vmax.f32 %v1602, 1e-24
      %v1689 = vmax.f32 %v1607, 1e-24
      %v1690 = vmax.f32 %v1612, 1e-24
      %v1691 = vmax.f32 %v1617, 1e-24
      %v1692 = vmax.f32 %v1622, 1e-24
      %v1693 = vmax.f32 %v1627, 1e-24
      %v1694 = vmax.f32 %v1632, 1e-24
      %v1695 = vmax.f32 %v1637, 1e-24
      %v1696 = vmax.f32 %v1642, 1e-24
      %v1697 = vmax.f32 %v1647, 1e-24
      %v1698 = vmax.f32 %v1652, 1e-24
      %v1699 = vmax.f32 %v1657, 1e-24
      %v1700 = vmax.f32 %v1662, 1e-24
      %v1701 = vrsqrt.pop %v1665
      %v1702 = vrsqrt.pop %v1666
      %v1703 = vrsqrt.pop %v1667
      %v1704 = vrsqrt.pop %v1668
      %v1705 = vrsqrt.pop %v1669
      %v1706 = vrsqrt.pop %v1670
      %v1707 = vrsqrt.pop %v1671
      %v1708 = vrsqrt.pop %v1672
      %v1709 = vrsqrt.pop %v1673
      %v1710 = vrsqrt.pop %v1674
      %v1711 = vrsqrt.pop %v1675
      %v1712 = vrsqrt.pop %v1676
      %v1713 = vrsqrt.pop %v1677
      %v1714 = vrsqrt.pop %v1678
      %v1715 = vrsqrt.pop %v1679
      %v1716 = vrsqrt.pop %v1680
      %v1717 = vrsqrt.pop %v1681
      %v1718 = vrsqrt.pop %v1682
      %v1719 = vrsqrt.pop %v1683
      %v1720 = vrsqrt.pop %v1684
      %v1721 = vrsqrt.pop %v1685
      %v1722 = vrsqrt.pop %v1686
      %v1723 = vrsqrt.pop %v1687
      %v1724 = vrsqrt.pop %v1688
      %v1725 = vrsqrt.pop %v1689
      %v1726 = vrsqrt.pop %v1690
      %v1727 = vrsqrt.pop %v1691
      %v1728 = vrsqrt.pop %v1692
      %v1729 = vrsqrt.pop %v1693
      %v1730 = vrsqrt.pop %v1694
      %v1731 = vrsqrt.pop %v1695
      %v1732 = vrsqrt.pop %v1696
      %v1733 = vrsqrt.pop %v1697
      %v1734 = vrsqrt.pop %v1698
      %v1735 = vrsqrt.pop %v1699
      %v1736 = vrsqrt.pop %v1700
      %vm1737 = vcmask 31744
      %v1739 = vsel %vm1737, %v1701, 0
      %v1742 = vsel %vm1737, %v1702, 0
      %v1745 = vsel %vm1737, %v1703, 0
      %v1748 = vsel %vm1737, %v1704, 0
      %v1751 = vsel %vm1737, %v1705, 0
      %v1754 = vsel %vm1737, %v1706, 0
      %v1757 = vsel %vm1737, %v1707, 0
      %v1760 = vsel %vm1737, %v1708, 0
      %v1763 = vsel %vm1737, %v1709, 0
      %v1766 = vsel %vm1737, %v1710, 0
      %v1769 = vsel %vm1737, %v1711, 0
      %v1772 = vsel %vm1737, %v1712, 0
      %v1775 = vsel %vm1737, %v1713, 0
      %v1778 = vsel %vm1737, %v1714, 0
      %v1781 = vsel %vm1737, %v1715, 0
      %v1784 = vsel %vm1737, %v1716, 0
      %v1787 = vsel %vm1737, %v1717, 0
      %v1790 = vsel %vm1737, %v1718, 0
      %v1793 = vsel %vm1737, %v1719, 0
      %v1796 = vsel %vm1737, %v1720, 0
      %v1799 = vsel %vm1737, %v1721, 0
      %v1802 = vsel %vm1737, %v1722, 0
      %v1805 = vsel %vm1737, %v1723, 0
      %v1808 = vsel %vm1737, %v1724, 0
      %v1811 = vsel %vm1737, %v1725, 0
      %v1814 = vsel %vm1737, %v1726, 0
      %v1817 = vsel %vm1737, %v1727, 0
      %v1820 = vsel %vm1737, %v1728, 0
      %v1823 = vsel %vm1737, %v1729, 0
      %v1826 = vsel %vm1737, %v1730, 0
      %v1829 = vsel %vm1737, %v1731, 0
      %v1832 = vsel %vm1737, %v1732, 0
      %v1835 = vsel %vm1737, %v1733, 0
      %v1838 = vsel %vm1737, %v1734, 0
      %v1841 = vsel %vm1737, %v1735, 0
      %v1844 = vsel %vm1737, %v1736, 0
      %v1847 = vsel %vm1737, %v1267, 0
      %v1850 = vsel %vm1737, %v1268, 0
      %v1853 = vsel %vm1737, %v1269, 0
      %v1856 = vsel %vm1737, %v1270, 0
      %v1859 = vsel %vm1737, %v1271, 0
      %v1862 = vsel %vm1737, %v1272, 0
      %v1865 = vsel %vm1737, %v1273, 0
      %v1868 = vsel %vm1737, %v1274, 0
      %1870 = vmatprep.subr.mxu0 0.0
      %1871 = vmatpush1.xpose.msra.mxu0 %v1847
      %1872 = vmatprep.subr.mxu0 0.0
      %1873 = vmatpush1.xpose.msra.mxu0 %v1850
      %1874 = vmatprep.subr.mxu0 0.0
      %1875 = vmatpush1.xpose.msra.mxu0 %v1853
      %1876 = vmatprep.subr.mxu0 0.0
      %1877 = vmatpush1.xpose.msra.mxu0 %v1856
      %1878 = vmatprep.subr.mxu0 0.0
      %1879 = vmatpush1.xpose.msra.mxu0 %v1859
      %1880 = vmatprep.subr.mxu0 0.0
      %1881 = vmatpush1.xpose.msra.mxu0 %v1862
      %1882 = vmatprep.subr.mxu0 0.0
      %1883 = vmatpush1.xpose.msra.mxu0 %v1865
      %1884 = vmatprep.subr.mxu0 0.0
      %1885 = vmatpush1.xpose.msra.mxu0 %v1868
      %1886 = vmatprep.subr.mxu0 0.0
      %1887 = vmatpush1.xpose.msra.mxu0 0.0
      %1888 = vmatprep.subr.mxu0 0.0
      %1889 = vmatpush1.xpose.msra.mxu0 0.0
      %1890 = vmatprep.subr.mxu0 0.0
      %1891 = vmatpush1.xpose.msra.mxu0 0.0
      %1892 = vmatprep.subr.mxu0 0.0
      %1893 = vmatpush1.xpose.msra.mxu0 0.0
      %1894 = vmatprep.subr.mxu0 0.0
      %1895 = vmatpush1.xpose.msra.mxu0 0.0
      %1896 = vmatprep.subr.mxu0 0.0
      %1897 = vmatpush1.xpose.msra.mxu0 0.0
      %1898 = vmatprep.subr.mxu0 0.0
      %1899 = vmatpush1.xpose.msra.mxu0 0.0
      %1900 = vmatprep.subr.mxu0 0.0
      %1901 = vmatpush1.xpose.msra.mxu0 0.0
      %1902 = vmatprep.subr.mxu0 0.0
      %1903 = vmatpush1.xpose.msra.mxu0 0.0
      %1904 = vmatprep.subr.mxu0 0.0
      %1905 = vmatpush1.xpose.msra.mxu0 0.0
      %1906 = vmatprep.subr.mxu0 0.0
      %1907 = vmatpush1.xpose.msra.mxu0 0.0
      %1908 = vmatprep.subr.mxu0 0.0
      %1909 = vmatpush1.xpose.msra.mxu0 0.0
      %1910 = vmatprep.subr.mxu0 0.0
      %1911 = vmatpush1.xpose.msra.mxu0 0.0
      %1912 = vmatprep.subr.mxu0 0.0
      %1913 = vmatpush1.xpose.msra.mxu0 0.0
      %1914 = vmatprep.subr.mxu0 0.0
      %1915 = vmatpush1.xpose.msra.mxu0 0.0
      %1916 = vmatprep.subr.mxu0 0.0
      %1917 = vmatpush1.xpose.msra.mxu0 0.0
      %1918 = vmatprep.subr.mxu0 0.0
      %1919 = vmatpush1.xpose.msra.mxu0 0.0
      %1920 = vmatprep.subr.mxu0 0.0
      %1921 = vmatpush1.xpose.msra.mxu0 0.0
      %1922 = vmatprep.subr.mxu0 0.0
      %1923 = vmatpush1.xpose.msra.mxu0 0.0
      %1924 = vmatprep.subr.mxu0 0.0
      %1925 = vmatpush1.xpose.msra.mxu0 0.0
      %1926 = vmatprep.subr.mxu0 0.0
      %1927 = vmatpush1.xpose.msra.mxu0 0.0
      %1928 = vmatprep.subr.mxu0 0.0
      %1929 = vmatpush1.xpose.msra.mxu0 0.0
      %1930 = vmatprep.subr.mxu0 0.0
      %1931 = vmatpush1.xpose.msra.mxu0 0.0
      %1932 = vmatprep.subr.mxu0 0.0
      %1933 = vmatpush1.xpose.msra.mxu0 0.0
      %1934 = vmatprep.mubr.f32.mxu0 0.0
      %1935 = vmatmul.mubr.f32.gmra.mrb[0].mxu0 %v1739
      %v1936 = vpop.f32.mrb[0].mxu0
      %v1937 = vadd.f32 0.0, %v1936
      %v1938 = vpop.f32.mrb[0].mxu0
      %1939 = vmatprep.mubr.f32.mxu0 0.0
      %1940 = vmatmul.mubr.f32.gmra.mrb[0].mxu0 %v1742
      %v1941 = vpop.f32.mrb[0].mxu0
      %v1942 = vadd.f32 0.0, %v1941
      %v1943 = vpop.f32.mrb[0].mxu0
      %1944 = vmatprep.mubr.f32.mxu0 0.0
      %1945 = vmatmul.mubr.f32.gmra.mrb[0].mxu0 %v1745
      %v1946 = vpop.f32.mrb[0].mxu0
      %v1947 = vadd.f32 0.0, %v1946
      %v1948 = vpop.f32.mrb[0].mxu0
      %1949 = vmatprep.mubr.f32.mxu0 0.0
      %1950 = vmatmul.mubr.f32.gmra.mrb[0].mxu0 %v1748
      %v1951 = vpop.f32.mrb[0].mxu0
      %v1952 = vadd.f32 0.0, %v1951
      %v1953 = vpop.f32.mrb[0].mxu0
      %1954 = vmatprep.mubr.f32.mxu0 0.0
      %1955 = vmatmul.mubr.f32.gmra.mrb[0].mxu0 %v1751
      %v1956 = vpop.f32.mrb[0].mxu0
      %v1957 = vadd.f32 0.0, %v1956
      %v1958 = vpop.f32.mrb[0].mxu0
      %1959 = vmatprep.mubr.f32.mxu0 0.0
      %1960 = vmatmul.mubr.f32.gmra.mrb[0].mxu0 %v1754
      %v1961 = vpop.f32.mrb[0].mxu0
      %v1962 = vadd.f32 0.0, %v1961
      %v1963 = vpop.f32.mrb[0].mxu0
      %1964 = vmatprep.mubr.f32.mxu0 0.0
      %1965 = vmatmul.mubr.f32.gmra.mrb[0].mxu0 %v1757
      %v1966 = vpop.f32.mrb[0].mxu0
      %v1967 = vadd.f32 0.0, %v1966
      %v1968 = vpop.f32.mrb[0].mxu0
      %1969 = vmatprep.mubr.f32.mxu0 0.0
      %1970 = vmatmul.mubr.f32.gmra.mrb[0].mxu0 %v1760
      %v1971 = vpop.f32.mrb[0].mxu0
      %v1972 = vadd.f32 0.0, %v1971
      %v1973 = vpop.f32.mrb[0].mxu0
      %1974 = vmatprep.mubr.f32.mxu0 0.0
      %1975 = vmatmul.mubr.f32.gmra.mrb[0].mxu0 %v1763
      %v1976 = vpop.f32.mrb[0].mxu0
      %v1977 = vadd.f32 0.0, %v1976
      %v1978 = vpop.f32.mrb[0].mxu0
      %1979 = vmatprep.mubr.f32.mxu0 0.0
      %1980 = vmatmul.mubr.f32.gmra.mrb[0].mxu0 %v1766
      %v1981 = vpop.f32.mrb[0].mxu0
      %v1982 = vadd.f32 0.0, %v1981
      %v1983 = vpop.f32.mrb[0].mxu0
      %1984 = vmatprep.mubr.f32.mxu0 0.0
      %1985 = vmatmul.mubr.f32.gmra.mrb[0].mxu0 %v1769
      %v1986 = vpop.f32.mrb[0].mxu0
      %v1987 = vadd.f32 0.0, %v1986
      %v1988 = vpop.f32.mrb[0].mxu0
      %1989 = vmatprep.mubr.f32.mxu0 0.0
      %1990 = vmatmul.mubr.f32.gmra.mrb[0].mxu0 %v1772
      %v1991 = vpop.f32.mrb[0].mxu0
      %v1992 = vadd.f32 0.0, %v1991
      %v1993 = vpop.f32.mrb[0].mxu0
      %1994 = vmatprep.mubr.f32.mxu0 0.0
      %1995 = vmatmul.mubr.f32.gmra.mrb[0].mxu0 %v1775
      %v1996 = vpop.f32.mrb[0].mxu0
      %v1997 = vadd.f32 0.0, %v1996
      %v1998 = vpop.f32.mrb[0].mxu0
      %1999 = vmatprep.mubr.f32.mxu0 0.0
      %2000 = vmatmul.mubr.f32.gmra.mrb[0].mxu0 %v1778
      %v2001 = vpop.f32.mrb[0].mxu0
      %v2002 = vadd.f32 0.0, %v2001
      %v2003 = vpop.f32.mrb[0].mxu0
      %2004 = vmatprep.mubr.f32.mxu0 0.0
      %2005 = vmatmul.mubr.f32.gmra.mrb[0].mxu0 %v1781
      %v2006 = vpop.f32.mrb[0].mxu0
      %v2007 = vadd.f32 0.0, %v2006
      %v2008 = vpop.f32.mrb[0].mxu0
      %2009 = vmatprep.mubr.f32.mxu0 0.0
      %2010 = vmatmul.mubr.f32.gmra.mrb[0].mxu0 %v1784
      %v2011 = vpop.f32.mrb[0].mxu0
      %v2012 = vadd.f32 0.0, %v2011
      %v2013 = vpop.f32.mrb[0].mxu0
      %2014 = vmatprep.mubr.f32.mxu0 0.0
      %2015 = vmatmul.mubr.f32.gmra.mrb[0].mxu0 %v1787
      %v2016 = vpop.f32.mrb[0].mxu0
      %v2017 = vadd.f32 0.0, %v2016
      %v2018 = vpop.f32.mrb[0].mxu0
      %2019 = vmatprep.mubr.f32.mxu0 0.0
      %2020 = vmatmul.mubr.f32.gmra.mrb[0].mxu0 %v1790
      %v2021 = vpop.f32.mrb[0].mxu0
      %v2022 = vadd.f32 0.0, %v2021
      %v2023 = vpop.f32.mrb[0].mxu0
      %2024 = vmatprep.mubr.f32.mxu0 0.0
      %2025 = vmatmul.mubr.f32.gmra.mrb[0].mxu0 %v1793
      %v2026 = vpop.f32.mrb[0].mxu0
      %v2027 = vadd.f32 0.0, %v2026
      %v2028 = vpop.f32.mrb[0].mxu0
      %2029 = vmatprep.mubr.f32.mxu0 0.0
      %2030 = vmatmul.mubr.f32.gmra.mrb[0].mxu0 %v1796
      %v2031 = vpop.f32.mrb[0].mxu0
      %v2032 = vadd.f32 0.0, %v2031
      %v2033 = vpop.f32.mrb[0].mxu0
      %2034 = vmatprep.mubr.f32.mxu0 0.0
      %2035 = vmatmul.mubr.f32.gmra.mrb[0].mxu0 %v1799
      %v2036 = vpop.f32.mrb[0].mxu0
      %v2037 = vadd.f32 0.0, %v2036
      %v2038 = vpop.f32.mrb[0].mxu0
      %2039 = vmatprep.mubr.f32.mxu0 0.0
      %2040 = vmatmul.mubr.f32.gmra.mrb[0].mxu0 %v1802
      %v2041 = vpop.f32.mrb[0].mxu0
      %v2042 = vadd.f32 0.0, %v2041
      %v2043 = vpop.f32.mrb[0].mxu0
      %2044 = vmatprep.mubr.f32.mxu0 0.0
      %2045 = vmatmul.mubr.f32.gmra.mrb[0].mxu0 %v1805
      %v2046 = vpop.f32.mrb[0].mxu0
      %v2047 = vadd.f32 0.0, %v2046
      %v2048 = vpop.f32.mrb[0].mxu0
      %2049 = vmatprep.mubr.f32.mxu0 0.0
      %2050 = vmatmul.mubr.f32.gmra.mrb[0].mxu0 %v1808
      %v2051 = vpop.f32.mrb[0].mxu0
      %v2052 = vadd.f32 0.0, %v2051
      %v2053 = vpop.f32.mrb[0].mxu0
      %2054 = vmatprep.mubr.f32.mxu0 0.0
      %2055 = vmatmul.mubr.f32.gmra.mrb[0].mxu0 %v1811
      %v2056 = vpop.f32.mrb[0].mxu0
      %v2057 = vadd.f32 0.0, %v2056
      %v2058 = vpop.f32.mrb[0].mxu0
      %2059 = vmatprep.mubr.f32.mxu0 0.0
      %2060 = vmatmul.mubr.f32.gmra.mrb[0].mxu0 %v1814
      %v2061 = vpop.f32.mrb[0].mxu0
      %v2062 = vadd.f32 0.0, %v2061
      %v2063 = vpop.f32.mrb[0].mxu0
      %2064 = vmatprep.mubr.f32.mxu0 0.0
      %2065 = vmatmul.mubr.f32.gmra.mrb[0].mxu0 %v1817
      %v2066 = vpop.f32.mrb[0].mxu0
      %v2067 = vadd.f32 0.0, %v2066
      %v2068 = vpop.f32.mrb[0].mxu0
      %2069 = vmatprep.mubr.f32.mxu0 0.0
      %2070 = vmatmul.mubr.f32.gmra.mrb[0].mxu0 %v1820
      %v2071 = vpop.f32.mrb[0].mxu0
      %v2072 = vadd.f32 0.0, %v2071
      %v2073 = vpop.f32.mrb[0].mxu0
      %2074 = vmatprep.mubr.f32.mxu0 0.0
      %2075 = vmatmul.mubr.f32.gmra.mrb[0].mxu0 %v1823
      %v2076 = vpop.f32.mrb[0].mxu0
      %v2077 = vadd.f32 0.0, %v2076
      %v2078 = vpop.f32.mrb[0].mxu0
      %2079 = vmatprep.mubr.f32.mxu0 0.0
      %2080 = vmatmul.mubr.f32.gmra.mrb[0].mxu0 %v1826
      %v2081 = vpop.f32.mrb[0].mxu0
      %v2082 = vadd.f32 0.0, %v2081
      %v2083 = vpop.f32.mrb[0].mxu0
      %2084 = vmatprep.mubr.f32.mxu0 0.0
      %2085 = vmatmul.mubr.f32.gmra.mrb[0].mxu0 %v1829
      %v2086 = vpop.f32.mrb[0].mxu0
      %v2087 = vadd.f32 0.0, %v2086
      %v2088 = vpop.f32.mrb[0].mxu0
      %2089 = vmatprep.mubr.f32.mxu0 0.0
      %2090 = vmatmul.mubr.f32.gmra.mrb[0].mxu0 %v1832
      %v2091 = vpop.f32.mrb[0].mxu0
      %v2092 = vadd.f32 0.0, %v2091
      %v2093 = vpop.f32.mrb[0].mxu0
      %2094 = vmatprep.mubr.f32.mxu0 0.0
      %2095 = vmatmul.mubr.f32.gmra.mrb[0].mxu0 %v1835
      %v2096 = vpop.f32.mrb[0].mxu0
      %v2097 = vadd.f32 0.0, %v2096
      %v2098 = vpop.f32.mrb[0].mxu0
      %2099 = vmatprep.mubr.f32.mxu0 0.0
      %2100 = vmatmul.mubr.f32.gmra.mrb[0].mxu0 %v1838
      %v2101 = vpop.f32.mrb[0].mxu0
      %v2102 = vadd.f32 0.0, %v2101
      %v2103 = vpop.f32.mrb[0].mxu0
      %2104 = vmatprep.mubr.f32.mxu0 0.0
      %2105 = vmatmul.mubr.f32.gmra.mrb[0].mxu0 %v1841
      %v2106 = vpop.f32.mrb[0].mxu0
      %v2107 = vadd.f32 0.0, %v2106
      %v2108 = vpop.f32.mrb[0].mxu0
      %2109 = vmatprep.mubr.f32.mxu0 0.0
      %2110 = vmatmul.mubr.f32.gmra.mrb[0].mxu0 %v1844
      %v2111 = vpop.f32.mrb[0].mxu0
      %v2112 = vadd.f32 0.0, %v2111
      %v2113 = vpop.f32.mrb[0].mxu0
      %2114 = vdwg.mxu0
      %v2115 = vmul.f32 %v1089, %v1937
      %v2116 = vmul.f32 %v1093, %v1942
      %v2117 = vmul.f32 %v1099, %v1947
      %v2118 = vmul.f32 %v1103, %v1952
      %v2119 = vmul.f32 %v1109, %v1957
      %v2120 = vmul.f32 %v1113, %v1962
      %v2121 = vmul.f32 %v1119, %v1967
      %v2122 = vmul.f32 %v1123, %v1972
      %v2123 = vmul.f32 %v1129, %v1977
      %v2124 = vmul.f32 %v1133, %v1982
      %v2125 = vmul.f32 %v1139, %v1987
      %v2126 = vmul.f32 %v1143, %v1992
      %v2127 = vmul.f32 %v1149, %v1997
      %v2128 = vmul.f32 %v1153, %v2002
      %v2129 = vmul.f32 %v1159, %v2007
      %v2130 = vmul.f32 %v1163, %v2012
      %v2131 = vmul.f32 %v1169, %v2017
      %v2132 = vmul.f32 %v1173, %v2022
      %v2133 = vmul.f32 %v1179, %v2027
      %v2134 = vmul.f32 %v1183, %v2032
      %v2135 = vmul.f32 %v1189, %v2037
      %v2136 = vmul.f32 %v1193, %v2042
      %v2137 = vmul.f32 %v1199, %v2047
      %v2138 = vmul.f32 %v1203, %v2052
      %v2139 = vmul.f32 %v1209, %v2057
      %v2140 = vmul.f32 %v1213, %v2062
      %v2141 = vmul.f32 %v1219, %v2067
      %v2142 = vmul.f32 %v1223, %v2072
      %v2143 = vmul.f32 %v1229, %v2077
      %v2144 = vmul.f32 %v1233, %v2082
      %v2145 = vmul.f32 %v1239, %v2087
      %v2146 = vmul.f32 %v1243, %v2092
      %v2147 = vmul.f32 %v1249, %v2097
      %v2148 = vmul.f32 %v1253, %v2102
      %v2149 = vmul.f32 %v1259, %v2107
      %v2150 = vmul.f32 %v1263, %v2112
      %v2152 = vlaneseq
      %v2153 = vshrl.u32 %v2152, 7
      %v2154 = vsub.s32 0, %v2153
      %v2155 = vrot.slane %v1275, %v2154
      %v2157 = vmul.f32 %v2115, %v2155
      %v2158 = vmul.f32 %v2116, %v2155
      %v2159 = vmul.f32 %v2117, %v2155
      %v2160 = vmul.f32 %v2118, %v2155
      %v2161 = vmul.f32 %v2119, %v2155
      %v2162 = vmul.f32 %v2120, %v2155
      %v2163 = vmul.f32 %v2121, %v2155
      %v2164 = vmul.f32 %v2122, %v2155
      %v2165 = vmul.f32 %v2123, %v2155
      %v2166 = vmul.f32 %v2124, %v2155
      %v2167 = vmul.f32 %v2125, %v2155
      %v2168 = vmul.f32 %v2126, %v2155
      %v2169 = vmul.f32 %v2127, %v2155
      %v2170 = vmul.f32 %v2128, %v2155
      %v2171 = vmul.f32 %v2129, %v2155
      %v2172 = vmul.f32 %v2130, %v2155
      %v2173 = vmul.f32 %v2131, %v2155
      %v2174 = vmul.f32 %v2132, %v2155
      %v2175 = vmul.f32 %v2133, %v2155
      %v2176 = vmul.f32 %v2134, %v2155
      %v2177 = vmul.f32 %v2135, %v2155
      %v2178 = vmul.f32 %v2136, %v2155
      %v2179 = vmul.f32 %v2137, %v2155
      %v2180 = vmul.f32 %v2138, %v2155
      %v2181 = vmul.f32 %v2139, %v2155
      %v2182 = vmul.f32 %v2140, %v2155
      %v2183 = vmul.f32 %v2141, %v2155
      %v2184 = vmul.f32 %v2142, %v2155
      %v2185 = vmul.f32 %v2143, %v2155
      %v2186 = vmul.f32 %v2144, %v2155
      %v2187 = vmul.f32 %v2145, %v2155
      %v2188 = vmul.f32 %v2146, %v2155
      %v2189 = vmul.f32 %v2147, %v2155
      %v2190 = vmul.f32 %v2148, %v2155
      %v2191 = vmul.f32 %v2149, %v2155
      %v2192 = vmul.f32 %v2150, %v2155
      %v2193 = vpack.c.bf16 %v2158, %v2157
      %v2194 = vpack.c.bf16 %v2160, %v2159
      %v2195 = vpack.c.bf16 %v2162, %v2161
      %v2196 = vpack.c.bf16 %v2164, %v2163
      %v2197 = vpack.c.bf16 %v2166, %v2165
      %v2198 = vpack.c.bf16 %v2168, %v2167
      %v2199 = vpack.c.bf16 %v2170, %v2169
      %v2200 = vpack.c.bf16 %v2172, %v2171
      %v2201 = vpack.c.bf16 %v2174, %v2173
      %v2202 = vpack.c.bf16 %v2176, %v2175
      %v2203 = vpack.c.bf16 %v2178, %v2177
      %v2204 = vpack.c.bf16 %v2180, %v2179
      %v2205 = vpack.c.bf16 %v2182, %v2181
      %v2206 = vpack.c.bf16 %v2184, %v2183
      %v2207 = vpack.c.bf16 %v2186, %v2185
      %v2208 = vpack.c.bf16 %v2188, %v2187
      %v2209 = vpack.c.bf16 %v2190, %v2189
      %v2210 = vpack.c.bf16 %v2192, %v2191
      %v2229 = vunpack.c.l.b16 %v2193
      %v2230 = vunpack.c.h.b16 %v2193
      %v2231 = vunpack.c.l.b16 %v2194
      %v2232 = vunpack.c.h.b16 %v2194
      %v2233 = vunpack.c.l.b16 %v2195
      %v2234 = vunpack.c.h.b16 %v2195
      %v2235 = vunpack.c.l.b16 %v2196
      %v2236 = vunpack.c.h.b16 %v2196
      %v2237 = vunpack.c.l.b16 %v2197
      %v2238 = vunpack.c.h.b16 %v2197
      %v2239 = vunpack.c.l.b16 %v2198
      %v2240 = vunpack.c.h.b16 %v2198
      %v2241 = vunpack.c.l.b16 %v2199
      %v2242 = vunpack.c.h.b16 %v2199
      %v2243 = vunpack.c.l.b16 %v2200
      %v2244 = vunpack.c.h.b16 %v2200
      %v2245 = vunpack.c.l.b16 %v2201
      %v2246 = vunpack.c.h.b16 %v2201
      %v2247 = vunpack.c.l.b16 %v2202
      %v2248 = vunpack.c.h.b16 %v2202
      %v2249 = vunpack.c.l.b16 %v2203
      %v2250 = vunpack.c.h.b16 %v2203
      %v2251 = vunpack.c.l.b16 %v2204
      %v2252 = vunpack.c.h.b16 %v2204
      %v2253 = vunpack.c.l.b16 %v2205
      %v2254 = vunpack.c.h.b16 %v2205
      %v2255 = vunpack.c.l.b16 %v2206
      %v2256 = vunpack.c.h.b16 %v2206
      %v2257 = vunpack.c.l.b16 %v2207
      %v2258 = vunpack.c.h.b16 %v2207
      %v2259 = vunpack.c.l.b16 %v2208
      %v2260 = vunpack.c.h.b16 %v2208
      %v2261 = vunpack.c.l.b16 %v2209
      %v2262 = vunpack.c.h.b16 %v2209
      %v2263 = vunpack.c.l.b16 %v2210
      %v2264 = vunpack.c.h.b16 %v2210
      %v2265 = vld [vmem:[%s5] sm:$0x1]
      %2266 = vrot.lane.b32.xlu0 %v1276, 64
      %v2267 = vpop.permute.xlu0 %2266
      %2268 = vrot.lane.b32.xlu0 %v1277, 64
      %v2269 = vpop.permute.xlu0 %2268
      %2270 = vrot.lane.b32.xlu0 %v1278, 64
      %v2271 = vpop.permute.xlu0 %2270
      %2272 = vrot.lane.b32.xlu0 %v1279, 64
      %v2273 = vpop.permute.xlu0 %2272
      %2274 = vrot.lane.b32.xlu0 %v1280, 64
      %v2275 = vpop.permute.xlu0 %2274
      %2276 = vrot.lane.b32.xlu0 %v1281, 64
      %v2277 = vpop.permute.xlu0 %2276
      %2278 = vrot.lane.b32.xlu0 %v1282, 64
      %v2279 = vpop.permute.xlu0 %2278
      %2280 = vrot.lane.b32.xlu0 %v1283, 64
      %v2281 = vpop.permute.xlu0 %2280
      %2282 = vrot.lane.b32.xlu0 %v1284, 64
      %v2283 = vpop.permute.xlu0 %2282
      %2284 = vrot.lane.b32.xlu0 %v1285, 64
      %v2285 = vpop.permute.xlu0 %2284
      %2286 = vrot.lane.b32.xlu0 %v1286, 64
      %v2287 = vpop.permute.xlu0 %2286
      %2288 = vrot.lane.b32.xlu0 %v1287, 64
      %v2289 = vpop.permute.xlu0 %2288
      %2290 = vrot.lane.b32.xlu0 %v1288, 64
      %v2291 = vpop.permute.xlu0 %2290
      %2292 = vrot.lane.b32.xlu0 %v1289, 64
      %v2293 = vpop.permute.xlu0 %2292
      %2294 = vrot.lane.b32.xlu0 %v1290, 64
      %v2295 = vpop.permute.xlu0 %2294
      %2296 = vrot.lane.b32.xlu0 %v1291, 64
      %v2297 = vpop.permute.xlu0 %2296
      %2298 = vrot.lane.b32.xlu0 %v1292, 64
      %v2299 = vpop.permute.xlu0 %2298
      %2300 = vrot.lane.b32.xlu0 %v1293, 64
      %v2301 = vpop.permute.xlu0 %2300
      %2302 = vrot.lane.b32.xlu0 %v1294, 64
      %v2303 = vpop.permute.xlu0 %2302
      %2304 = vrot.lane.b32.xlu0 %v1295, 64
      %v2305 = vpop.permute.xlu0 %2304
      %2306 = vrot.lane.b32.xlu0 %v1296, 64
      %v2307 = vpop.permute.xlu0 %2306
      %2308 = vrot.lane.b32.xlu0 %v1297, 64
      %v2309 = vpop.permute.xlu0 %2308
      %2310 = vrot.lane.b32.xlu0 %v1298, 64
      %v2311 = vpop.permute.xlu0 %2310
      %2312 = vrot.lane.b32.xlu0 %v1299, 64
      %v2313 = vpop.permute.xlu0 %2312
      %2314 = vrot.lane.b32.xlu0 %v1300, 64
      %v2315 = vpop.permute.xlu0 %2314
      %2316 = vrot.lane.b32.xlu0 %v1301, 64
      %v2317 = vpop.permute.xlu0 %2316
      %2318 = vrot.lane.b32.xlu0 %v1302, 64
      %v2319 = vpop.permute.xlu0 %2318
      %2320 = vrot.lane.b32.xlu0 %v1303, 64
      %v2321 = vpop.permute.xlu0 %2320
      %2322 = vrot.lane.b32.xlu0 %v1304, 64
      %v2323 = vpop.permute.xlu0 %2322
      %2324 = vrot.lane.b32.xlu0 %v1305, 64
      %v2325 = vpop.permute.xlu0 %2324
      %2326 = vrot.lane.b32.xlu0 %v1306, 64
      %v2327 = vpop.permute.xlu0 %2326
      %2328 = vrot.lane.b32.xlu0 %v1307, 64
      %v2329 = vpop.permute.xlu0 %2328
      %2330 = vrot.lane.b32.xlu0 %v1308, 64
      %v2331 = vpop.permute.xlu0 %2330
      %2332 = vrot.lane.b32.xlu0 %v1309, 64
      %v2333 = vpop.permute.xlu0 %2332
      %2334 = vrot.lane.b32.xlu0 %v1310, 64
      %v2335 = vpop.permute.xlu0 %2334
      %2336 = vrot.lane.b32.xlu0 %v1311, 64
      %v2337 = vpop.permute.xlu0 %2336
      %v2338 = vsel %vm378, %v2267, 0
      %v2340 = vsel %vm378, %v2269, 0
      %v2342 = vsel %vm378, %v2271, 0
      %v2344 = vsel %vm378, %v2273, 0
      %v2346 = vsel %vm378, %v2275, 0
      %v2348 = vsel %vm378, %v2277, 0
      %v2350 = vsel %vm378, %v2279, 0
      %v2352 = vsel %vm378, %v2281, 0
      %v2354 = vsel %vm378, %v2283, 0
      %v2356 = vsel %vm378, %v2285, 0
      %v2358 = vsel %vm378, %v2287, 0
      %v2360 = vsel %vm378, %v2289, 0
      %v2362 = vsel %vm378, %v2291, 0
      %v2364 = vsel %vm378, %v2293, 0
      %v2366 = vsel %vm378, %v2295, 0
      %v2368 = vsel %vm378, %v2297, 0
      %v2370 = vsel %vm378, %v2299, 0
      %v2372 = vsel %vm378, %v2301, 0
      %v2374 = vsel %vm378, %v2303, 0
      %v2376 = vsel %vm378, %v2305, 0
      %v2378 = vsel %vm378, %v2307, 0
      %v2380 = vsel %vm378, %v2309, 0
      %v2382 = vsel %vm378, %v2311, 0
      %v2384 = vsel %vm378, %v2313, 0
      %v2386 = vsel %vm378, %v2315, 0
      %v2388 = vsel %vm378, %v2317, 0
      %v2390 = vsel %vm378, %v2319, 0
      %v2392 = vsel %vm378, %v2321, 0
      %v2394 = vsel %vm378, %v2323, 0
      %v2396 = vsel %vm378, %v2325, 0
      %v2398 = vsel %vm378, %v2327, 0
      %v2400 = vsel %vm378, %v2329, 0
      %v2402 = vsel %vm378, %v2331, 0
      %v2404 = vsel %vm378, %v2333, 0
      %v2406 = vsel %vm378, %v2335, 0
      %v2408 = vsel %vm378, %v2337, 0
      %2410 = vmatprep.subr.mxu0 0.0
      %2411 = vmatpush1.msra.mxu0 %v1267
      %2412 = vmatprep.subr.mxu0 0.0
      %2413 = vmatpush1.msra.mxu0 %v1268
      %2414 = vmatprep.subr.mxu0 0.0
      %2415 = vmatpush1.msra.mxu0 %v1269
      %2416 = vmatprep.subr.mxu0 0.0
      %2417 = vmatpush1.msra.mxu0 %v1270
      %2418 = vmatprep.subr.mxu0 0.0
      %2419 = vmatpush1.msra.mxu0 %v1271
      %2420 = vmatprep.subr.mxu0 0.0
      %2421 = vmatpush1.msra.mxu0 %v1272
      %2422 = vmatprep.subr.mxu0 0.0
      %2423 = vmatpush1.msra.mxu0 %v1273
      %2424 = vmatprep.subr.mxu0 0.0
      %2425 = vmatpush1.msra.mxu0 %v1274
      %2426 = vmatprep.subr.mxu0 0.0
      %2427 = vmatpush1.msra.mxu0 0.0
      %2428 = vmatprep.subr.mxu0 0.0
      %2429 = vmatpush1.msra.mxu0 0.0
      %2430 = vmatprep.subr.mxu0 0.0
      %2431 = vmatpush1.msra.mxu0 0.0
      %2432 = vmatprep.subr.mxu0 0.0
      %2433 = vmatpush1.msra.mxu0 0.0
      %2434 = vmatprep.subr.mxu0 0.0
      %2435 = vmatpush1.msra.mxu0 0.0
      %2436 = vmatprep.subr.mxu0 0.0
      %2437 = vmatpush1.msra.mxu0 0.0
      %2438 = vmatprep.subr.mxu0 0.0
      %2439 = vmatpush1.msra.mxu0 0.0
      %2440 = vmatprep.subr.mxu0 0.0
      %2441 = vmatpush1.msra.mxu0 0.0
      %2442 = vmatprep.subr.mxu0 0.0
      %2443 = vmatpush1.msra.mxu0 0.0
      %2444 = vmatprep.subr.mxu0 0.0
      %2445 = vmatpush1.msra.mxu0 0.0
      %2446 = vmatprep.subr.mxu0 0.0
      %2447 = vmatpush1.msra.mxu0 0.0
      %2448 = vmatprep.subr.mxu0 0.0
      %2449 = vmatpush1.msra.mxu0 0.0
      %2450 = vmatprep.subr.mxu0 0.0
      %2451 = vmatpush1.msra.mxu0 0.0
      %2452 = vmatprep.subr.mxu0 0.0
      %2453 = vmatpush1.msra.mxu0 0.0
      %2454 = vmatprep.subr.mxu0 0.0
      %2455 = vmatpush1.msra.mxu0 0.0
      %2456 = vmatprep.subr.mxu0 0.0
      %2457 = vmatpush1.msra.mxu0 0.0
      %2458 = vmatprep.subr.mxu0 0.0
      %2459 = vmatpush1.msra.mxu0 0.0
      %2460 = vmatprep.subr.mxu0 0.0
      %2461 = vmatpush1.msra.mxu0 0.0
      %2462 = vmatprep.subr.mxu0 0.0
      %2463 = vmatpush1.msra.mxu0 0.0
      %2464 = vmatprep.subr.mxu0 0.0
      %2465 = vmatpush1.msra.mxu0 0.0
      %2466 = vmatprep.subr.mxu0 0.0
      %2467 = vmatpush1.msra.mxu0 0.0
      %2468 = vmatprep.subr.mxu0 0.0
      %2469 = vmatpush1.msra.mxu0 0.0
      %2470 = vmatprep.subr.mxu0 0.0
      %2471 = vmatpush1.msra.mxu0 0.0
      %2472 = vmatprep.subr.mxu0 0.0
      %2473 = vmatpush1.msra.mxu0 0.0
      %2474 = vmatprep.mubr.f32.mxu0 0.0
      %2475 = vmatmul.mubr.f32.gmra.mrb[0].mxu0 %v2338
      %v2476 = vpop.f32.mrb[0].mxu0
      %v2477 = vadd.f32 0.0, %v2476
      %v2478 = vpop.f32.mrb[0].mxu0
      %2479 = vmatprep.mubr.f32.mxu0 0.0
      %2480 = vmatmul.mubr.f32.gmra.mrb[0].mxu0 %v2340
      %v2481 = vpop.f32.mrb[0].mxu0
      %v2482 = vadd.f32 0.0, %v2481
      %v2483 = vpop.f32.mrb[0].mxu0
      %2484 = vmatprep.mubr.f32.mxu0 0.0
      %2485 = vmatmul.mubr.f32.gmra.mrb[0].mxu0 %v2342
      %v2486 = vpop.f32.mrb[0].mxu0
      %v2487 = vadd.f32 0.0, %v2486
      %v2488 = vpop.f32.mrb[0].mxu0
      %2489 = vmatprep.mubr.f32.mxu0 0.0
      %2490 = vmatmul.mubr.f32.gmra.mrb[0].mxu0 %v2344
      %v2491 = vpop.f32.mrb[0].mxu0
      %v2492 = vadd.f32 0.0, %v2491
      %v2493 = vpop.f32.mrb[0].mxu0
      %2494 = vmatprep.mubr.f32.mxu0 0.0
      %2495 = vmatmul.mubr.f32.gmra.mrb[0].mxu0 %v2346
      %v2496 = vpop.f32.mrb[0].mxu0
      %v2497 = vadd.f32 0.0, %v2496
      %v2498 = vpop.f32.mrb[0].mxu0
      %2499 = vmatprep.mubr.f32.mxu0 0.0
      %2500 = vmatmul.mubr.f32.gmra.mrb[0].mxu0 %v2348
      %v2501 = vpop.f32.mrb[0].mxu0
      %v2502 = vadd.f32 0.0, %v2501
      %v2503 = vpop.f32.mrb[0].mxu0
      %2504 = vmatprep.mubr.f32.mxu0 0.0
      %2505 = vmatmul.mubr.f32.gmra.mrb[0].mxu0 %v2350
      %v2506 = vpop.f32.mrb[0].mxu0
      %v2507 = vadd.f32 0.0, %v2506
      %v2508 = vpop.f32.mrb[0].mxu0
      %2509 = vmatprep.mubr.f32.mxu0 0.0
      %2510 = vmatmul.mubr.f32.gmra.mrb[0].mxu0 %v2352
      %v2511 = vpop.f32.mrb[0].mxu0
      %v2512 = vadd.f32 0.0, %v2511
      %v2513 = vpop.f32.mrb[0].mxu0
      %2514 = vmatprep.mubr.f32.mxu0 0.0
      %2515 = vmatmul.mubr.f32.gmra.mrb[0].mxu0 %v2354
      %v2516 = vpop.f32.mrb[0].mxu0
      %v2517 = vadd.f32 0.0, %v2516
      %v2518 = vpop.f32.mrb[0].mxu0
      %2519 = vmatprep.mubr.f32.mxu0 0.0
      %2520 = vmatmul.mubr.f32.gmra.mrb[0].mxu0 %v2356
      %v2521 = vpop.f32.mrb[0].mxu0
      %v2522 = vadd.f32 0.0, %v2521
      %v2523 = vpop.f32.mrb[0].mxu0
      %2524 = vmatprep.mubr.f32.mxu0 0.0
      %2525 = vmatmul.mubr.f32.gmra.mrb[0].mxu0 %v2358
      %v2526 = vpop.f32.mrb[0].mxu0
      %v2527 = vadd.f32 0.0, %v2526
      %v2528 = vpop.f32.mrb[0].mxu0
      %2529 = vmatprep.mubr.f32.mxu0 0.0
      %2530 = vmatmul.mubr.f32.gmra.mrb[0].mxu0 %v2360
      %v2531 = vpop.f32.mrb[0].mxu0
      %v2532 = vadd.f32 0.0, %v2531
      %v2533 = vpop.f32.mrb[0].mxu0
      %2534 = vmatprep.mubr.f32.mxu0 0.0
      %2535 = vmatmul.mubr.f32.gmra.mrb[0].mxu0 %v2362
      %v2536 = vpop.f32.mrb[0].mxu0
      %v2537 = vadd.f32 0.0, %v2536
      %v2538 = vpop.f32.mrb[0].mxu0
      %2539 = vmatprep.mubr.f32.mxu0 0.0
      %2540 = vmatmul.mubr.f32.gmra.mrb[0].mxu0 %v2364
      %v2541 = vpop.f32.mrb[0].mxu0
      %v2542 = vadd.f32 0.0, %v2541
      %v2543 = vpop.f32.mrb[0].mxu0
      %2544 = vmatprep.mubr.f32.mxu0 0.0
      %2545 = vmatmul.mubr.f32.gmra.mrb[0].mxu0 %v2366
      %v2546 = vpop.f32.mrb[0].mxu0
      %v2547 = vadd.f32 0.0, %v2546
      %v2548 = vpop.f32.mrb[0].mxu0
      %2549 = vmatprep.mubr.f32.mxu0 0.0
      %2550 = vmatmul.mubr.f32.gmra.mrb[0].mxu0 %v2368
      %v2551 = vpop.f32.mrb[0].mxu0
      %v2552 = vadd.f32 0.0, %v2551
      %v2553 = vpop.f32.mrb[0].mxu0
      %2554 = vmatprep.mubr.f32.mxu0 0.0
      %2555 = vmatmul.mubr.f32.gmra.mrb[0].mxu0 %v2370
      %v2556 = vpop.f32.mrb[0].mxu0
      %v2557 = vadd.f32 0.0, %v2556
      %v2558 = vpop.f32.mrb[0].mxu0
      %2559 = vmatprep.mubr.f32.mxu0 0.0
      %2560 = vmatmul.mubr.f32.gmra.mrb[0].mxu0 %v2372
      %v2561 = vpop.f32.mrb[0].mxu0
      %v2562 = vadd.f32 0.0, %v2561
      %v2563 = vpop.f32.mrb[0].mxu0
      %2564 = vmatprep.mubr.f32.mxu0 0.0
      %2565 = vmatmul.mubr.f32.gmra.mrb[0].mxu0 %v2374
      %v2566 = vpop.f32.mrb[0].mxu0
      %v2567 = vadd.f32 0.0, %v2566
      %v2568 = vpop.f32.mrb[0].mxu0
      %2569 = vmatprep.mubr.f32.mxu0 0.0
      %2570 = vmatmul.mubr.f32.gmra.mrb[0].mxu0 %v2376
      %v2571 = vpop.f32.mrb[0].mxu0
      %v2572 = vadd.f32 0.0, %v2571
      %v2573 = vpop.f32.mrb[0].mxu0
      %2574 = vmatprep.mubr.f32.mxu0 0.0
      %2575 = vmatmul.mubr.f32.gmra.mrb[0].mxu0 %v2378
      %v2576 = vpop.f32.mrb[0].mxu0
      %v2577 = vadd.f32 0.0, %v2576
      %v2578 = vpop.f32.mrb[0].mxu0
      %2579 = vmatprep.mubr.f32.mxu0 0.0
      %2580 = vmatmul.mubr.f32.gmra.mrb[0].mxu0 %v2380
      %v2581 = vpop.f32.mrb[0].mxu0
      %v2582 = vadd.f32 0.0, %v2581
      %v2583 = vpop.f32.mrb[0].mxu0
      %2584 = vmatprep.mubr.f32.mxu0 0.0
      %2585 = vmatmul.mubr.f32.gmra.mrb[0].mxu0 %v2382
      %v2586 = vpop.f32.mrb[0].mxu0
      %v2587 = vadd.f32 0.0, %v2586
      %v2588 = vpop.f32.mrb[0].mxu0
      %2589 = vmatprep.mubr.f32.mxu0 0.0
      %2590 = vmatmul.mubr.f32.gmra.mrb[0].mxu0 %v2384
      %v2591 = vpop.f32.mrb[0].mxu0
      %v2592 = vadd.f32 0.0, %v2591
      %v2593 = vpop.f32.mrb[0].mxu0
      %2594 = vmatprep.mubr.f32.mxu0 0.0
      %2595 = vmatmul.mubr.f32.gmra.mrb[0].mxu0 %v2386
      %v2596 = vpop.f32.mrb[0].mxu0
      %v2597 = vadd.f32 0.0, %v2596
      %v2598 = vpop.f32.mrb[0].mxu0
      %2599 = vmatprep.mubr.f32.mxu0 0.0
      %2600 = vmatmul.mubr.f32.gmra.mrb[0].mxu0 %v2388
      %v2601 = vpop.f32.mrb[0].mxu0
      %v2602 = vadd.f32 0.0, %v2601
      %v2603 = vpop.f32.mrb[0].mxu0
      %2604 = vmatprep.mubr.f32.mxu0 0.0
      %2605 = vmatmul.mubr.f32.gmra.mrb[0].mxu0 %v2390
      %v2606 = vpop.f32.mrb[0].mxu0
      %v2607 = vadd.f32 0.0, %v2606
      %v2608 = vpop.f32.mrb[0].mxu0
      %2609 = vmatprep.mubr.f32.mxu0 0.0
      %2610 = vmatmul.mubr.f32.gmra.mrb[0].mxu0 %v2392
      %v2611 = vpop.f32.mrb[0].mxu0
      %v2612 = vadd.f32 0.0, %v2611
      %v2613 = vpop.f32.mrb[0].mxu0
      %2614 = vmatprep.mubr.f32.mxu0 0.0
      %2615 = vmatmul.mubr.f32.gmra.mrb[0].mxu0 %v2394
      %v2616 = vpop.f32.mrb[0].mxu0
      %v2617 = vadd.f32 0.0, %v2616
      %v2618 = vpop.f32.mrb[0].mxu0
      %2619 = vmatprep.mubr.f32.mxu0 0.0
      %2620 = vmatmul.mubr.f32.gmra.mrb[0].mxu0 %v2396
      %v2621 = vpop.f32.mrb[0].mxu0
      %v2622 = vadd.f32 0.0, %v2621
      %v2623 = vpop.f32.mrb[0].mxu0
      %2624 = vmatprep.mubr.f32.mxu0 0.0
      %2625 = vmatmul.mubr.f32.gmra.mrb[0].mxu0 %v2398
      %v2626 = vpop.f32.mrb[0].mxu0
      %v2627 = vadd.f32 0.0, %v2626
      %v2628 = vpop.f32.mrb[0].mxu0
      %2629 = vmatprep.mubr.f32.mxu0 0.0
      %2630 = vmatmul.mubr.f32.gmra.mrb[0].mxu0 %v2400
      %v2631 = vpop.f32.mrb[0].mxu0
      %v2632 = vadd.f32 0.0, %v2631
      %v2633 = vpop.f32.mrb[0].mxu0
      %2634 = vmatprep.mubr.f32.mxu0 0.0
      %2635 = vmatmul.mubr.f32.gmra.mrb[0].mxu0 %v2402
      %v2636 = vpop.f32.mrb[0].mxu0
      %v2637 = vadd.f32 0.0, %v2636
      %v2638 = vpop.f32.mrb[0].mxu0
      %2639 = vmatprep.mubr.f32.mxu0 0.0
      %2640 = vmatmul.mubr.f32.gmra.mrb[0].mxu0 %v2404
      %v2641 = vpop.f32.mrb[0].mxu0
      %v2642 = vadd.f32 0.0, %v2641
      %v2643 = vpop.f32.mrb[0].mxu0
      %2644 = vmatprep.mubr.f32.mxu0 0.0
      %2645 = vmatmul.mubr.f32.gmra.mrb[0].mxu0 %v2406
      %v2646 = vpop.f32.mrb[0].mxu0
      %v2647 = vadd.f32 0.0, %v2646
      %v2648 = vpop.f32.mrb[0].mxu0
      %2649 = vmatprep.mubr.f32.mxu0 0.0
      %2650 = vmatmul.mubr.f32.gmra.mrb[0].mxu0 %v2408
      %v2651 = vpop.f32.mrb[0].mxu0
      %v2652 = vadd.f32 0.0, %v2651
      %v2653 = vpop.f32.mrb[0].mxu0
      %2654 = vdwg.mxu0
      %v2655 = vmax.f32 %v2477, 1e-24
      %v2656 = vmax.f32 %v2482, 1e-24
      %v2657 = vmax.f32 %v2487, 1e-24
      %v2658 = vmax.f32 %v2492, 1e-24
      %v2659 = vmax.f32 %v2497, 1e-24
      %v2660 = vmax.f32 %v2502, 1e-24
      %v2661 = vmax.f32 %v2507, 1e-24
      %v2662 = vmax.f32 %v2512, 1e-24
      %v2663 = vmax.f32 %v2517, 1e-24
      %v2664 = vmax.f32 %v2522, 1e-24
      %v2665 = vmax.f32 %v2527, 1e-24
      %v2666 = vmax.f32 %v2532, 1e-24
      %v2667 = vmax.f32 %v2537, 1e-24
      %v2668 = vmax.f32 %v2542, 1e-24
      %v2669 = vmax.f32 %v2547, 1e-24
      %v2670 = vmax.f32 %v2552, 1e-24
      %v2671 = vmax.f32 %v2557, 1e-24
      %v2672 = vmax.f32 %v2562, 1e-24
      %v2673 = vmax.f32 %v2567, 1e-24
      %v2674 = vmax.f32 %v2572, 1e-24
      %v2675 = vmax.f32 %v2577, 1e-24
      %v2676 = vmax.f32 %v2582, 1e-24
      %v2677 = vmax.f32 %v2587, 1e-24
      %v2678 = vmax.f32 %v2592, 1e-24
      %v2679 = vmax.f32 %v2597, 1e-24
      %v2680 = vmax.f32 %v2602, 1e-24
      %v2681 = vmax.f32 %v2607, 1e-24
      %v2682 = vmax.f32 %v2612, 1e-24
      %v2683 = vmax.f32 %v2617, 1e-24
      %v2684 = vmax.f32 %v2622, 1e-24
      %v2685 = vmax.f32 %v2627, 1e-24
      %v2686 = vmax.f32 %v2632, 1e-24
      %v2687 = vmax.f32 %v2637, 1e-24
      %v2688 = vmax.f32 %v2642, 1e-24
      %v2689 = vmax.f32 %v2647, 1e-24
      %v2690 = vmax.f32 %v2652, 1e-24
      %v2691 = vrsqrt.pop %v2655
      %v2692 = vrsqrt.pop %v2656
      %v2693 = vrsqrt.pop %v2657
      %v2694 = vrsqrt.pop %v2658
      %v2695 = vrsqrt.pop %v2659
      %v2696 = vrsqrt.pop %v2660
      %v2697 = vrsqrt.pop %v2661
      %v2698 = vrsqrt.pop %v2662
      %v2699 = vrsqrt.pop %v2663
      %v2700 = vrsqrt.pop %v2664
      %v2701 = vrsqrt.pop %v2665
      %v2702 = vrsqrt.pop %v2666
      %v2703 = vrsqrt.pop %v2667
      %v2704 = vrsqrt.pop %v2668
      %v2705 = vrsqrt.pop %v2669
      %v2706 = vrsqrt.pop %v2670
      %v2707 = vrsqrt.pop %v2671
      %v2708 = vrsqrt.pop %v2672
      %v2709 = vrsqrt.pop %v2673
      %v2710 = vrsqrt.pop %v2674
      %v2711 = vrsqrt.pop %v2675
      %v2712 = vrsqrt.pop %v2676
      %v2713 = vrsqrt.pop %v2677
      %v2714 = vrsqrt.pop %v2678
      %v2715 = vrsqrt.pop %v2679
      %v2716 = vrsqrt.pop %v2680
      %v2717 = vrsqrt.pop %v2681
      %v2718 = vrsqrt.pop %v2682
      %v2719 = vrsqrt.pop %v2683
      %v2720 = vrsqrt.pop %v2684
      %v2721 = vrsqrt.pop %v2685
      %v2722 = vrsqrt.pop %v2686
      %v2723 = vrsqrt.pop %v2687
      %v2724 = vrsqrt.pop %v2688
      %v2725 = vrsqrt.pop %v2689
      %v2726 = vrsqrt.pop %v2690
      %v2728 = vsel %vm1737, %v2691, 0
      %v2731 = vsel %vm1737, %v2692, 0
      %v2734 = vsel %vm1737, %v2693, 0
      %v2737 = vsel %vm1737, %v2694, 0
      %v2740 = vsel %vm1737, %v2695, 0
      %v2743 = vsel %vm1737, %v2696, 0
      %v2746 = vsel %vm1737, %v2697, 0
      %v2749 = vsel %vm1737, %v2698, 0
      %v2752 = vsel %vm1737, %v2699, 0
      %v2755 = vsel %vm1737, %v2700, 0
      %v2758 = vsel %vm1737, %v2701, 0
      %v2761 = vsel %vm1737, %v2702, 0
      %v2764 = vsel %vm1737, %v2703, 0
      %v2767 = vsel %vm1737, %v2704, 0
      %v2770 = vsel %vm1737, %v2705, 0
      %v2773 = vsel %vm1737, %v2706, 0
      %v2776 = vsel %vm1737, %v2707, 0
      %v2779 = vsel %vm1737, %v2708, 0
      %v2782 = vsel %vm1737, %v2709, 0
      %v2785 = vsel %vm1737, %v2710, 0
      %v2788 = vsel %vm1737, %v2711, 0
      %v2791 = vsel %vm1737, %v2712, 0
      %v2794 = vsel %vm1737, %v2713, 0
      %v2797 = vsel %vm1737, %v2714, 0
      %v2800 = vsel %vm1737, %v2715, 0
      %v2803 = vsel %vm1737, %v2716, 0
      %v2806 = vsel %vm1737, %v2717, 0
      %v2809 = vsel %vm1737, %v2718, 0
      %v2812 = vsel %vm1737, %v2719, 0
      %v2815 = vsel %vm1737, %v2720, 0
      %v2818 = vsel %vm1737, %v2721, 0
      %v2821 = vsel %vm1737, %v2722, 0
      %v2824 = vsel %vm1737, %v2723, 0
      %v2827 = vsel %vm1737, %v2724, 0
      %v2830 = vsel %vm1737, %v2725, 0
      %v2833 = vsel %vm1737, %v2726, 0
      %2835 = vmatprep.subr.mxu0 0.0
      %2836 = vmatpush1.xpose.msra.mxu0 %v1847
      %2837 = vmatprep.subr.mxu0 0.0
      %2838 = vmatpush1.xpose.msra.mxu0 %v1850
      %2839 = vmatprep.subr.mxu0 0.0
      %2840 = vmatpush1.xpose.msra.mxu0 %v1853
      %2841 = vmatprep.subr.mxu0 0.0
      %2842 = vmatpush1.xpose.msra.mxu0 %v1856
      %2843 = vmatprep.subr.mxu0 0.0
      %2844 = vmatpush1.xpose.msra.mxu0 %v1859
      %2845 = vmatprep.subr.mxu0 0.0
      %2846 = vmatpush1.xpose.msra.mxu0 %v1862
      %2847 = vmatprep.subr.mxu0 0.0
      %2848 = vmatpush1.xpose.msra.mxu0 %v1865
      %2849 = vmatprep.subr.mxu0 0.0
      %2850 = vmatpush1.xpose.msra.mxu0 %v1868
      %2851 = vmatprep.subr.mxu0 0.0
      %2852 = vmatpush1.xpose.msra.mxu0 0.0
      %2853 = vmatprep.subr.mxu0 0.0
      %2854 = vmatpush1.xpose.msra.mxu0 0.0
      %2855 = vmatprep.subr.mxu0 0.0
      %2856 = vmatpush1.xpose.msra.mxu0 0.0
      %2857 = vmatprep.subr.mxu0 0.0
      %2858 = vmatpush1.xpose.msra.mxu0 0.0
      %2859 = vmatprep.subr.mxu0 0.0
      %2860 = vmatpush1.xpose.msra.mxu0 0.0
      %2861 = vmatprep.subr.mxu0 0.0
      %2862 = vmatpush1.xpose.msra.mxu0 0.0
      %2863 = vmatprep.subr.mxu0 0.0
      %2864 = vmatpush1.xpose.msra.mxu0 0.0
      %2865 = vmatprep.subr.mxu0 0.0
      %2866 = vmatpush1.xpose.msra.mxu0 0.0
      %2867 = vmatprep.subr.mxu0 0.0
      %2868 = vmatpush1.xpose.msra.mxu0 0.0
      %2869 = vmatprep.subr.mxu0 0.0
      %2870 = vmatpush1.xpose.msra.mxu0 0.0
      %2871 = vmatprep.subr.mxu0 0.0
      %2872 = vmatpush1.xpose.msra.mxu0 0.0
      %2873 = vmatprep.subr.mxu0 0.0
      %2874 = vmatpush1.xpose.msra.mxu0 0.0
      %2875 = vmatprep.subr.mxu0 0.0
      %2876 = vmatpush1.xpose.msra.mxu0 0.0
      %2877 = vmatprep.subr.mxu0 0.0
      %2878 = vmatpush1.xpose.msra.mxu0 0.0
      %2879 = vmatprep.subr.mxu0 0.0
      %2880 = vmatpush1.xpose.msra.mxu0 0.0
      %2881 = vmatprep.subr.mxu0 0.0
      %2882 = vmatpush1.xpose.msra.mxu0 0.0
      %2883 = vmatprep.subr.mxu0 0.0
      %2884 = vmatpush1.xpose.msra.mxu0 0.0
      %2885 = vmatprep.subr.mxu0 0.0
      %2886 = vmatpush1.xpose.msra.mxu0 0.0
      %2887 = vmatprep.subr.mxu0 0.0
      %2888 = vmatpush1.xpose.msra.mxu0 0.0
      %2889 = vmatprep.subr.mxu0 0.0
      %2890 = vmatpush1.xpose.msra.mxu0 0.0
      %2891 = vmatprep.subr.mxu0 0.0
      %2892 = vmatpush1.xpose.msra.mxu0 0.0
      %2893 = vmatprep.subr.mxu0 0.0
      %2894 = vmatpush1.xpose.msra.mxu0 0.0
      %2895 = vmatprep.subr.mxu0 0.0
      %2896 = vmatpush1.xpose.msra.mxu0 0.0
      %2897 = vmatprep.subr.mxu0 0.0
      %2898 = vmatpush1.xpose.msra.mxu0 0.0
      %2899 = vmatprep.mubr.f32.mxu0 0.0
      %2900 = vmatmul.mubr.f32.gmra.mrb[0].mxu0 %v2728
      %v2901 = vpop.f32.mrb[0].mxu0
      %v2902 = vadd.f32 0.0, %v2901
      %v2903 = vpop.f32.mrb[0].mxu0
      %2904 = vmatprep.mubr.f32.mxu0 0.0
      %2905 = vmatmul.mubr.f32.gmra.mrb[0].mxu0 %v2731
      %v2906 = vpop.f32.mrb[0].mxu0
      %v2907 = vadd.f32 0.0, %v2906
      %v2908 = vpop.f32.mrb[0].mxu0
      %2909 = vmatprep.mubr.f32.mxu0 0.0
      %2910 = vmatmul.mubr.f32.gmra.mrb[0].mxu0 %v2734
      %v2911 = vpop.f32.mrb[0].mxu0
      %v2912 = vadd.f32 0.0, %v2911
      %v2913 = vpop.f32.mrb[0].mxu0
      %2914 = vmatprep.mubr.f32.mxu0 0.0
      %2915 = vmatmul.mubr.f32.gmra.mrb[0].mxu0 %v2737
      %v2916 = vpop.f32.mrb[0].mxu0
      %v2917 = vadd.f32 0.0, %v2916
      %v2918 = vpop.f32.mrb[0].mxu0
      %2919 = vmatprep.mubr.f32.mxu0 0.0
      %2920 = vmatmul.mubr.f32.gmra.mrb[0].mxu0 %v2740
      %v2921 = vpop.f32.mrb[0].mxu0
      %v2922 = vadd.f32 0.0, %v2921
      %v2923 = vpop.f32.mrb[0].mxu0
      %2924 = vmatprep.mubr.f32.mxu0 0.0
      %2925 = vmatmul.mubr.f32.gmra.mrb[0].mxu0 %v2743
      %v2926 = vpop.f32.mrb[0].mxu0
      %v2927 = vadd.f32 0.0, %v2926
      %v2928 = vpop.f32.mrb[0].mxu0
      %2929 = vmatprep.mubr.f32.mxu0 0.0
      %2930 = vmatmul.mubr.f32.gmra.mrb[0].mxu0 %v2746
      %v2931 = vpop.f32.mrb[0].mxu0
      %v2932 = vadd.f32 0.0, %v2931
      %v2933 = vpop.f32.mrb[0].mxu0
      %2934 = vmatprep.mubr.f32.mxu0 0.0
      %2935 = vmatmul.mubr.f32.gmra.mrb[0].mxu0 %v2749
      %v2936 = vpop.f32.mrb[0].mxu0
      %v2937 = vadd.f32 0.0, %v2936
      %v2938 = vpop.f32.mrb[0].mxu0
      %2939 = vmatprep.mubr.f32.mxu0 0.0
      %2940 = vmatmul.mubr.f32.gmra.mrb[0].mxu0 %v2752
      %v2941 = vpop.f32.mrb[0].mxu0
      %v2942 = vadd.f32 0.0, %v2941
      %v2943 = vpop.f32.mrb[0].mxu0
      %2944 = vmatprep.mubr.f32.mxu0 0.0
      %2945 = vmatmul.mubr.f32.gmra.mrb[0].mxu0 %v2755
      %v2946 = vpop.f32.mrb[0].mxu0
      %v2947 = vadd.f32 0.0, %v2946
      %v2948 = vpop.f32.mrb[0].mxu0
      %2949 = vmatprep.mubr.f32.mxu0 0.0
      %2950 = vmatmul.mubr.f32.gmra.mrb[0].mxu0 %v2758
      %v2951 = vpop.f32.mrb[0].mxu0
      %v2952 = vadd.f32 0.0, %v2951
      %v2953 = vpop.f32.mrb[0].mxu0
      %2954 = vmatprep.mubr.f32.mxu0 0.0
      %2955 = vmatmul.mubr.f32.gmra.mrb[0].mxu0 %v2761
      %v2956 = vpop.f32.mrb[0].mxu0
      %v2957 = vadd.f32 0.0, %v2956
      %v2958 = vpop.f32.mrb[0].mxu0
      %2959 = vmatprep.mubr.f32.mxu0 0.0
      %2960 = vmatmul.mubr.f32.gmra.mrb[0].mxu0 %v2764
      %v2961 = vpop.f32.mrb[0].mxu0
      %v2962 = vadd.f32 0.0, %v2961
      %v2963 = vpop.f32.mrb[0].mxu0
      %2964 = vmatprep.mubr.f32.mxu0 0.0
      %2965 = vmatmul.mubr.f32.gmra.mrb[0].mxu0 %v2767
      %v2966 = vpop.f32.mrb[0].mxu0
      %v2967 = vadd.f32 0.0, %v2966
      %v2968 = vpop.f32.mrb[0].mxu0
      %2969 = vmatprep.mubr.f32.mxu0 0.0
      %2970 = vmatmul.mubr.f32.gmra.mrb[0].mxu0 %v2770
      %v2971 = vpop.f32.mrb[0].mxu0
      %v2972 = vadd.f32 0.0, %v2971
      %v2973 = vpop.f32.mrb[0].mxu0
      %2974 = vmatprep.mubr.f32.mxu0 0.0
      %2975 = vmatmul.mubr.f32.gmra.mrb[0].mxu0 %v2773
      %v2976 = vpop.f32.mrb[0].mxu0
      %v2977 = vadd.f32 0.0, %v2976
      %v2978 = vpop.f32.mrb[0].mxu0
      %2979 = vmatprep.mubr.f32.mxu0 0.0
      %2980 = vmatmul.mubr.f32.gmra.mrb[0].mxu0 %v2776
      %v2981 = vpop.f32.mrb[0].mxu0
      %v2982 = vadd.f32 0.0, %v2981
      %v2983 = vpop.f32.mrb[0].mxu0
      %2984 = vmatprep.mubr.f32.mxu0 0.0
      %2985 = vmatmul.mubr.f32.gmra.mrb[0].mxu0 %v2779
      %v2986 = vpop.f32.mrb[0].mxu0
      %v2987 = vadd.f32 0.0, %v2986
      %v2988 = vpop.f32.mrb[0].mxu0
      %2989 = vmatprep.mubr.f32.mxu0 0.0
      %2990 = vmatmul.mubr.f32.gmra.mrb[0].mxu0 %v2782
      %v2991 = vpop.f32.mrb[0].mxu0
      %v2992 = vadd.f32 0.0, %v2991
      %v2993 = vpop.f32.mrb[0].mxu0
      %2994 = vmatprep.mubr.f32.mxu0 0.0
      %2995 = vmatmul.mubr.f32.gmra.mrb[0].mxu0 %v2785
      %v2996 = vpop.f32.mrb[0].mxu0
      %v2997 = vadd.f32 0.0, %v2996
      %v2998 = vpop.f32.mrb[0].mxu0
      %2999 = vmatprep.mubr.f32.mxu0 0.0
      %3000 = vmatmul.mubr.f32.gmra.mrb[0].mxu0 %v2788
      %v3001 = vpop.f32.mrb[0].mxu0
      %v3002 = vadd.f32 0.0, %v3001
      %v3003 = vpop.f32.mrb[0].mxu0
      %3004 = vmatprep.mubr.f32.mxu0 0.0
      %3005 = vmatmul.mubr.f32.gmra.mrb[0].mxu0 %v2791
      %v3006 = vpop.f32.mrb[0].mxu0
      %v3007 = vadd.f32 0.0, %v3006
      %v3008 = vpop.f32.mrb[0].mxu0
      %3009 = vmatprep.mubr.f32.mxu0 0.0
      %3010 = vmatmul.mubr.f32.gmra.mrb[0].mxu0 %v2794
      %v3011 = vpop.f32.mrb[0].mxu0
      %v3012 = vadd.f32 0.0, %v3011
      %v3013 = vpop.f32.mrb[0].mxu0
      %3014 = vmatprep.mubr.f32.mxu0 0.0
      %3015 = vmatmul.mubr.f32.gmra.mrb[0].mxu0 %v2797
      %v3016 = vpop.f32.mrb[0].mxu0
      %v3017 = vadd.f32 0.0, %v3016
      %v3018 = vpop.f32.mrb[0].mxu0
      %3019 = vmatprep.mubr.f32.mxu0 0.0
      %3020 = vmatmul.mubr.f32.gmra.mrb[0].mxu0 %v2800
      %v3021 = vpop.f32.mrb[0].mxu0
      %v3022 = vadd.f32 0.0, %v3021
      %v3023 = vpop.f32.mrb[0].mxu0
      %3024 = vmatprep.mubr.f32.mxu0 0.0
      %3025 = vmatmul.mubr.f32.gmra.mrb[0].mxu0 %v2803
      %v3026 = vpop.f32.mrb[0].mxu0
      %v3027 = vadd.f32 0.0, %v3026
      %v3028 = vpop.f32.mrb[0].mxu0
      %3029 = vmatprep.mubr.f32.mxu0 0.0
      %3030 = vmatmul.mubr.f32.gmra.mrb[0].mxu0 %v2806
      %v3031 = vpop.f32.mrb[0].mxu0
      %v3032 = vadd.f32 0.0, %v3031
      %v3033 = vpop.f32.mrb[0].mxu0
      %3034 = vmatprep.mubr.f32.mxu0 0.0
      %3035 = vmatmul.mubr.f32.gmra.mrb[0].mxu0 %v2809
      %v3036 = vpop.f32.mrb[0].mxu0
      %v3037 = vadd.f32 0.0, %v3036
      %v3038 = vpop.f32.mrb[0].mxu0
      %3039 = vmatprep.mubr.f32.mxu0 0.0
      %3040 = vmatmul.mubr.f32.gmra.mrb[0].mxu0 %v2812
      %v3041 = vpop.f32.mrb[0].mxu0
      %v3042 = vadd.f32 0.0, %v3041
      %v3043 = vpop.f32.mrb[0].mxu0
      %3044 = vmatprep.mubr.f32.mxu0 0.0
      %3045 = vmatmul.mubr.f32.gmra.mrb[0].mxu0 %v2815
      %v3046 = vpop.f32.mrb[0].mxu0
      %v3047 = vadd.f32 0.0, %v3046
      %v3048 = vpop.f32.mrb[0].mxu0
      %3049 = vmatprep.mubr.f32.mxu0 0.0
      %3050 = vmatmul.mubr.f32.gmra.mrb[0].mxu0 %v2818
      %v3051 = vpop.f32.mrb[0].mxu0
      %v3052 = vadd.f32 0.0, %v3051
      %v3053 = vpop.f32.mrb[0].mxu0
      %3054 = vmatprep.mubr.f32.mxu0 0.0
      %3055 = vmatmul.mubr.f32.gmra.mrb[0].mxu0 %v2821
      %v3056 = vpop.f32.mrb[0].mxu0
      %v3057 = vadd.f32 0.0, %v3056
      %v3058 = vpop.f32.mrb[0].mxu0
      %3059 = vmatprep.mubr.f32.mxu0 0.0
      %3060 = vmatmul.mubr.f32.gmra.mrb[0].mxu0 %v2824
      %v3061 = vpop.f32.mrb[0].mxu0
      %v3062 = vadd.f32 0.0, %v3061
      %v3063 = vpop.f32.mrb[0].mxu0
      %3064 = vmatprep.mubr.f32.mxu0 0.0
      %3065 = vmatmul.mubr.f32.gmra.mrb[0].mxu0 %v2827
      %v3066 = vpop.f32.mrb[0].mxu0
      %v3067 = vadd.f32 0.0, %v3066
      %v3068 = vpop.f32.mrb[0].mxu0
      %3069 = vmatprep.mubr.f32.mxu0 0.0
      %3070 = vmatmul.mubr.f32.gmra.mrb[0].mxu0 %v2830
      %v3071 = vpop.f32.mrb[0].mxu0
      %v3072 = vadd.f32 0.0, %v3071
      %v3073 = vpop.f32.mrb[0].mxu0
      %3074 = vmatprep.mubr.f32.mxu0 0.0
      %3075 = vmatmul.mubr.f32.gmra.mrb[0].mxu0 %v2833
      %v3076 = vpop.f32.mrb[0].mxu0
      %v3077 = vadd.f32 0.0, %v3076
      %v3078 = vpop.f32.mrb[0].mxu0
      %3079 = vdwg.mxu0
      %3116 = vrot.lane.b32.xlu0 %v2902, 64
      %v3117 = vpop.permute.xlu0 %3116
      %3118 = vrot.lane.b32.xlu0 %v2907, 64
      %v3119 = vpop.permute.xlu0 %3118
      %3120 = vrot.lane.b32.xlu0 %v2912, 64
      %v3121 = vpop.permute.xlu0 %3120
      %3122 = vrot.lane.b32.xlu0 %v2917, 64
      %v3123 = vpop.permute.xlu0 %3122
      %3124 = vrot.lane.b32.xlu0 %v2922, 64
      %v3125 = vpop.permute.xlu0 %3124
      %3126 = vrot.lane.b32.xlu0 %v2927, 64
      %v3127 = vpop.permute.xlu0 %3126
      %3128 = vrot.lane.b32.xlu0 %v2932, 64
      %v3129 = vpop.permute.xlu0 %3128
      %3130 = vrot.lane.b32.xlu0 %v2937, 64
      %v3131 = vpop.permute.xlu0 %3130
      %3132 = vrot.lane.b32.xlu0 %v2942, 64
      %v3133 = vpop.permute.xlu0 %3132
      %3134 = vrot.lane.b32.xlu0 %v2947, 64
      %v3135 = vpop.permute.xlu0 %3134
      %3136 = vrot.lane.b32.xlu0 %v2952, 64
      %v3137 = vpop.permute.xlu0 %3136
      %3138 = vrot.lane.b32.xlu0 %v2957, 64
      %v3139 = vpop.permute.xlu0 %3138
      %3140 = vrot.lane.b32.xlu0 %v2962, 64
      %v3141 = vpop.permute.xlu0 %3140
      %3142 = vrot.lane.b32.xlu0 %v2967, 64
      %v3143 = vpop.permute.xlu0 %3142
      %3144 = vrot.lane.b32.xlu0 %v2972, 64
      %v3145 = vpop.permute.xlu0 %3144
      %3146 = vrot.lane.b32.xlu0 %v2977, 64
      %v3147 = vpop.permute.xlu0 %3146
      %3148 = vrot.lane.b32.xlu0 %v2982, 64
      %v3149 = vpop.permute.xlu0 %3148
      %3150 = vrot.lane.b32.xlu0 %v2987, 64
      %v3151 = vpop.permute.xlu0 %3150
      %3152 = vrot.lane.b32.xlu0 %v2992, 64
      %v3153 = vpop.permute.xlu0 %3152
      %3154 = vrot.lane.b32.xlu0 %v2997, 64
      %v3155 = vpop.permute.xlu0 %3154
      %3156 = vrot.lane.b32.xlu0 %v3002, 64
      %v3157 = vpop.permute.xlu0 %3156
      %3158 = vrot.lane.b32.xlu0 %v3007, 64
      %v3159 = vpop.permute.xlu0 %3158
      %3160 = vrot.lane.b32.xlu0 %v3012, 64
      %v3161 = vpop.permute.xlu0 %3160
      %3162 = vrot.lane.b32.xlu0 %v3017, 64
      %v3163 = vpop.permute.xlu0 %3162
      %3164 = vrot.lane.b32.xlu0 %v3022, 64
      %v3165 = vpop.permute.xlu0 %3164
      %3166 = vrot.lane.b32.xlu0 %v3027, 64
      %v3167 = vpop.permute.xlu0 %3166
      %3168 = vrot.lane.b32.xlu0 %v3032, 64
      %v3169 = vpop.permute.xlu0 %3168
      %3170 = vrot.lane.b32.xlu0 %v3037, 64
      %v3171 = vpop.permute.xlu0 %3170
      %3172 = vrot.lane.b32.xlu0 %v3042, 64
      %v3173 = vpop.permute.xlu0 %3172
      %3174 = vrot.lane.b32.xlu0 %v3047, 64
      %v3175 = vpop.permute.xlu0 %3174
      %3176 = vrot.lane.b32.xlu0 %v3052, 64
      %v3177 = vpop.permute.xlu0 %3176
      %3178 = vrot.lane.b32.xlu0 %v3057, 64
      %v3179 = vpop.permute.xlu0 %3178
      %3180 = vrot.lane.b32.xlu0 %v3062, 64
      %v3181 = vpop.permute.xlu0 %3180
      %3182 = vrot.lane.b32.xlu0 %v3067, 64
      %v3183 = vpop.permute.xlu0 %3182
      %3184 = vrot.lane.b32.xlu0 %v3072, 64
      %v3185 = vpop.permute.xlu0 %3184
      %3186 = vrot.lane.b32.xlu0 %v3077, 64
      %v3187 = vpop.permute.xlu0 %3186
      %v3224 = vmul.f32 %v1089, %v3117
      %v3225 = vmul.f32 %v1093, %v3119
      %v3226 = vmul.f32 %v1099, %v3121
      %v3227 = vmul.f32 %v1103, %v3123
      %v3228 = vmul.f32 %v1109, %v3125
      %v3229 = vmul.f32 %v1113, %v3127
      %v3230 = vmul.f32 %v1119, %v3129
      %v3231 = vmul.f32 %v1123, %v3131
      %v3232 = vmul.f32 %v1129, %v3133
      %v3233 = vmul.f32 %v1133, %v3135
      %v3234 = vmul.f32 %v1139, %v3137
      %v3235 = vmul.f32 %v1143, %v3139
      %v3236 = vmul.f32 %v1149, %v3141
      %v3237 = vmul.f32 %v1153, %v3143
      %v3238 = vmul.f32 %v1159, %v3145
      %v3239 = vmul.f32 %v1163, %v3147
      %v3240 = vmul.f32 %v1169, %v3149
      %v3241 = vmul.f32 %v1173, %v3151
      %v3242 = vmul.f32 %v1179, %v3153
      %v3243 = vmul.f32 %v1183, %v3155
      %v3244 = vmul.f32 %v1189, %v3157
      %v3245 = vmul.f32 %v1193, %v3159
      %v3246 = vmul.f32 %v1199, %v3161
      %v3247 = vmul.f32 %v1203, %v3163
      %v3248 = vmul.f32 %v1209, %v3165
      %v3249 = vmul.f32 %v1213, %v3167
      %v3250 = vmul.f32 %v1219, %v3169
      %v3251 = vmul.f32 %v1223, %v3171
      %v3252 = vmul.f32 %v1229, %v3173
      %v3253 = vmul.f32 %v1233, %v3175
      %v3254 = vmul.f32 %v1239, %v3177
      %v3255 = vmul.f32 %v1243, %v3179
      %v3256 = vmul.f32 %v1249, %v3181
      %v3257 = vmul.f32 %v1253, %v3183
      %v3258 = vmul.f32 %v1259, %v3185
      %v3259 = vmul.f32 %v1263, %v3187
      %v3261 = vlaneseq
      %v3262 = vshrl.u32 %v3261, 7
      %v3263 = vsub.s32 0, %v3262
      %v3264 = vrot.slane %v2265, %v3263
      %3265 = vrot.lane.b32.xlu0 %v3264, 64
      %v3266 = vpop.permute.xlu0 %3265
      %v3268 = vmul.f32 %v3224, %v3266
      %v3269 = vmul.f32 %v3225, %v3266
      %v3270 = vmul.f32 %v3226, %v3266
      %v3271 = vmul.f32 %v3227, %v3266
      %v3272 = vmul.f32 %v3228, %v3266
      %v3273 = vmul.f32 %v3229, %v3266
      %v3274 = vmul.f32 %v3230, %v3266
      %v3275 = vmul.f32 %v3231, %v3266
      %v3276 = vmul.f32 %v3232, %v3266
      %v3277 = vmul.f32 %v3233, %v3266
      %v3278 = vmul.f32 %v3234, %v3266
      %v3279 = vmul.f32 %v3235, %v3266
      %v3280 = vmul.f32 %v3236, %v3266
      %v3281 = vmul.f32 %v3237, %v3266
      %v3282 = vmul.f32 %v3238, %v3266
      %v3283 = vmul.f32 %v3239, %v3266
      %v3284 = vmul.f32 %v3240, %v3266
      %v3285 = vmul.f32 %v3241, %v3266
      %v3286 = vmul.f32 %v3242, %v3266
      %v3287 = vmul.f32 %v3243, %v3266
      %v3288 = vmul.f32 %v3244, %v3266
      %v3289 = vmul.f32 %v3245, %v3266
      %v3290 = vmul.f32 %v3246, %v3266
      %v3291 = vmul.f32 %v3247, %v3266
      %v3292 = vmul.f32 %v3248, %v3266
      %v3293 = vmul.f32 %v3249, %v3266
      %v3294 = vmul.f32 %v3250, %v3266
      %v3295 = vmul.f32 %v3251, %v3266
      %v3296 = vmul.f32 %v3252, %v3266
      %v3297 = vmul.f32 %v3253, %v3266
      %v3298 = vmul.f32 %v3254, %v3266
      %v3299 = vmul.f32 %v3255, %v3266
      %v3300 = vmul.f32 %v3256, %v3266
      %v3301 = vmul.f32 %v3257, %v3266
      %v3302 = vmul.f32 %v3258, %v3266
      %v3303 = vmul.f32 %v3259, %v3266
      %v3304 = vpack.c.bf16 %v3269, %v3268
      %v3305 = vpack.c.bf16 %v3271, %v3270
      %v3306 = vpack.c.bf16 %v3273, %v3272
      %v3307 = vpack.c.bf16 %v3275, %v3274
      %v3308 = vpack.c.bf16 %v3277, %v3276
      %v3309 = vpack.c.bf16 %v3279, %v3278
      %v3310 = vpack.c.bf16 %v3281, %v3280
      %v3311 = vpack.c.bf16 %v3283, %v3282
      %v3312 = vpack.c.bf16 %v3285, %v3284
      %v3313 = vpack.c.bf16 %v3287, %v3286
      %v3314 = vpack.c.bf16 %v3289, %v3288
      %v3315 = vpack.c.bf16 %v3291, %v3290
      %v3316 = vpack.c.bf16 %v3293, %v3292
      %v3317 = vpack.c.bf16 %v3295, %v3294
      %v3318 = vpack.c.bf16 %v3297, %v3296
      %v3319 = vpack.c.bf16 %v3299, %v3298
      %v3320 = vpack.c.bf16 %v3301, %v3300
      %v3321 = vpack.c.bf16 %v3303, %v3302
      %v3340 = vunpack.c.l.b16 %v3304
      %v3341 = vunpack.c.h.b16 %v3304
      %v3342 = vunpack.c.l.b16 %v3305
      %v3343 = vunpack.c.h.b16 %v3305
      %v3344 = vunpack.c.l.b16 %v3306
      %v3345 = vunpack.c.h.b16 %v3306
      %v3346 = vunpack.c.l.b16 %v3307
      %v3347 = vunpack.c.h.b16 %v3307
      %v3348 = vunpack.c.l.b16 %v3308
      %v3349 = vunpack.c.h.b16 %v3308
      %v3350 = vunpack.c.l.b16 %v3309
      %v3351 = vunpack.c.h.b16 %v3309
      %v3352 = vunpack.c.l.b16 %v3310
      %v3353 = vunpack.c.h.b16 %v3310
      %v3354 = vunpack.c.l.b16 %v3311
      %v3355 = vunpack.c.h.b16 %v3311
      %v3356 = vunpack.c.l.b16 %v3312
      %v3357 = vunpack.c.h.b16 %v3312
      %v3358 = vunpack.c.l.b16 %v3313
      %v3359 = vunpack.c.h.b16 %v3313
      %v3360 = vunpack.c.l.b16 %v3314
      %v3361 = vunpack.c.h.b16 %v3314
      %v3362 = vunpack.c.l.b16 %v3315
      %v3363 = vunpack.c.h.b16 %v3315
      %v3364 = vunpack.c.l.b16 %v3316
      %v3365 = vunpack.c.h.b16 %v3316
      %v3366 = vunpack.c.l.b16 %v3317
      %v3367 = vunpack.c.h.b16 %v3317
      %v3368 = vunpack.c.l.b16 %v3318
      %v3369 = vunpack.c.h.b16 %v3318
      %v3370 = vunpack.c.l.b16 %v3319
      %v3371 = vunpack.c.h.b16 %v3319
      %v3372 = vunpack.c.l.b16 %v3320
      %v3373 = vunpack.c.h.b16 %v3320
      %v3374 = vunpack.c.l.b16 %v3321
      %v3375 = vunpack.c.h.b16 %v3321
      %v3376 = vpack.c.bf16 %v1095, %v1091
      %v3377 = vpack.c.bf16 %v1105, %v1101
      %v3378 = vpack.c.bf16 %v1115, %v1111
      %v3379 = vpack.c.bf16 %v1125, %v1121
      %v3380 = vpack.c.bf16 %v1135, %v1131
      %v3381 = vpack.c.bf16 %v1145, %v1141
      %v3382 = vpack.c.bf16 %v1155, %v1151
      %v3383 = vpack.c.bf16 %v1165, %v1161
      %v3384 = vpack.c.bf16 %v1175, %v1171
      %v3385 = vpack.c.bf16 %v1185, %v1181
      %v3386 = vpack.c.bf16 %v1195, %v1191
      %v3387 = vpack.c.bf16 %v1205, %v1201
      %v3388 = vpack.c.bf16 %v1215, %v1211
      %v3389 = vpack.c.bf16 %v1225, %v1221
      %v3390 = vpack.c.bf16 %v1235, %v1231
      %v3391 = vpack.c.bf16 %v1245, %v1241
      %v3392 = vpack.c.bf16 %v1255, %v1251
      %v3393 = vpack.c.bf16 %v1265, %v1261
      %v3412 = vunpack.c.l.b16 %v3376
      %v3413 = vunpack.c.h.b16 %v3376
      %v3414 = vunpack.c.l.b16 %v3377
      %v3415 = vunpack.c.h.b16 %v3377
      %v3416 = vunpack.c.l.b16 %v3378
      %v3417 = vunpack.c.h.b16 %v3378
      %v3418 = vunpack.c.l.b16 %v3379
      %v3419 = vunpack.c.h.b16 %v3379
      %v3420 = vunpack.c.l.b16 %v3380
      %v3421 = vunpack.c.h.b16 %v3380
      %v3422 = vunpack.c.l.b16 %v3381
      %v3423 = vunpack.c.h.b16 %v3381
      %v3424 = vunpack.c.l.b16 %v3382
      %v3425 = vunpack.c.h.b16 %v3382
      %v3426 = vunpack.c.l.b16 %v3383
      %v3427 = vunpack.c.h.b16 %v3383
      %v3428 = vunpack.c.l.b16 %v3384
      %v3429 = vunpack.c.h.b16 %v3384
      %v3430 = vunpack.c.l.b16 %v3385
      %v3431 = vunpack.c.h.b16 %v3385
      %v3432 = vunpack.c.l.b16 %v3386
      %v3433 = vunpack.c.h.b16 %v3386
      %v3434 = vunpack.c.l.b16 %v3387
      %v3435 = vunpack.c.h.b16 %v3387
      %v3436 = vunpack.c.l.b16 %v3388
      %v3437 = vunpack.c.h.b16 %v3388
      %v3438 = vunpack.c.l.b16 %v3389
      %v3439 = vunpack.c.h.b16 %v3389
      %v3440 = vunpack.c.l.b16 %v3390
      %v3441 = vunpack.c.h.b16 %v3390
      %v3442 = vunpack.c.l.b16 %v3391
      %v3443 = vunpack.c.h.b16 %v3391
      %v3444 = vunpack.c.l.b16 %v3392
      %v3445 = vunpack.c.h.b16 %v3392
      %v3446 = vunpack.c.l.b16 %v3393
      %v3447 = vunpack.c.h.b16 %v3393
      %v3448 = vld [vmem:[%s7] sm:$0xf]
      %v3449 = vld [vmem:[%s7 + $0x4] sm:$0xf]
      %v3450 = vld [vmem:[%s7 + $0x8] sm:$0xf]
      %v3451 = vld [vmem:[%s7 + $0xc] sm:$0xf]
      %v3452 = vld [vmem:[%s7 + $0x10] sm:$0xf]
      %v3453 = vld [vmem:[%s7 + $0x14] sm:$0xf]
      %v3454 = vld [vmem:[%s7 + $0x18] sm:$0xf]
      %v3455 = vld [vmem:[%s7 + $0x1c] sm:$0xf]
      %v3456 = vld [vmem:[%s7 + $0x20] sm:$0xf]
      %v3457 = vunpack.c.l.bf16 %v3448
      %v3458 = vunpack.c.l.bf16 %v3449
      %v3459 = vunpack.c.l.bf16 %v3450
      %v3460 = vunpack.c.l.bf16 %v3451
      %v3461 = vunpack.c.l.bf16 %v3452
      %v3462 = vunpack.c.l.bf16 %v3453
      %v3463 = vunpack.c.l.bf16 %v3454
      %v3464 = vunpack.c.l.bf16 %v3455
      %v3465 = vunpack.c.l.bf16 %v3456
      %v3466 = vpack.c.b16 %v2230, %v2229
      %v3467 = vpack.c.b16 %v2232, %v2231
      %v3468 = vpack.c.b16 %v2234, %v2233
      %v3469 = vpack.c.b16 %v2236, %v2235
      %v3470 = vpack.c.b16 %v2237, %v2237
      %v3471 = vpack.c.b16 %v3341, %v3340
      %v3472 = vpack.c.b16 %v3343, %v3342
      %v3473 = vpack.c.b16 %v3345, %v3344
      %v3474 = vpack.c.b16 %v3347, %v3346
      %v3475 = vpack.c.b16 %v3348, %v3348
      %3476 = vrot.lane.b32.xlu0 %v3471, 64
      %v3477 = vpop.permute.xlu0 %3476
      %3478 = vrot.lane.b32.xlu0 %v3472, 64
      %v3479 = vpop.permute.xlu0 %3478
      %3480 = vrot.lane.b32.xlu0 %v3473, 64
      %v3481 = vpop.permute.xlu0 %3480
      %3482 = vrot.lane.b32.xlu0 %v3474, 64
      %v3483 = vpop.permute.xlu0 %3482
      %3484 = vrot.lane.b32.xlu0 %v3475, 64
      %v3485 = vpop.permute.xlu0 %3484
      %vm3486 = vcmask 130048
      %v3488 = vsel %vm3486, %v3466, 0
      %v3491 = vsel %vm3486, %v3467, 0
      %v3494 = vsel %vm3486, %v3468, 0
      %v3497 = vsel %vm3486, %v3469, 0
      %v3500 = vsel %vm3486, %v3470, 0
      %v3503 = vsel %vm3486, %v3477, 0
      %v3506 = vsel %vm3486, %v3479, 0
      %v3509 = vsel %vm3486, %v3481, 0
      %v3512 = vsel %vm3486, %v3483, 0
      %v3515 = vsel %vm3486, %v3485, 0
      %3517 = vmatprep.subr.bf16.mxu0 0
      %3518 = vmatpush1.bf16.xpose.msra.mxu0 %v3503
      %3519 = vmatprep.subr.bf16.mxu0 0
      %3520 = vmatpush1.bf16.xpose.msra.mxu0 %v3506
      %3521 = vmatprep.subr.bf16.mxu0 0
      %3522 = vmatpush1.bf16.xpose.msra.mxu0 %v3509
      %3523 = vmatprep.subr.bf16.mxu0 0
      %3524 = vmatpush1.bf16.xpose.msra.mxu0 %v3512
      %3525 = vmatprep.subr.bf16.mxu0 0
      %3526 = vmatpush1.bf16.xpose.msra.mxu0 %v3515
      %3527 = vmatprep.subr.bf16.mxu0 0
      %3528 = vmatpush1.bf16.xpose.msra.mxu0 0
      %3529 = vmatprep.subr.bf16.mxu0 0
      %3530 = vmatpush1.bf16.xpose.msra.mxu0 0
      %3531 = vmatprep.subr.bf16.mxu0 0
      %3532 = vmatpush1.bf16.xpose.msra.mxu0 0
      %3533 = vmatprep.subr.bf16.mxu0 0
      %3534 = vmatpush1.bf16.xpose.msra.mxu0 0
      %3535 = vmatprep.subr.bf16.mxu0 0
      %3536 = vmatpush1.bf16.xpose.msra.mxu0 0
      %3537 = vmatprep.subr.bf16.mxu0 0
      %3538 = vmatpush1.bf16.xpose.msra.mxu0 0
      %3539 = vmatprep.subr.bf16.mxu0 0
      %3540 = vmatpush1.bf16.xpose.msra.mxu0 0
      %3541 = vmatprep.subr.bf16.mxu0 0
      %3542 = vmatpush1.bf16.xpose.msra.mxu0 0
      %3543 = vmatprep.subr.bf16.mxu0 0
      %3544 = vmatpush1.bf16.xpose.msra.mxu0 0
      %3545 = vmatprep.subr.bf16.mxu0 0
      %3546 = vmatpush1.bf16.xpose.msra.mxu0 0
      %3547 = vmatprep.subr.bf16.mxu0 0
      %3548 = vmatpush1.bf16.xpose.msra.mxu0 0
      %3549 = vmatprep.mubr.bf16.mxu0 0
      %3550 = vmatmul.mubr.bf16.gmra.mrb[0].mxu0 %v3488
      %v3551 = vpop.f32.mrb[0].mxu0
      %v3552 = vadd.f32 %v3457, %v3551
      %v3553 = vpop.f32.mrb[0].mxu0
      %v3554 = vpop.f32.mrb[0].mxu0
      %v3555 = vadd.f32 %v3458, %v3554
      %v3556 = vpop.f32.mrb[0].mxu0
      %3557 = vmatprep.mubr.bf16.mxu0 0
      %3558 = vmatmul.mubr.bf16.gmra.mrb[0].mxu0 %v3491
      %v3559 = vpop.f32.mrb[0].mxu0
      %v3560 = vadd.f32 %v3459, %v3559
      %v3561 = vpop.f32.mrb[0].mxu0
      %v3562 = vpop.f32.mrb[0].mxu0
      %v3563 = vadd.f32 %v3460, %v3562
      %v3564 = vpop.f32.mrb[0].mxu0
      %3565 = vmatprep.mubr.bf16.mxu0 0
      %3566 = vmatmul.mubr.bf16.gmra.mrb[0].mxu0 %v3494
      %v3567 = vpop.f32.mrb[0].mxu0
      %v3568 = vadd.f32 %v3461, %v3567
      %v3569 = vpop.f32.mrb[0].mxu0
      %v3570 = vpop.f32.mrb[0].mxu0
      %v3571 = vadd.f32 %v3462, %v3570
      %v3572 = vpop.f32.mrb[0].mxu0
      %3573 = vmatprep.mubr.bf16.mxu0 0
      %3574 = vmatmul.mubr.bf16.gmra.mrb[0].mxu0 %v3497
      %v3575 = vpop.f32.mrb[0].mxu0
      %v3576 = vadd.f32 %v3463, %v3575
      %v3577 = vpop.f32.mrb[0].mxu0
      %v3578 = vpop.f32.mrb[0].mxu0
      %v3579 = vadd.f32 %v3464, %v3578
      %v3580 = vpop.f32.mrb[0].mxu0
      %3581 = vmatprep.mubr.bf16.mxu0 0
      %3582 = vmatmul.mubr.bf16.gmra.mrb[0].mxu0 %v3500
      %v3583 = vpop.f32.mrb[0].mxu0
      %v3584 = vadd.f32 %v3465, %v3583
      %v3585 = vpop.f32.mrb[0].mxu0
      %v3586 = vpop.f32.mrb[0].mxu0
      %v3587 = vpop.f32.mrb[0].mxu0
      %3588 = vdwg.mxu0
      %v3589 = vpack.c.b16 %v2239, %v2238
      %v3590 = vpack.c.b16 %v2241, %v2240
      %v3591 = vpack.c.b16 %v2243, %v2242
      %v3592 = vpack.c.b16 %v2245, %v2244
      %v3593 = vpack.c.b16 %v2246, %v2246
      %v3594 = vpack.c.b16 %v3350, %v3349
      %v3595 = vpack.c.b16 %v3352, %v3351
      %v3596 = vpack.c.b16 %v3354, %v3353
      %v3597 = vpack.c.b16 %v3356, %v3355
      %v3598 = vpack.c.b16 %v3357, %v3357
      %3599 = vrot.lane.b32.xlu0 %v3594, 64
      %v3600 = vpop.permute.xlu0 %3599
      %3601 = vrot.lane.b32.xlu0 %v3595, 64
      %v3602 = vpop.permute.xlu0 %3601
      %3603 = vrot.lane.b32.xlu0 %v3596, 64
      %v3604 = vpop.permute.xlu0 %3603
      %3605 = vrot.lane.b32.xlu0 %v3597, 64
      %v3606 = vpop.permute.xlu0 %3605
      %3607 = vrot.lane.b32.xlu0 %v3598, 64
      %v3608 = vpop.permute.xlu0 %3607
      %v3610 = vsel %vm3486, %v3589, 0
      %v3613 = vsel %vm3486, %v3590, 0
      %v3616 = vsel %vm3486, %v3591, 0
      %v3619 = vsel %vm3486, %v3592, 0
      %v3622 = vsel %vm3486, %v3593, 0
      %v3625 = vsel %vm3486, %v3600, 0
      %v3628 = vsel %vm3486, %v3602, 0
      %v3631 = vsel %vm3486, %v3604, 0
      %v3634 = vsel %vm3486, %v3606, 0
      %v3637 = vsel %vm3486, %v3608, 0
      %3639 = vmatprep.subr.bf16.mxu0 0
      %3640 = vmatpush1.bf16.xpose.msra.mxu0 %v3625
      %3641 = vmatprep.subr.bf16.mxu0 0
      %3642 = vmatpush1.bf16.xpose.msra.mxu0 %v3628
      %3643 = vmatprep.subr.bf16.mxu0 0
      %3644 = vmatpush1.bf16.xpose.msra.mxu0 %v3631
      %3645 = vmatprep.subr.bf16.mxu0 0
      %3646 = vmatpush1.bf16.xpose.msra.mxu0 %v3634
      %3647 = vmatprep.subr.bf16.mxu0 0
      %3648 = vmatpush1.bf16.xpose.msra.mxu0 %v3637
      %3649 = vmatprep.subr.bf16.mxu0 0
      %3650 = vmatpush1.bf16.xpose.msra.mxu0 0
      %3651 = vmatprep.subr.bf16.mxu0 0
      %3652 = vmatpush1.bf16.xpose.msra.mxu0 0
      %3653 = vmatprep.subr.bf16.mxu0 0
      %3654 = vmatpush1.bf16.xpose.msra.mxu0 0
      %3655 = vmatprep.subr.bf16.mxu0 0
      %3656 = vmatpush1.bf16.xpose.msra.mxu0 0
      %3657 = vmatprep.subr.bf16.mxu0 0
      %3658 = vmatpush1.bf16.xpose.msra.mxu0 0
      %3659 = vmatprep.subr.bf16.mxu0 0
      %3660 = vmatpush1.bf16.xpose.msra.mxu0 0
      %3661 = vmatprep.subr.bf16.mxu0 0
      %3662 = vmatpush1.bf16.xpose.msra.mxu0 0
      %3663 = vmatprep.subr.bf16.mxu0 0
      %3664 = vmatpush1.bf16.xpose.msra.mxu0 0
      %3665 = vmatprep.subr.bf16.mxu0 0
      %3666 = vmatpush1.bf16.xpose.msra.mxu0 0
      %3667 = vmatprep.subr.bf16.mxu0 0
      %3668 = vmatpush1.bf16.xpose.msra.mxu0 0
      %3669 = vmatprep.subr.bf16.mxu0 0
      %3670 = vmatpush1.bf16.xpose.msra.mxu0 0
      %3671 = vmatprep.mubr.bf16.mxu0 0
      %3672 = vmatmul.mubr.bf16.gmra.mrb[0].mxu0 %v3610
      %v3673 = vpop.f32.mrb[0].mxu0
      %v3674 = vadd.f32 %v3457, %v3673
      %v3675 = vpop.f32.mrb[0].mxu0
      %v3676 = vpop.f32.mrb[0].mxu0
      %v3677 = vadd.f32 %v3458, %v3676
      %v3678 = vpop.f32.mrb[0].mxu0
      %3679 = vmatprep.mubr.bf16.mxu0 0
      %3680 = vmatmul.mubr.bf16.gmra.mrb[0].mxu0 %v3613
      %v3681 = vpop.f32.mrb[0].mxu0
      %v3682 = vadd.f32 %v3459, %v3681
      %v3683 = vpop.f32.mrb[0].mxu0
      %v3684 = vpop.f32.mrb[0].mxu0
      %v3685 = vadd.f32 %v3460, %v3684
      %v3686 = vpop.f32.mrb[0].mxu0
      %3687 = vmatprep.mubr.bf16.mxu0 0
      %3688 = vmatmul.mubr.bf16.gmra.mrb[0].mxu0 %v3616
      %v3689 = vpop.f32.mrb[0].mxu0
      %v3690 = vadd.f32 %v3461, %v3689
      %v3691 = vpop.f32.mrb[0].mxu0
      %v3692 = vpop.f32.mrb[0].mxu0
      %v3693 = vadd.f32 %v3462, %v3692
      %v3694 = vpop.f32.mrb[0].mxu0
      %3695 = vmatprep.mubr.bf16.mxu0 0
      %3696 = vmatmul.mubr.bf16.gmra.mrb[0].mxu0 %v3619
      %v3697 = vpop.f32.mrb[0].mxu0
      %v3698 = vadd.f32 %v3463, %v3697
      %v3699 = vpop.f32.mrb[0].mxu0
      %v3700 = vpop.f32.mrb[0].mxu0
      %v3701 = vadd.f32 %v3464, %v3700
      %v3702 = vpop.f32.mrb[0].mxu0
      %3703 = vmatprep.mubr.bf16.mxu0 0
      %3704 = vmatmul.mubr.bf16.gmra.mrb[0].mxu0 %v3622
      %v3705 = vpop.f32.mrb[0].mxu0
      %v3706 = vadd.f32 %v3465, %v3705
      %v3707 = vpop.f32.mrb[0].mxu0
      %v3708 = vpop.f32.mrb[0].mxu0
      %v3709 = vpop.f32.mrb[0].mxu0
      %3710 = vdwg.mxu0
      %v3711 = vpack.c.b16 %v2248, %v2247
      %v3712 = vpack.c.b16 %v2250, %v2249
      %v3713 = vpack.c.b16 %v2252, %v2251
      %v3714 = vpack.c.b16 %v2254, %v2253
      %v3715 = vpack.c.b16 %v2255, %v2255
      %v3716 = vpack.c.b16 %v3359, %v3358
      %v3717 = vpack.c.b16 %v3361, %v3360
      %v3718 = vpack.c.b16 %v3363, %v3362
      %v3719 = vpack.c.b16 %v3365, %v3364
      %v3720 = vpack.c.b16 %v3366, %v3366
      %3721 = vrot.lane.b32.xlu0 %v3716, 64
      %v3722 = vpop.permute.xlu0 %3721
      %3723 = vrot.lane.b32.xlu0 %v3717, 64
      %v3724 = vpop.permute.xlu0 %3723
      %3725 = vrot.lane.b32.xlu0 %v3718, 64
      %v3726 = vpop.permute.xlu0 %3725
      %3727 = vrot.lane.b32.xlu0 %v3719, 64
      %v3728 = vpop.permute.xlu0 %3727
      %3729 = vrot.lane.b32.xlu0 %v3720, 64
      %v3730 = vpop.permute.xlu0 %3729
      %v3732 = vsel %vm3486, %v3711, 0
      %v3735 = vsel %vm3486, %v3712, 0
      %v3738 = vsel %vm3486, %v3713, 0
      %v3741 = vsel %vm3486, %v3714, 0
      %v3744 = vsel %vm3486, %v3715, 0
      %v3747 = vsel %vm3486, %v3722, 0
      %v3750 = vsel %vm3486, %v3724, 0
      %v3753 = vsel %vm3486, %v3726, 0
      %v3756 = vsel %vm3486, %v3728, 0
      %v3759 = vsel %vm3486, %v3730, 0
      %3761 = vmatprep.subr.bf16.mxu0 0
      %3762 = vmatpush1.bf16.xpose.msra.mxu0 %v3747
      %3763 = vmatprep.subr.bf16.mxu0 0
      %3764 = vmatpush1.bf16.xpose.msra.mxu0 %v3750
      %3765 = vmatprep.subr.bf16.mxu0 0
      %3766 = vmatpush1.bf16.xpose.msra.mxu0 %v3753
      %3767 = vmatprep.subr.bf16.mxu0 0
      %3768 = vmatpush1.bf16.xpose.msra.mxu0 %v3756
      %3769 = vmatprep.subr.bf16.mxu0 0
      %3770 = vmatpush1.bf16.xpose.msra.mxu0 %v3759
      %3771 = vmatprep.subr.bf16.mxu0 0
      %3772 = vmatpush1.bf16.xpose.msra.mxu0 0
      %3773 = vmatprep.subr.bf16.mxu0 0
      %3774 = vmatpush1.bf16.xpose.msra.mxu0 0
      %3775 = vmatprep.subr.bf16.mxu0 0
      %3776 = vmatpush1.bf16.xpose.msra.mxu0 0
      %3777 = vmatprep.subr.bf16.mxu0 0
      %3778 = vmatpush1.bf16.xpose.msra.mxu0 0
      %3779 = vmatprep.subr.bf16.mxu0 0
      %3780 = vmatpush1.bf16.xpose.msra.mxu0 0
      %3781 = vmatprep.subr.bf16.mxu0 0
      %3782 = vmatpush1.bf16.xpose.msra.mxu0 0
      %3783 = vmatprep.subr.bf16.mxu0 0
      %3784 = vmatpush1.bf16.xpose.msra.mxu0 0
      %3785 = vmatprep.subr.bf16.mxu0 0
      %3786 = vmatpush1.bf16.xpose.msra.mxu0 0
      %3787 = vmatprep.subr.bf16.mxu0 0
      %3788 = vmatpush1.bf16.xpose.msra.mxu0 0
      %3789 = vmatprep.subr.bf16.mxu0 0
      %3790 = vmatpush1.bf16.xpose.msra.mxu0 0
      %3791 = vmatprep.subr.bf16.mxu0 0
      %3792 = vmatpush1.bf16.xpose.msra.mxu0 0
      %3793 = vmatprep.mubr.bf16.mxu0 0
      %3794 = vmatmul.mubr.bf16.gmra.mrb[0].mxu0 %v3732
      %v3795 = vpop.f32.mrb[0].mxu0
      %v3796 = vadd.f32 %v3457, %v3795
      %v3797 = vpop.f32.mrb[0].mxu0
      %v3798 = vpop.f32.mrb[0].mxu0
      %v3799 = vadd.f32 %v3458, %v3798
      %v3800 = vpop.f32.mrb[0].mxu0
      %3801 = vmatprep.mubr.bf16.mxu0 0
      %3802 = vmatmul.mubr.bf16.gmra.mrb[0].mxu0 %v3735
      %v3803 = vpop.f32.mrb[0].mxu0
      %v3804 = vadd.f32 %v3459, %v3803
      %v3805 = vpop.f32.mrb[0].mxu0
      %v3806 = vpop.f32.mrb[0].mxu0
      %v3807 = vadd.f32 %v3460, %v3806
      %v3808 = vpop.f32.mrb[0].mxu0
      %3809 = vmatprep.mubr.bf16.mxu0 0
      %3810 = vmatmul.mubr.bf16.gmra.mrb[0].mxu0 %v3738
      %v3811 = vpop.f32.mrb[0].mxu0
      %v3812 = vadd.f32 %v3461, %v3811
      %v3813 = vpop.f32.mrb[0].mxu0
      %v3814 = vpop.f32.mrb[0].mxu0
      %v3815 = vadd.f32 %v3462, %v3814
      %v3816 = vpop.f32.mrb[0].mxu0
      %3817 = vmatprep.mubr.bf16.mxu0 0
      %3818 = vmatmul.mubr.bf16.gmra.mrb[0].mxu0 %v3741
      %v3819 = vpop.f32.mrb[0].mxu0
      %v3820 = vadd.f32 %v3463, %v3819
      %v3821 = vpop.f32.mrb[0].mxu0
      %v3822 = vpop.f32.mrb[0].mxu0
      %v3823 = vadd.f32 %v3464, %v3822
      %v3824 = vpop.f32.mrb[0].mxu0
      %3825 = vmatprep.mubr.bf16.mxu0 0
      %3826 = vmatmul.mubr.bf16.gmra.mrb[0].mxu0 %v3744
      %v3827 = vpop.f32.mrb[0].mxu0
      %v3828 = vadd.f32 %v3465, %v3827
      %v3829 = vpop.f32.mrb[0].mxu0
      %v3830 = vpop.f32.mrb[0].mxu0
      %v3831 = vpop.f32.mrb[0].mxu0
      %3832 = vdwg.mxu0
      %v3833 = vpack.c.b16 %v2257, %v2256
      %v3834 = vpack.c.b16 %v2259, %v2258
      %v3835 = vpack.c.b16 %v2261, %v2260
      %v3836 = vpack.c.b16 %v2263, %v2262
      %v3837 = vpack.c.b16 %v2264, %v2264
      %v3838 = vpack.c.b16 %v3368, %v3367
      %v3839 = vpack.c.b16 %v3370, %v3369
      %v3840 = vpack.c.b16 %v3372, %v3371
      %v3841 = vpack.c.b16 %v3374, %v3373
      %v3842 = vpack.c.b16 %v3375, %v3375
      %3843 = vrot.lane.b32.xlu0 %v3838, 64
      %v3844 = vpop.permute.xlu0 %3843
      %3845 = vrot.lane.b32.xlu0 %v3839, 64
      %v3846 = vpop.permute.xlu0 %3845
      %3847 = vrot.lane.b32.xlu0 %v3840, 64
      %v3848 = vpop.permute.xlu0 %3847
      %3849 = vrot.lane.b32.xlu0 %v3841, 64
      %v3850 = vpop.permute.xlu0 %3849
      %3851 = vrot.lane.b32.xlu0 %v3842, 64
      %v3852 = vpop.permute.xlu0 %3851
      %v3854 = vsel %vm3486, %v3833, 0
      %v3857 = vsel %vm3486, %v3834, 0
      %v3860 = vsel %vm3486, %v3835, 0
      %v3863 = vsel %vm3486, %v3836, 0
      %v3866 = vsel %vm3486, %v3837, 0
      %v3869 = vsel %vm3486, %v3844, 0
      %v3872 = vsel %vm3486, %v3846, 0
      %v3875 = vsel %vm3486, %v3848, 0
      %v3878 = vsel %vm3486, %v3850, 0
      %v3881 = vsel %vm3486, %v3852, 0
      %3883 = vmatprep.subr.bf16.mxu0 0
      %3884 = vmatpush1.bf16.xpose.msra.mxu0 %v3869
      %3885 = vmatprep.subr.bf16.mxu0 0
      %3886 = vmatpush1.bf16.xpose.msra.mxu0 %v3872
      %3887 = vmatprep.subr.bf16.mxu0 0
      %3888 = vmatpush1.bf16.xpose.msra.mxu0 %v3875
      %3889 = vmatprep.subr.bf16.mxu0 0
      %3890 = vmatpush1.bf16.xpose.msra.mxu0 %v3878
      %3891 = vmatprep.subr.bf16.mxu0 0
      %3892 = vmatpush1.bf16.xpose.msra.mxu0 %v3881
      %3893 = vmatprep.subr.bf16.mxu0 0
      %3894 = vmatpush1.bf16.xpose.msra.mxu0 0
      %3895 = vmatprep.subr.bf16.mxu0 0
      %3896 = vmatpush1.bf16.xpose.msra.mxu0 0
      %3897 = vmatprep.subr.bf16.mxu0 0
      %3898 = vmatpush1.bf16.xpose.msra.mxu0 0
      %3899 = vmatprep.subr.bf16.mxu0 0
      %3900 = vmatpush1.bf16.xpose.msra.mxu0 0
      %3901 = vmatprep.subr.bf16.mxu0 0
      %3902 = vmatpush1.bf16.xpose.msra.mxu0 0
      %3903 = vmatprep.subr.bf16.mxu0 0
      %3904 = vmatpush1.bf16.xpose.msra.mxu0 0
      %3905 = vmatprep.subr.bf16.mxu0 0
      %3906 = vmatpush1.bf16.xpose.msra.mxu0 0
      %3907 = vmatprep.subr.bf16.mxu0 0
      %3908 = vmatpush1.bf16.xpose.msra.mxu0 0
      %3909 = vmatprep.subr.bf16.mxu0 0
      %3910 = vmatpush1.bf16.xpose.msra.mxu0 0
      %3911 = vmatprep.subr.bf16.mxu0 0
      %3912 = vmatpush1.bf16.xpose.msra.mxu0 0
      %3913 = vmatprep.subr.bf16.mxu0 0
      %3914 = vmatpush1.bf16.xpose.msra.mxu0 0
      %3915 = vmatprep.mubr.bf16.mxu0 0
      %3916 = vmatmul.mubr.bf16.gmra.mrb[0].mxu0 %v3854
      %v3917 = vpop.f32.mrb[0].mxu0
      %v3918 = vadd.f32 %v3457, %v3917
      %v3919 = vpop.f32.mrb[0].mxu0
      %v3920 = vpop.f32.mrb[0].mxu0
      %v3921 = vadd.f32 %v3458, %v3920
      %v3922 = vpop.f32.mrb[0].mxu0
      %3923 = vmatprep.mubr.bf16.mxu0 0
      %3924 = vmatmul.mubr.bf16.gmra.mrb[0].mxu0 %v3857
      %v3925 = vpop.f32.mrb[0].mxu0
      %v3926 = vadd.f32 %v3459, %v3925
      %v3927 = vpop.f32.mrb[0].mxu0
      %v3928 = vpop.f32.mrb[0].mxu0
      %v3929 = vadd.f32 %v3460, %v3928
      %v3930 = vpop.f32.mrb[0].mxu0
      %3931 = vmatprep.mubr.bf16.mxu0 0
      %3932 = vmatmul.mubr.bf16.gmra.mrb[0].mxu0 %v3860
      %v3933 = vpop.f32.mrb[0].mxu0
      %v3934 = vadd.f32 %v3461, %v3933
      %v3935 = vpop.f32.mrb[0].mxu0
      %v3936 = vpop.f32.mrb[0].mxu0
      %v3937 = vadd.f32 %v3462, %v3936
      %v3938 = vpop.f32.mrb[0].mxu0
      %3939 = vmatprep.mubr.bf16.mxu0 0
      %3940 = vmatmul.mubr.bf16.gmra.mrb[0].mxu0 %v3863
      %v3941 = vpop.f32.mrb[0].mxu0
      %v3942 = vadd.f32 %v3463, %v3941
      %v3943 = vpop.f32.mrb[0].mxu0
      %v3944 = vpop.f32.mrb[0].mxu0
      %v3945 = vadd.f32 %v3464, %v3944
      %v3946 = vpop.f32.mrb[0].mxu0
      %3947 = vmatprep.mubr.bf16.mxu0 0
      %3948 = vmatmul.mubr.bf16.gmra.mrb[0].mxu0 %v3866
      %v3949 = vpop.f32.mrb[0].mxu0
      %v3950 = vadd.f32 %v3465, %v3949
      %v3951 = vpop.f32.mrb[0].mxu0
      %v3952 = vpop.f32.mrb[0].mxu0
      %v3953 = vpop.f32.mrb[0].mxu0
      %3954 = vdwg.mxu0
      %vm3955 = vcmask 588800
      %v3956 = vsel %vm3955, %v3552, -inf
      %3957 = vmax.xlane.f32.xlu0 %v3956
      %v3958 = vpop.xlane.xlu0 %3957
      %v3959 = vsel %vm3955, %v3555, -inf
      %3960 = vmax.xlane.f32.xlu0 %v3959
      %v3961 = vpop.xlane.xlu0 %3960
      %v3962 = vsel %vm3955, %v3560, -inf
      %3963 = vmax.xlane.f32.xlu0 %v3962
      %v3964 = vpop.xlane.xlu0 %3963
      %v3965 = vsel %vm3955, %v3563, -inf
      %3966 = vmax.xlane.f32.xlu0 %v3965
      %v3967 = vpop.xlane.xlu0 %3966
      %v3968 = vsel %vm3955, %v3568, -inf
      %3969 = vmax.xlane.f32.xlu0 %v3968
      %v3970 = vpop.xlane.xlu0 %3969
      %v3971 = vsel %vm3955, %v3571, -inf
      %3972 = vmax.xlane.f32.xlu0 %v3971
      %v3973 = vpop.xlane.xlu0 %3972
      %v3974 = vsel %vm3955, %v3576, -inf
      %3975 = vmax.xlane.f32.xlu0 %v3974
      %v3976 = vpop.xlane.xlu0 %3975
      %v3977 = vsel %vm3955, %v3579, -inf
      %3978 = vmax.xlane.f32.xlu0 %v3977
      %v3979 = vpop.xlane.xlu0 %3978
      %v3980 = vsel %vm3955, %v3584, -inf
      %3981 = vmax.xlane.f32.xlu0 %v3980
      %v3982 = vpop.xlane.xlu0 %3981
      %v3983 = vsel %vm3955, %v3674, -inf
      %3984 = vmax.xlane.f32.xlu0 %v3983
      %v3985 = vpop.xlane.xlu0 %3984
      %v3986 = vsel %vm3955, %v3677, -inf
      %3987 = vmax.xlane.f32.xlu0 %v3986
      %v3988 = vpop.xlane.xlu0 %3987
      %v3989 = vsel %vm3955, %v3682, -inf
      %3990 = vmax.xlane.f32.xlu0 %v3989
      %v3991 = vpop.xlane.xlu0 %3990
      %v3992 = vsel %vm3955, %v3685, -inf
      %3993 = vmax.xlane.f32.xlu0 %v3992
      %v3994 = vpop.xlane.xlu0 %3993
      %v3995 = vsel %vm3955, %v3690, -inf
      %3996 = vmax.xlane.f32.xlu0 %v3995
      %v3997 = vpop.xlane.xlu0 %3996
      %v3998 = vsel %vm3955, %v3693, -inf
      %3999 = vmax.xlane.f32.xlu0 %v3998
      %v4000 = vpop.xlane.xlu0 %3999
      %v4001 = vsel %vm3955, %v3698, -inf
      %4002 = vmax.xlane.f32.xlu0 %v4001
      %v4003 = vpop.xlane.xlu0 %4002
      %v4004 = vsel %vm3955, %v3701, -inf
      %4005 = vmax.xlane.f32.xlu0 %v4004
      %v4006 = vpop.xlane.xlu0 %4005
      %v4007 = vsel %vm3955, %v3706, -inf
      %4008 = vmax.xlane.f32.xlu0 %v4007
      %v4009 = vpop.xlane.xlu0 %4008
      %v4010 = vsel %vm3955, %v3796, -inf
      %4011 = vmax.xlane.f32.xlu0 %v4010
      %v4012 = vpop.xlane.xlu0 %4011
      %v4013 = vsel %vm3955, %v3799, -inf
      %4014 = vmax.xlane.f32.xlu0 %v4013
      %v4015 = vpop.xlane.xlu0 %4014
      %v4016 = vsel %vm3955, %v3804, -inf
      %4017 = vmax.xlane.f32.xlu0 %v4016
      %v4018 = vpop.xlane.xlu0 %4017
      %v4019 = vsel %vm3955, %v3807, -inf
      %4020 = vmax.xlane.f32.xlu0 %v4019
      %v4021 = vpop.xlane.xlu0 %4020
      %v4022 = vsel %vm3955, %v3812, -inf
      %4023 = vmax.xlane.f32.xlu0 %v4022
      %v4024 = vpop.xlane.xlu0 %4023
      %v4025 = vsel %vm3955, %v3815, -inf
      %4026 = vmax.xlane.f32.xlu0 %v4025
      %v4027 = vpop.xlane.xlu0 %4026
      %v4028 = vsel %vm3955, %v3820, -inf
      %4029 = vmax.xlane.f32.xlu0 %v4028
      %v4030 = vpop.xlane.xlu0 %4029
      %v4031 = vsel %vm3955, %v3823, -inf
      %4032 = vmax.xlane.f32.xlu0 %v4031
      %v4033 = vpop.xlane.xlu0 %4032
      %v4034 = vsel %vm3955, %v3828, -inf
      %4035 = vmax.xlane.f32.xlu0 %v4034
      %v4036 = vpop.xlane.xlu0 %4035
      %v4037 = vsel %vm3955, %v3918, -inf
      %4038 = vmax.xlane.f32.xlu0 %v4037
      %v4039 = vpop.xlane.xlu0 %4038
      %v4040 = vsel %vm3955, %v3921, -inf
      %4041 = vmax.xlane.f32.xlu0 %v4040
      %v4042 = vpop.xlane.xlu0 %4041
      %v4043 = vsel %vm3955, %v3926, -inf
      %4044 = vmax.xlane.f32.xlu0 %v4043
      %v4045 = vpop.xlane.xlu0 %4044
      %v4046 = vsel %vm3955, %v3929, -inf
      %4047 = vmax.xlane.f32.xlu0 %v4046
      %v4048 = vpop.xlane.xlu0 %4047
      %v4049 = vsel %vm3955, %v3934, -inf
      %4050 = vmax.xlane.f32.xlu0 %v4049
      %v4051 = vpop.xlane.xlu0 %4050
      %v4052 = vsel %vm3955, %v3937, -inf
      %4053 = vmax.xlane.f32.xlu0 %v4052
      %v4054 = vpop.xlane.xlu0 %4053
      %v4055 = vsel %vm3955, %v3942, -inf
      %4056 = vmax.xlane.f32.xlu0 %v4055
      %v4057 = vpop.xlane.xlu0 %4056
      %v4058 = vsel %vm3955, %v3945, -inf
      %4059 = vmax.xlane.f32.xlu0 %v4058
      %v4060 = vpop.xlane.xlu0 %4059
      %v4061 = vsel %vm3955, %v3950, -inf
      %4062 = vmax.xlane.f32.xlu0 %v4061
      %v4063 = vpop.xlane.xlu0 %4062
      %v4064 = vsub.f32 %v3552, %v3958
      %v4065 = vsub.f32 %v3555, %v3961
      %v4066 = vsub.f32 %v3560, %v3964
      %v4067 = vsub.f32 %v3563, %v3967
      %v4068 = vsub.f32 %v3568, %v3970
      %v4069 = vsub.f32 %v3571, %v3973
      %v4070 = vsub.f32 %v3576, %v3976
      %v4071 = vsub.f32 %v3579, %v3979
      %v4072 = vsub.f32 %v3584, %v3982
      %v4073 = vsub.f32 %v3674, %v3985
      %v4074 = vsub.f32 %v3677, %v3988
      %v4075 = vsub.f32 %v3682, %v3991
      %v4076 = vsub.f32 %v3685, %v3994
      %v4077 = vsub.f32 %v3690, %v3997
      %v4078 = vsub.f32 %v3693, %v4000
      %v4079 = vsub.f32 %v3698, %v4003
      %v4080 = vsub.f32 %v3701, %v4006
      %v4081 = vsub.f32 %v3706, %v4009
      %v4082 = vsub.f32 %v3796, %v4012
      %v4083 = vsub.f32 %v3799, %v4015
      %v4084 = vsub.f32 %v3804, %v4018
      %v4085 = vsub.f32 %v3807, %v4021
      %v4086 = vsub.f32 %v3812, %v4024
      %v4087 = vsub.f32 %v3815, %v4027
      %v4088 = vsub.f32 %v3820, %v4030
      %v4089 = vsub.f32 %v3823, %v4033
      %v4090 = vsub.f32 %v3828, %v4036
      %v4091 = vsub.f32 %v3918, %v4039
      %v4092 = vsub.f32 %v3921, %v4042
      %v4093 = vsub.f32 %v3926, %v4045
      %v4094 = vsub.f32 %v3929, %v4048
      %v4095 = vsub.f32 %v3934, %v4051
      %v4096 = vsub.f32 %v3937, %v4054
      %v4097 = vsub.f32 %v3942, %v4057
      %v4098 = vsub.f32 %v3945, %v4060
      %v4099 = vsub.f32 %v3950, %v4063
      %v4100 = vmul.f32 %v4064, 1.442695
      %v4101 = vpow.pop %v4100
      %v4102 = vmul.f32 %v4065, 1.442695
      %v4103 = vpow.pop %v4102
      %v4104 = vmul.f32 %v4066, 1.442695
      %v4105 = vpow.pop %v4104
      %v4106 = vmul.f32 %v4067, 1.442695
      %v4107 = vpow.pop %v4106
      %v4108 = vmul.f32 %v4068, 1.442695
      %v4109 = vpow.pop %v4108
      %v4110 = vmul.f32 %v4069, 1.442695
      %v4111 = vpow.pop %v4110
      %v4112 = vmul.f32 %v4070, 1.442695
      %v4113 = vpow.pop %v4112
      %v4114 = vmul.f32 %v4071, 1.442695
      %v4115 = vpow.pop %v4114
      %v4116 = vmul.f32 %v4072, 1.442695
      %v4117 = vpow.pop %v4116
      %v4118 = vmul.f32 %v4073, 1.442695
      %v4119 = vpow.pop %v4118
      %v4120 = vmul.f32 %v4074, 1.442695
      %v4121 = vpow.pop %v4120
      %v4122 = vmul.f32 %v4075, 1.442695
      %v4123 = vpow.pop %v4122
      %v4124 = vmul.f32 %v4076, 1.442695
      %v4125 = vpow.pop %v4124
      %v4126 = vmul.f32 %v4077, 1.442695
      %v4127 = vpow.pop %v4126
      %v4128 = vmul.f32 %v4078, 1.442695
      %v4129 = vpow.pop %v4128
      %v4130 = vmul.f32 %v4079, 1.442695
      %v4131 = vpow.pop %v4130
      %v4132 = vmul.f32 %v4080, 1.442695
      %v4133 = vpow.pop %v4132
      %v4134 = vmul.f32 %v4081, 1.442695
      %v4135 = vpow.pop %v4134
      %v4136 = vmul.f32 %v4082, 1.442695
      %v4137 = vpow.pop %v4136
      %v4138 = vmul.f32 %v4083, 1.442695
      %v4139 = vpow.pop %v4138
      %v4140 = vmul.f32 %v4084, 1.442695
      %v4141 = vpow.pop %v4140
      %v4142 = vmul.f32 %v4085, 1.442695
      %v4143 = vpow.pop %v4142
      %v4144 = vmul.f32 %v4086, 1.442695
      %v4145 = vpow.pop %v4144
      %v4146 = vmul.f32 %v4087, 1.442695
      %v4147 = vpow.pop %v4146
      %v4148 = vmul.f32 %v4088, 1.442695
      %v4149 = vpow.pop %v4148
      %v4150 = vmul.f32 %v4089, 1.442695
      %v4151 = vpow.pop %v4150
      %v4152 = vmul.f32 %v4090, 1.442695
      %v4153 = vpow.pop %v4152
      %v4154 = vmul.f32 %v4091, 1.442695
      %v4155 = vpow.pop %v4154
      %v4156 = vmul.f32 %v4092, 1.442695
      %v4157 = vpow.pop %v4156
      %v4158 = vmul.f32 %v4093, 1.442695
      %v4159 = vpow.pop %v4158
      %v4160 = vmul.f32 %v4094, 1.442695
      %v4161 = vpow.pop %v4160
      %v4162 = vmul.f32 %v4095, 1.442695
      %v4163 = vpow.pop %v4162
      %v4164 = vmul.f32 %v4096, 1.442695
      %v4165 = vpow.pop %v4164
      %v4166 = vmul.f32 %v4097, 1.442695
      %v4167 = vpow.pop %v4166
      %v4168 = vmul.f32 %v4098, 1.442695
      %v4169 = vpow.pop %v4168
      %v4170 = vmul.f32 %v4099, 1.442695
      %v4171 = vpow.pop %v4170
      %v4172 = vsel %vm3955, %v4101, 0.0
      %4173 = vadd.xlane.f32.xlu0 %v4172
      %v4174 = vpop.xlane.xlu0 %4173
      %v4175 = vsel %vm3955, %v4103, 0.0
      %4176 = vadd.xlane.f32.xlu0 %v4175
      %v4177 = vpop.xlane.xlu0 %4176
      %v4178 = vsel %vm3955, %v4105, 0.0
      %4179 = vadd.xlane.f32.xlu0 %v4178
      %v4180 = vpop.xlane.xlu0 %4179
      %v4181 = vsel %vm3955, %v4107, 0.0
      %4182 = vadd.xlane.f32.xlu0 %v4181
      %v4183 = vpop.xlane.xlu0 %4182
      %v4184 = vsel %vm3955, %v4109, 0.0
      %4185 = vadd.xlane.f32.xlu0 %v4184
      %v4186 = vpop.xlane.xlu0 %4185
      %v4187 = vsel %vm3955, %v4111, 0.0
      %4188 = vadd.xlane.f32.xlu0 %v4187
      %v4189 = vpop.xlane.xlu0 %4188
      %v4190 = vsel %vm3955, %v4113, 0.0
      %4191 = vadd.xlane.f32.xlu0 %v4190
      %v4192 = vpop.xlane.xlu0 %4191
      %v4193 = vsel %vm3955, %v4115, 0.0
      %4194 = vadd.xlane.f32.xlu0 %v4193
      %v4195 = vpop.xlane.xlu0 %4194
      %v4196 = vsel %vm3955, %v4117, 0.0
      %4197 = vadd.xlane.f32.xlu0 %v4196
      %v4198 = vpop.xlane.xlu0 %4197
      %v4199 = vsel %vm3955, %v4119, 0.0
      %4200 = vadd.xlane.f32.xlu0 %v4199
      %v4201 = vpop.xlane.xlu0 %4200
      %v4202 = vsel %vm3955, %v4121, 0.0
      %4203 = vadd.xlane.f32.xlu0 %v4202
      %v4204 = vpop.xlane.xlu0 %4203
      %v4205 = vsel %vm3955, %v4123, 0.0
      %4206 = vadd.xlane.f32.xlu0 %v4205
      %v4207 = vpop.xlane.xlu0 %4206
      %v4208 = vsel %vm3955, %v4125, 0.0
      %4209 = vadd.xlane.f32.xlu0 %v4208
      %v4210 = vpop.xlane.xlu0 %4209
      %v4211 = vsel %vm3955, %v4127, 0.0
      %4212 = vadd.xlane.f32.xlu0 %v4211
      %v4213 = vpop.xlane.xlu0 %4212
      %v4214 = vsel %vm3955, %v4129, 0.0
      %4215 = vadd.xlane.f32.xlu0 %v4214
      %v4216 = vpop.xlane.xlu0 %4215
      %v4217 = vsel %vm3955, %v4131, 0.0
      %4218 = vadd.xlane.f32.xlu0 %v4217
      %v4219 = vpop.xlane.xlu0 %4218
      %v4220 = vsel %vm3955, %v4133, 0.0
      %4221 = vadd.xlane.f32.xlu0 %v4220
      %v4222 = vpop.xlane.xlu0 %4221
      %v4223 = vsel %vm3955, %v4135, 0.0
      %4224 = vadd.xlane.f32.xlu0 %v4223
      %v4225 = vpop.xlane.xlu0 %4224
      %v4226 = vsel %vm3955, %v4137, 0.0
      %4227 = vadd.xlane.f32.xlu0 %v4226
      %v4228 = vpop.xlane.xlu0 %4227
      %v4229 = vsel %vm3955, %v4139, 0.0
      %4230 = vadd.xlane.f32.xlu0 %v4229
      %v4231 = vpop.xlane.xlu0 %4230
      %v4232 = vsel %vm3955, %v4141, 0.0
      %4233 = vadd.xlane.f32.xlu0 %v4232
      %v4234 = vpop.xlane.xlu0 %4233
      %v4235 = vsel %vm3955, %v4143, 0.0
      %4236 = vadd.xlane.f32.xlu0 %v4235
      %v4237 = vpop.xlane.xlu0 %4236
      %v4238 = vsel %vm3955, %v4145, 0.0
      %4239 = vadd.xlane.f32.xlu0 %v4238
      %v4240 = vpop.xlane.xlu0 %4239
      %v4241 = vsel %vm3955, %v4147, 0.0
      %4242 = vadd.xlane.f32.xlu0 %v4241
      %v4243 = vpop.xlane.xlu0 %4242
      %v4244 = vsel %vm3955, %v4149, 0.0
      %4245 = vadd.xlane.f32.xlu0 %v4244
      %v4246 = vpop.xlane.xlu0 %4245
      %v4247 = vsel %vm3955, %v4151, 0.0
      %4248 = vadd.xlane.f32.xlu0 %v4247
      %v4249 = vpop.xlane.xlu0 %4248
      %v4250 = vsel %vm3955, %v4153, 0.0
      %4251 = vadd.xlane.f32.xlu0 %v4250
      %v4252 = vpop.xlane.xlu0 %4251
      %v4253 = vsel %vm3955, %v4155, 0.0
      %4254 = vadd.xlane.f32.xlu0 %v4253
      %v4255 = vpop.xlane.xlu0 %4254
      %v4256 = vsel %vm3955, %v4157, 0.0
      %4257 = vadd.xlane.f32.xlu0 %v4256
      %v4258 = vpop.xlane.xlu0 %4257
      %v4259 = vsel %vm3955, %v4159, 0.0
      %4260 = vadd.xlane.f32.xlu0 %v4259
      %v4261 = vpop.xlane.xlu0 %4260
      %v4262 = vsel %vm3955, %v4161, 0.0
      %4263 = vadd.xlane.f32.xlu0 %v4262
      %v4264 = vpop.xlane.xlu0 %4263
      %v4265 = vsel %vm3955, %v4163, 0.0
      %4266 = vadd.xlane.f32.xlu0 %v4265
      %v4267 = vpop.xlane.xlu0 %4266
      %v4268 = vsel %vm3955, %v4165, 0.0
      %4269 = vadd.xlane.f32.xlu0 %v4268
      %v4270 = vpop.xlane.xlu0 %4269
      %v4271 = vsel %vm3955, %v4167, 0.0
      %4272 = vadd.xlane.f32.xlu0 %v4271
      %v4273 = vpop.xlane.xlu0 %4272
      %v4274 = vsel %vm3955, %v4169, 0.0
      %4275 = vadd.xlane.f32.xlu0 %v4274
      %v4276 = vpop.xlane.xlu0 %4275
      %v4277 = vsel %vm3955, %v4171, 0.0
      %4278 = vadd.xlane.f32.xlu0 %v4277
      %v4279 = vpop.xlane.xlu0 %4278
      %v4280 = vpack.c.bf16 %v4103, %v4101
      %v4281 = vpack.c.bf16 %v4107, %v4105
      %v4282 = vpack.c.bf16 %v4111, %v4109
      %v4283 = vpack.c.bf16 %v4115, %v4113
      %v4284 = vpack.c.bf16 %v4117, %v4117
      %v4285 = vpack.c.bf16 %v4121, %v4119
      %v4286 = vpack.c.bf16 %v4125, %v4123
      %v4287 = vpack.c.bf16 %v4129, %v4127
      %v4288 = vpack.c.bf16 %v4133, %v4131
      %v4289 = vpack.c.bf16 %v4135, %v4135
      %v4290 = vpack.c.bf16 %v4139, %v4137
      %v4291 = vpack.c.bf16 %v4143, %v4141
      %v4292 = vpack.c.bf16 %v4147, %v4145
      %v4293 = vpack.c.bf16 %v4151, %v4149
      %v4294 = vpack.c.bf16 %v4153, %v4153
      %v4295 = vpack.c.bf16 %v4157, %v4155
      %v4296 = vpack.c.bf16 %v4161, %v4159
      %v4297 = vpack.c.bf16 %v4165, %v4163
      %v4298 = vpack.c.bf16 %v4169, %v4167
      %v4299 = vpack.c.bf16 %v4171, %v4171
      %v4300 = vpack.c.b16 %v3413, %v3412
      %v4301 = vpack.c.b16 %v3415, %v3414
      %v4302 = vpack.c.b16 %v3417, %v3416
      %v4303 = vpack.c.b16 %v3419, %v3418
      %v4304 = vpack.c.b16 %v3420, %v3420
      %v4310 = vsel %vm3955, %v4280, 0
      %v4313 = vsel %vm3955, %v4281, 0
      %v4316 = vsel %vm3955, %v4282, 0
      %v4319 = vsel %vm3955, %v4283, 0
      %v4322 = vsel %vm3955, %v4284, 0
      %vm4324 = vcmask 1043456
      %v4326 = vsel %vm4324, %v4304, 0
      %4328 = vmatprep.subr.bf16.mxu0 0
      %4329 = vmatpush1.bf16.msra.mxu0 %v4300
      %4330 = vmatprep.subr.bf16.mxu0 0
      %4331 = vmatpush1.bf16.msra.mxu0 %v4301
      %4332 = vmatprep.subr.bf16.mxu0 0
      %4333 = vmatpush1.bf16.msra.mxu0 %v4302
      %4334 = vmatprep.subr.bf16.mxu0 0
      %4335 = vmatpush1.bf16.msra.mxu0 %v4303
      %4336 = vmatprep.subr.bf16.mxu0 0
      %4337 = vmatpush1.bf16.msra.mxu0 %v4326
      %4338 = vmatprep.subr.bf16.mxu0 0
      %4339 = vmatpush1.bf16.msra.mxu0 0
      %4340 = vmatprep.subr.bf16.mxu0 0
      %4341 = vmatpush1.bf16.msra.mxu0 0
      %4342 = vmatprep.subr.bf16.mxu0 0
      %4343 = vmatpush1.bf16.msra.mxu0 0
      %4344 = vmatprep.subr.bf16.mxu0 0
      %4345 = vmatpush1.bf16.msra.mxu0 0
      %4346 = vmatprep.subr.bf16.mxu0 0
      %4347 = vmatpush1.bf16.msra.mxu0 0
      %4348 = vmatprep.subr.bf16.mxu0 0
      %4349 = vmatpush1.bf16.msra.mxu0 0
      %4350 = vmatprep.subr.bf16.mxu0 0
      %4351 = vmatpush1.bf16.msra.mxu0 0
      %4352 = vmatprep.subr.bf16.mxu0 0
      %4353 = vmatpush1.bf16.msra.mxu0 0
      %4354 = vmatprep.subr.bf16.mxu0 0
      %4355 = vmatpush1.bf16.msra.mxu0 0
      %4356 = vmatprep.subr.bf16.mxu0 0
      %4357 = vmatpush1.bf16.msra.mxu0 0
      %4358 = vmatprep.subr.bf16.mxu0 0
      %4359 = vmatpush1.bf16.msra.mxu0 0
      %4360 = vmatprep.mubr.bf16.mxu0 0
      %4361 = vmatmul.mubr.bf16.gmra.mrb[0].mxu0 %v4310
      %v4362 = vpop.f32.mrb[0].mxu0
      %v4363 = vadd.f32 0.0, %v4362
      %v4364 = vpop.f32.mrb[0].mxu0
      %v4365 = vpop.f32.mrb[0].mxu0
      %v4366 = vadd.f32 0.0, %v4365
      %v4367 = vpop.f32.mrb[0].mxu0
      %4368 = vmatprep.mubr.bf16.mxu0 0
      %4369 = vmatmul.mubr.bf16.gmra.mrb[0].mxu0 %v4313
      %v4370 = vpop.f32.mrb[0].mxu0
      %v4371 = vadd.f32 0.0, %v4370
      %v4372 = vpop.f32.mrb[0].mxu0
      %v4373 = vpop.f32.mrb[0].mxu0
      %v4374 = vadd.f32 0.0, %v4373
      %v4375 = vpop.f32.mrb[0].mxu0
      %4376 = vmatprep.mubr.bf16.mxu0 0
      %4377 = vmatmul.mubr.bf16.gmra.mrb[0].mxu0 %v4316
      %v4378 = vpop.f32.mrb[0].mxu0
      %v4379 = vadd.f32 0.0, %v4378
      %v4380 = vpop.f32.mrb[0].mxu0
      %v4381 = vpop.f32.mrb[0].mxu0
      %v4382 = vadd.f32 0.0, %v4381
      %v4383 = vpop.f32.mrb[0].mxu0
      %4384 = vmatprep.mubr.bf16.mxu0 0
      %4385 = vmatmul.mubr.bf16.gmra.mrb[0].mxu0 %v4319
      %v4386 = vpop.f32.mrb[0].mxu0
      %v4387 = vadd.f32 0.0, %v4386
      %v4388 = vpop.f32.mrb[0].mxu0
      %v4389 = vpop.f32.mrb[0].mxu0
      %v4390 = vadd.f32 0.0, %v4389
      %v4391 = vpop.f32.mrb[0].mxu0
      %4392 = vmatprep.mubr.bf16.mxu0 0
      %4393 = vmatmul.mubr.bf16.gmra.mrb[0].mxu0 %v4322
      %v4394 = vpop.f32.mrb[0].mxu0
      %v4395 = vadd.f32 0.0, %v4394
      %v4396 = vpop.f32.mrb[0].mxu0
      %v4397 = vpop.f32.mrb[0].mxu0
      %v4398 = vpop.f32.mrb[0].mxu0
      %4399 = vdwg.mxu0
      %v4400 = vpack.c.b16 %v3422, %v3421
      %v4401 = vpack.c.b16 %v3424, %v3423
      %v4402 = vpack.c.b16 %v3426, %v3425
      %v4403 = vpack.c.b16 %v3428, %v3427
      %v4404 = vpack.c.b16 %v3429, %v3429
      %v4410 = vsel %vm3955, %v4285, 0
      %v4413 = vsel %vm3955, %v4286, 0
      %v4416 = vsel %vm3955, %v4287, 0
      %v4419 = vsel %vm3955, %v4288, 0
      %v4422 = vsel %vm3955, %v4289, 0
      %v4425 = vsel %vm4324, %v4404, 0
      %4427 = vmatprep.subr.bf16.mxu0 0
      %4428 = vmatpush1.bf16.msra.mxu0 %v4400
      %4429 = vmatprep.subr.bf16.mxu0 0
      %4430 = vmatpush1.bf16.msra.mxu0 %v4401
      %4431 = vmatprep.subr.bf16.mxu0 0
      %4432 = vmatpush1.bf16.msra.mxu0 %v4402
      %4433 = vmatprep.subr.bf16.mxu0 0
      %4434 = vmatpush1.bf16.msra.mxu0 %v4403
      %4435 = vmatprep.subr.bf16.mxu0 0
      %4436 = vmatpush1.bf16.msra.mxu0 %v4425
      %4437 = vmatprep.subr.bf16.mxu0 0
      %4438 = vmatpush1.bf16.msra.mxu0 0
      %4439 = vmatprep.subr.bf16.mxu0 0
      %4440 = vmatpush1.bf16.msra.mxu0 0
      %4441 = vmatprep.subr.bf16.mxu0 0
      %4442 = vmatpush1.bf16.msra.mxu0 0
      %4443 = vmatprep.subr.bf16.mxu0 0
      %4444 = vmatpush1.bf16.msra.mxu0 0
      %4445 = vmatprep.subr.bf16.mxu0 0
      %4446 = vmatpush1.bf16.msra.mxu0 0
      %4447 = vmatprep.subr.bf16.mxu0 0
      %4448 = vmatpush1.bf16.msra.mxu0 0
      %4449 = vmatprep.subr.bf16.mxu0 0
      %4450 = vmatpush1.bf16.msra.mxu0 0
      %4451 = vmatprep.subr.bf16.mxu0 0
      %4452 = vmatpush1.bf16.msra.mxu0 0
      %4453 = vmatprep.subr.bf16.mxu0 0
      %4454 = vmatpush1.bf16.msra.mxu0 0
      %4455 = vmatprep.subr.bf16.mxu0 0
      %4456 = vmatpush1.bf16.msra.mxu0 0
      %4457 = vmatprep.subr.bf16.mxu0 0
      %4458 = vmatpush1.bf16.msra.mxu0 0
      %4459 = vmatprep.mubr.bf16.mxu0 0
      %4460 = vmatmul.mubr.bf16.gmra.mrb[0].mxu0 %v4410
      %v4461 = vpop.f32.mrb[0].mxu0
      %v4462 = vadd.f32 0.0, %v4461
      %v4463 = vpop.f32.mrb[0].mxu0
      %v4464 = vpop.f32.mrb[0].mxu0
      %v4465 = vadd.f32 0.0, %v4464
      %v4466 = vpop.f32.mrb[0].mxu0
      %4467 = vmatprep.mubr.bf16.mxu0 0
      %4468 = vmatmul.mubr.bf16.gmra.mrb[0].mxu0 %v4413
      %v4469 = vpop.f32.mrb[0].mxu0
      %v4470 = vadd.f32 0.0, %v4469
      %v4471 = vpop.f32.mrb[0].mxu0
      %v4472 = vpop.f32.mrb[0].mxu0
      %v4473 = vadd.f32 0.0, %v4472
      %v4474 = vpop.f32.mrb[0].mxu0
      %4475 = vmatprep.mubr.bf16.mxu0 0
      %4476 = vmatmul.mubr.bf16.gmra.mrb[0].mxu0 %v4416
      %v4477 = vpop.f32.mrb[0].mxu0
      %v4478 = vadd.f32 0.0, %v4477
      %v4479 = vpop.f32.mrb[0].mxu0
      %v4480 = vpop.f32.mrb[0].mxu0
      %v4481 = vadd.f32 0.0, %v4480
      %v4482 = vpop.f32.mrb[0].mxu0
      %4483 = vmatprep.mubr.bf16.mxu0 0
      %4484 = vmatmul.mubr.bf16.gmra.mrb[0].mxu0 %v4419
      %v4485 = vpop.f32.mrb[0].mxu0
      %v4486 = vadd.f32 0.0, %v4485
      %v4487 = vpop.f32.mrb[0].mxu0
      %v4488 = vpop.f32.mrb[0].mxu0
      %v4489 = vadd.f32 0.0, %v4488
      %v4490 = vpop.f32.mrb[0].mxu0
      %4491 = vmatprep.mubr.bf16.mxu0 0
      %4492 = vmatmul.mubr.bf16.gmra.mrb[0].mxu0 %v4422
      %v4493 = vpop.f32.mrb[0].mxu0
      %v4494 = vadd.f32 0.0, %v4493
      %v4495 = vpop.f32.mrb[0].mxu0
      %v4496 = vpop.f32.mrb[0].mxu0
      %v4497 = vpop.f32.mrb[0].mxu0
      %4498 = vdwg.mxu0
      %v4499 = vpack.c.b16 %v3431, %v3430
      %v4500 = vpack.c.b16 %v3433, %v3432
      %v4501 = vpack.c.b16 %v3435, %v3434
      %v4502 = vpack.c.b16 %v3437, %v3436
      %v4503 = vpack.c.b16 %v3438, %v3438
      %v4509 = vsel %vm3955, %v4290, 0
      %v4512 = vsel %vm3955, %v4291, 0
      %v4515 = vsel %vm3955, %v4292, 0
      %v4518 = vsel %vm3955, %v4293, 0
      %v4521 = vsel %vm3955, %v4294, 0
      %v4524 = vsel %vm4324, %v4503, 0
      %4526 = vmatprep.subr.bf16.mxu0 0
      %4527 = vmatpush1.bf16.msra.mxu0 %v4499
      %4528 = vmatprep.subr.bf16.mxu0 0
      %4529 = vmatpush1.bf16.msra.mxu0 %v4500
      %4530 = vmatprep.subr.bf16.mxu0 0
      %4531 = vmatpush1.bf16.msra.mxu0 %v4501
      %4532 = vmatprep.subr.bf16.mxu0 0
      %4533 = vmatpush1.bf16.msra.mxu0 %v4502
      %4534 = vmatprep.subr.bf16.mxu0 0
      %4535 = vmatpush1.bf16.msra.mxu0 %v4524
      %4536 = vmatprep.subr.bf16.mxu0 0
      %4537 = vmatpush1.bf16.msra.mxu0 0
      %4538 = vmatprep.subr.bf16.mxu0 0
      %4539 = vmatpush1.bf16.msra.mxu0 0
      %4540 = vmatprep.subr.bf16.mxu0 0
      %4541 = vmatpush1.bf16.msra.mxu0 0
      %4542 = vmatprep.subr.bf16.mxu0 0
      %4543 = vmatpush1.bf16.msra.mxu0 0
      %4544 = vmatprep.subr.bf16.mxu0 0
      %4545 = vmatpush1.bf16.msra.mxu0 0
      %4546 = vmatprep.subr.bf16.mxu0 0
      %4547 = vmatpush1.bf16.msra.mxu0 0
      %4548 = vmatprep.subr.bf16.mxu0 0
      %4549 = vmatpush1.bf16.msra.mxu0 0
      %4550 = vmatprep.subr.bf16.mxu0 0
      %4551 = vmatpush1.bf16.msra.mxu0 0
      %4552 = vmatprep.subr.bf16.mxu0 0
      %4553 = vmatpush1.bf16.msra.mxu0 0
      %4554 = vmatprep.subr.bf16.mxu0 0
      %4555 = vmatpush1.bf16.msra.mxu0 0
      %4556 = vmatprep.subr.bf16.mxu0 0
      %4557 = vmatpush1.bf16.msra.mxu0 0
      %4558 = vmatprep.mubr.bf16.mxu0 0
      %4559 = vmatmul.mubr.bf16.gmra.mrb[0].mxu0 %v4509
      %v4560 = vpop.f32.mrb[0].mxu0
      %v4561 = vadd.f32 0.0, %v4560
      %v4562 = vpop.f32.mrb[0].mxu0
      %v4563 = vpop.f32.mrb[0].mxu0
      %v4564 = vadd.f32 0.0, %v4563
      %v4565 = vpop.f32.mrb[0].mxu0
      %4566 = vmatprep.mubr.bf16.mxu0 0
      %4567 = vmatmul.mubr.bf16.gmra.mrb[0].mxu0 %v4512
      %v4568 = vpop.f32.mrb[0].mxu0
      %v4569 = vadd.f32 0.0, %v4568
      %v4570 = vpop.f32.mrb[0].mxu0
      %v4571 = vpop.f32.mrb[0].mxu0
      %v4572 = vadd.f32 0.0, %v4571
      %v4573 = vpop.f32.mrb[0].mxu0
      %4574 = vmatprep.mubr.bf16.mxu0 0
      %4575 = vmatmul.mubr.bf16.gmra.mrb[0].mxu0 %v4515
      %v4576 = vpop.f32.mrb[0].mxu0
      %v4577 = vadd.f32 0.0, %v4576
      %v4578 = vpop.f32.mrb[0].mxu0
      %v4579 = vpop.f32.mrb[0].mxu0
      %v4580 = vadd.f32 0.0, %v4579
      %v4581 = vpop.f32.mrb[0].mxu0
      %4582 = vmatprep.mubr.bf16.mxu0 0
      %4583 = vmatmul.mubr.bf16.gmra.mrb[0].mxu0 %v4518
      %v4584 = vpop.f32.mrb[0].mxu0
      %v4585 = vadd.f32 0.0, %v4584
      %v4586 = vpop.f32.mrb[0].mxu0
      %v4587 = vpop.f32.mrb[0].mxu0
      %v4588 = vadd.f32 0.0, %v4587
      %v4589 = vpop.f32.mrb[0].mxu0
      %4590 = vmatprep.mubr.bf16.mxu0 0
      %4591 = vmatmul.mubr.bf16.gmra.mrb[0].mxu0 %v4521
      %v4592 = vpop.f32.mrb[0].mxu0
      %v4593 = vadd.f32 0.0, %v4592
      %v4594 = vpop.f32.mrb[0].mxu0
      %v4595 = vpop.f32.mrb[0].mxu0
      %v4596 = vpop.f32.mrb[0].mxu0
      %4597 = vdwg.mxu0
      %v4598 = vpack.c.b16 %v3440, %v3439
      %v4599 = vpack.c.b16 %v3442, %v3441
      %v4600 = vpack.c.b16 %v3444, %v3443
      %v4601 = vpack.c.b16 %v3446, %v3445
      %v4602 = vpack.c.b16 %v3447, %v3447
      %v4608 = vsel %vm3955, %v4295, 0
      %v4611 = vsel %vm3955, %v4296, 0
      %v4614 = vsel %vm3955, %v4297, 0
      %v4617 = vsel %vm3955, %v4298, 0
      %v4620 = vsel %vm3955, %v4299, 0
      %v4623 = vsel %vm4324, %v4602, 0
      %4625 = vmatprep.subr.bf16.mxu0 0
      %4626 = vmatpush1.bf16.msra.mxu0 %v4598
      %4627 = vmatprep.subr.bf16.mxu0 0
      %4628 = vmatpush1.bf16.msra.mxu0 %v4599
      %4629 = vmatprep.subr.bf16.mxu0 0
      %4630 = vmatpush1.bf16.msra.mxu0 %v4600
      %4631 = vmatprep.subr.bf16.mxu0 0
      %4632 = vmatpush1.bf16.msra.mxu0 %v4601
      %4633 = vmatprep.subr.bf16.mxu0 0
      %4634 = vmatpush1.bf16.msra.mxu0 %v4623
      %4635 = vmatprep.subr.bf16.mxu0 0
      %4636 = vmatpush1.bf16.msra.mxu0 0
      %4637 = vmatprep.subr.bf16.mxu0 0
      %4638 = vmatpush1.bf16.msra.mxu0 0
      %4639 = vmatprep.subr.bf16.mxu0 0
      %4640 = vmatpush1.bf16.msra.mxu0 0
      %4641 = vmatprep.subr.bf16.mxu0 0
      %4642 = vmatpush1.bf16.msra.mxu0 0
      %4643 = vmatprep.subr.bf16.mxu0 0
      %4644 = vmatpush1.bf16.msra.mxu0 0
      %4645 = vmatprep.subr.bf16.mxu0 0
      %4646 = vmatpush1.bf16.msra.mxu0 0
      %4647 = vmatprep.subr.bf16.mxu0 0
      %4648 = vmatpush1.bf16.msra.mxu0 0
      %4649 = vmatprep.subr.bf16.mxu0 0
      %4650 = vmatpush1.bf16.msra.mxu0 0
      %4651 = vmatprep.subr.bf16.mxu0 0
      %4652 = vmatpush1.bf16.msra.mxu0 0
      %4653 = vmatprep.subr.bf16.mxu0 0
      %4654 = vmatpush1.bf16.msra.mxu0 0
      %4655 = vmatprep.subr.bf16.mxu0 0
      %4656 = vmatpush1.bf16.msra.mxu0 0
      %4657 = vmatprep.mubr.bf16.mxu0 0
      %4658 = vmatmul.mubr.bf16.gmra.mrb[0].mxu0 %v4608
      %v4659 = vpop.f32.mrb[0].mxu0
      %v4660 = vadd.f32 0.0, %v4659
      %v4661 = vpop.f32.mrb[0].mxu0
      %v4662 = vpop.f32.mrb[0].mxu0
      %v4663 = vadd.f32 0.0, %v4662
      %v4664 = vpop.f32.mrb[0].mxu0
      %4665 = vmatprep.mubr.bf16.mxu0 0
      %4666 = vmatmul.mubr.bf16.gmra.mrb[0].mxu0 %v4611
      %v4667 = vpop.f32.mrb[0].mxu0
      %v4668 = vadd.f32 0.0, %v4667
      %v4669 = vpop.f32.mrb[0].mxu0
      %v4670 = vpop.f32.mrb[0].mxu0
      %v4671 = vadd.f32 0.0, %v4670
      %v4672 = vpop.f32.mrb[0].mxu0
      %4673 = vmatprep.mubr.bf16.mxu0 0
      %4674 = vmatmul.mubr.bf16.gmra.mrb[0].mxu0 %v4614
      %v4675 = vpop.f32.mrb[0].mxu0
      %v4676 = vadd.f32 0.0, %v4675
      %v4677 = vpop.f32.mrb[0].mxu0
      %v4678 = vpop.f32.mrb[0].mxu0
      %v4679 = vadd.f32 0.0, %v4678
      %v4680 = vpop.f32.mrb[0].mxu0
      %4681 = vmatprep.mubr.bf16.mxu0 0
      %4682 = vmatmul.mubr.bf16.gmra.mrb[0].mxu0 %v4617
      %v4683 = vpop.f32.mrb[0].mxu0
      %v4684 = vadd.f32 0.0, %v4683
      %v4685 = vpop.f32.mrb[0].mxu0
      %v4686 = vpop.f32.mrb[0].mxu0
      %v4687 = vadd.f32 0.0, %v4686
      %v4688 = vpop.f32.mrb[0].mxu0
      %4689 = vmatprep.mubr.bf16.mxu0 0
      %4690 = vmatmul.mubr.bf16.gmra.mrb[0].mxu0 %v4620
      %v4691 = vpop.f32.mrb[0].mxu0
      %v4692 = vadd.f32 0.0, %v4691
      %v4693 = vpop.f32.mrb[0].mxu0
      %v4694 = vpop.f32.mrb[0].mxu0
      %v4695 = vpop.f32.mrb[0].mxu0
      %4696 = vdwg.mxu0
      %v4697 = vrcp.pop %v4174
      %v4698 = vrcp.pop %v4177
      %v4699 = vrcp.pop %v4180
      %v4700 = vrcp.pop %v4183
      %v4701 = vrcp.pop %v4186
      %v4702 = vrcp.pop %v4189
      %v4703 = vrcp.pop %v4192
      %v4704 = vrcp.pop %v4195
      %v4705 = vrcp.pop %v4198
      %v4706 = vrcp.pop %v4201
      %v4707 = vrcp.pop %v4204
      %v4708 = vrcp.pop %v4207
      %v4709 = vrcp.pop %v4210
      %v4710 = vrcp.pop %v4213
      %v4711 = vrcp.pop %v4216
      %v4712 = vrcp.pop %v4219
      %v4713 = vrcp.pop %v4222
      %v4714 = vrcp.pop %v4225
      %v4715 = vrcp.pop %v4228
      %v4716 = vrcp.pop %v4231
      %v4717 = vrcp.pop %v4234
      %v4718 = vrcp.pop %v4237
      %v4719 = vrcp.pop %v4240
      %v4720 = vrcp.pop %v4243
      %v4721 = vrcp.pop %v4246
      %v4722 = vrcp.pop %v4249
      %v4723 = vrcp.pop %v4252
      %v4724 = vrcp.pop %v4255
      %v4725 = vrcp.pop %v4258
      %v4726 = vrcp.pop %v4261
      %v4727 = vrcp.pop %v4264
      %v4728 = vrcp.pop %v4267
      %v4729 = vrcp.pop %v4270
      %v4730 = vrcp.pop %v4273
      %v4731 = vrcp.pop %v4276
      %v4732 = vrcp.pop %v4279
      %v4733 = vmul.f32 %v4363, %v4697
      %v4734 = vmul.f32 %v4366, %v4698
      %v4735 = vmul.f32 %v4371, %v4699
      %v4736 = vmul.f32 %v4374, %v4700
      %v4737 = vmul.f32 %v4379, %v4701
      %v4738 = vmul.f32 %v4382, %v4702
      %v4739 = vmul.f32 %v4387, %v4703
      %v4740 = vmul.f32 %v4390, %v4704
      %v4741 = vmul.f32 %v4395, %v4705
      %v4742 = vmul.f32 %v4462, %v4706
      %v4743 = vmul.f32 %v4465, %v4707
      %v4744 = vmul.f32 %v4470, %v4708
      %v4745 = vmul.f32 %v4473, %v4709
      %v4746 = vmul.f32 %v4478, %v4710
      %v4747 = vmul.f32 %v4481, %v4711
      %v4748 = vmul.f32 %v4486, %v4712
      %v4749 = vmul.f32 %v4489, %v4713
      %v4750 = vmul.f32 %v4494, %v4714
      %v4751 = vmul.f32 %v4561, %v4715
      %v4752 = vmul.f32 %v4564, %v4716
      %v4753 = vmul.f32 %v4569, %v4717
      %v4754 = vmul.f32 %v4572, %v4718
      %v4755 = vmul.f32 %v4577, %v4719
      %v4756 = vmul.f32 %v4580, %v4720
      %v4757 = vmul.f32 %v4585, %v4721
      %v4758 = vmul.f32 %v4588, %v4722
      %v4759 = vmul.f32 %v4593, %v4723
      %v4760 = vmul.f32 %v4660, %v4724
      %v4761 = vmul.f32 %v4663, %v4725
      %v4762 = vmul.f32 %v4668, %v4726
      %v4763 = vmul.f32 %v4671, %v4727
      %v4764 = vmul.f32 %v4676, %v4728
      %v4765 = vmul.f32 %v4679, %v4729
      %v4766 = vmul.f32 %v4684, %v4730
      %v4767 = vmul.f32 %v4687, %v4731
      %v4768 = vmul.f32 %v4692, %v4732
      %4769 = vst.msk [vmem:[#allocation2] sm:$0xff] %vm3486, %v4733
      %4770 = vst.msk [vmem:[#allocation2 + $0x8] sm:$0xff] %vm3486, %v4734
      %4771 = vst.msk [vmem:[#allocation2 + $0x10] sm:$0xff] %vm3486, %v4735
      %4772 = vst.msk [vmem:[#allocation2 + $0x18] sm:$0xff] %vm3486, %v4736
      %4773 = vst.msk [vmem:[#allocation2 + $0x20] sm:$0xff] %vm3486, %v4737
      %4774 = vst.msk [vmem:[#allocation2 + $0x28] sm:$0xff] %vm3486, %v4738
      %4775 = vst.msk [vmem:[#allocation2 + $0x30] sm:$0xff] %vm3486, %v4739
      %4776 = vst.msk [vmem:[#allocation2 + $0x38] sm:$0xff] %vm3486, %v4740
      %4777 = vst.msk [vmem:[#allocation2 + $0x40] sm:$0xff] %vm3486, %v4741
      %4778 = vst.msk [vmem:[#allocation2 + $0x48] sm:$0xff] %vm3486, %v4742
      %4779 = vst.msk [vmem:[#allocation2 + $0x50] sm:$0xff] %vm3486, %v4743
      %4780 = vst.msk [vmem:[#allocation2 + $0x58] sm:$0xff] %vm3486, %v4744
      %4781 = vst.msk [vmem:[#allocation2 + $0x60] sm:$0xff] %vm3486, %v4745
      %4782 = vst.msk [vmem:[#allocation2 + $0x68] sm:$0xff] %vm3486, %v4746
      %4783 = vst.msk [vmem:[#allocation2 + $0x70] sm:$0xff] %vm3486, %v4747
      %4784 = vst.msk [vmem:[#allocation2 + $0x78] sm:$0xff] %vm3486, %v4748
      %4785 = vst.msk [vmem:[#allocation2 + $0x80] sm:$0xff] %vm3486, %v4749
      %4786 = vst.msk [vmem:[#allocation2 + $0x88] sm:$0xff] %vm3486, %v4750
      %4787 = vst.msk [vmem:[#allocation2 + $0x90] sm:$0xff] %vm3486, %v4751
      %4788 = vst.msk [vmem:[#allocation2 + $0x98] sm:$0xff] %vm3486, %v4752
      %4789 = vst.msk [vmem:[#allocation2 + $0xa0] sm:$0xff] %vm3486, %v4753
      %4790 = vst.msk [vmem:[#allocation2 + $0xa8] sm:$0xff] %vm3486, %v4754
      %4791 = vst.msk [vmem:[#allocation2 + $0xb0] sm:$0xff] %vm3486, %v4755
      %4792 = vst.msk [vmem:[#allocation2 + $0xb8] sm:$0xff] %vm3486, %v4756
      %4793 = vst.msk [vmem:[#allocation2 + $0xc0] sm:$0xff] %vm3486, %v4757
      %4794 = vst.msk [vmem:[#allocation2 + $0xc8] sm:$0xff] %vm3486, %v4758
      %4795 = vst.msk [vmem:[#allocation2 + $0xd0] sm:$0xff] %vm3486, %v4759
      %4796 = vst.msk [vmem:[#allocation2 + $0xd8] sm:$0xff] %vm3486, %v4760
      %4797 = vst.msk [vmem:[#allocation2 + $0xe0] sm:$0xff] %vm3486, %v4761
      %4798 = vst.msk [vmem:[#allocation2 + $0xe8] sm:$0xff] %vm3486, %v4762
      %4799 = vst.msk [vmem:[#allocation2 + $0xf0] sm:$0xff] %vm3486, %v4763
      %4800 = vst.msk [vmem:[#allocation2 + $0xf8] sm:$0xff] %vm3486, %v4764
      %4801 = vst.msk [vmem:[#allocation2 + $0x100] sm:$0xff] %vm3486, %v4765
      %4802 = vst.msk [vmem:[#allocation2 + $0x108] sm:$0xff] %vm3486, %v4766
      %4803 = vst.msk [vmem:[#allocation2 + $0x110] sm:$0xff] %vm3486, %v4767
      %4804 = vst.msk [vmem:[#allocation2 + $0x118] sm:$0xff] %vm3486, %v4768
      %s4805 = scalar_lea.vmem %s7, 36
      %v4806 = vld [vmem:[%s4805] sm:$0xf]
      %v4807 = vld [vmem:[%s4805 + $0x4] sm:$0xf]
      %v4808 = vld [vmem:[%s4805 + $0x8] sm:$0xf]
      %v4809 = vld [vmem:[%s4805 + $0xc] sm:$0xf]
      %v4810 = vld [vmem:[%s4805 + $0x10] sm:$0xf]
      %v4811 = vld [vmem:[%s4805 + $0x14] sm:$0xf]
      %v4812 = vld [vmem:[%s4805 + $0x18] sm:$0xf]
      %v4813 = vld [vmem:[%s4805 + $0x1c] sm:$0xf]
      %v4814 = vld [vmem:[%s4805 + $0x20] sm:$0xf]
      %v4815 = vunpack.c.l.bf16 %v4806
      %v4816 = vunpack.c.l.bf16 %v4807
      %v4817 = vunpack.c.l.bf16 %v4808
      %v4818 = vunpack.c.l.bf16 %v4809
      %v4819 = vunpack.c.l.bf16 %v4810
      %v4820 = vunpack.c.l.bf16 %v4811
      %v4821 = vunpack.c.l.bf16 %v4812
      %v4822 = vunpack.c.l.bf16 %v4813
      %v4823 = vunpack.c.l.bf16 %v4814
      %4824 = vrot.lane.b32.xlu0 %v3466, 112
      %v4825 = vpop.permute.xlu0 %4824
      %4826 = vrot.lane.b32.xlu0 %v3467, 112
      %v4827 = vpop.permute.xlu0 %4826
      %4828 = vrot.lane.b32.xlu0 %v3468, 112
      %v4829 = vpop.permute.xlu0 %4828
      %4830 = vrot.lane.b32.xlu0 %v3469, 112
      %v4831 = vpop.permute.xlu0 %4830
      %4832 = vrot.lane.b32.xlu0 %v3470, 112
      %v4833 = vpop.permute.xlu0 %4832
      %4834 = vrot.lane.b32.xlu0 %v3471, 48
      %v4835 = vpop.permute.xlu0 %4834
      %4836 = vrot.lane.b32.xlu0 %v3472, 48
      %v4837 = vpop.permute.xlu0 %4836
      %4838 = vrot.lane.b32.xlu0 %v3473, 48
      %v4839 = vpop.permute.xlu0 %4838
      %4840 = vrot.lane.b32.xlu0 %v3474, 48
      %v4841 = vpop.permute.xlu0 %4840
      %4842 = vrot.lane.b32.xlu0 %v3475, 48
      %v4843 = vpop.permute.xlu0 %4842
      %v4845 = vsel %vm3486, %v4825, 0
      %v4848 = vsel %vm3486, %v4827, 0
      %v4851 = vsel %vm3486, %v4829, 0
      %v4854 = vsel %vm3486, %v4831, 0
      %v4857 = vsel %vm3486, %v4833, 0
      %v4860 = vsel %vm3486, %v4835, 0
      %v4863 = vsel %vm3486, %v4837, 0
      %v4866 = vsel %vm3486, %v4839, 0
      %v4869 = vsel %vm3486, %v4841, 0
      %v4872 = vsel %vm3486, %v4843, 0
      %4874 = vmatprep.subr.bf16.mxu0 0
      %4875 = vmatpush1.bf16.xpose.msra.mxu0 %v4860
      %4876 = vmatprep.subr.bf16.mxu0 0
      %4877 = vmatpush1.bf16.xpose.msra.mxu0 %v4863
      %4878 = vmatprep.subr.bf16.mxu0 0
      %4879 = vmatpush1.bf16.xpose.msra.mxu0 %v4866
      %4880 = vmatprep.subr.bf16.mxu0 0
      %4881 = vmatpush1.bf16.xpose.msra.mxu0 %v4869
      %4882 = vmatprep.subr.bf16.mxu0 0
      %4883 = vmatpush1.bf16.xpose.msra.mxu0 %v4872
      %4884 = vmatprep.subr.bf16.mxu0 0
      %4885 = vmatpush1.bf16.xpose.msra.mxu0 0
      %4886 = vmatprep.subr.bf16.mxu0 0
      %4887 = vmatpush1.bf16.xpose.msra.mxu0 0
      %4888 = vmatprep.subr.bf16.mxu0 0
      %4889 = vmatpush1.bf16.xpose.msra.mxu0 0
      %4890 = vmatprep.subr.bf16.mxu0 0
      %4891 = vmatpush1.bf16.xpose.msra.mxu0 0
      %4892 = vmatprep.subr.bf16.mxu0 0
      %4893 = vmatpush1.bf16.xpose.msra.mxu0 0
      %4894 = vmatprep.subr.bf16.mxu0 0
      %4895 = vmatpush1.bf16.xpose.msra.mxu0 0
      %4896 = vmatprep.subr.bf16.mxu0 0
      %4897 = vmatpush1.bf16.xpose.msra.mxu0 0
      %4898 = vmatprep.subr.bf16.mxu0 0
      %4899 = vmatpush1.bf16.xpose.msra.mxu0 0
      %4900 = vmatprep.subr.bf16.mxu0 0
      %4901 = vmatpush1.bf16.xpose.msra.mxu0 0
      %4902 = vmatprep.subr.bf16.mxu0 0
      %4903 = vmatpush1.bf16.xpose.msra.mxu0 0
      %4904 = vmatprep.subr.bf16.mxu0 0
      %4905 = vmatpush1.bf16.xpose.msra.mxu0 0
      %4906 = vmatprep.mubr.bf16.mxu0 0
      %4907 = vmatmul.mubr.bf16.gmra.mrb[0].mxu0 %v4845
      %v4908 = vpop.f32.mrb[0].mxu0
      %v4909 = vadd.f32 %v4815, %v4908
      %v4910 = vpop.f32.mrb[0].mxu0
      %v4911 = vpop.f32.mrb[0].mxu0
      %v4912 = vadd.f32 %v4816, %v4911
      %v4913 = vpop.f32.mrb[0].mxu0
      %4914 = vmatprep.mubr.bf16.mxu0 0
      %4915 = vmatmul.mubr.bf16.gmra.mrb[0].mxu0 %v4848
      %v4916 = vpop.f32.mrb[0].mxu0
      %v4917 = vadd.f32 %v4817, %v4916
      %v4918 = vpop.f32.mrb[0].mxu0
      %v4919 = vpop.f32.mrb[0].mxu0
      %v4920 = vadd.f32 %v4818, %v4919
      %v4921 = vpop.f32.mrb[0].mxu0
      %4922 = vmatprep.mubr.bf16.mxu0 0
      %4923 = vmatmul.mubr.bf16.gmra.mrb[0].mxu0 %v4851
      %v4924 = vpop.f32.mrb[0].mxu0
      %v4925 = vadd.f32 %v4819, %v4924
      %v4926 = vpop.f32.mrb[0].mxu0
      %v4927 = vpop.f32.mrb[0].mxu0
      %v4928 = vadd.f32 %v4820, %v4927
      %v4929 = vpop.f32.mrb[0].mxu0
      %4930 = vmatprep.mubr.bf16.mxu0 0
      %4931 = vmatmul.mubr.bf16.gmra.mrb[0].mxu0 %v4854
      %v4932 = vpop.f32.mrb[0].mxu0
      %v4933 = vadd.f32 %v4821, %v4932
      %v4934 = vpop.f32.mrb[0].mxu0
      %v4935 = vpop.f32.mrb[0].mxu0
      %v4936 = vadd.f32 %v4822, %v4935
      %v4937 = vpop.f32.mrb[0].mxu0
      %4938 = vmatprep.mubr.bf16.mxu0 0
      %4939 = vmatmul.mubr.bf16.gmra.mrb[0].mxu0 %v4857
      %v4940 = vpop.f32.mrb[0].mxu0
      %v4941 = vadd.f32 %v4823, %v4940
      %v4942 = vpop.f32.mrb[0].mxu0
      %v4943 = vpop.f32.mrb[0].mxu0
      %v4944 = vpop.f32.mrb[0].mxu0
      %4945 = vdwg.mxu0
      %4946 = vrot.lane.b32.xlu0 %v3589, 112
      %v4947 = vpop.permute.xlu0 %4946
      %4948 = vrot.lane.b32.xlu0 %v3590, 112
      %v4949 = vpop.permute.xlu0 %4948
      %4950 = vrot.lane.b32.xlu0 %v3591, 112
      %v4951 = vpop.permute.xlu0 %4950
      %4952 = vrot.lane.b32.xlu0 %v3592, 112
      %v4953 = vpop.permute.xlu0 %4952
      %4954 = vrot.lane.b32.xlu0 %v3593, 112
      %v4955 = vpop.permute.xlu0 %4954
      %4956 = vrot.lane.b32.xlu0 %v3594, 48
      %v4957 = vpop.permute.xlu0 %4956
      %4958 = vrot.lane.b32.xlu0 %v3595, 48
      %v4959 = vpop.permute.xlu0 %4958
      %4960 = vrot.lane.b32.xlu0 %v3596, 48
      %v4961 = vpop.permute.xlu0 %4960
      %4962 = vrot.lane.b32.xlu0 %v3597, 48
      %v4963 = vpop.permute.xlu0 %4962
      %4964 = vrot.lane.b32.xlu0 %v3598, 48
      %v4965 = vpop.permute.xlu0 %4964
      %v4967 = vsel %vm3486, %v4947, 0
      %v4970 = vsel %vm3486, %v4949, 0
      %v4973 = vsel %vm3486, %v4951, 0
      %v4976 = vsel %vm3486, %v4953, 0
      %v4979 = vsel %vm3486, %v4955, 0
      %v4982 = vsel %vm3486, %v4957, 0
      %v4985 = vsel %vm3486, %v4959, 0
      %v4988 = vsel %vm3486, %v4961, 0
      %v4991 = vsel %vm3486, %v4963, 0
      %v4994 = vsel %vm3486, %v4965, 0
      %4996 = vmatprep.subr.bf16.mxu0 0
      %4997 = vmatpush1.bf16.xpose.msra.mxu0 %v4982
      %4998 = vmatprep.subr.bf16.mxu0 0
      %4999 = vmatpush1.bf16.xpose.msra.mxu0 %v4985
      %5000 = vmatprep.subr.bf16.mxu0 0
      %5001 = vmatpush1.bf16.xpose.msra.mxu0 %v4988
      %5002 = vmatprep.subr.bf16.mxu0 0
      %5003 = vmatpush1.bf16.xpose.msra.mxu0 %v4991
      %5004 = vmatprep.subr.bf16.mxu0 0
      %5005 = vmatpush1.bf16.xpose.msra.mxu0 %v4994
      %5006 = vmatprep.subr.bf16.mxu0 0
      %5007 = vmatpush1.bf16.xpose.msra.mxu0 0
      %5008 = vmatprep.subr.bf16.mxu0 0
      %5009 = vmatpush1.bf16.xpose.msra.mxu0 0
      %5010 = vmatprep.subr.bf16.mxu0 0
      %5011 = vmatpush1.bf16.xpose.msra.mxu0 0
      %5012 = vmatprep.subr.bf16.mxu0 0
      %5013 = vmatpush1.bf16.xpose.msra.mxu0 0
      %5014 = vmatprep.subr.bf16.mxu0 0
      %5015 = vmatpush1.bf16.xpose.msra.mxu0 0
      %5016 = vmatprep.subr.bf16.mxu0 0
      %5017 = vmatpush1.bf16.xpose.msra.mxu0 0
      %5018 = vmatprep.subr.bf16.mxu0 0
      %5019 = vmatpush1.bf16.xpose.msra.mxu0 0
      %5020 = vmatprep.subr.bf16.mxu0 0
      %5021 = vmatpush1.bf16.xpose.msra.mxu0 0
      %5022 = vmatprep.subr.bf16.mxu0 0
      %5023 = vmatpush1.bf16.xpose.msra.mxu0 0
      %5024 = vmatprep.subr.bf16.mxu0 0
      %5025 = vmatpush1.bf16.xpose.msra.mxu0 0
      %5026 = vmatprep.subr.bf16.mxu0 0
      %5027 = vmatpush1.bf16.xpose.msra.mxu0 0
      %5028 = vmatprep.mubr.bf16.mxu0 0
      %5029 = vmatmul.mubr.bf16.gmra.mrb[0].mxu0 %v4967
      %v5030 = vpop.f32.mrb[0].mxu0
      %v5031 = vadd.f32 %v4815, %v5030
      %v5032 = vpop.f32.mrb[0].mxu0
      %v5033 = vpop.f32.mrb[0].mxu0
      %v5034 = vadd.f32 %v4816, %v5033
      %v5035 = vpop.f32.mrb[0].mxu0
      %5036 = vmatprep.mubr.bf16.mxu0 0
      %5037 = vmatmul.mubr.bf16.gmra.mrb[0].mxu0 %v4970
      %v5038 = vpop.f32.mrb[0].mxu0
      %v5039 = vadd.f32 %v4817, %v5038
      %v5040 = vpop.f32.mrb[0].mxu0
      %v5041 = vpop.f32.mrb[0].mxu0
      %v5042 = vadd.f32 %v4818, %v5041
      %v5043 = vpop.f32.mrb[0].mxu0
      %5044 = vmatprep.mubr.bf16.mxu0 0
      %5045 = vmatmul.mubr.bf16.gmra.mrb[0].mxu0 %v4973
      %v5046 = vpop.f32.mrb[0].mxu0
      %v5047 = vadd.f32 %v4819, %v5046
      %v5048 = vpop.f32.mrb[0].mxu0
      %v5049 = vpop.f32.mrb[0].mxu0
      %v5050 = vadd.f32 %v4820, %v5049
      %v5051 = vpop.f32.mrb[0].mxu0
      %5052 = vmatprep.mubr.bf16.mxu0 0
      %5053 = vmatmul.mubr.bf16.gmra.mrb[0].mxu0 %v4976
      %v5054 = vpop.f32.mrb[0].mxu0
      %v5055 = vadd.f32 %v4821, %v5054
      %v5056 = vpop.f32.mrb[0].mxu0
      %v5057 = vpop.f32.mrb[0].mxu0
      %v5058 = vadd.f32 %v4822, %v5057
      %v5059 = vpop.f32.mrb[0].mxu0
      %5060 = vmatprep.mubr.bf16.mxu0 0
      %5061 = vmatmul.mubr.bf16.gmra.mrb[0].mxu0 %v4979
      %v5062 = vpop.f32.mrb[0].mxu0
      %v5063 = vadd.f32 %v4823, %v5062
      %v5064 = vpop.f32.mrb[0].mxu0
      %v5065 = vpop.f32.mrb[0].mxu0
      %v5066 = vpop.f32.mrb[0].mxu0
      %5067 = vdwg.mxu0
      %5068 = vrot.lane.b32.xlu0 %v3711, 112
      %v5069 = vpop.permute.xlu0 %5068
      %5070 = vrot.lane.b32.xlu0 %v3712, 112
      %v5071 = vpop.permute.xlu0 %5070
      %5072 = vrot.lane.b32.xlu0 %v3713, 112
      %v5073 = vpop.permute.xlu0 %5072
      %5074 = vrot.lane.b32.xlu0 %v3714, 112
      %v5075 = vpop.permute.xlu0 %5074
      %5076 = vrot.lane.b32.xlu0 %v3715, 112
      %v5077 = vpop.permute.xlu0 %5076
      %5078 = vrot.lane.b32.xlu0 %v3716, 48
      %v5079 = vpop.permute.xlu0 %5078
      %5080 = vrot.lane.b32.xlu0 %v3717, 48
      %v5081 = vpop.permute.xlu0 %5080
      %5082 = vrot.lane.b32.xlu0 %v3718, 48
      %v5083 = vpop.permute.xlu0 %5082
      %5084 = vrot.lane.b32.xlu0 %v3719, 48
      %v5085 = vpop.permute.xlu0 %5084
      %5086 = vrot.lane.b32.xlu0 %v3720, 48
      %v5087 = vpop.permute.xlu0 %5086
      %v5089 = vsel %vm3486, %v5069, 0
      %v5092 = vsel %vm3486, %v5071, 0
      %v5095 = vsel %vm3486, %v5073, 0
      %v5098 = vsel %vm3486, %v5075, 0
      %v5101 = vsel %vm3486, %v5077, 0
      %v5104 = vsel %vm3486, %v5079, 0
      %v5107 = vsel %vm3486, %v5081, 0
      %v5110 = vsel %vm3486, %v5083, 0
      %v5113 = vsel %vm3486, %v5085, 0
      %v5116 = vsel %vm3486, %v5087, 0
      %5118 = vmatprep.subr.bf16.mxu0 0
      %5119 = vmatpush1.bf16.xpose.msra.mxu0 %v5104
      %5120 = vmatprep.subr.bf16.mxu0 0
      %5121 = vmatpush1.bf16.xpose.msra.mxu0 %v5107
      %5122 = vmatprep.subr.bf16.mxu0 0
      %5123 = vmatpush1.bf16.xpose.msra.mxu0 %v5110
      %5124 = vmatprep.subr.bf16.mxu0 0
      %5125 = vmatpush1.bf16.xpose.msra.mxu0 %v5113
      %5126 = vmatprep.subr.bf16.mxu0 0
      %5127 = vmatpush1.bf16.xpose.msra.mxu0 %v5116
      %5128 = vmatprep.subr.bf16.mxu0 0
      %5129 = vmatpush1.bf16.xpose.msra.mxu0 0
      %5130 = vmatprep.subr.bf16.mxu0 0
      %5131 = vmatpush1.bf16.xpose.msra.mxu0 0
      %5132 = vmatprep.subr.bf16.mxu0 0
      %5133 = vmatpush1.bf16.xpose.msra.mxu0 0
      %5134 = vmatprep.subr.bf16.mxu0 0
      %5135 = vmatpush1.bf16.xpose.msra.mxu0 0
      %5136 = vmatprep.subr.bf16.mxu0 0
      %5137 = vmatpush1.bf16.xpose.msra.mxu0 0
      %5138 = vmatprep.subr.bf16.mxu0 0
      %5139 = vmatpush1.bf16.xpose.msra.mxu0 0
      %5140 = vmatprep.subr.bf16.mxu0 0
      %5141 = vmatpush1.bf16.xpose.msra.mxu0 0
      %5142 = vmatprep.subr.bf16.mxu0 0
      %5143 = vmatpush1.bf16.xpose.msra.mxu0 0
      %5144 = vmatprep.subr.bf16.mxu0 0
      %5145 = vmatpush1.bf16.xpose.msra.mxu0 0
      %5146 = vmatprep.subr.bf16.mxu0 0
      %5147 = vmatpush1.bf16.xpose.msra.mxu0 0
      %5148 = vmatprep.subr.bf16.mxu0 0
      %5149 = vmatpush1.bf16.xpose.msra.mxu0 0
      %5150 = vmatprep.mubr.bf16.mxu0 0
      %5151 = vmatmul.mubr.bf16.gmra.mrb[0].mxu0 %v5089
      %v5152 = vpop.f32.mrb[0].mxu0
      %v5153 = vadd.f32 %v4815, %v5152
      %v5154 = vpop.f32.mrb[0].mxu0
      %v5155 = vpop.f32.mrb[0].mxu0
      %v5156 = vadd.f32 %v4816, %v5155
      %v5157 = vpop.f32.mrb[0].mxu0
      %5158 = vmatprep.mubr.bf16.mxu0 0
      %5159 = vmatmul.mubr.bf16.gmra.mrb[0].mxu0 %v5092
      %v5160 = vpop.f32.mrb[0].mxu0
      %v5161 = vadd.f32 %v4817, %v5160
      %v5162 = vpop.f32.mrb[0].mxu0
      %v5163 = vpop.f32.mrb[0].mxu0
      %v5164 = vadd.f32 %v4818, %v5163
      %v5165 = vpop.f32.mrb[0].mxu0
      %5166 = vmatprep.mubr.bf16.mxu0 0
      %5167 = vmatmul.mubr.bf16.gmra.mrb[0].mxu0 %v5095
      %v5168 = vpop.f32.mrb[0].mxu0
      %v5169 = vadd.f32 %v4819, %v5168
      %v5170 = vpop.f32.mrb[0].mxu0
      %v5171 = vpop.f32.mrb[0].mxu0
      %v5172 = vadd.f32 %v4820, %v5171
      %v5173 = vpop.f32.mrb[0].mxu0
      %5174 = vmatprep.mubr.bf16.mxu0 0
      %5175 = vmatmul.mubr.bf16.gmra.mrb[0].mxu0 %v5098
      %v5176 = vpop.f32.mrb[0].mxu0
      %v5177 = vadd.f32 %v4821, %v5176
      %v5178 = vpop.f32.mrb[0].mxu0
      %v5179 = vpop.f32.mrb[0].mxu0
      %v5180 = vadd.f32 %v4822, %v5179
      %v5181 = vpop.f32.mrb[0].mxu0
      %5182 = vmatprep.mubr.bf16.mxu0 0
      %5183 = vmatmul.mubr.bf16.gmra.mrb[0].mxu0 %v5101
      %v5184 = vpop.f32.mrb[0].mxu0
      %v5185 = vadd.f32 %v4823, %v5184
      %v5186 = vpop.f32.mrb[0].mxu0
      %v5187 = vpop.f32.mrb[0].mxu0
      %v5188 = vpop.f32.mrb[0].mxu0
      %5189 = vdwg.mxu0
      %5190 = vrot.lane.b32.xlu0 %v3833, 112
      %v5191 = vpop.permute.xlu0 %5190
      %5192 = vrot.lane.b32.xlu0 %v3834, 112
      %v5193 = vpop.permute.xlu0 %5192
      %5194 = vrot.lane.b32.xlu0 %v3835, 112
      %v5195 = vpop.permute.xlu0 %5194
      %5196 = vrot.lane.b32.xlu0 %v3836, 112
      %v5197 = vpop.permute.xlu0 %5196
      %5198 = vrot.lane.b32.xlu0 %v3837, 112
      %v5199 = vpop.permute.xlu0 %5198
      %5200 = vrot.lane.b32.xlu0 %v3838, 48
      %v5201 = vpop.permute.xlu0 %5200
      %5202 = vrot.lane.b32.xlu0 %v3839, 48
      %v5203 = vpop.permute.xlu0 %5202
      %5204 = vrot.lane.b32.xlu0 %v3840, 48
      %v5205 = vpop.permute.xlu0 %5204
      %5206 = vrot.lane.b32.xlu0 %v3841, 48
      %v5207 = vpop.permute.xlu0 %5206
      %5208 = vrot.lane.b32.xlu0 %v3842, 48
      %v5209 = vpop.permute.xlu0 %5208
      %v5211 = vsel %vm3486, %v5191, 0
      %v5214 = vsel %vm3486, %v5193, 0
      %v5217 = vsel %vm3486, %v5195, 0
      %v5220 = vsel %vm3486, %v5197, 0
      %v5223 = vsel %vm3486, %v5199, 0
      %v5226 = vsel %vm3486, %v5201, 0
      %v5229 = vsel %vm3486, %v5203, 0
      %v5232 = vsel %vm3486, %v5205, 0
      %v5235 = vsel %vm3486, %v5207, 0
      %v5238 = vsel %vm3486, %v5209, 0
      %5240 = vmatprep.subr.bf16.mxu0 0
      %5241 = vmatpush1.bf16.xpose.msra.mxu0 %v5226
      %5242 = vmatprep.subr.bf16.mxu0 0
      %5243 = vmatpush1.bf16.xpose.msra.mxu0 %v5229
      %5244 = vmatprep.subr.bf16.mxu0 0
      %5245 = vmatpush1.bf16.xpose.msra.mxu0 %v5232
      %5246 = vmatprep.subr.bf16.mxu0 0
      %5247 = vmatpush1.bf16.xpose.msra.mxu0 %v5235
      %5248 = vmatprep.subr.bf16.mxu0 0
      %5249 = vmatpush1.bf16.xpose.msra.mxu0 %v5238
      %5250 = vmatprep.subr.bf16.mxu0 0
      %5251 = vmatpush1.bf16.xpose.msra.mxu0 0
      %5252 = vmatprep.subr.bf16.mxu0 0
      %5253 = vmatpush1.bf16.xpose.msra.mxu0 0
      %5254 = vmatprep.subr.bf16.mxu0 0
      %5255 = vmatpush1.bf16.xpose.msra.mxu0 0
      %5256 = vmatprep.subr.bf16.mxu0 0
      %5257 = vmatpush1.bf16.xpose.msra.mxu0 0
      %5258 = vmatprep.subr.bf16.mxu0 0
      %5259 = vmatpush1.bf16.xpose.msra.mxu0 0
      %5260 = vmatprep.subr.bf16.mxu0 0
      %5261 = vmatpush1.bf16.xpose.msra.mxu0 0
      %5262 = vmatprep.subr.bf16.mxu0 0
      %5263 = vmatpush1.bf16.xpose.msra.mxu0 0
      %5264 = vmatprep.subr.bf16.mxu0 0
      %5265 = vmatpush1.bf16.xpose.msra.mxu0 0
      %5266 = vmatprep.subr.bf16.mxu0 0
      %5267 = vmatpush1.bf16.xpose.msra.mxu0 0
      %5268 = vmatprep.subr.bf16.mxu0 0
      %5269 = vmatpush1.bf16.xpose.msra.mxu0 0
      %5270 = vmatprep.subr.bf16.mxu0 0
      %5271 = vmatpush1.bf16.xpose.msra.mxu0 0
      %5272 = vmatprep.mubr.bf16.mxu0 0
      %5273 = vmatmul.mubr.bf16.gmra.mrb[0].mxu0 %v5211
      %v5274 = vpop.f32.mrb[0].mxu0
      %v5275 = vadd.f32 %v4815, %v5274
      %v5276 = vpop.f32.mrb[0].mxu0
      %v5277 = vpop.f32.mrb[0].mxu0
      %v5278 = vadd.f32 %v4816, %v5277
      %v5279 = vpop.f32.mrb[0].mxu0
      %5280 = vmatprep.mubr.bf16.mxu0 0
      %5281 = vmatmul.mubr.bf16.gmra.mrb[0].mxu0 %v5214
      %v5282 = vpop.f32.mrb[0].mxu0
      %v5283 = vadd.f32 %v4817, %v5282
      %v5284 = vpop.f32.mrb[0].mxu0
      %v5285 = vpop.f32.mrb[0].mxu0
      %v5286 = vadd.f32 %v4818, %v5285
      %v5287 = vpop.f32.mrb[0].mxu0
      %5288 = vmatprep.mubr.bf16.mxu0 0
      %5289 = vmatmul.mubr.bf16.gmra.mrb[0].mxu0 %v5217
      %v5290 = vpop.f32.mrb[0].mxu0
      %v5291 = vadd.f32 %v4819, %v5290
      %v5292 = vpop.f32.mrb[0].mxu0
      %v5293 = vpop.f32.mrb[0].mxu0
      %v5294 = vadd.f32 %v4820, %v5293
      %v5295 = vpop.f32.mrb[0].mxu0
      %5296 = vmatprep.mubr.bf16.mxu0 0
      %5297 = vmatmul.mubr.bf16.gmra.mrb[0].mxu0 %v5220
      %v5298 = vpop.f32.mrb[0].mxu0
      %v5299 = vadd.f32 %v4821, %v5298
      %v5300 = vpop.f32.mrb[0].mxu0
      %v5301 = vpop.f32.mrb[0].mxu0
      %v5302 = vadd.f32 %v4822, %v5301
      %v5303 = vpop.f32.mrb[0].mxu0
      %5304 = vmatprep.mubr.bf16.mxu0 0
      %5305 = vmatmul.mubr.bf16.gmra.mrb[0].mxu0 %v5223
      %v5306 = vpop.f32.mrb[0].mxu0
      %v5307 = vadd.f32 %v4823, %v5306
      %v5308 = vpop.f32.mrb[0].mxu0
      %v5309 = vpop.f32.mrb[0].mxu0
      %v5310 = vpop.f32.mrb[0].mxu0
      %5311 = vdwg.mxu0
      %v5312 = vsel %vm3955, %v4909, -inf
      %5313 = vmax.xlane.f32.xlu0 %v5312
      %v5314 = vpop.xlane.xlu0 %5313
      %v5315 = vsel %vm3955, %v4912, -inf
      %5316 = vmax.xlane.f32.xlu0 %v5315
      %v5317 = vpop.xlane.xlu0 %5316
      %v5318 = vsel %vm3955, %v4917, -inf
      %5319 = vmax.xlane.f32.xlu0 %v5318
      %v5320 = vpop.xlane.xlu0 %5319
      %v5321 = vsel %vm3955, %v4920, -inf
      %5322 = vmax.xlane.f32.xlu0 %v5321
      %v5323 = vpop.xlane.xlu0 %5322
      %v5324 = vsel %vm3955, %v4925, -inf
      %5325 = vmax.xlane.f32.xlu0 %v5324
      %v5326 = vpop.xlane.xlu0 %5325
      %v5327 = vsel %vm3955, %v4928, -inf
      %5328 = vmax.xlane.f32.xlu0 %v5327
      %v5329 = vpop.xlane.xlu0 %5328
      %v5330 = vsel %vm3955, %v4933, -inf
      %5331 = vmax.xlane.f32.xlu0 %v5330
      %v5332 = vpop.xlane.xlu0 %5331
      %v5333 = vsel %vm3955, %v4936, -inf
      %5334 = vmax.xlane.f32.xlu0 %v5333
      %v5335 = vpop.xlane.xlu0 %5334
      %v5336 = vsel %vm3955, %v4941, -inf
      %5337 = vmax.xlane.f32.xlu0 %v5336
      %v5338 = vpop.xlane.xlu0 %5337
      %v5339 = vsel %vm3955, %v5031, -inf
      %5340 = vmax.xlane.f32.xlu0 %v5339
      %v5341 = vpop.xlane.xlu0 %5340
      %v5342 = vsel %vm3955, %v5034, -inf
      %5343 = vmax.xlane.f32.xlu0 %v5342
      %v5344 = vpop.xlane.xlu0 %5343
      %v5345 = vsel %vm3955, %v5039, -inf
      %5346 = vmax.xlane.f32.xlu0 %v5345
      %v5347 = vpop.xlane.xlu0 %5346
      %v5348 = vsel %vm3955, %v5042, -inf
      %5349 = vmax.xlane.f32.xlu0 %v5348
      %v5350 = vpop.xlane.xlu0 %5349
      %v5351 = vsel %vm3955, %v5047, -inf
      %5352 = vmax.xlane.f32.xlu0 %v5351
      %v5353 = vpop.xlane.xlu0 %5352
      %v5354 = vsel %vm3955, %v5050, -inf
      %5355 = vmax.xlane.f32.xlu0 %v5354
      %v5356 = vpop.xlane.xlu0 %5355
      %v5357 = vsel %vm3955, %v5055, -inf
      %5358 = vmax.xlane.f32.xlu0 %v5357
      %v5359 = vpop.xlane.xlu0 %5358
      %v5360 = vsel %vm3955, %v5058, -inf
      %5361 = vmax.xlane.f32.xlu0 %v5360
      %v5362 = vpop.xlane.xlu0 %5361
      %v5363 = vsel %vm3955, %v5063, -inf
      %5364 = vmax.xlane.f32.xlu0 %v5363
      %v5365 = vpop.xlane.xlu0 %5364
      %v5366 = vsel %vm3955, %v5153, -inf
      %5367 = vmax.xlane.f32.xlu0 %v5366
      %v5368 = vpop.xlane.xlu0 %5367
      %v5369 = vsel %vm3955, %v5156, -inf
      %5370 = vmax.xlane.f32.xlu0 %v5369
      %v5371 = vpop.xlane.xlu0 %5370
      %v5372 = vsel %vm3955, %v5161, -inf
      %5373 = vmax.xlane.f32.xlu0 %v5372
      %v5374 = vpop.xlane.xlu0 %5373
      %v5375 = vsel %vm3955, %v5164, -inf
      %5376 = vmax.xlane.f32.xlu0 %v5375
      %v5377 = vpop.xlane.xlu0 %5376
      %v5378 = vsel %vm3955, %v5169, -inf
      %5379 = vmax.xlane.f32.xlu0 %v5378
      %v5380 = vpop.xlane.xlu0 %5379
      %v5381 = vsel %vm3955, %v5172, -inf
      %5382 = vmax.xlane.f32.xlu0 %v5381
      %v5383 = vpop.xlane.xlu0 %5382
      %v5384 = vsel %vm3955, %v5177, -inf
      %5385 = vmax.xlane.f32.xlu0 %v5384
      %v5386 = vpop.xlane.xlu0 %5385
      %v5387 = vsel %vm3955, %v5180, -inf
      %5388 = vmax.xlane.f32.xlu0 %v5387
      %v5389 = vpop.xlane.xlu0 %5388
      %v5390 = vsel %vm3955, %v5185, -inf
      %5391 = vmax.xlane.f32.xlu0 %v5390
      %v5392 = vpop.xlane.xlu0 %5391
      %v5393 = vsel %vm3955, %v5275, -inf
      %5394 = vmax.xlane.f32.xlu0 %v5393
      %v5395 = vpop.xlane.xlu0 %5394
      %v5396 = vsel %vm3955, %v5278, -inf
      %5397 = vmax.xlane.f32.xlu0 %v5396
      %v5398 = vpop.xlane.xlu0 %5397
      %v5399 = vsel %vm3955, %v5283, -inf
      %5400 = vmax.xlane.f32.xlu0 %v5399
      %v5401 = vpop.xlane.xlu0 %5400
      %v5402 = vsel %vm3955, %v5286, -inf
      %5403 = vmax.xlane.f32.xlu0 %v5402
      %v5404 = vpop.xlane.xlu0 %5403
      %v5405 = vsel %vm3955, %v5291, -inf
      %5406 = vmax.xlane.f32.xlu0 %v5405
      %v5407 = vpop.xlane.xlu0 %5406
      %v5408 = vsel %vm3955, %v5294, -inf
      %5409 = vmax.xlane.f32.xlu0 %v5408
      %v5410 = vpop.xlane.xlu0 %5409
      %v5411 = vsel %vm3955, %v5299, -inf
      %5412 = vmax.xlane.f32.xlu0 %v5411
      %v5413 = vpop.xlane.xlu0 %5412
      %v5414 = vsel %vm3955, %v5302, -inf
      %5415 = vmax.xlane.f32.xlu0 %v5414
      %v5416 = vpop.xlane.xlu0 %5415
      %v5417 = vsel %vm3955, %v5307, -inf
      %5418 = vmax.xlane.f32.xlu0 %v5417
      %v5419 = vpop.xlane.xlu0 %5418
      %v5420 = vsub.f32 %v4909, %v5314
      %v5421 = vsub.f32 %v4912, %v5317
      %v5422 = vsub.f32 %v4917, %v5320
      %v5423 = vsub.f32 %v4920, %v5323
      %v5424 = vsub.f32 %v4925, %v5326
      %v5425 = vsub.f32 %v4928, %v5329
      %v5426 = vsub.f32 %v4933, %v5332
      %v5427 = vsub.f32 %v4936, %v5335
      %v5428 = vsub.f32 %v4941, %v5338
      %v5429 = vsub.f32 %v5031, %v5341
      %v5430 = vsub.f32 %v5034, %v5344
      %v5431 = vsub.f32 %v5039, %v5347
      %v5432 = vsub.f32 %v5042, %v5350
      %v5433 = vsub.f32 %v5047, %v5353
      %v5434 = vsub.f32 %v5050, %v5356
      %v5435 = vsub.f32 %v5055, %v5359
      %v5436 = vsub.f32 %v5058, %v5362
      %v5437 = vsub.f32 %v5063, %v5365
      %v5438 = vsub.f32 %v5153, %v5368
      %v5439 = vsub.f32 %v5156, %v5371
      %v5440 = vsub.f32 %v5161, %v5374
      %v5441 = vsub.f32 %v5164, %v5377
      %v5442 = vsub.f32 %v5169, %v5380
      %v5443 = vsub.f32 %v5172, %v5383
      %v5444 = vsub.f32 %v5177, %v5386
      %v5445 = vsub.f32 %v5180, %v5389
      %v5446 = vsub.f32 %v5185, %v5392
      %v5447 = vsub.f32 %v5275, %v5395
      %v5448 = vsub.f32 %v5278, %v5398
      %v5449 = vsub.f32 %v5283, %v5401
      %v5450 = vsub.f32 %v5286, %v5404
      %v5451 = vsub.f32 %v5291, %v5407
      %v5452 = vsub.f32 %v5294, %v5410
      %v5453 = vsub.f32 %v5299, %v5413
      %v5454 = vsub.f32 %v5302, %v5416
      %v5455 = vsub.f32 %v5307, %v5419
      %v5456 = vmul.f32 %v5420, 1.442695
      %v5457 = vpow.pop %v5456
      %v5458 = vmul.f32 %v5421, 1.442695
      %v5459 = vpow.pop %v5458
      %v5460 = vmul.f32 %v5422, 1.442695
      %v5461 = vpow.pop %v5460
      %v5462 = vmul.f32 %v5423, 1.442695
      %v5463 = vpow.pop %v5462
      %v5464 = vmul.f32 %v5424, 1.442695
      %v5465 = vpow.pop %v5464
      %v5466 = vmul.f32 %v5425, 1.442695
      %v5467 = vpow.pop %v5466
      %v5468 = vmul.f32 %v5426, 1.442695
      %v5469 = vpow.pop %v5468
      %v5470 = vmul.f32 %v5427, 1.442695
      %v5471 = vpow.pop %v5470
      %v5472 = vmul.f32 %v5428, 1.442695
      %v5473 = vpow.pop %v5472
      %v5474 = vmul.f32 %v5429, 1.442695
      %v5475 = vpow.pop %v5474
      %v5476 = vmul.f32 %v5430, 1.442695
      %v5477 = vpow.pop %v5476
      %v5478 = vmul.f32 %v5431, 1.442695
      %v5479 = vpow.pop %v5478
      %v5480 = vmul.f32 %v5432, 1.442695
      %v5481 = vpow.pop %v5480
      %v5482 = vmul.f32 %v5433, 1.442695
      %v5483 = vpow.pop %v5482
      %v5484 = vmul.f32 %v5434, 1.442695
      %v5485 = vpow.pop %v5484
      %v5486 = vmul.f32 %v5435, 1.442695
      %v5487 = vpow.pop %v5486
      %v5488 = vmul.f32 %v5436, 1.442695
      %v5489 = vpow.pop %v5488
      %v5490 = vmul.f32 %v5437, 1.442695
      %v5491 = vpow.pop %v5490
      %v5492 = vmul.f32 %v5438, 1.442695
      %v5493 = vpow.pop %v5492
      %v5494 = vmul.f32 %v5439, 1.442695
      %v5495 = vpow.pop %v5494
      %v5496 = vmul.f32 %v5440, 1.442695
      %v5497 = vpow.pop %v5496
      %v5498 = vmul.f32 %v5441, 1.442695
      %v5499 = vpow.pop %v5498
      %v5500 = vmul.f32 %v5442, 1.442695
      %v5501 = vpow.pop %v5500
      %v5502 = vmul.f32 %v5443, 1.442695
      %v5503 = vpow.pop %v5502
      %v5504 = vmul.f32 %v5444, 1.442695
      %v5505 = vpow.pop %v5504
      %v5506 = vmul.f32 %v5445, 1.442695
      %v5507 = vpow.pop %v5506
      %v5508 = vmul.f32 %v5446, 1.442695
      %v5509 = vpow.pop %v5508
      %v5510 = vmul.f32 %v5447, 1.442695
      %v5511 = vpow.pop %v5510
      %v5512 = vmul.f32 %v5448, 1.442695
      %v5513 = vpow.pop %v5512
      %v5514 = vmul.f32 %v5449, 1.442695
      %v5515 = vpow.pop %v5514
      %v5516 = vmul.f32 %v5450, 1.442695
      %v5517 = vpow.pop %v5516
      %v5518 = vmul.f32 %v5451, 1.442695
      %v5519 = vpow.pop %v5518
      %v5520 = vmul.f32 %v5452, 1.442695
      %v5521 = vpow.pop %v5520
      %v5522 = vmul.f32 %v5453, 1.442695
      %v5523 = vpow.pop %v5522
      %v5524 = vmul.f32 %v5454, 1.442695
      %v5525 = vpow.pop %v5524
      %v5526 = vmul.f32 %v5455, 1.442695
      %v5527 = vpow.pop %v5526
      %v5528 = vsel %vm3955, %v5457, 0.0
      %5529 = vadd.xlane.f32.xlu0 %v5528
      %v5530 = vpop.xlane.xlu0 %5529
      %v5531 = vsel %vm3955, %v5459, 0.0
      %5532 = vadd.xlane.f32.xlu0 %v5531
      %v5533 = vpop.xlane.xlu0 %5532
      %v5534 = vsel %vm3955, %v5461, 0.0
      %5535 = vadd.xlane.f32.xlu0 %v5534
      %v5536 = vpop.xlane.xlu0 %5535
      %v5537 = vsel %vm3955, %v5463, 0.0
      %5538 = vadd.xlane.f32.xlu0 %v5537
      %v5539 = vpop.xlane.xlu0 %5538
      %v5540 = vsel %vm3955, %v5465, 0.0
      %5541 = vadd.xlane.f32.xlu0 %v5540
      %v5542 = vpop.xlane.xlu0 %5541
      %v5543 = vsel %vm3955, %v5467, 0.0
      %5544 = vadd.xlane.f32.xlu0 %v5543
      %v5545 = vpop.xlane.xlu0 %5544
      %v5546 = vsel %vm3955, %v5469, 0.0
      %5547 = vadd.xlane.f32.xlu0 %v5546
      %v5548 = vpop.xlane.xlu0 %5547
      %v5549 = vsel %vm3955, %v5471, 0.0
      %5550 = vadd.xlane.f32.xlu0 %v5549
      %v5551 = vpop.xlane.xlu0 %5550
      %v5552 = vsel %vm3955, %v5473, 0.0
      %5553 = vadd.xlane.f32.xlu0 %v5552
      %v5554 = vpop.xlane.xlu0 %5553
      %v5555 = vsel %vm3955, %v5475, 0.0
      %5556 = vadd.xlane.f32.xlu0 %v5555
      %v5557 = vpop.xlane.xlu0 %5556
      %v5558 = vsel %vm3955, %v5477, 0.0
      %5559 = vadd.xlane.f32.xlu0 %v5558
      %v5560 = vpop.xlane.xlu0 %5559
      %v5561 = vsel %vm3955, %v5479, 0.0
      %5562 = vadd.xlane.f32.xlu0 %v5561
      %v5563 = vpop.xlane.xlu0 %5562
      %v5564 = vsel %vm3955, %v5481, 0.0
      %5565 = vadd.xlane.f32.xlu0 %v5564
      %v5566 = vpop.xlane.xlu0 %5565
      %v5567 = vsel %vm3955, %v5483, 0.0
      %5568 = vadd.xlane.f32.xlu0 %v5567
      %v5569 = vpop.xlane.xlu0 %5568
      %v5570 = vsel %vm3955, %v5485, 0.0
      %5571 = vadd.xlane.f32.xlu0 %v5570
      %v5572 = vpop.xlane.xlu0 %5571
      %v5573 = vsel %vm3955, %v5487, 0.0
      %5574 = vadd.xlane.f32.xlu0 %v5573
      %v5575 = vpop.xlane.xlu0 %5574
      %v5576 = vsel %vm3955, %v5489, 0.0
      %5577 = vadd.xlane.f32.xlu0 %v5576
      %v5578 = vpop.xlane.xlu0 %5577
      %v5579 = vsel %vm3955, %v5491, 0.0
      %5580 = vadd.xlane.f32.xlu0 %v5579
      %v5581 = vpop.xlane.xlu0 %5580
      %v5582 = vsel %vm3955, %v5493, 0.0
      %5583 = vadd.xlane.f32.xlu0 %v5582
      %v5584 = vpop.xlane.xlu0 %5583
      %v5585 = vsel %vm3955, %v5495, 0.0
      %5586 = vadd.xlane.f32.xlu0 %v5585
      %v5587 = vpop.xlane.xlu0 %5586
      %v5588 = vsel %vm3955, %v5497, 0.0
      %5589 = vadd.xlane.f32.xlu0 %v5588
      %v5590 = vpop.xlane.xlu0 %5589
      %v5591 = vsel %vm3955, %v5499, 0.0
      %5592 = vadd.xlane.f32.xlu0 %v5591
      %v5593 = vpop.xlane.xlu0 %5592
      %v5594 = vsel %vm3955, %v5501, 0.0
      %5595 = vadd.xlane.f32.xlu0 %v5594
      %v5596 = vpop.xlane.xlu0 %5595
      %v5597 = vsel %vm3955, %v5503, 0.0
      %5598 = vadd.xlane.f32.xlu0 %v5597
      %v5599 = vpop.xlane.xlu0 %5598
      %v5600 = vsel %vm3955, %v5505, 0.0
      %5601 = vadd.xlane.f32.xlu0 %v5600
      %v5602 = vpop.xlane.xlu0 %5601
      %v5603 = vsel %vm3955, %v5507, 0.0
      %5604 = vadd.xlane.f32.xlu0 %v5603
      %v5605 = vpop.xlane.xlu0 %5604
      %v5606 = vsel %vm3955, %v5509, 0.0
      %5607 = vadd.xlane.f32.xlu0 %v5606
      %v5608 = vpop.xlane.xlu0 %5607
      %v5609 = vsel %vm3955, %v5511, 0.0
      %5610 = vadd.xlane.f32.xlu0 %v5609
      %v5611 = vpop.xlane.xlu0 %5610
      %v5612 = vsel %vm3955, %v5513, 0.0
      %5613 = vadd.xlane.f32.xlu0 %v5612
      %v5614 = vpop.xlane.xlu0 %5613
      %v5615 = vsel %vm3955, %v5515, 0.0
      %5616 = vadd.xlane.f32.xlu0 %v5615
      %v5617 = vpop.xlane.xlu0 %5616
      %v5618 = vsel %vm3955, %v5517, 0.0
      %5619 = vadd.xlane.f32.xlu0 %v5618
      %v5620 = vpop.xlane.xlu0 %5619
      %v5621 = vsel %vm3955, %v5519, 0.0
      %5622 = vadd.xlane.f32.xlu0 %v5621
      %v5623 = vpop.xlane.xlu0 %5622
      %v5624 = vsel %vm3955, %v5521, 0.0
      %5625 = vadd.xlane.f32.xlu0 %v5624
      %v5626 = vpop.xlane.xlu0 %5625
      %v5627 = vsel %vm3955, %v5523, 0.0
      %5628 = vadd.xlane.f32.xlu0 %v5627
      %v5629 = vpop.xlane.xlu0 %5628
      %v5630 = vsel %vm3955, %v5525, 0.0
      %5631 = vadd.xlane.f32.xlu0 %v5630
      %v5632 = vpop.xlane.xlu0 %5631
      %v5633 = vsel %vm3955, %v5527, 0.0
      %5634 = vadd.xlane.f32.xlu0 %v5633
      %v5635 = vpop.xlane.xlu0 %5634
      %v5636 = vpack.c.bf16 %v5459, %v5457
      %v5637 = vpack.c.bf16 %v5463, %v5461
      %v5638 = vpack.c.bf16 %v5467, %v5465
      %v5639 = vpack.c.bf16 %v5471, %v5469
      %v5640 = vpack.c.bf16 %v5473, %v5473
      %v5641 = vpack.c.bf16 %v5477, %v5475
      %v5642 = vpack.c.bf16 %v5481, %v5479
      %v5643 = vpack.c.bf16 %v5485, %v5483
      %v5644 = vpack.c.bf16 %v5489, %v5487
      %v5645 = vpack.c.bf16 %v5491, %v5491
      %v5646 = vpack.c.bf16 %v5495, %v5493
      %v5647 = vpack.c.bf16 %v5499, %v5497
      %v5648 = vpack.c.bf16 %v5503, %v5501
      %v5649 = vpack.c.bf16 %v5507, %v5505
      %v5650 = vpack.c.bf16 %v5509, %v5509
      %v5651 = vpack.c.bf16 %v5513, %v5511
      %v5652 = vpack.c.bf16 %v5517, %v5515
      %v5653 = vpack.c.bf16 %v5521, %v5519
      %v5654 = vpack.c.bf16 %v5525, %v5523
      %v5655 = vpack.c.bf16 %v5527, %v5527
      %5656 = vrot.lane.b32.xlu0 %v4300, 112
      %v5657 = vpop.permute.xlu0 %5656
      %5658 = vrot.lane.b32.xlu0 %v4301, 112
      %v5659 = vpop.permute.xlu0 %5658
      %5660 = vrot.lane.b32.xlu0 %v4302, 112
      %v5661 = vpop.permute.xlu0 %5660
      %5662 = vrot.lane.b32.xlu0 %v4303, 112
      %v5663 = vpop.permute.xlu0 %5662
      %5664 = vrot.lane.b32.xlu0 %v4304, 112
      %v5665 = vpop.permute.xlu0 %5664
      %v5671 = vsel %vm3955, %v5636, 0
      %v5674 = vsel %vm3955, %v5637, 0
      %v5677 = vsel %vm3955, %v5638, 0
      %v5680 = vsel %vm3955, %v5639, 0
      %v5683 = vsel %vm3955, %v5640, 0
      %v5686 = vsel %vm4324, %v5665, 0
      %5688 = vmatprep.subr.bf16.mxu0 0
      %5689 = vmatpush1.bf16.msra.mxu0 %v5657
      %5690 = vmatprep.subr.bf16.mxu0 0
      %5691 = vmatpush1.bf16.msra.mxu0 %v5659
      %5692 = vmatprep.subr.bf16.mxu0 0
      %5693 = vmatpush1.bf16.msra.mxu0 %v5661
      %5694 = vmatprep.subr.bf16.mxu0 0
      %5695 = vmatpush1.bf16.msra.mxu0 %v5663
      %5696 = vmatprep.subr.bf16.mxu0 0
      %5697 = vmatpush1.bf16.msra.mxu0 %v5686
      %5698 = vmatprep.subr.bf16.mxu0 0
      %5699 = vmatpush1.bf16.msra.mxu0 0
      %5700 = vmatprep.subr.bf16.mxu0 0
      %5701 = vmatpush1.bf16.msra.mxu0 0
      %5702 = vmatprep.subr.bf16.mxu0 0
      %5703 = vmatpush1.bf16.msra.mxu0 0
      %5704 = vmatprep.subr.bf16.mxu0 0
      %5705 = vmatpush1.bf16.msra.mxu0 0
      %5706 = vmatprep.subr.bf16.mxu0 0
      %5707 = vmatpush1.bf16.msra.mxu0 0
      %5708 = vmatprep.subr.bf16.mxu0 0
      %5709 = vmatpush1.bf16.msra.mxu0 0
      %5710 = vmatprep.subr.bf16.mxu0 0
      %5711 = vmatpush1.bf16.msra.mxu0 0
      %5712 = vmatprep.subr.bf16.mxu0 0
      %5713 = vmatpush1.bf16.msra.mxu0 0
      %5714 = vmatprep.subr.bf16.mxu0 0
      %5715 = vmatpush1.bf16.msra.mxu0 0
      %5716 = vmatprep.subr.bf16.mxu0 0
      %5717 = vmatpush1.bf16.msra.mxu0 0
      %5718 = vmatprep.subr.bf16.mxu0 0
      %5719 = vmatpush1.bf16.msra.mxu0 0
      %5720 = vmatprep.mubr.bf16.mxu0 0
      %5721 = vmatmul.mubr.bf16.gmra.mrb[0].mxu0 %v5671
      %v5722 = vpop.f32.mrb[0].mxu0
      %v5723 = vadd.f32 0.0, %v5722
      %v5724 = vpop.f32.mrb[0].mxu0
      %v5725 = vpop.f32.mrb[0].mxu0
      %v5726 = vadd.f32 0.0, %v5725
      %v5727 = vpop.f32.mrb[0].mxu0
      %5728 = vmatprep.mubr.bf16.mxu0 0
      %5729 = vmatmul.mubr.bf16.gmra.mrb[0].mxu0 %v5674
      %v5730 = vpop.f32.mrb[0].mxu0
      %v5731 = vadd.f32 0.0, %v5730
      %v5732 = vpop.f32.mrb[0].mxu0
      %v5733 = vpop.f32.mrb[0].mxu0
      %v5734 = vadd.f32 0.0, %v5733
      %v5735 = vpop.f32.mrb[0].mxu0
      %5736 = vmatprep.mubr.bf16.mxu0 0
      %5737 = vmatmul.mubr.bf16.gmra.mrb[0].mxu0 %v5677
      %v5738 = vpop.f32.mrb[0].mxu0
      %v5739 = vadd.f32 0.0, %v5738
      %v5740 = vpop.f32.mrb[0].mxu0
      %v5741 = vpop.f32.mrb[0].mxu0
      %v5742 = vadd.f32 0.0, %v5741
      %v5743 = vpop.f32.mrb[0].mxu0
      %5744 = vmatprep.mubr.bf16.mxu0 0
      %5745 = vmatmul.mubr.bf16.gmra.mrb[0].mxu0 %v5680
      %v5746 = vpop.f32.mrb[0].mxu0
      %v5747 = vadd.f32 0.0, %v5746
      %v5748 = vpop.f32.mrb[0].mxu0
      %v5749 = vpop.f32.mrb[0].mxu0
      %v5750 = vadd.f32 0.0, %v5749
      %v5751 = vpop.f32.mrb[0].mxu0
      %5752 = vmatprep.mubr.bf16.mxu0 0
      %5753 = vmatmul.mubr.bf16.gmra.mrb[0].mxu0 %v5683
      %v5754 = vpop.f32.mrb[0].mxu0
      %v5755 = vadd.f32 0.0, %v5754
      %v5756 = vpop.f32.mrb[0].mxu0
      %v5757 = vpop.f32.mrb[0].mxu0
      %v5758 = vpop.f32.mrb[0].mxu0
      %5759 = vdwg.mxu0
      %5760 = vrot.lane.b32.xlu0 %v4400, 112
      %v5761 = vpop.permute.xlu0 %5760
      %5762 = vrot.lane.b32.xlu0 %v4401, 112
      %v5763 = vpop.permute.xlu0 %5762
      %5764 = vrot.lane.b32.xlu0 %v4402, 112
      %v5765 = vpop.permute.xlu0 %5764
      %5766 = vrot.lane.b32.xlu0 %v4403, 112
      %v5767 = vpop.permute.xlu0 %5766
      %5768 = vrot.lane.b32.xlu0 %v4404, 112
      %v5769 = vpop.permute.xlu0 %5768
      %v5775 = vsel %vm3955, %v5641, 0
      %v5778 = vsel %vm3955, %v5642, 0
      %v5781 = vsel %vm3955, %v5643, 0
      %v5784 = vsel %vm3955, %v5644, 0
      %v5787 = vsel %vm3955, %v5645, 0
      %v5790 = vsel %vm4324, %v5769, 0
      %5792 = vmatprep.subr.bf16.mxu0 0
      %5793 = vmatpush1.bf16.msra.mxu0 %v5761
      %5794 = vmatprep.subr.bf16.mxu0 0
      %5795 = vmatpush1.bf16.msra.mxu0 %v5763
      %5796 = vmatprep.subr.bf16.mxu0 0
      %5797 = vmatpush1.bf16.msra.mxu0 %v5765
      %5798 = vmatprep.subr.bf16.mxu0 0
      %5799 = vmatpush1.bf16.msra.mxu0 %v5767
      %5800 = vmatprep.subr.bf16.mxu0 0
      %5801 = vmatpush1.bf16.msra.mxu0 %v5790
      %5802 = vmatprep.subr.bf16.mxu0 0
      %5803 = vmatpush1.bf16.msra.mxu0 0
      %5804 = vmatprep.subr.bf16.mxu0 0
      %5805 = vmatpush1.bf16.msra.mxu0 0
      %5806 = vmatprep.subr.bf16.mxu0 0
      %5807 = vmatpush1.bf16.msra.mxu0 0
      %5808 = vmatprep.subr.bf16.mxu0 0
      %5809 = vmatpush1.bf16.msra.mxu0 0
      %5810 = vmatprep.subr.bf16.mxu0 0
      %5811 = vmatpush1.bf16.msra.mxu0 0
      %5812 = vmatprep.subr.bf16.mxu0 0
      %5813 = vmatpush1.bf16.msra.mxu0 0
      %5814 = vmatprep.subr.bf16.mxu0 0
      %5815 = vmatpush1.bf16.msra.mxu0 0
      %5816 = vmatprep.subr.bf16.mxu0 0
      %5817 = vmatpush1.bf16.msra.mxu0 0
      %5818 = vmatprep.subr.bf16.mxu0 0
      %5819 = vmatpush1.bf16.msra.mxu0 0
      %5820 = vmatprep.subr.bf16.mxu0 0
      %5821 = vmatpush1.bf16.msra.mxu0 0
      %5822 = vmatprep.subr.bf16.mxu0 0
      %5823 = vmatpush1.bf16.msra.mxu0 0
      %5824 = vmatprep.mubr.bf16.mxu0 0
      %5825 = vmatmul.mubr.bf16.gmra.mrb[0].mxu0 %v5775
      %v5826 = vpop.f32.mrb[0].mxu0
      %v5827 = vadd.f32 0.0, %v5826
      %v5828 = vpop.f32.mrb[0].mxu0
      %v5829 = vpop.f32.mrb[0].mxu0
      %v5830 = vadd.f32 0.0, %v5829
      %v5831 = vpop.f32.mrb[0].mxu0
      %5832 = vmatprep.mubr.bf16.mxu0 0
      %5833 = vmatmul.mubr.bf16.gmra.mrb[0].mxu0 %v5778
      %v5834 = vpop.f32.mrb[0].mxu0
      %v5835 = vadd.f32 0.0, %v5834
      %v5836 = vpop.f32.mrb[0].mxu0
      %v5837 = vpop.f32.mrb[0].mxu0
      %v5838 = vadd.f32 0.0, %v5837
      %v5839 = vpop.f32.mrb[0].mxu0
      %5840 = vmatprep.mubr.bf16.mxu0 0
      %5841 = vmatmul.mubr.bf16.gmra.mrb[0].mxu0 %v5781
      %v5842 = vpop.f32.mrb[0].mxu0
      %v5843 = vadd.f32 0.0, %v5842
      %v5844 = vpop.f32.mrb[0].mxu0
      %v5845 = vpop.f32.mrb[0].mxu0
      %v5846 = vadd.f32 0.0, %v5845
      %v5847 = vpop.f32.mrb[0].mxu0
      %5848 = vmatprep.mubr.bf16.mxu0 0
      %5849 = vmatmul.mubr.bf16.gmra.mrb[0].mxu0 %v5784
      %v5850 = vpop.f32.mrb[0].mxu0
      %v5851 = vadd.f32 0.0, %v5850
      %v5852 = vpop.f32.mrb[0].mxu0
      %v5853 = vpop.f32.mrb[0].mxu0
      %v5854 = vadd.f32 0.0, %v5853
      %v5855 = vpop.f32.mrb[0].mxu0
      %5856 = vmatprep.mubr.bf16.mxu0 0
      %5857 = vmatmul.mubr.bf16.gmra.mrb[0].mxu0 %v5787
      %v5858 = vpop.f32.mrb[0].mxu0
      %v5859 = vadd.f32 0.0, %v5858
      %v5860 = vpop.f32.mrb[0].mxu0
      %v5861 = vpop.f32.mrb[0].mxu0
      %v5862 = vpop.f32.mrb[0].mxu0
      %5863 = vdwg.mxu0
      %5864 = vrot.lane.b32.xlu0 %v4499, 112
      %v5865 = vpop.permute.xlu0 %5864
      %5866 = vrot.lane.b32.xlu0 %v4500, 112
      %v5867 = vpop.permute.xlu0 %5866
      %5868 = vrot.lane.b32.xlu0 %v4501, 112
      %v5869 = vpop.permute.xlu0 %5868
      %5870 = vrot.lane.b32.xlu0 %v4502, 112
      %v5871 = vpop.permute.xlu0 %5870
      %5872 = vrot.lane.b32.xlu0 %v4503, 112
      %v5873 = vpop.permute.xlu0 %5872
      %v5879 = vsel %vm3955, %v5646, 0
      %v5882 = vsel %vm3955, %v5647, 0
      %v5885 = vsel %vm3955, %v5648, 0
      %v5888 = vsel %vm3955, %v5649, 0
      %v5891 = vsel %vm3955, %v5650, 0
      %v5894 = vsel %vm4324, %v5873, 0
      %5896 = vmatprep.subr.bf16.mxu0 0
      %5897 = vmatpush1.bf16.msra.mxu0 %v5865
      %5898 = vmatprep.subr.bf16.mxu0 0
      %5899 = vmatpush1.bf16.msra.mxu0 %v5867
      %5900 = vmatprep.subr.bf16.mxu0 0
      %5901 = vmatpush1.bf16.msra.mxu0 %v5869
      %5902 = vmatprep.subr.bf16.mxu0 0
      %5903 = vmatpush1.bf16.msra.mxu0 %v5871
      %5904 = vmatprep.subr.bf16.mxu0 0
      %5905 = vmatpush1.bf16.msra.mxu0 %v5894
      %5906 = vmatprep.subr.bf16.mxu0 0
      %5907 = vmatpush1.bf16.msra.mxu0 0
      %5908 = vmatprep.subr.bf16.mxu0 0
      %5909 = vmatpush1.bf16.msra.mxu0 0
      %5910 = vmatprep.subr.bf16.mxu0 0
      %5911 = vmatpush1.bf16.msra.mxu0 0
      %5912 = vmatprep.subr.bf16.mxu0 0
      %5913 = vmatpush1.bf16.msra.mxu0 0
      %5914 = vmatprep.subr.bf16.mxu0 0
      %5915 = vmatpush1.bf16.msra.mxu0 0
      %5916 = vmatprep.subr.bf16.mxu0 0
      %5917 = vmatpush1.bf16.msra.mxu0 0
      %5918 = vmatprep.subr.bf16.mxu0 0
      %5919 = vmatpush1.bf16.msra.mxu0 0
      %5920 = vmatprep.subr.bf16.mxu0 0
      %5921 = vmatpush1.bf16.msra.mxu0 0
      %5922 = vmatprep.subr.bf16.mxu0 0
      %5923 = vmatpush1.bf16.msra.mxu0 0
      %5924 = vmatprep.subr.bf16.mxu0 0
      %5925 = vmatpush1.bf16.msra.mxu0 0
      %5926 = vmatprep.subr.bf16.mxu0 0
      %5927 = vmatpush1.bf16.msra.mxu0 0
      %5928 = vmatprep.mubr.bf16.mxu0 0
      %5929 = vmatmul.mubr.bf16.gmra.mrb[0].mxu0 %v5879
      %v5930 = vpop.f32.mrb[0].mxu0
      %v5931 = vadd.f32 0.0, %v5930
      %v5932 = vpop.f32.mrb[0].mxu0
      %v5933 = vpop.f32.mrb[0].mxu0
      %v5934 = vadd.f32 0.0, %v5933
      %v5935 = vpop.f32.mrb[0].mxu0
      %5936 = vmatprep.mubr.bf16.mxu0 0
      %5937 = vmatmul.mubr.bf16.gmra.mrb[0].mxu0 %v5882
      %v5938 = vpop.f32.mrb[0].mxu0
      %v5939 = vadd.f32 0.0, %v5938
      %v5940 = vpop.f32.mrb[0].mxu0
      %v5941 = vpop.f32.mrb[0].mxu0
      %v5942 = vadd.f32 0.0, %v5941
      %v5943 = vpop.f32.mrb[0].mxu0
      %5944 = vmatprep.mubr.bf16.mxu0 0
      %5945 = vmatmul.mubr.bf16.gmra.mrb[0].mxu0 %v5885
      %v5946 = vpop.f32.mrb[0].mxu0
      %v5947 = vadd.f32 0.0, %v5946
      %v5948 = vpop.f32.mrb[0].mxu0
      %v5949 = vpop.f32.mrb[0].mxu0
      %v5950 = vadd.f32 0.0, %v5949
      %v5951 = vpop.f32.mrb[0].mxu0
      %5952 = vmatprep.mubr.bf16.mxu0 0
      %5953 = vmatmul.mubr.bf16.gmra.mrb[0].mxu0 %v5888
      %v5954 = vpop.f32.mrb[0].mxu0
      %v5955 = vadd.f32 0.0, %v5954
      %v5956 = vpop.f32.mrb[0].mxu0
      %v5957 = vpop.f32.mrb[0].mxu0
      %v5958 = vadd.f32 0.0, %v5957
      %v5959 = vpop.f32.mrb[0].mxu0
      %5960 = vmatprep.mubr.bf16.mxu0 0
      %5961 = vmatmul.mubr.bf16.gmra.mrb[0].mxu0 %v5891
      %v5962 = vpop.f32.mrb[0].mxu0
      %v5963 = vadd.f32 0.0, %v5962
      %v5964 = vpop.f32.mrb[0].mxu0
      %v5965 = vpop.f32.mrb[0].mxu0
      %v5966 = vpop.f32.mrb[0].mxu0
      %5967 = vdwg.mxu0
      %5968 = vrot.lane.b32.xlu0 %v4598, 112
      %v5969 = vpop.permute.xlu0 %5968
      %5970 = vrot.lane.b32.xlu0 %v4599, 112
      %v5971 = vpop.permute.xlu0 %5970
      %5972 = vrot.lane.b32.xlu0 %v4600, 112
      %v5973 = vpop.permute.xlu0 %5972
      %5974 = vrot.lane.b32.xlu0 %v4601, 112
      %v5975 = vpop.permute.xlu0 %5974
      %5976 = vrot.lane.b32.xlu0 %v4602, 112
      %v5977 = vpop.permute.xlu0 %5976
      %v5983 = vsel %vm3955, %v5651, 0
      %v5986 = vsel %vm3955, %v5652, 0
      %v5989 = vsel %vm3955, %v5653, 0
      %v5992 = vsel %vm3955, %v5654, 0
      %v5995 = vsel %vm3955, %v5655, 0
      %v5998 = vsel %vm4324, %v5977, 0
      %6000 = vmatprep.subr.bf16.mxu0 0
      %6001 = vmatpush1.bf16.msra.mxu0 %v5969
      %6002 = vmatprep.subr.bf16.mxu0 0
      %6003 = vmatpush1.bf16.msra.mxu0 %v5971
      %6004 = vmatprep.subr.bf16.mxu0 0
      %6005 = vmatpush1.bf16.msra.mxu0 %v5973
      %6006 = vmatprep.subr.bf16.mxu0 0
      %6007 = vmatpush1.bf16.msra.mxu0 %v5975
      %6008 = vmatprep.subr.bf16.mxu0 0
      %6009 = vmatpush1.bf16.msra.mxu0 %v5998
      %6010 = vmatprep.subr.bf16.mxu0 0
      %6011 = vmatpush1.bf16.msra.mxu0 0
      %6012 = vmatprep.subr.bf16.mxu0 0
      %6013 = vmatpush1.bf16.msra.mxu0 0
      %6014 = vmatprep.subr.bf16.mxu0 0
      %6015 = vmatpush1.bf16.msra.mxu0 0
      %6016 = vmatprep.subr.bf16.mxu0 0
      %6017 = vmatpush1.bf16.msra.mxu0 0
      %6018 = vmatprep.subr.bf16.mxu0 0
      %6019 = vmatpush1.bf16.msra.mxu0 0
      %6020 = vmatprep.subr.bf16.mxu0 0
      %6021 = vmatpush1.bf16.msra.mxu0 0
      %6022 = vmatprep.subr.bf16.mxu0 0
      %6023 = vmatpush1.bf16.msra.mxu0 0
      %6024 = vmatprep.subr.bf16.mxu0 0
      %6025 = vmatpush1.bf16.msra.mxu0 0
      %6026 = vmatprep.subr.bf16.mxu0 0
      %6027 = vmatpush1.bf16.msra.mxu0 0
      %6028 = vmatprep.subr.bf16.mxu0 0
      %6029 = vmatpush1.bf16.msra.mxu0 0
      %6030 = vmatprep.subr.bf16.mxu0 0
      %6031 = vmatpush1.bf16.msra.mxu0 0
      %6032 = vmatprep.mubr.bf16.mxu0 0
      %6033 = vmatmul.mubr.bf16.gmra.mrb[0].mxu0 %v5983
      %v6034 = vpop.f32.mrb[0].mxu0
      %v6035 = vadd.f32 0.0, %v6034
      %v6036 = vpop.f32.mrb[0].mxu0
      %v6037 = vpop.f32.mrb[0].mxu0
      %v6038 = vadd.f32 0.0, %v6037
      %v6039 = vpop.f32.mrb[0].mxu0
      %6040 = vmatprep.mubr.bf16.mxu0 0
      %6041 = vmatmul.mubr.bf16.gmra.mrb[0].mxu0 %v5986
      %v6042 = vpop.f32.mrb[0].mxu0
      %v6043 = vadd.f32 0.0, %v6042
      %v6044 = vpop.f32.mrb[0].mxu0
      %v6045 = vpop.f32.mrb[0].mxu0
      %v6046 = vadd.f32 0.0, %v6045
      %v6047 = vpop.f32.mrb[0].mxu0
      %6048 = vmatprep.mubr.bf16.mxu0 0
      %6049 = vmatmul.mubr.bf16.gmra.mrb[0].mxu0 %v5989
      %v6050 = vpop.f32.mrb[0].mxu0
      %v6051 = vadd.f32 0.0, %v6050
      %v6052 = vpop.f32.mrb[0].mxu0
      %v6053 = vpop.f32.mrb[0].mxu0
      %v6054 = vadd.f32 0.0, %v6053
      %v6055 = vpop.f32.mrb[0].mxu0
      %6056 = vmatprep.mubr.bf16.mxu0 0
      %6057 = vmatmul.mubr.bf16.gmra.mrb[0].mxu0 %v5992
      %v6058 = vpop.f32.mrb[0].mxu0
      %v6059 = vadd.f32 0.0, %v6058
      %v6060 = vpop.f32.mrb[0].mxu0
      %v6061 = vpop.f32.mrb[0].mxu0
      %v6062 = vadd.f32 0.0, %v6061
      %v6063 = vpop.f32.mrb[0].mxu0
      %6064 = vmatprep.mubr.bf16.mxu0 0
      %6065 = vmatmul.mubr.bf16.gmra.mrb[0].mxu0 %v5995
      %v6066 = vpop.f32.mrb[0].mxu0
      %v6067 = vadd.f32 0.0, %v6066
      %v6068 = vpop.f32.mrb[0].mxu0
      %v6069 = vpop.f32.mrb[0].mxu0
      %v6070 = vpop.f32.mrb[0].mxu0
      %6071 = vdwg.mxu0
      %v6072 = vrcp.pop %v5530
      %v6073 = vrcp.pop %v5533
      %v6074 = vrcp.pop %v5536
      %v6075 = vrcp.pop %v5539
      %v6076 = vrcp.pop %v5542
      %v6077 = vrcp.pop %v5545
      %v6078 = vrcp.pop %v5548
      %v6079 = vrcp.pop %v5551
      %v6080 = vrcp.pop %v5554
      %v6081 = vrcp.pop %v5557
      %v6082 = vrcp.pop %v5560
      %v6083 = vrcp.pop %v5563
      %v6084 = vrcp.pop %v5566
      %v6085 = vrcp.pop %v5569
      %v6086 = vrcp.pop %v5572
      %v6087 = vrcp.pop %v5575
      %v6088 = vrcp.pop %v5578
      %v6089 = vrcp.pop %v5581
      %v6090 = vrcp.pop %v5584
      %v6091 = vrcp.pop %v5587
      %v6092 = vrcp.pop %v5590
      %v6093 = vrcp.pop %v5593
      %v6094 = vrcp.pop %v5596
      %v6095 = vrcp.pop %v5599
      %v6096 = vrcp.pop %v5602
      %v6097 = vrcp.pop %v5605
      %v6098 = vrcp.pop %v5608
      %v6099 = vrcp.pop %v5611
      %v6100 = vrcp.pop %v5614
      %v6101 = vrcp.pop %v5617
      %v6102 = vrcp.pop %v5620
      %v6103 = vrcp.pop %v5623
      %v6104 = vrcp.pop %v5626
      %v6105 = vrcp.pop %v5629
      %v6106 = vrcp.pop %v5632
      %v6107 = vrcp.pop %v5635
      %v6108 = vmul.f32 %v5723, %v6072
      %v6109 = vmul.f32 %v5726, %v6073
      %v6110 = vmul.f32 %v5731, %v6074
      %v6111 = vmul.f32 %v5734, %v6075
      %v6112 = vmul.f32 %v5739, %v6076
      %v6113 = vmul.f32 %v5742, %v6077
      %v6114 = vmul.f32 %v5747, %v6078
      %v6115 = vmul.f32 %v5750, %v6079
      %v6116 = vmul.f32 %v5755, %v6080
      %v6117 = vmul.f32 %v5827, %v6081
      %v6118 = vmul.f32 %v5830, %v6082
      %v6119 = vmul.f32 %v5835, %v6083
      %v6120 = vmul.f32 %v5838, %v6084
      %v6121 = vmul.f32 %v5843, %v6085
      %v6122 = vmul.f32 %v5846, %v6086
      %v6123 = vmul.f32 %v5851, %v6087
      %v6124 = vmul.f32 %v5854, %v6088
      %v6125 = vmul.f32 %v5859, %v6089
      %v6126 = vmul.f32 %v5931, %v6090
      %v6127 = vmul.f32 %v5934, %v6091
      %v6128 = vmul.f32 %v5939, %v6092
      %v6129 = vmul.f32 %v5942, %v6093
      %v6130 = vmul.f32 %v5947, %v6094
      %v6131 = vmul.f32 %v5950, %v6095
      %v6132 = vmul.f32 %v5955, %v6096
      %v6133 = vmul.f32 %v5958, %v6097
      %v6134 = vmul.f32 %v5963, %v6098
      %v6135 = vmul.f32 %v6035, %v6099
      %v6136 = vmul.f32 %v6038, %v6100
      %v6137 = vmul.f32 %v6043, %v6101
      %v6138 = vmul.f32 %v6046, %v6102
      %v6139 = vmul.f32 %v6051, %v6103
      %v6140 = vmul.f32 %v6054, %v6104
      %v6141 = vmul.f32 %v6059, %v6105
      %v6142 = vmul.f32 %v6062, %v6106
      %v6143 = vmul.f32 %v6067, %v6107
      %6180 = vrot.lane.b32.xlu0 %v6108, 16
      %v6181 = vpop.permute.xlu0 %6180
      %6182 = vrot.lane.b32.xlu0 %v6109, 16
      %v6183 = vpop.permute.xlu0 %6182
      %6184 = vrot.lane.b32.xlu0 %v6110, 16
      %v6185 = vpop.permute.xlu0 %6184
      %6186 = vrot.lane.b32.xlu0 %v6111, 16
      %v6187 = vpop.permute.xlu0 %6186
      %6188 = vrot.lane.b32.xlu0 %v6112, 16
      %v6189 = vpop.permute.xlu0 %6188
      %6190 = vrot.lane.b32.xlu0 %v6113, 16
      %v6191 = vpop.permute.xlu0 %6190
      %6192 = vrot.lane.b32.xlu0 %v6114, 16
      %v6193 = vpop.permute.xlu0 %6192
      %6194 = vrot.lane.b32.xlu0 %v6115, 16
      %v6195 = vpop.permute.xlu0 %6194
      %6196 = vrot.lane.b32.xlu0 %v6116, 16
      %v6197 = vpop.permute.xlu0 %6196
      %6198 = vrot.lane.b32.xlu0 %v6117, 16
      %v6199 = vpop.permute.xlu0 %6198
      %6200 = vrot.lane.b32.xlu0 %v6118, 16
      %v6201 = vpop.permute.xlu0 %6200
      %6202 = vrot.lane.b32.xlu0 %v6119, 16
      %v6203 = vpop.permute.xlu0 %6202
      %6204 = vrot.lane.b32.xlu0 %v6120, 16
      %v6205 = vpop.permute.xlu0 %6204
      %6206 = vrot.lane.b32.xlu0 %v6121, 16
      %v6207 = vpop.permute.xlu0 %6206
      %6208 = vrot.lane.b32.xlu0 %v6122, 16
      %v6209 = vpop.permute.xlu0 %6208
      %6210 = vrot.lane.b32.xlu0 %v6123, 16
      %v6211 = vpop.permute.xlu0 %6210
      %6212 = vrot.lane.b32.xlu0 %v6124, 16
      %v6213 = vpop.permute.xlu0 %6212
      %6214 = vrot.lane.b32.xlu0 %v6125, 16
      %v6215 = vpop.permute.xlu0 %6214
      %6216 = vrot.lane.b32.xlu0 %v6126, 16
      %v6217 = vpop.permute.xlu0 %6216
      %6218 = vrot.lane.b32.xlu0 %v6127, 16
      %v6219 = vpop.permute.xlu0 %6218
      %6220 = vrot.lane.b32.xlu0 %v6128, 16
      %v6221 = vpop.permute.xlu0 %6220
      %6222 = vrot.lane.b32.xlu0 %v6129, 16
      %v6223 = vpop.permute.xlu0 %6222
      %6224 = vrot.lane.b32.xlu0 %v6130, 16
      %v6225 = vpop.permute.xlu0 %6224
      %6226 = vrot.lane.b32.xlu0 %v6131, 16
      %v6227 = vpop.permute.xlu0 %6226
      %6228 = vrot.lane.b32.xlu0 %v6132, 16
      %v6229 = vpop.permute.xlu0 %6228
      %6230 = vrot.lane.b32.xlu0 %v6133, 16
      %v6231 = vpop.permute.xlu0 %6230
      %6232 = vrot.lane.b32.xlu0 %v6134, 16
      %v6233 = vpop.permute.xlu0 %6232
      %6234 = vrot.lane.b32.xlu0 %v6135, 16
      %v6235 = vpop.permute.xlu0 %6234
      %6236 = vrot.lane.b32.xlu0 %v6136, 16
      %v6237 = vpop.permute.xlu0 %6236
      %6238 = vrot.lane.b32.xlu0 %v6137, 16
      %v6239 = vpop.permute.xlu0 %6238
      %6240 = vrot.lane.b32.xlu0 %v6138, 16
      %v6241 = vpop.permute.xlu0 %6240
      %6242 = vrot.lane.b32.xlu0 %v6139, 16
      %v6243 = vpop.permute.xlu0 %6242
      %6244 = vrot.lane.b32.xlu0 %v6140, 16
      %v6245 = vpop.permute.xlu0 %6244
      %6246 = vrot.lane.b32.xlu0 %v6141, 16
      %v6247 = vpop.permute.xlu0 %6246
      %6248 = vrot.lane.b32.xlu0 %v6142, 16
      %v6249 = vpop.permute.xlu0 %6248
      %6250 = vrot.lane.b32.xlu0 %v6143, 16
      %v6251 = vpop.permute.xlu0 %6250
      %vm6288 = vcmask 261248
      %6289 = vst.msk [vmem:[#allocation2] sm:$0xff] %vm6288, %v6181
      %6290 = vst.msk [vmem:[#allocation2 + $0x8] sm:$0xff] %vm6288, %v6183
      %6291 = vst.msk [vmem:[#allocation2 + $0x10] sm:$0xff] %vm6288, %v6185
      %6292 = vst.msk [vmem:[#allocation2 + $0x18] sm:$0xff] %vm6288, %v6187
      %6293 = vst.msk [vmem:[#allocation2 + $0x20] sm:$0xff] %vm6288, %v6189
      %6294 = vst.msk [vmem:[#allocation2 + $0x28] sm:$0xff] %vm6288, %v6191
      %6295 = vst.msk [vmem:[#allocation2 + $0x30] sm:$0xff] %vm6288, %v6193
      %6296 = vst.msk [vmem:[#allocation2 + $0x38] sm:$0xff] %vm6288, %v6195
      %6297 = vst.msk [vmem:[#allocation2 + $0x40] sm:$0xff] %vm6288, %v6197
      %6298 = vst.msk [vmem:[#allocation2 + $0x48] sm:$0xff] %vm6288, %v6199
      %6299 = vst.msk [vmem:[#allocation2 + $0x50] sm:$0xff] %vm6288, %v6201
      %6300 = vst.msk [vmem:[#allocation2 + $0x58] sm:$0xff] %vm6288, %v6203
      %6301 = vst.msk [vmem:[#allocation2 + $0x60] sm:$0xff] %vm6288, %v6205
      %6302 = vst.msk [vmem:[#allocation2 + $0x68] sm:$0xff] %vm6288, %v6207
      %6303 = vst.msk [vmem:[#allocation2 + $0x70] sm:$0xff] %vm6288, %v6209
      %6304 = vst.msk [vmem:[#allocation2 + $0x78] sm:$0xff] %vm6288, %v6211
      %6305 = vst.msk [vmem:[#allocation2 + $0x80] sm:$0xff] %vm6288, %v6213
      %6306 = vst.msk [vmem:[#allocation2 + $0x88] sm:$0xff] %vm6288, %v6215
      %6307 = vst.msk [vmem:[#allocation2 + $0x90] sm:$0xff] %vm6288, %v6217
      %6308 = vst.msk [vmem:[#allocation2 + $0x98] sm:$0xff] %vm6288, %v6219
      %6309 = vst.msk [vmem:[#allocation2 + $0xa0] sm:$0xff] %vm6288, %v6221
      %6310 = vst.msk [vmem:[#allocation2 + $0xa8] sm:$0xff] %vm6288, %v6223
      %6311 = vst.msk [vmem:[#allocation2 + $0xb0] sm:$0xff] %vm6288, %v6225
      %6312 = vst.msk [vmem:[#allocation2 + $0xb8] sm:$0xff] %vm6288, %v6227
      %6313 = vst.msk [vmem:[#allocation2 + $0xc0] sm:$0xff] %vm6288, %v6229
      %6314 = vst.msk [vmem:[#allocation2 + $0xc8] sm:$0xff] %vm6288, %v6231
      %6315 = vst.msk [vmem:[#allocation2 + $0xd0] sm:$0xff] %vm6288, %v6233
      %6316 = vst.msk [vmem:[#allocation2 + $0xd8] sm:$0xff] %vm6288, %v6235
      %6317 = vst.msk [vmem:[#allocation2 + $0xe0] sm:$0xff] %vm6288, %v6237
      %6318 = vst.msk [vmem:[#allocation2 + $0xe8] sm:$0xff] %vm6288, %v6239
      %6319 = vst.msk [vmem:[#allocation2 + $0xf0] sm:$0xff] %vm6288, %v6241
      %6320 = vst.msk [vmem:[#allocation2 + $0xf8] sm:$0xff] %vm6288, %v6243
      %6321 = vst.msk [vmem:[#allocation2 + $0x100] sm:$0xff] %vm6288, %v6245
      %6322 = vst.msk [vmem:[#allocation2 + $0x108] sm:$0xff] %vm6288, %v6247
      %6323 = vst.msk [vmem:[#allocation2 + $0x110] sm:$0xff] %vm6288, %v6249
      %6324 = vst.msk [vmem:[#allocation2 + $0x118] sm:$0xff] %vm6288, %v6251
      %s6325 = scalar_lea.vmem %s7, 72
      %v6326 = vld [vmem:[%s6325] sm:$0xf]
      %v6327 = vld [vmem:[%s6325 + $0x4] sm:$0xf]
      %v6328 = vld [vmem:[%s6325 + $0x8] sm:$0xf]
      %v6329 = vld [vmem:[%s6325 + $0xc] sm:$0xf]
      %v6330 = vld [vmem:[%s6325 + $0x10] sm:$0xf]
      %v6331 = vld [vmem:[%s6325 + $0x14] sm:$0xf]
      %v6332 = vld [vmem:[%s6325 + $0x18] sm:$0xf]
      %v6333 = vld [vmem:[%s6325 + $0x1c] sm:$0xf]
      %v6334 = vld [vmem:[%s6325 + $0x20] sm:$0xf]
      %v6335 = vunpack.c.l.bf16 %v6326
      %v6336 = vunpack.c.l.bf16 %v6327
      %v6337 = vunpack.c.l.bf16 %v6328
      %v6338 = vunpack.c.l.bf16 %v6329
      %v6339 = vunpack.c.l.bf16 %v6330
      %v6340 = vunpack.c.l.bf16 %v6331
      %v6341 = vunpack.c.l.bf16 %v6332
      %v6342 = vunpack.c.l.bf16 %v6333
      %v6343 = vunpack.c.l.bf16 %v6334
      %6344 = vrot.lane.b32.xlu0 %v3466, 96
      %v6345 = vpop.permute.xlu0 %6344
      %6346 = vrot.lane.b32.xlu0 %v3467, 96
      %v6347 = vpop.permute.xlu0 %6346
      %6348 = vrot.lane.b32.xlu0 %v3468, 96
      %v6349 = vpop.permute.xlu0 %6348
      %6350 = vrot.lane.b32.xlu0 %v3469, 96
      %v6351 = vpop.permute.xlu0 %6350
      %6352 = vrot.lane.b32.xlu0 %v3470, 96
      %v6353 = vpop.permute.xlu0 %6352
      %6354 = vrot.lane.b32.xlu0 %v3471, 32
      %v6355 = vpop.permute.xlu0 %6354
      %6356 = vrot.lane.b32.xlu0 %v3472, 32
      %v6357 = vpop.permute.xlu0 %6356
      %6358 = vrot.lane.b32.xlu0 %v3473, 32
      %v6359 = vpop.permute.xlu0 %6358
      %6360 = vrot.lane.b32.xlu0 %v3474, 32
      %v6361 = vpop.permute.xlu0 %6360
      %6362 = vrot.lane.b32.xlu0 %v3475, 32
      %v6363 = vpop.permute.xlu0 %6362
      %v6365 = vsel %vm3486, %v6345, 0
      %v6368 = vsel %vm3486, %v6347, 0
      %v6371 = vsel %vm3486, %v6349, 0
      %v6374 = vsel %vm3486, %v6351, 0
      %v6377 = vsel %vm3486, %v6353, 0
      %v6380 = vsel %vm3486, %v6355, 0
      %v6383 = vsel %vm3486, %v6357, 0
      %v6386 = vsel %vm3486, %v6359, 0
      %v6389 = vsel %vm3486, %v6361, 0
      %v6392 = vsel %vm3486, %v6363, 0
      %6394 = vmatprep.subr.bf16.mxu0 0
      %6395 = vmatpush1.bf16.xpose.msra.mxu0 %v6380
      %6396 = vmatprep.subr.bf16.mxu0 0
      %6397 = vmatpush1.bf16.xpose.msra.mxu0 %v6383
      %6398 = vmatprep.subr.bf16.mxu0 0
      %6399 = vmatpush1.bf16.xpose.msra.mxu0 %v6386
      %6400 = vmatprep.subr.bf16.mxu0 0
      %6401 = vmatpush1.bf16.xpose.msra.mxu0 %v6389
      %6402 = vmatprep.subr.bf16.mxu0 0
      %6403 = vmatpush1.bf16.xpose.msra.mxu0 %v6392
      %6404 = vmatprep.subr.bf16.mxu0 0
      %6405 = vmatpush1.bf16.xpose.msra.mxu0 0
      %6406 = vmatprep.subr.bf16.mxu0 0
      %6407 = vmatpush1.bf16.xpose.msra.mxu0 0
      %6408 = vmatprep.subr.bf16.mxu0 0
      %6409 = vmatpush1.bf16.xpose.msra.mxu0 0
      %6410 = vmatprep.subr.bf16.mxu0 0
      %6411 = vmatpush1.bf16.xpose.msra.mxu0 0
      %6412 = vmatprep.subr.bf16.mxu0 0
      %6413 = vmatpush1.bf16.xpose.msra.mxu0 0
      %6414 = vmatprep.subr.bf16.mxu0 0
      %6415 = vmatpush1.bf16.xpose.msra.mxu0 0
      %6416 = vmatprep.subr.bf16.mxu0 0
      %6417 = vmatpush1.bf16.xpose.msra.mxu0 0
      %6418 = vmatprep.subr.bf16.mxu0 0
      %6419 = vmatpush1.bf16.xpose.msra.mxu0 0
      %6420 = vmatprep.subr.bf16.mxu0 0
      %6421 = vmatpush1.bf16.xpose.msra.mxu0 0
      %6422 = vmatprep.subr.bf16.mxu0 0
      %6423 = vmatpush1.bf16.xpose.msra.mxu0 0
      %6424 = vmatprep.subr.bf16.mxu0 0
      %6425 = vmatpush1.bf16.xpose.msra.mxu0 0
      %6426 = vmatprep.mubr.bf16.mxu0 0
      %6427 = vmatmul.mubr.bf16.gmra.mrb[0].mxu0 %v6365
      %v6428 = vpop.f32.mrb[0].mxu0
      %v6429 = vadd.f32 %v6335, %v6428
      %v6430 = vpop.f32.mrb[0].mxu0
      %v6431 = vpop.f32.mrb[0].mxu0
      %v6432 = vadd.f32 %v6336, %v6431
      %v6433 = vpop.f32.mrb[0].mxu0
      %6434 = vmatprep.mubr.bf16.mxu0 0
      %6435 = vmatmul.mubr.bf16.gmra.mrb[0].mxu0 %v6368
      %v6436 = vpop.f32.mrb[0].mxu0
      %v6437 = vadd.f32 %v6337, %v6436
      %v6438 = vpop.f32.mrb[0].mxu0
      %v6439 = vpop.f32.mrb[0].mxu0
      %v6440 = vadd.f32 %v6338, %v6439
      %v6441 = vpop.f32.mrb[0].mxu0
      %6442 = vmatprep.mubr.bf16.mxu0 0
      %6443 = vmatmul.mubr.bf16.gmra.mrb[0].mxu0 %v6371
      %v6444 = vpop.f32.mrb[0].mxu0
      %v6445 = vadd.f32 %v6339, %v6444
      %v6446 = vpop.f32.mrb[0].mxu0
      %v6447 = vpop.f32.mrb[0].mxu0
      %v6448 = vadd.f32 %v6340, %v6447
      %v6449 = vpop.f32.mrb[0].mxu0
      %6450 = vmatprep.mubr.bf16.mxu0 0
      %6451 = vmatmul.mubr.bf16.gmra.mrb[0].mxu0 %v6374
      %v6452 = vpop.f32.mrb[0].mxu0
      %v6453 = vadd.f32 %v6341, %v6452
      %v6454 = vpop.f32.mrb[0].mxu0
      %v6455 = vpop.f32.mrb[0].mxu0
      %v6456 = vadd.f32 %v6342, %v6455
      %v6457 = vpop.f32.mrb[0].mxu0
      %6458 = vmatprep.mubr.bf16.mxu0 0
      %6459 = vmatmul.mubr.bf16.gmra.mrb[0].mxu0 %v6377
      %v6460 = vpop.f32.mrb[0].mxu0
      %v6461 = vadd.f32 %v6343, %v6460
      %v6462 = vpop.f32.mrb[0].mxu0
      %v6463 = vpop.f32.mrb[0].mxu0
      %v6464 = vpop.f32.mrb[0].mxu0
      %6465 = vdwg.mxu0
      %6466 = vrot.lane.b32.xlu0 %v3589, 96
      %v6467 = vpop.permute.xlu0 %6466
      %6468 = vrot.lane.b32.xlu0 %v3590, 96
      %v6469 = vpop.permute.xlu0 %6468
      %6470 = vrot.lane.b32.xlu0 %v3591, 96
      %v6471 = vpop.permute.xlu0 %6470
      %6472 = vrot.lane.b32.xlu0 %v3592, 96
      %v6473 = vpop.permute.xlu0 %6472
      %6474 = vrot.lane.b32.xlu0 %v3593, 96
      %v6475 = vpop.permute.xlu0 %6474
      %6476 = vrot.lane.b32.xlu0 %v3594, 32
      %v6477 = vpop.permute.xlu0 %6476
      %6478 = vrot.lane.b32.xlu0 %v3595, 32
      %v6479 = vpop.permute.xlu0 %6478
      %6480 = vrot.lane.b32.xlu0 %v3596, 32
      %v6481 = vpop.permute.xlu0 %6480
      %6482 = vrot.lane.b32.xlu0 %v3597, 32
      %v6483 = vpop.permute.xlu0 %6482
      %6484 = vrot.lane.b32.xlu0 %v3598, 32
      %v6485 = vpop.permute.xlu0 %6484
      %v6487 = vsel %vm3486, %v6467, 0
      %v6490 = vsel %vm3486, %v6469, 0
      %v6493 = vsel %vm3486, %v6471, 0
      %v6496 = vsel %vm3486, %v6473, 0
      %v6499 = vsel %vm3486, %v6475, 0
      %v6502 = vsel %vm3486, %v6477, 0
      %v6505 = vsel %vm3486, %v6479, 0
      %v6508 = vsel %vm3486, %v6481, 0
      %v6511 = vsel %vm3486, %v6483, 0
      %v6514 = vsel %vm3486, %v6485, 0
      %6516 = vmatprep.subr.bf16.mxu0 0
      %6517 = vmatpush1.bf16.xpose.msra.mxu0 %v6502
      %6518 = vmatprep.subr.bf16.mxu0 0
      %6519 = vmatpush1.bf16.xpose.msra.mxu0 %v6505
      %6520 = vmatprep.subr.bf16.mxu0 0
      %6521 = vmatpush1.bf16.xpose.msra.mxu0 %v6508
      %6522 = vmatprep.subr.bf16.mxu0 0
      %6523 = vmatpush1.bf16.xpose.msra.mxu0 %v6511
      %6524 = vmatprep.subr.bf16.mxu0 0
      %6525 = vmatpush1.bf16.xpose.msra.mxu0 %v6514
      %6526 = vmatprep.subr.bf16.mxu0 0
      %6527 = vmatpush1.bf16.xpose.msra.mxu0 0
      %6528 = vmatprep.subr.bf16.mxu0 0
      %6529 = vmatpush1.bf16.xpose.msra.mxu0 0
      %6530 = vmatprep.subr.bf16.mxu0 0
      %6531 = vmatpush1.bf16.xpose.msra.mxu0 0
      %6532 = vmatprep.subr.bf16.mxu0 0
      %6533 = vmatpush1.bf16.xpose.msra.mxu0 0
      %6534 = vmatprep.subr.bf16.mxu0 0
      %6535 = vmatpush1.bf16.xpose.msra.mxu0 0
      %6536 = vmatprep.subr.bf16.mxu0 0
      %6537 = vmatpush1.bf16.xpose.msra.mxu0 0
      %6538 = vmatprep.subr.bf16.mxu0 0
      %6539 = vmatpush1.bf16.xpose.msra.mxu0 0
      %6540 = vmatprep.subr.bf16.mxu0 0
      %6541 = vmatpush1.bf16.xpose.msra.mxu0 0
      %6542 = vmatprep.subr.bf16.mxu0 0
      %6543 = vmatpush1.bf16.xpose.msra.mxu0 0
      %6544 = vmatprep.subr.bf16.mxu0 0
      %6545 = vmatpush1.bf16.xpose.msra.mxu0 0
      %6546 = vmatprep.subr.bf16.mxu0 0
      %6547 = vmatpush1.bf16.xpose.msra.mxu0 0
      %6548 = vmatprep.mubr.bf16.mxu0 0
      %6549 = vmatmul.mubr.bf16.gmra.mrb[0].mxu0 %v6487
      %v6550 = vpop.f32.mrb[0].mxu0
      %v6551 = vadd.f32 %v6335, %v6550
      %v6552 = vpop.f32.mrb[0].mxu0
      %v6553 = vpop.f32.mrb[0].mxu0
      %v6554 = vadd.f32 %v6336, %v6553
      %v6555 = vpop.f32.mrb[0].mxu0
      %6556 = vmatprep.mubr.bf16.mxu0 0
      %6557 = vmatmul.mubr.bf16.gmra.mrb[0].mxu0 %v6490
      %v6558 = vpop.f32.mrb[0].mxu0
      %v6559 = vadd.f32 %v6337, %v6558
      %v6560 = vpop.f32.mrb[0].mxu0
      %v6561 = vpop.f32.mrb[0].mxu0
      %v6562 = vadd.f32 %v6338, %v6561
      %v6563 = vpop.f32.mrb[0].mxu0
      %6564 = vmatprep.mubr.bf16.mxu0 0
      %6565 = vmatmul.mubr.bf16.gmra.mrb[0].mxu0 %v6493
      %v6566 = vpop.f32.mrb[0].mxu0
      %v6567 = vadd.f32 %v6339, %v6566
      %v6568 = vpop.f32.mrb[0].mxu0
      %v6569 = vpop.f32.mrb[0].mxu0
      %v6570 = vadd.f32 %v6340, %v6569
      %v6571 = vpop.f32.mrb[0].mxu0
      %6572 = vmatprep.mubr.bf16.mxu0 0
      %6573 = vmatmul.mubr.bf16.gmra.mrb[0].mxu0 %v6496
      %v6574 = vpop.f32.mrb[0].mxu0
      %v6575 = vadd.f32 %v6341, %v6574
      %v6576 = vpop.f32.mrb[0].mxu0
      %v6577 = vpop.f32.mrb[0].mxu0
      %v6578 = vadd.f32 %v6342, %v6577
      %v6579 = vpop.f32.mrb[0].mxu0
      %6580 = vmatprep.mubr.bf16.mxu0 0
      %6581 = vmatmul.mubr.bf16.gmra.mrb[0].mxu0 %v6499
      %v6582 = vpop.f32.mrb[0].mxu0
      %v6583 = vadd.f32 %v6343, %v6582
      %v6584 = vpop.f32.mrb[0].mxu0
      %v6585 = vpop.f32.mrb[0].mxu0
      %v6586 = vpop.f32.mrb[0].mxu0
      %6587 = vdwg.mxu0
      %6588 = vrot.lane.b32.xlu0 %v3711, 96
      %v6589 = vpop.permute.xlu0 %6588
      %6590 = vrot.lane.b32.xlu0 %v3712, 96
      %v6591 = vpop.permute.xlu0 %6590
      %6592 = vrot.lane.b32.xlu0 %v3713, 96
      %v6593 = vpop.permute.xlu0 %6592
      %6594 = vrot.lane.b32.xlu0 %v3714, 96
      %v6595 = vpop.permute.xlu0 %6594
      %6596 = vrot.lane.b32.xlu0 %v3715, 96
      %v6597 = vpop.permute.xlu0 %6596
      %6598 = vrot.lane.b32.xlu0 %v3716, 32
      %v6599 = vpop.permute.xlu0 %6598
      %6600 = vrot.lane.b32.xlu0 %v3717, 32
      %v6601 = vpop.permute.xlu0 %6600
      %6602 = vrot.lane.b32.xlu0 %v3718, 32
      %v6603 = vpop.permute.xlu0 %6602
      %6604 = vrot.lane.b32.xlu0 %v3719, 32
      %v6605 = vpop.permute.xlu0 %6604
      %6606 = vrot.lane.b32.xlu0 %v3720, 32
      %v6607 = vpop.permute.xlu0 %6606
      %v6609 = vsel %vm3486, %v6589, 0
      %v6612 = vsel %vm3486, %v6591, 0
      %v6615 = vsel %vm3486, %v6593, 0
      %v6618 = vsel %vm3486, %v6595, 0
      %v6621 = vsel %vm3486, %v6597, 0
      %v6624 = vsel %vm3486, %v6599, 0
      %v6627 = vsel %vm3486, %v6601, 0
      %v6630 = vsel %vm3486, %v6603, 0
      %v6633 = vsel %vm3486, %v6605, 0
      %v6636 = vsel %vm3486, %v6607, 0
      %6638 = vmatprep.subr.bf16.mxu0 0
      %6639 = vmatpush1.bf16.xpose.msra.mxu0 %v6624
      %6640 = vmatprep.subr.bf16.mxu0 0
      %6641 = vmatpush1.bf16.xpose.msra.mxu0 %v6627
      %6642 = vmatprep.subr.bf16.mxu0 0
      %6643 = vmatpush1.bf16.xpose.msra.mxu0 %v6630
      %6644 = vmatprep.subr.bf16.mxu0 0
      %6645 = vmatpush1.bf16.xpose.msra.mxu0 %v6633
      %6646 = vmatprep.subr.bf16.mxu0 0
      %6647 = vmatpush1.bf16.xpose.msra.mxu0 %v6636
      %6648 = vmatprep.subr.bf16.mxu0 0
      %6649 = vmatpush1.bf16.xpose.msra.mxu0 0
      %6650 = vmatprep.subr.bf16.mxu0 0
      %6651 = vmatpush1.bf16.xpose.msra.mxu0 0
      %6652 = vmatprep.subr.bf16.mxu0 0
      %6653 = vmatpush1.bf16.xpose.msra.mxu0 0
      %6654 = vmatprep.subr.bf16.mxu0 0
      %6655 = vmatpush1.bf16.xpose.msra.mxu0 0
      %6656 = vmatprep.subr.bf16.mxu0 0
      %6657 = vmatpush1.bf16.xpose.msra.mxu0 0
      %6658 = vmatprep.subr.bf16.mxu0 0
      %6659 = vmatpush1.bf16.xpose.msra.mxu0 0
      %6660 = vmatprep.subr.bf16.mxu0 0
      %6661 = vmatpush1.bf16.xpose.msra.mxu0 0
      %6662 = vmatprep.subr.bf16.mxu0 0
      %6663 = vmatpush1.bf16.xpose.msra.mxu0 0
      %6664 = vmatprep.subr.bf16.mxu0 0
      %6665 = vmatpush1.bf16.xpose.msra.mxu0 0
      %6666 = vmatprep.subr.bf16.mxu0 0
      %6667 = vmatpush1.bf16.xpose.msra.mxu0 0
      %6668 = vmatprep.subr.bf16.mxu0 0
      %6669 = vmatpush1.bf16.xpose.msra.mxu0 0
      %6670 = vmatprep.mubr.bf16.mxu0 0
      %6671 = vmatmul.mubr.bf16.gmra.mrb[0].mxu0 %v6609
      %v6672 = vpop.f32.mrb[0].mxu0
      %v6673 = vadd.f32 %v6335, %v6672
      %v6674 = vpop.f32.mrb[0].mxu0
      %v6675 = vpop.f32.mrb[0].mxu0
      %v6676 = vadd.f32 %v6336, %v6675
      %v6677 = vpop.f32.mrb[0].mxu0
      %6678 = vmatprep.mubr.bf16.mxu0 0
      %6679 = vmatmul.mubr.bf16.gmra.mrb[0].mxu0 %v6612
      %v6680 = vpop.f32.mrb[0].mxu0
      %v6681 = vadd.f32 %v6337, %v6680
      %v6682 = vpop.f32.mrb[0].mxu0
      %v6683 = vpop.f32.mrb[0].mxu0
      %v6684 = vadd.f32 %v6338, %v6683
      %v6685 = vpop.f32.mrb[0].mxu0
      %6686 = vmatprep.mubr.bf16.mxu0 0
      %6687 = vmatmul.mubr.bf16.gmra.mrb[0].mxu0 %v6615
      %v6688 = vpop.f32.mrb[0].mxu0
      %v6689 = vadd.f32 %v6339, %v6688
      %v6690 = vpop.f32.mrb[0].mxu0
      %v6691 = vpop.f32.mrb[0].mxu0
      %v6692 = vadd.f32 %v6340, %v6691
      %v6693 = vpop.f32.mrb[0].mxu0
      %6694 = vmatprep.mubr.bf16.mxu0 0
      %6695 = vmatmul.mubr.bf16.gmra.mrb[0].mxu0 %v6618
      %v6696 = vpop.f32.mrb[0].mxu0
      %v6697 = vadd.f32 %v6341, %v6696
      %v6698 = vpop.f32.mrb[0].mxu0
      %v6699 = vpop.f32.mrb[0].mxu0
      %v6700 = vadd.f32 %v6342, %v6699
      %v6701 = vpop.f32.mrb[0].mxu0
      %6702 = vmatprep.mubr.bf16.mxu0 0
      %6703 = vmatmul.mubr.bf16.gmra.mrb[0].mxu0 %v6621
      %v6704 = vpop.f32.mrb[0].mxu0
      %v6705 = vadd.f32 %v6343, %v6704
      %v6706 = vpop.f32.mrb[0].mxu0
      %v6707 = vpop.f32.mrb[0].mxu0
      %v6708 = vpop.f32.mrb[0].mxu0
      %6709 = vdwg.mxu0
      %6710 = vrot.lane.b32.xlu0 %v3833, 96
      %v6711 = vpop.permute.xlu0 %6710
      %6712 = vrot.lane.b32.xlu0 %v3834, 96
      %v6713 = vpop.permute.xlu0 %6712
      %6714 = vrot.lane.b32.xlu0 %v3835, 96
      %v6715 = vpop.permute.xlu0 %6714
      %6716 = vrot.lane.b32.xlu0 %v3836, 96
      %v6717 = vpop.permute.xlu0 %6716
      %6718 = vrot.lane.b32.xlu0 %v3837, 96
      %v6719 = vpop.permute.xlu0 %6718
      %6720 = vrot.lane.b32.xlu0 %v3838, 32
      %v6721 = vpop.permute.xlu0 %6720
      %6722 = vrot.lane.b32.xlu0 %v3839, 32
      %v6723 = vpop.permute.xlu0 %6722
      %6724 = vrot.lane.b32.xlu0 %v3840, 32
      %v6725 = vpop.permute.xlu0 %6724
      %6726 = vrot.lane.b32.xlu0 %v3841, 32
      %v6727 = vpop.permute.xlu0 %6726
      %6728 = vrot.lane.b32.xlu0 %v3842, 32
      %v6729 = vpop.permute.xlu0 %6728
      %v6731 = vsel %vm3486, %v6711, 0
      %v6734 = vsel %vm3486, %v6713, 0
      %v6737 = vsel %vm3486, %v6715, 0
      %v6740 = vsel %vm3486, %v6717, 0
      %v6743 = vsel %vm3486, %v6719, 0
      %v6746 = vsel %vm3486, %v6721, 0
      %v6749 = vsel %vm3486, %v6723, 0
      %v6752 = vsel %vm3486, %v6725, 0
      %v6755 = vsel %vm3486, %v6727, 0
      %v6758 = vsel %vm3486, %v6729, 0
      %6760 = vmatprep.subr.bf16.mxu0 0
      %6761 = vmatpush1.bf16.xpose.msra.mxu0 %v6746
      %6762 = vmatprep.subr.bf16.mxu0 0
      %6763 = vmatpush1.bf16.xpose.msra.mxu0 %v6749
      %6764 = vmatprep.subr.bf16.mxu0 0
      %6765 = vmatpush1.bf16.xpose.msra.mxu0 %v6752
      %6766 = vmatprep.subr.bf16.mxu0 0
      %6767 = vmatpush1.bf16.xpose.msra.mxu0 %v6755
      %6768 = vmatprep.subr.bf16.mxu0 0
      %6769 = vmatpush1.bf16.xpose.msra.mxu0 %v6758
      %6770 = vmatprep.subr.bf16.mxu0 0
      %6771 = vmatpush1.bf16.xpose.msra.mxu0 0
      %6772 = vmatprep.subr.bf16.mxu0 0
      %6773 = vmatpush1.bf16.xpose.msra.mxu0 0
      %6774 = vmatprep.subr.bf16.mxu0 0
      %6775 = vmatpush1.bf16.xpose.msra.mxu0 0
      %6776 = vmatprep.subr.bf16.mxu0 0
      %6777 = vmatpush1.bf16.xpose.msra.mxu0 0
      %6778 = vmatprep.subr.bf16.mxu0 0
      %6779 = vmatpush1.bf16.xpose.msra.mxu0 0
      %6780 = vmatprep.subr.bf16.mxu0 0
      %6781 = vmatpush1.bf16.xpose.msra.mxu0 0
      %6782 = vmatprep.subr.bf16.mxu0 0
      %6783 = vmatpush1.bf16.xpose.msra.mxu0 0
      %6784 = vmatprep.subr.bf16.mxu0 0
      %6785 = vmatpush1.bf16.xpose.msra.mxu0 0
      %6786 = vmatprep.subr.bf16.mxu0 0
      %6787 = vmatpush1.bf16.xpose.msra.mxu0 0
      %6788 = vmatprep.subr.bf16.mxu0 0
      %6789 = vmatpush1.bf16.xpose.msra.mxu0 0
      %6790 = vmatprep.subr.bf16.mxu0 0
      %6791 = vmatpush1.bf16.xpose.msra.mxu0 0
      %6792 = vmatprep.mubr.bf16.mxu0 0
      %6793 = vmatmul.mubr.bf16.gmra.mrb[0].mxu0 %v6731
      %v6794 = vpop.f32.mrb[0].mxu0
      %v6795 = vadd.f32 %v6335, %v6794
      %v6796 = vpop.f32.mrb[0].mxu0
      %v6797 = vpop.f32.mrb[0].mxu0
      %v6798 = vadd.f32 %v6336, %v6797
      %v6799 = vpop.f32.mrb[0].mxu0
      %6800 = vmatprep.mubr.bf16.mxu0 0
      %6801 = vmatmul.mubr.bf16.gmra.mrb[0].mxu0 %v6734
      %v6802 = vpop.f32.mrb[0].mxu0
      %v6803 = vadd.f32 %v6337, %v6802
      %v6804 = vpop.f32.mrb[0].mxu0
      %v6805 = vpop.f32.mrb[0].mxu0
      %v6806 = vadd.f32 %v6338, %v6805
      %v6807 = vpop.f32.mrb[0].mxu0
      %6808 = vmatprep.mubr.bf16.mxu0 0
      %6809 = vmatmul.mubr.bf16.gmra.mrb[0].mxu0 %v6737
      %v6810 = vpop.f32.mrb[0].mxu0
      %v6811 = vadd.f32 %v6339, %v6810
      %v6812 = vpop.f32.mrb[0].mxu0
      %v6813 = vpop.f32.mrb[0].mxu0
      %v6814 = vadd.f32 %v6340, %v6813
      %v6815 = vpop.f32.mrb[0].mxu0
      %6816 = vmatprep.mubr.bf16.mxu0 0
      %6817 = vmatmul.mubr.bf16.gmra.mrb[0].mxu0 %v6740
      %v6818 = vpop.f32.mrb[0].mxu0
      %v6819 = vadd.f32 %v6341, %v6818
      %v6820 = vpop.f32.mrb[0].mxu0
      %v6821 = vpop.f32.mrb[0].mxu0
      %v6822 = vadd.f32 %v6342, %v6821
      %v6823 = vpop.f32.mrb[0].mxu0
      %6824 = vmatprep.mubr.bf16.mxu0 0
      %6825 = vmatmul.mubr.bf16.gmra.mrb[0].mxu0 %v6743
      %v6826 = vpop.f32.mrb[0].mxu0
      %v6827 = vadd.f32 %v6343, %v6826
      %v6828 = vpop.f32.mrb[0].mxu0
      %v6829 = vpop.f32.mrb[0].mxu0
      %v6830 = vpop.f32.mrb[0].mxu0
      %6831 = vdwg.mxu0
      %v6832 = vsel %vm3955, %v6429, -inf
      %6833 = vmax.xlane.f32.xlu0 %v6832
      %v6834 = vpop.xlane.xlu0 %6833
      %v6835 = vsel %vm3955, %v6432, -inf
      %6836 = vmax.xlane.f32.xlu0 %v6835
      %v6837 = vpop.xlane.xlu0 %6836
      %v6838 = vsel %vm3955, %v6437, -inf
      %6839 = vmax.xlane.f32.xlu0 %v6838
      %v6840 = vpop.xlane.xlu0 %6839
      %v6841 = vsel %vm3955, %v6440, -inf
      %6842 = vmax.xlane.f32.xlu0 %v6841
      %v6843 = vpop.xlane.xlu0 %6842
      %v6844 = vsel %vm3955, %v6445, -inf
      %6845 = vmax.xlane.f32.xlu0 %v6844
      %v6846 = vpop.xlane.xlu0 %6845
      %v6847 = vsel %vm3955, %v6448, -inf
      %6848 = vmax.xlane.f32.xlu0 %v6847
      %v6849 = vpop.xlane.xlu0 %6848
      %v6850 = vsel %vm3955, %v6453, -inf
      %6851 = vmax.xlane.f32.xlu0 %v6850
      %v6852 = vpop.xlane.xlu0 %6851
      %v6853 = vsel %vm3955, %v6456, -inf
      %6854 = vmax.xlane.f32.xlu0 %v6853
      %v6855 = vpop.xlane.xlu0 %6854
      %v6856 = vsel %vm3955, %v6461, -inf
      %6857 = vmax.xlane.f32.xlu0 %v6856
      %v6858 = vpop.xlane.xlu0 %6857
      %v6859 = vsel %vm3955, %v6551, -inf
      %6860 = vmax.xlane.f32.xlu0 %v6859
      %v6861 = vpop.xlane.xlu0 %6860
      %v6862 = vsel %vm3955, %v6554, -inf
      %6863 = vmax.xlane.f32.xlu0 %v6862
      %v6864 = vpop.xlane.xlu0 %6863
      %v6865 = vsel %vm3955, %v6559, -inf
      %6866 = vmax.xlane.f32.xlu0 %v6865
      %v6867 = vpop.xlane.xlu0 %6866
      %v6868 = vsel %vm3955, %v6562, -inf
      %6869 = vmax.xlane.f32.xlu0 %v6868
      %v6870 = vpop.xlane.xlu0 %6869
      %v6871 = vsel %vm3955, %v6567, -inf
      %6872 = vmax.xlane.f32.xlu0 %v6871
      %v6873 = vpop.xlane.xlu0 %6872
      %v6874 = vsel %vm3955, %v6570, -inf
      %6875 = vmax.xlane.f32.xlu0 %v6874
      %v6876 = vpop.xlane.xlu0 %6875
      %v6877 = vsel %vm3955, %v6575, -inf
      %6878 = vmax.xlane.f32.xlu0 %v6877
      %v6879 = vpop.xlane.xlu0 %6878
      %v6880 = vsel %vm3955, %v6578, -inf
      %6881 = vmax.xlane.f32.xlu0 %v6880
      %v6882 = vpop.xlane.xlu0 %6881
      %v6883 = vsel %vm3955, %v6583, -inf
      %6884 = vmax.xlane.f32.xlu0 %v6883
      %v6885 = vpop.xlane.xlu0 %6884
      %v6886 = vsel %vm3955, %v6673, -inf
      %6887 = vmax.xlane.f32.xlu0 %v6886
      %v6888 = vpop.xlane.xlu0 %6887
      %v6889 = vsel %vm3955, %v6676, -inf
      %6890 = vmax.xlane.f32.xlu0 %v6889
      %v6891 = vpop.xlane.xlu0 %6890
      %v6892 = vsel %vm3955, %v6681, -inf
      %6893 = vmax.xlane.f32.xlu0 %v6892
      %v6894 = vpop.xlane.xlu0 %6893
      %v6895 = vsel %vm3955, %v6684, -inf
      %6896 = vmax.xlane.f32.xlu0 %v6895
      %v6897 = vpop.xlane.xlu0 %6896
      %v6898 = vsel %vm3955, %v6689, -inf
      %6899 = vmax.xlane.f32.xlu0 %v6898
      %v6900 = vpop.xlane.xlu0 %6899
      %v6901 = vsel %vm3955, %v6692, -inf
      %6902 = vmax.xlane.f32.xlu0 %v6901
      %v6903 = vpop.xlane.xlu0 %6902
      %v6904 = vsel %vm3955, %v6697, -inf
      %6905 = vmax.xlane.f32.xlu0 %v6904
      %v6906 = vpop.xlane.xlu0 %6905
      %v6907 = vsel %vm3955, %v6700, -inf
      %6908 = vmax.xlane.f32.xlu0 %v6907
      %v6909 = vpop.xlane.xlu0 %6908
      %v6910 = vsel %vm3955, %v6705, -inf
      %6911 = vmax.xlane.f32.xlu0 %v6910
      %v6912 = vpop.xlane.xlu0 %6911
      %v6913 = vsel %vm3955, %v6795, -inf
      %6914 = vmax.xlane.f32.xlu0 %v6913
      %v6915 = vpop.xlane.xlu0 %6914
      %v6916 = vsel %vm3955, %v6798, -inf
      %6917 = vmax.xlane.f32.xlu0 %v6916
      %v6918 = vpop.xlane.xlu0 %6917
      %v6919 = vsel %vm3955, %v6803, -inf
      %6920 = vmax.xlane.f32.xlu0 %v6919
      %v6921 = vpop.xlane.xlu0 %6920
      %v6922 = vsel %vm3955, %v6806, -inf
      %6923 = vmax.xlane.f32.xlu0 %v6922
      %v6924 = vpop.xlane.xlu0 %6923
      %v6925 = vsel %vm3955, %v6811, -inf
      %6926 = vmax.xlane.f32.xlu0 %v6925
      %v6927 = vpop.xlane.xlu0 %6926
      %v6928 = vsel %vm3955, %v6814, -inf
      %6929 = vmax.xlane.f32.xlu0 %v6928
      %v6930 = vpop.xlane.xlu0 %6929
      %v6931 = vsel %vm3955, %v6819, -inf
      %6932 = vmax.xlane.f32.xlu0 %v6931
      %v6933 = vpop.xlane.xlu0 %6932
      %v6934 = vsel %vm3955, %v6822, -inf
      %6935 = vmax.xlane.f32.xlu0 %v6934
      %v6936 = vpop.xlane.xlu0 %6935
      %v6937 = vsel %vm3955, %v6827, -inf
      %6938 = vmax.xlane.f32.xlu0 %v6937
      %v6939 = vpop.xlane.xlu0 %6938
      %v6940 = vsub.f32 %v6429, %v6834
      %v6941 = vsub.f32 %v6432, %v6837
      %v6942 = vsub.f32 %v6437, %v6840
      %v6943 = vsub.f32 %v6440, %v6843
      %v6944 = vsub.f32 %v6445, %v6846
      %v6945 = vsub.f32 %v6448, %v6849
      %v6946 = vsub.f32 %v6453, %v6852
      %v6947 = vsub.f32 %v6456, %v6855
      %v6948 = vsub.f32 %v6461, %v6858
      %v6949 = vsub.f32 %v6551, %v6861
      %v6950 = vsub.f32 %v6554, %v6864
      %v6951 = vsub.f32 %v6559, %v6867
      %v6952 = vsub.f32 %v6562, %v6870
      %v6953 = vsub.f32 %v6567, %v6873
      %v6954 = vsub.f32 %v6570, %v6876
      %v6955 = vsub.f32 %v6575, %v6879
      %v6956 = vsub.f32 %v6578, %v6882
      %v6957 = vsub.f32 %v6583, %v6885
      %v6958 = vsub.f32 %v6673, %v6888
      %v6959 = vsub.f32 %v6676, %v6891
      %v6960 = vsub.f32 %v6681, %v6894
      %v6961 = vsub.f32 %v6684, %v6897
      %v6962 = vsub.f32 %v6689, %v6900
      %v6963 = vsub.f32 %v6692, %v6903
      %v6964 = vsub.f32 %v6697, %v6906
      %v6965 = vsub.f32 %v6700, %v6909
      %v6966 = vsub.f32 %v6705, %v6912
      %v6967 = vsub.f32 %v6795, %v6915
      %v6968 = vsub.f32 %v6798, %v6918
      %v6969 = vsub.f32 %v6803, %v6921
      %v6970 = vsub.f32 %v6806, %v6924
      %v6971 = vsub.f32 %v6811, %v6927
      %v6972 = vsub.f32 %v6814, %v6930
      %v6973 = vsub.f32 %v6819, %v6933
      %v6974 = vsub.f32 %v6822, %v6936
      %v6975 = vsub.f32 %v6827, %v6939
      %v6976 = vmul.f32 %v6940, 1.442695
      %v6977 = vpow.pop %v6976
      %v6978 = vmul.f32 %v6941, 1.442695
      %v6979 = vpow.pop %v6978
      %v6980 = vmul.f32 %v6942, 1.442695
      %v6981 = vpow.pop %v6980
      %v6982 = vmul.f32 %v6943, 1.442695
      %v6983 = vpow.pop %v6982
      %v6984 = vmul.f32 %v6944, 1.442695
      %v6985 = vpow.pop %v6984
      %v6986 = vmul.f32 %v6945, 1.442695
      %v6987 = vpow.pop %v6986
      %v6988 = vmul.f32 %v6946, 1.442695
      %v6989 = vpow.pop %v6988
      %v6990 = vmul.f32 %v6947, 1.442695
      %v6991 = vpow.pop %v6990
      %v6992 = vmul.f32 %v6948, 1.442695
      %v6993 = vpow.pop %v6992
      %v6994 = vmul.f32 %v6949, 1.442695
      %v6995 = vpow.pop %v6994
      %v6996 = vmul.f32 %v6950, 1.442695
      %v6997 = vpow.pop %v6996
      %v6998 = vmul.f32 %v6951, 1.442695
      %v6999 = vpow.pop %v6998
      %v7000 = vmul.f32 %v6952, 1.442695
      %v7001 = vpow.pop %v7000
      %v7002 = vmul.f32 %v6953, 1.442695
      %v7003 = vpow.pop %v7002
      %v7004 = vmul.f32 %v6954, 1.442695
      %v7005 = vpow.pop %v7004
      %v7006 = vmul.f32 %v6955, 1.442695
      %v7007 = vpow.pop %v7006
      %v7008 = vmul.f32 %v6956, 1.442695
      %v7009 = vpow.pop %v7008
      %v7010 = vmul.f32 %v6957, 1.442695
      %v7011 = vpow.pop %v7010
      %v7012 = vmul.f32 %v6958, 1.442695
      %v7013 = vpow.pop %v7012
      %v7014 = vmul.f32 %v6959, 1.442695
      %v7015 = vpow.pop %v7014
      %v7016 = vmul.f32 %v6960, 1.442695
      %v7017 = vpow.pop %v7016
      %v7018 = vmul.f32 %v6961, 1.442695
      %v7019 = vpow.pop %v7018
      %v7020 = vmul.f32 %v6962, 1.442695
      %v7021 = vpow.pop %v7020
      %v7022 = vmul.f32 %v6963, 1.442695
      %v7023 = vpow.pop %v7022
      %v7024 = vmul.f32 %v6964, 1.442695
      %v7025 = vpow.pop %v7024
      %v7026 = vmul.f32 %v6965, 1.442695
      %v7027 = vpow.pop %v7026
      %v7028 = vmul.f32 %v6966, 1.442695
      %v7029 = vpow.pop %v7028
      %v7030 = vmul.f32 %v6967, 1.442695
      %v7031 = vpow.pop %v7030
      %v7032 = vmul.f32 %v6968, 1.442695
      %v7033 = vpow.pop %v7032
      %v7034 = vmul.f32 %v6969, 1.442695
      %v7035 = vpow.pop %v7034
      %v7036 = vmul.f32 %v6970, 1.442695
      %v7037 = vpow.pop %v7036
      %v7038 = vmul.f32 %v6971, 1.442695
      %v7039 = vpow.pop %v7038
      %v7040 = vmul.f32 %v6972, 1.442695
      %v7041 = vpow.pop %v7040
      %v7042 = vmul.f32 %v6973, 1.442695
      %v7043 = vpow.pop %v7042
      %v7044 = vmul.f32 %v6974, 1.442695
      %v7045 = vpow.pop %v7044
      %v7046 = vmul.f32 %v6975, 1.442695
      %v7047 = vpow.pop %v7046
      %v7048 = vsel %vm3955, %v6977, 0.0
      %7049 = vadd.xlane.f32.xlu0 %v7048
      %v7050 = vpop.xlane.xlu0 %7049
      %v7051 = vsel %vm3955, %v6979, 0.0
      %7052 = vadd.xlane.f32.xlu0 %v7051
      %v7053 = vpop.xlane.xlu0 %7052
      %v7054 = vsel %vm3955, %v6981, 0.0
      %7055 = vadd.xlane.f32.xlu0 %v7054
      %v7056 = vpop.xlane.xlu0 %7055
      %v7057 = vsel %vm3955, %v6983, 0.0
      %7058 = vadd.xlane.f32.xlu0 %v7057
      %v7059 = vpop.xlane.xlu0 %7058
      %v7060 = vsel %vm3955, %v6985, 0.0
      %7061 = vadd.xlane.f32.xlu0 %v7060
      %v7062 = vpop.xlane.xlu0 %7061
      %v7063 = vsel %vm3955, %v6987, 0.0
      %7064 = vadd.xlane.f32.xlu0 %v7063
      %v7065 = vpop.xlane.xlu0 %7064
      %v7066 = vsel %vm3955, %v6989, 0.0
      %7067 = vadd.xlane.f32.xlu0 %v7066
      %v7068 = vpop.xlane.xlu0 %7067
      %v7069 = vsel %vm3955, %v6991, 0.0
      %7070 = vadd.xlane.f32.xlu0 %v7069
      %v7071 = vpop.xlane.xlu0 %7070
      %v7072 = vsel %vm3955, %v6993, 0.0
      %7073 = vadd.xlane.f32.xlu0 %v7072
      %v7074 = vpop.xlane.xlu0 %7073
      %v7075 = vsel %vm3955, %v6995, 0.0
      %7076 = vadd.xlane.f32.xlu0 %v7075
      %v7077 = vpop.xlane.xlu0 %7076
      %v7078 = vsel %vm3955, %v6997, 0.0
      %7079 = vadd.xlane.f32.xlu0 %v7078
      %v7080 = vpop.xlane.xlu0 %7079
      %v7081 = vsel %vm3955, %v6999, 0.0
      %7082 = vadd.xlane.f32.xlu0 %v7081
      %v7083 = vpop.xlane.xlu0 %7082
      %v7084 = vsel %vm3955, %v7001, 0.0
      %7085 = vadd.xlane.f32.xlu0 %v7084
      %v7086 = vpop.xlane.xlu0 %7085
      %v7087 = vsel %vm3955, %v7003, 0.0
      %7088 = vadd.xlane.f32.xlu0 %v7087
      %v7089 = vpop.xlane.xlu0 %7088
      %v7090 = vsel %vm3955, %v7005, 0.0
      %7091 = vadd.xlane.f32.xlu0 %v7090
      %v7092 = vpop.xlane.xlu0 %7091
      %v7093 = vsel %vm3955, %v7007, 0.0
      %7094 = vadd.xlane.f32.xlu0 %v7093
      %v7095 = vpop.xlane.xlu0 %7094
      %v7096 = vsel %vm3955, %v7009, 0.0
      %7097 = vadd.xlane.f32.xlu0 %v7096
      %v7098 = vpop.xlane.xlu0 %7097
      %v7099 = vsel %vm3955, %v7011, 0.0
      %7100 = vadd.xlane.f32.xlu0 %v7099
      %v7101 = vpop.xlane.xlu0 %7100
      %v7102 = vsel %vm3955, %v7013, 0.0
      %7103 = vadd.xlane.f32.xlu0 %v7102
      %v7104 = vpop.xlane.xlu0 %7103
      %v7105 = vsel %vm3955, %v7015, 0.0
      %7106 = vadd.xlane.f32.xlu0 %v7105
      %v7107 = vpop.xlane.xlu0 %7106
      %v7108 = vsel %vm3955, %v7017, 0.0
      %7109 = vadd.xlane.f32.xlu0 %v7108
      %v7110 = vpop.xlane.xlu0 %7109
      %v7111 = vsel %vm3955, %v7019, 0.0
      %7112 = vadd.xlane.f32.xlu0 %v7111
      %v7113 = vpop.xlane.xlu0 %7112
      %v7114 = vsel %vm3955, %v7021, 0.0
      %7115 = vadd.xlane.f32.xlu0 %v7114
      %v7116 = vpop.xlane.xlu0 %7115
      %v7117 = vsel %vm3955, %v7023, 0.0
      %7118 = vadd.xlane.f32.xlu0 %v7117
      %v7119 = vpop.xlane.xlu0 %7118
      %v7120 = vsel %vm3955, %v7025, 0.0
      %7121 = vadd.xlane.f32.xlu0 %v7120
      %v7122 = vpop.xlane.xlu0 %7121
      %v7123 = vsel %vm3955, %v7027, 0.0
      %7124 = vadd.xlane.f32.xlu0 %v7123
      %v7125 = vpop.xlane.xlu0 %7124
      %v7126 = vsel %vm3955, %v7029, 0.0
      %7127 = vadd.xlane.f32.xlu0 %v7126
      %v7128 = vpop.xlane.xlu0 %7127
      %v7129 = vsel %vm3955, %v7031, 0.0
      %7130 = vadd.xlane.f32.xlu0 %v7129
      %v7131 = vpop.xlane.xlu0 %7130
      %v7132 = vsel %vm3955, %v7033, 0.0
      %7133 = vadd.xlane.f32.xlu0 %v7132
      %v7134 = vpop.xlane.xlu0 %7133
      %v7135 = vsel %vm3955, %v7035, 0.0
      %7136 = vadd.xlane.f32.xlu0 %v7135
      %v7137 = vpop.xlane.xlu0 %7136
      %v7138 = vsel %vm3955, %v7037, 0.0
      %7139 = vadd.xlane.f32.xlu0 %v7138
      %v7140 = vpop.xlane.xlu0 %7139
      %v7141 = vsel %vm3955, %v7039, 0.0
      %7142 = vadd.xlane.f32.xlu0 %v7141
      %v7143 = vpop.xlane.xlu0 %7142
      %v7144 = vsel %vm3955, %v7041, 0.0
      %7145 = vadd.xlane.f32.xlu0 %v7144
      %v7146 = vpop.xlane.xlu0 %7145
      %v7147 = vsel %vm3955, %v7043, 0.0
      %7148 = vadd.xlane.f32.xlu0 %v7147
      %v7149 = vpop.xlane.xlu0 %7148
      %v7150 = vsel %vm3955, %v7045, 0.0
      %7151 = vadd.xlane.f32.xlu0 %v7150
      %v7152 = vpop.xlane.xlu0 %7151
      %v7153 = vsel %vm3955, %v7047, 0.0
      %7154 = vadd.xlane.f32.xlu0 %v7153
      %v7155 = vpop.xlane.xlu0 %7154
      %v7156 = vpack.c.bf16 %v6979, %v6977
      %v7157 = vpack.c.bf16 %v6983, %v6981
      %v7158 = vpack.c.bf16 %v6987, %v6985
      %v7159 = vpack.c.bf16 %v6991, %v6989
      %v7160 = vpack.c.bf16 %v6993, %v6993
      %v7161 = vpack.c.bf16 %v6997, %v6995
      %v7162 = vpack.c.bf16 %v7001, %v6999
      %v7163 = vpack.c.bf16 %v7005, %v7003
      %v7164 = vpack.c.bf16 %v7009, %v7007
      %v7165 = vpack.c.bf16 %v7011, %v7011
      %v7166 = vpack.c.bf16 %v7015, %v7013
      %v7167 = vpack.c.bf16 %v7019, %v7017
      %v7168 = vpack.c.bf16 %v7023, %v7021
      %v7169 = vpack.c.bf16 %v7027, %v7025
      %v7170 = vpack.c.bf16 %v7029, %v7029
      %v7171 = vpack.c.bf16 %v7033, %v7031
      %v7172 = vpack.c.bf16 %v7037, %v7035
      %v7173 = vpack.c.bf16 %v7041, %v7039
      %v7174 = vpack.c.bf16 %v7045, %v7043
      %v7175 = vpack.c.bf16 %v7047, %v7047
      %7176 = vrot.lane.b32.xlu0 %v4300, 96
      %v7177 = vpop.permute.xlu0 %7176
      %7178 = vrot.lane.b32.xlu0 %v4301, 96
      %v7179 = vpop.permute.xlu0 %7178
      %7180 = vrot.lane.b32.xlu0 %v4302, 96
      %v7181 = vpop.permute.xlu0 %7180
      %7182 = vrot.lane.b32.xlu0 %v4303, 96
      %v7183 = vpop.permute.xlu0 %7182
      %7184 = vrot.lane.b32.xlu0 %v4304, 96
      %v7185 = vpop.permute.xlu0 %7184
      %v7191 = vsel %vm3955, %v7156, 0
      %v7194 = vsel %vm3955, %v7157, 0
      %v7197 = vsel %vm3955, %v7158, 0
      %v7200 = vsel %vm3955, %v7159, 0
      %v7203 = vsel %vm3955, %v7160, 0
      %v7206 = vsel %vm4324, %v7185, 0
      %7208 = vmatprep.subr.bf16.mxu0 0
      %7209 = vmatpush1.bf16.msra.mxu0 %v7177
      %7210 = vmatprep.subr.bf16.mxu0 0
      %7211 = vmatpush1.bf16.msra.mxu0 %v7179
      %7212 = vmatprep.subr.bf16.mxu0 0
      %7213 = vmatpush1.bf16.msra.mxu0 %v7181
      %7214 = vmatprep.subr.bf16.mxu0 0
      %7215 = vmatpush1.bf16.msra.mxu0 %v7183
      %7216 = vmatprep.subr.bf16.mxu0 0
      %7217 = vmatpush1.bf16.msra.mxu0 %v7206
      %7218 = vmatprep.subr.bf16.mxu0 0
      %7219 = vmatpush1.bf16.msra.mxu0 0
      %7220 = vmatprep.subr.bf16.mxu0 0
      %7221 = vmatpush1.bf16.msra.mxu0 0
      %7222 = vmatprep.subr.bf16.mxu0 0
      %7223 = vmatpush1.bf16.msra.mxu0 0
      %7224 = vmatprep.subr.bf16.mxu0 0
      %7225 = vmatpush1.bf16.msra.mxu0 0
      %7226 = vmatprep.subr.bf16.mxu0 0
      %7227 = vmatpush1.bf16.msra.mxu0 0
      %7228 = vmatprep.subr.bf16.mxu0 0
      %7229 = vmatpush1.bf16.msra.mxu0 0
      %7230 = vmatprep.subr.bf16.mxu0 0
      %7231 = vmatpush1.bf16.msra.mxu0 0
      %7232 = vmatprep.subr.bf16.mxu0 0
      %7233 = vmatpush1.bf16.msra.mxu0 0
      %7234 = vmatprep.subr.bf16.mxu0 0
      %7235 = vmatpush1.bf16.msra.mxu0 0
      %7236 = vmatprep.subr.bf16.mxu0 0
      %7237 = vmatpush1.bf16.msra.mxu0 0
      %7238 = vmatprep.subr.bf16.mxu0 0
      %7239 = vmatpush1.bf16.msra.mxu0 0
      %7240 = vmatprep.mubr.bf16.mxu0 0
      %7241 = vmatmul.mubr.bf16.gmra.mrb[0].mxu0 %v7191
      %v7242 = vpop.f32.mrb[0].mxu0
      %v7243 = vadd.f32 0.0, %v7242
      %v7244 = vpop.f32.mrb[0].mxu0
      %v7245 = vpop.f32.mrb[0].mxu0
      %v7246 = vadd.f32 0.0, %v7245
      %v7247 = vpop.f32.mrb[0].mxu0
      %7248 = vmatprep.mubr.bf16.mxu0 0
      %7249 = vmatmul.mubr.bf16.gmra.mrb[0].mxu0 %v7194
      %v7250 = vpop.f32.mrb[0].mxu0
      %v7251 = vadd.f32 0.0, %v7250
      %v7252 = vpop.f32.mrb[0].mxu0
      %v7253 = vpop.f32.mrb[0].mxu0
      %v7254 = vadd.f32 0.0, %v7253
      %v7255 = vpop.f32.mrb[0].mxu0
      %7256 = vmatprep.mubr.bf16.mxu0 0
      %7257 = vmatmul.mubr.bf16.gmra.mrb[0].mxu0 %v7197
      %v7258 = vpop.f32.mrb[0].mxu0
      %v7259 = vadd.f32 0.0, %v7258
      %v7260 = vpop.f32.mrb[0].mxu0
      %v7261 = vpop.f32.mrb[0].mxu0
      %v7262 = vadd.f32 0.0, %v7261
      %v7263 = vpop.f32.mrb[0].mxu0
      %7264 = vmatprep.mubr.bf16.mxu0 0
      %7265 = vmatmul.mubr.bf16.gmra.mrb[0].mxu0 %v7200
      %v7266 = vpop.f32.mrb[0].mxu0
      %v7267 = vadd.f32 0.0, %v7266
      %v7268 = vpop.f32.mrb[0].mxu0
      %v7269 = vpop.f32.mrb[0].mxu0
      %v7270 = vadd.f32 0.0, %v7269
      %v7271 = vpop.f32.mrb[0].mxu0
      %7272 = vmatprep.mubr.bf16.mxu0 0
      %7273 = vmatmul.mubr.bf16.gmra.mrb[0].mxu0 %v7203
      %v7274 = vpop.f32.mrb[0].mxu0
      %v7275 = vadd.f32 0.0, %v7274
      %v7276 = vpop.f32.mrb[0].mxu0
      %v7277 = vpop.f32.mrb[0].mxu0
      %v7278 = vpop.f32.mrb[0].mxu0
      %7279 = vdwg.mxu0
      %7280 = vrot.lane.b32.xlu0 %v4400, 96
      %v7281 = vpop.permute.xlu0 %7280
      %7282 = vrot.lane.b32.xlu0 %v4401, 96
      %v7283 = vpop.permute.xlu0 %7282
      %7284 = vrot.lane.b32.xlu0 %v4402, 96
      %v7285 = vpop.permute.xlu0 %7284
      %7286 = vrot.lane.b32.xlu0 %v4403, 96
      %v7287 = vpop.permute.xlu0 %7286
      %7288 = vrot.lane.b32.xlu0 %v4404, 96
      %v7289 = vpop.permute.xlu0 %7288
      %v7295 = vsel %vm3955, %v7161, 0
      %v7298 = vsel %vm3955, %v7162, 0
      %v7301 = vsel %vm3955, %v7163, 0
      %v7304 = vsel %vm3955, %v7164, 0
      %v7307 = vsel %vm3955, %v7165, 0
      %v7310 = vsel %vm4324, %v7289, 0
      %7312 = vmatprep.subr.bf16.mxu0 0
      %7313 = vmatpush1.bf16.msra.mxu0 %v7281
      %7314 = vmatprep.subr.bf16.mxu0 0
      %7315 = vmatpush1.bf16.msra.mxu0 %v7283
      %7316 = vmatprep.subr.bf16.mxu0 0
      %7317 = vmatpush1.bf16.msra.mxu0 %v7285
      %7318 = vmatprep.subr.bf16.mxu0 0
      %7319 = vmatpush1.bf16.msra.mxu0 %v7287
      %7320 = vmatprep.subr.bf16.mxu0 0
      %7321 = vmatpush1.bf16.msra.mxu0 %v7310
      %7322 = vmatprep.subr.bf16.mxu0 0
      %7323 = vmatpush1.bf16.msra.mxu0 0
      %7324 = vmatprep.subr.bf16.mxu0 0
      %7325 = vmatpush1.bf16.msra.mxu0 0
      %7326 = vmatprep.subr.bf16.mxu0 0
      %7327 = vmatpush1.bf16.msra.mxu0 0
      %7328 = vmatprep.subr.bf16.mxu0 0
      %7329 = vmatpush1.bf16.msra.mxu0 0
      %7330 = vmatprep.subr.bf16.mxu0 0
      %7331 = vmatpush1.bf16.msra.mxu0 0
      %7332 = vmatprep.subr.bf16.mxu0 0
      %7333 = vmatpush1.bf16.msra.mxu0 0
      %7334 = vmatprep.subr.bf16.mxu0 0
      %7335 = vmatpush1.bf16.msra.mxu0 0
      %7336 = vmatprep.subr.bf16.mxu0 0
      %7337 = vmatpush1.bf16.msra.mxu0 0
      %7338 = vmatprep.subr.bf16.mxu0 0
      %7339 = vmatpush1.bf16.msra.mxu0 0
      %7340 = vmatprep.subr.bf16.mxu0 0
      %7341 = vmatpush1.bf16.msra.mxu0 0
      %7342 = vmatprep.subr.bf16.mxu0 0
      %7343 = vmatpush1.bf16.msra.mxu0 0
      %7344 = vmatprep.mubr.bf16.mxu0 0
      %7345 = vmatmul.mubr.bf16.gmra.mrb[0].mxu0 %v7295
      %v7346 = vpop.f32.mrb[0].mxu0
      %v7347 = vadd.f32 0.0, %v7346
      %v7348 = vpop.f32.mrb[0].mxu0
      %v7349 = vpop.f32.mrb[0].mxu0
      %v7350 = vadd.f32 0.0, %v7349
      %v7351 = vpop.f32.mrb[0].mxu0
      %7352 = vmatprep.mubr.bf16.mxu0 0
      %7353 = vmatmul.mubr.bf16.gmra.mrb[0].mxu0 %v7298
      %v7354 = vpop.f32.mrb[0].mxu0
      %v7355 = vadd.f32 0.0, %v7354
      %v7356 = vpop.f32.mrb[0].mxu0
      %v7357 = vpop.f32.mrb[0].mxu0
      %v7358 = vadd.f32 0.0, %v7357
      %v7359 = vpop.f32.mrb[0].mxu0
      %7360 = vmatprep.mubr.bf16.mxu0 0
      %7361 = vmatmul.mubr.bf16.gmra.mrb[0].mxu0 %v7301
      %v7362 = vpop.f32.mrb[0].mxu0
      %v7363 = vadd.f32 0.0, %v7362
      %v7364 = vpop.f32.mrb[0].mxu0
      %v7365 = vpop.f32.mrb[0].mxu0
      %v7366 = vadd.f32 0.0, %v7365
      %v7367 = vpop.f32.mrb[0].mxu0
      %7368 = vmatprep.mubr.bf16.mxu0 0
      %7369 = vmatmul.mubr.bf16.gmra.mrb[0].mxu0 %v7304
      %v7370 = vpop.f32.mrb[0].mxu0
      %v7371 = vadd.f32 0.0, %v7370
      %v7372 = vpop.f32.mrb[0].mxu0
      %v7373 = vpop.f32.mrb[0].mxu0
      %v7374 = vadd.f32 0.0, %v7373
      %v7375 = vpop.f32.mrb[0].mxu0
      %7376 = vmatprep.mubr.bf16.mxu0 0
      %7377 = vmatmul.mubr.bf16.gmra.mrb[0].mxu0 %v7307
      %v7378 = vpop.f32.mrb[0].mxu0
      %v7379 = vadd.f32 0.0, %v7378
      %v7380 = vpop.f32.mrb[0].mxu0
      %v7381 = vpop.f32.mrb[0].mxu0
      %v7382 = vpop.f32.mrb[0].mxu0
      %7383 = vdwg.mxu0
      %7384 = vrot.lane.b32.xlu0 %v4499, 96
      %v7385 = vpop.permute.xlu0 %7384
      %7386 = vrot.lane.b32.xlu0 %v4500, 96
      %v7387 = vpop.permute.xlu0 %7386
      %7388 = vrot.lane.b32.xlu0 %v4501, 96
      %v7389 = vpop.permute.xlu0 %7388
      %7390 = vrot.lane.b32.xlu0 %v4502, 96
      %v7391 = vpop.permute.xlu0 %7390
      %7392 = vrot.lane.b32.xlu0 %v4503, 96
      %v7393 = vpop.permute.xlu0 %7392
      %v7399 = vsel %vm3955, %v7166, 0
      %v7402 = vsel %vm3955, %v7167, 0
      %v7405 = vsel %vm3955, %v7168, 0
      %v7408 = vsel %vm3955, %v7169, 0
      %v7411 = vsel %vm3955, %v7170, 0
      %v7414 = vsel %vm4324, %v7393, 0
      %7416 = vmatprep.subr.bf16.mxu0 0
      %7417 = vmatpush1.bf16.msra.mxu0 %v7385
      %7418 = vmatprep.subr.bf16.mxu0 0
      %7419 = vmatpush1.bf16.msra.mxu0 %v7387
      %7420 = vmatprep.subr.bf16.mxu0 0
      %7421 = vmatpush1.bf16.msra.mxu0 %v7389
      %7422 = vmatprep.subr.bf16.mxu0 0
      %7423 = vmatpush1.bf16.msra.mxu0 %v7391
      %7424 = vmatprep.subr.bf16.mxu0 0
      %7425 = vmatpush1.bf16.msra.mxu0 %v7414
      %7426 = vmatprep.subr.bf16.mxu0 0
      %7427 = vmatpush1.bf16.msra.mxu0 0
      %7428 = vmatprep.subr.bf16.mxu0 0
      %7429 = vmatpush1.bf16.msra.mxu0 0
      %7430 = vmatprep.subr.bf16.mxu0 0
      %7431 = vmatpush1.bf16.msra.mxu0 0
      %7432 = vmatprep.subr.bf16.mxu0 0
      %7433 = vmatpush1.bf16.msra.mxu0 0
      %7434 = vmatprep.subr.bf16.mxu0 0
      %7435 = vmatpush1.bf16.msra.mxu0 0
      %7436 = vmatprep.subr.bf16.mxu0 0
      %7437 = vmatpush1.bf16.msra.mxu0 0
      %7438 = vmatprep.subr.bf16.mxu0 0
      %7439 = vmatpush1.bf16.msra.mxu0 0
      %7440 = vmatprep.subr.bf16.mxu0 0
      %7441 = vmatpush1.bf16.msra.mxu0 0
      %7442 = vmatprep.subr.bf16.mxu0 0
      %7443 = vmatpush1.bf16.msra.mxu0 0
      %7444 = vmatprep.subr.bf16.mxu0 0
      %7445 = vmatpush1.bf16.msra.mxu0 0
      %7446 = vmatprep.subr.bf16.mxu0 0
      %7447 = vmatpush1.bf16.msra.mxu0 0
      %7448 = vmatprep.mubr.bf16.mxu0 0
      %7449 = vmatmul.mubr.bf16.gmra.mrb[0].mxu0 %v7399
      %v7450 = vpop.f32.mrb[0].mxu0
      %v7451 = vadd.f32 0.0, %v7450
      %v7452 = vpop.f32.mrb[0].mxu0
      %v7453 = vpop.f32.mrb[0].mxu0
      %v7454 = vadd.f32 0.0, %v7453
      %v7455 = vpop.f32.mrb[0].mxu0
      %7456 = vmatprep.mubr.bf16.mxu0 0
      %7457 = vmatmul.mubr.bf16.gmra.mrb[0].mxu0 %v7402
      %v7458 = vpop.f32.mrb[0].mxu0
      %v7459 = vadd.f32 0.0, %v7458
      %v7460 = vpop.f32.mrb[0].mxu0
      %v7461 = vpop.f32.mrb[0].mxu0
      %v7462 = vadd.f32 0.0, %v7461
      %v7463 = vpop.f32.mrb[0].mxu0
      %7464 = vmatprep.mubr.bf16.mxu0 0
      %7465 = vmatmul.mubr.bf16.gmra.mrb[0].mxu0 %v7405
      %v7466 = vpop.f32.mrb[0].mxu0
      %v7467 = vadd.f32 0.0, %v7466
      %v7468 = vpop.f32.mrb[0].mxu0
      %v7469 = vpop.f32.mrb[0].mxu0
      %v7470 = vadd.f32 0.0, %v7469
      %v7471 = vpop.f32.mrb[0].mxu0
      %7472 = vmatprep.mubr.bf16.mxu0 0
      %7473 = vmatmul.mubr.bf16.gmra.mrb[0].mxu0 %v7408
      %v7474 = vpop.f32.mrb[0].mxu0
      %v7475 = vadd.f32 0.0, %v7474
      %v7476 = vpop.f32.mrb[0].mxu0
      %v7477 = vpop.f32.mrb[0].mxu0
      %v7478 = vadd.f32 0.0, %v7477
      %v7479 = vpop.f32.mrb[0].mxu0
      %7480 = vmatprep.mubr.bf16.mxu0 0
      %7481 = vmatmul.mubr.bf16.gmra.mrb[0].mxu0 %v7411
      %v7482 = vpop.f32.mrb[0].mxu0
      %v7483 = vadd.f32 0.0, %v7482
      %v7484 = vpop.f32.mrb[0].mxu0
      %v7485 = vpop.f32.mrb[0].mxu0
      %v7486 = vpop.f32.mrb[0].mxu0
      %7487 = vdwg.mxu0
      %7488 = vrot.lane.b32.xlu0 %v4598, 96
      %v7489 = vpop.permute.xlu0 %7488
      %7490 = vrot.lane.b32.xlu0 %v4599, 96
      %v7491 = vpop.permute.xlu0 %7490
      %7492 = vrot.lane.b32.xlu0 %v4600, 96
      %v7493 = vpop.permute.xlu0 %7492
      %7494 = vrot.lane.b32.xlu0 %v4601, 96
      %v7495 = vpop.permute.xlu0 %7494
      %7496 = vrot.lane.b32.xlu0 %v4602, 96
      %v7497 = vpop.permute.xlu0 %7496
      %v7503 = vsel %vm3955, %v7171, 0
      %v7506 = vsel %vm3955, %v7172, 0
      %v7509 = vsel %vm3955, %v7173, 0
      %v7512 = vsel %vm3955, %v7174, 0
      %v7515 = vsel %vm3955, %v7175, 0
      %v7518 = vsel %vm4324, %v7497, 0
      %7520 = vmatprep.subr.bf16.mxu0 0
      %7521 = vmatpush1.bf16.msra.mxu0 %v7489
      %7522 = vmatprep.subr.bf16.mxu0 0
      %7523 = vmatpush1.bf16.msra.mxu0 %v7491
      %7524 = vmatprep.subr.bf16.mxu0 0
      %7525 = vmatpush1.bf16.msra.mxu0 %v7493
      %7526 = vmatprep.subr.bf16.mxu0 0
      %7527 = vmatpush1.bf16.msra.mxu0 %v7495
      %7528 = vmatprep.subr.bf16.mxu0 0
      %7529 = vmatpush1.bf16.msra.mxu0 %v7518
      %7530 = vmatprep.subr.bf16.mxu0 0
      %7531 = vmatpush1.bf16.msra.mxu0 0
      %7532 = vmatprep.subr.bf16.mxu0 0
      %7533 = vmatpush1.bf16.msra.mxu0 0
      %7534 = vmatprep.subr.bf16.mxu0 0
      %7535 = vmatpush1.bf16.msra.mxu0 0
      %7536 = vmatprep.subr.bf16.mxu0 0
      %7537 = vmatpush1.bf16.msra.mxu0 0
      %7538 = vmatprep.subr.bf16.mxu0 0
      %7539 = vmatpush1.bf16.msra.mxu0 0
      %7540 = vmatprep.subr.bf16.mxu0 0
      %7541 = vmatpush1.bf16.msra.mxu0 0
      %7542 = vmatprep.subr.bf16.mxu0 0
      %7543 = vmatpush1.bf16.msra.mxu0 0
      %7544 = vmatprep.subr.bf16.mxu0 0
      %7545 = vmatpush1.bf16.msra.mxu0 0
      %7546 = vmatprep.subr.bf16.mxu0 0
      %7547 = vmatpush1.bf16.msra.mxu0 0
      %7548 = vmatprep.subr.bf16.mxu0 0
      %7549 = vmatpush1.bf16.msra.mxu0 0
      %7550 = vmatprep.subr.bf16.mxu0 0
      %7551 = vmatpush1.bf16.msra.mxu0 0
      %7552 = vmatprep.mubr.bf16.mxu0 0
      %7553 = vmatmul.mubr.bf16.gmra.mrb[0].mxu0 %v7503
      %v7554 = vpop.f32.mrb[0].mxu0
      %v7555 = vadd.f32 0.0, %v7554
      %v7556 = vpop.f32.mrb[0].mxu0
      %v7557 = vpop.f32.mrb[0].mxu0
      %v7558 = vadd.f32 0.0, %v7557
      %v7559 = vpop.f32.mrb[0].mxu0
      %7560 = vmatprep.mubr.bf16.mxu0 0
      %7561 = vmatmul.mubr.bf16.gmra.mrb[0].mxu0 %v7506
      %v7562 = vpop.f32.mrb[0].mxu0
      %v7563 = vadd.f32 0.0, %v7562
      %v7564 = vpop.f32.mrb[0].mxu0
      %v7565 = vpop.f32.mrb[0].mxu0
      %v7566 = vadd.f32 0.0, %v7565
      %v7567 = vpop.f32.mrb[0].mxu0
      %7568 = vmatprep.mubr.bf16.mxu0 0
      %7569 = vmatmul.mubr.bf16.gmra.mrb[0].mxu0 %v7509
      %v7570 = vpop.f32.mrb[0].mxu0
      %v7571 = vadd.f32 0.0, %v7570
      %v7572 = vpop.f32.mrb[0].mxu0
      %v7573 = vpop.f32.mrb[0].mxu0
      %v7574 = vadd.f32 0.0, %v7573
      %v7575 = vpop.f32.mrb[0].mxu0
      %7576 = vmatprep.mubr.bf16.mxu0 0
      %7577 = vmatmul.mubr.bf16.gmra.mrb[0].mxu0 %v7512
      %v7578 = vpop.f32.mrb[0].mxu0
      %v7579 = vadd.f32 0.0, %v7578
      %v7580 = vpop.f32.mrb[0].mxu0
      %v7581 = vpop.f32.mrb[0].mxu0
      %v7582 = vadd.f32 0.0, %v7581
      %v7583 = vpop.f32.mrb[0].mxu0
      %7584 = vmatprep.mubr.bf16.mxu0 0
      %7585 = vmatmul.mubr.bf16.gmra.mrb[0].mxu0 %v7515
      %v7586 = vpop.f32.mrb[0].mxu0
      %v7587 = vadd.f32 0.0, %v7586
      %v7588 = vpop.f32.mrb[0].mxu0
      %v7589 = vpop.f32.mrb[0].mxu0
      %v7590 = vpop.f32.mrb[0].mxu0
      %7591 = vdwg.mxu0
      %v7592 = vrcp.pop %v7050
      %v7593 = vrcp.pop %v7053
      %v7594 = vrcp.pop %v7056
      %v7595 = vrcp.pop %v7059
      %v7596 = vrcp.pop %v7062
      %v7597 = vrcp.pop %v7065
      %v7598 = vrcp.pop %v7068
      %v7599 = vrcp.pop %v7071
      %v7600 = vrcp.pop %v7074
      %v7601 = vrcp.pop %v7077
      %v7602 = vrcp.pop %v7080
      %v7603 = vrcp.pop %v7083
      %v7604 = vrcp.pop %v7086
      %v7605 = vrcp.pop %v7089
      %v7606 = vrcp.pop %v7092
      %v7607 = vrcp.pop %v7095
      %v7608 = vrcp.pop %v7098
      %v7609 = vrcp.pop %v7101
      %v7610 = vrcp.pop %v7104
      %v7611 = vrcp.pop %v7107
      %v7612 = vrcp.pop %v7110
      %v7613 = vrcp.pop %v7113
      %v7614 = vrcp.pop %v7116
      %v7615 = vrcp.pop %v7119
      %v7616 = vrcp.pop %v7122
      %v7617 = vrcp.pop %v7125
      %v7618 = vrcp.pop %v7128
      %v7619 = vrcp.pop %v7131
      %v7620 = vrcp.pop %v7134
      %v7621 = vrcp.pop %v7137
      %v7622 = vrcp.pop %v7140
      %v7623 = vrcp.pop %v7143
      %v7624 = vrcp.pop %v7146
      %v7625 = vrcp.pop %v7149
      %v7626 = vrcp.pop %v7152
      %v7627 = vrcp.pop %v7155
      %v7628 = vmul.f32 %v7243, %v7592
      %v7629 = vmul.f32 %v7246, %v7593
      %v7630 = vmul.f32 %v7251, %v7594
      %v7631 = vmul.f32 %v7254, %v7595
      %v7632 = vmul.f32 %v7259, %v7596
      %v7633 = vmul.f32 %v7262, %v7597
      %v7634 = vmul.f32 %v7267, %v7598
      %v7635 = vmul.f32 %v7270, %v7599
      %v7636 = vmul.f32 %v7275, %v7600
      %v7637 = vmul.f32 %v7347, %v7601
      %v7638 = vmul.f32 %v7350, %v7602
      %v7639 = vmul.f32 %v7355, %v7603
      %v7640 = vmul.f32 %v7358, %v7604
      %v7641 = vmul.f32 %v7363, %v7605
      %v7642 = vmul.f32 %v7366, %v7606
      %v7643 = vmul.f32 %v7371, %v7607
      %v7644 = vmul.f32 %v7374, %v7608
      %v7645 = vmul.f32 %v7379, %v7609
      %v7646 = vmul.f32 %v7451, %v7610
      %v7647 = vmul.f32 %v7454, %v7611
      %v7648 = vmul.f32 %v7459, %v7612
      %v7649 = vmul.f32 %v7462, %v7613
      %v7650 = vmul.f32 %v7467, %v7614
      %v7651 = vmul.f32 %v7470, %v7615
      %v7652 = vmul.f32 %v7475, %v7616
      %v7653 = vmul.f32 %v7478, %v7617
      %v7654 = vmul.f32 %v7483, %v7618
      %v7655 = vmul.f32 %v7555, %v7619
      %v7656 = vmul.f32 %v7558, %v7620
      %v7657 = vmul.f32 %v7563, %v7621
      %v7658 = vmul.f32 %v7566, %v7622
      %v7659 = vmul.f32 %v7571, %v7623
      %v7660 = vmul.f32 %v7574, %v7624
      %v7661 = vmul.f32 %v7579, %v7625
      %v7662 = vmul.f32 %v7582, %v7626
      %v7663 = vmul.f32 %v7587, %v7627
      %7700 = vrot.lane.b32.xlu0 %v7628, 32
      %v7701 = vpop.permute.xlu0 %7700
      %7702 = vrot.lane.b32.xlu0 %v7629, 32
      %v7703 = vpop.permute.xlu0 %7702
      %7704 = vrot.lane.b32.xlu0 %v7630, 32
      %v7705 = vpop.permute.xlu0 %7704
      %7706 = vrot.lane.b32.xlu0 %v7631, 32
      %v7707 = vpop.permute.xlu0 %7706
      %7708 = vrot.lane.b32.xlu0 %v7632, 32
      %v7709 = vpop.permute.xlu0 %7708
      %7710 = vrot.lane.b32.xlu0 %v7633, 32
      %v7711 = vpop.permute.xlu0 %7710
      %7712 = vrot.lane.b32.xlu0 %v7634, 32
      %v7713 = vpop.permute.xlu0 %7712
      %7714 = vrot.lane.b32.xlu0 %v7635, 32
      %v7715 = vpop.permute.xlu0 %7714
      %7716 = vrot.lane.b32.xlu0 %v7636, 32
      %v7717 = vpop.permute.xlu0 %7716
      %7718 = vrot.lane.b32.xlu0 %v7637, 32
      %v7719 = vpop.permute.xlu0 %7718
      %7720 = vrot.lane.b32.xlu0 %v7638, 32
      %v7721 = vpop.permute.xlu0 %7720
      %7722 = vrot.lane.b32.xlu0 %v7639, 32
      %v7723 = vpop.permute.xlu0 %7722
      %7724 = vrot.lane.b32.xlu0 %v7640, 32
      %v7725 = vpop.permute.xlu0 %7724
      %7726 = vrot.lane.b32.xlu0 %v7641, 32
      %v7727 = vpop.permute.xlu0 %7726
      %7728 = vrot.lane.b32.xlu0 %v7642, 32
      %v7729 = vpop.permute.xlu0 %7728
      %7730 = vrot.lane.b32.xlu0 %v7643, 32
      %v7731 = vpop.permute.xlu0 %7730
      %7732 = vrot.lane.b32.xlu0 %v7644, 32
      %v7733 = vpop.permute.xlu0 %7732
      %7734 = vrot.lane.b32.xlu0 %v7645, 32
      %v7735 = vpop.permute.xlu0 %7734
      %7736 = vrot.lane.b32.xlu0 %v7646, 32
      %v7737 = vpop.permute.xlu0 %7736
      %7738 = vrot.lane.b32.xlu0 %v7647, 32
      %v7739 = vpop.permute.xlu0 %7738
      %7740 = vrot.lane.b32.xlu0 %v7648, 32
      %v7741 = vpop.permute.xlu0 %7740
      %7742 = vrot.lane.b32.xlu0 %v7649, 32
      %v7743 = vpop.permute.xlu0 %7742
      %7744 = vrot.lane.b32.xlu0 %v7650, 32
      %v7745 = vpop.permute.xlu0 %7744
      %7746 = vrot.lane.b32.xlu0 %v7651, 32
      %v7747 = vpop.permute.xlu0 %7746
      %7748 = vrot.lane.b32.xlu0 %v7652, 32
      %v7749 = vpop.permute.xlu0 %7748
      %7750 = vrot.lane.b32.xlu0 %v7653, 32
      %v7751 = vpop.permute.xlu0 %7750
      %7752 = vrot.lane.b32.xlu0 %v7654, 32
      %v7753 = vpop.permute.xlu0 %7752
      %7754 = vrot.lane.b32.xlu0 %v7655, 32
      %v7755 = vpop.permute.xlu0 %7754
      %7756 = vrot.lane.b32.xlu0 %v7656, 32
      %v7757 = vpop.permute.xlu0 %7756
      %7758 = vrot.lane.b32.xlu0 %v7657, 32
      %v7759 = vpop.permute.xlu0 %7758
      %7760 = vrot.lane.b32.xlu0 %v7658, 32
      %v7761 = vpop.permute.xlu0 %7760
      %7762 = vrot.lane.b32.xlu0 %v7659, 32
      %v7763 = vpop.permute.xlu0 %7762
      %7764 = vrot.lane.b32.xlu0 %v7660, 32
      %v7765 = vpop.permute.xlu0 %7764
      %7766 = vrot.lane.b32.xlu0 %v7661, 32
      %v7767 = vpop.permute.xlu0 %7766
      %7768 = vrot.lane.b32.xlu0 %v7662, 32
      %v7769 = vpop.permute.xlu0 %7768
      %7770 = vrot.lane.b32.xlu0 %v7663, 32
      %v7771 = vpop.permute.xlu0 %7770
      %vm7808 = vcmask 392448
      %7809 = vst.msk [vmem:[#allocation2] sm:$0xff] %vm7808, %v7701
      %7810 = vst.msk [vmem:[#allocation2 + $0x8] sm:$0xff] %vm7808, %v7703
      %7811 = vst.msk [vmem:[#allocation2 + $0x10] sm:$0xff] %vm7808, %v7705
      %7812 = vst.msk [vmem:[#allocation2 + $0x18] sm:$0xff] %vm7808, %v7707
      %7813 = vst.msk [vmem:[#allocation2 + $0x20] sm:$0xff] %vm7808, %v7709
      %7814 = vst.msk [vmem:[#allocation2 + $0x28] sm:$0xff] %vm7808, %v7711
      %7815 = vst.msk [vmem:[#allocation2 + $0x30] sm:$0xff] %vm7808, %v7713
      %7816 = vst.msk [vmem:[#allocation2 + $0x38] sm:$0xff] %vm7808, %v7715
      %7817 = vst.msk [vmem:[#allocation2 + $0x40] sm:$0xff] %vm7808, %v7717
      %7818 = vst.msk [vmem:[#allocation2 + $0x48] sm:$0xff] %vm7808, %v7719
      %7819 = vst.msk [vmem:[#allocation2 + $0x50] sm:$0xff] %vm7808, %v7721
      %7820 = vst.msk [vmem:[#allocation2 + $0x58] sm:$0xff] %vm7808, %v7723
      %7821 = vst.msk [vmem:[#allocation2 + $0x60] sm:$0xff] %vm7808, %v7725
      %7822 = vst.msk [vmem:[#allocation2 + $0x68] sm:$0xff] %vm7808, %v7727
      %7823 = vst.msk [vmem:[#allocation2 + $0x70] sm:$0xff] %vm7808, %v7729
      %7824 = vst.msk [vmem:[#allocation2 + $0x78] sm:$0xff] %vm7808, %v7731
      %7825 = vst.msk [vmem:[#allocation2 + $0x80] sm:$0xff] %vm7808, %v7733
      %7826 = vst.msk [vmem:[#allocation2 + $0x88] sm:$0xff] %vm7808, %v7735
      %7827 = vst.msk [vmem:[#allocation2 + $0x90] sm:$0xff] %vm7808, %v7737
      %7828 = vst.msk [vmem:[#allocation2 + $0x98] sm:$0xff] %vm7808, %v7739
      %7829 = vst.msk [vmem:[#allocation2 + $0xa0] sm:$0xff] %vm7808, %v7741
      %7830 = vst.msk [vmem:[#allocation2 + $0xa8] sm:$0xff] %vm7808, %v7743
      %7831 = vst.msk [vmem:[#allocation2 + $0xb0] sm:$0xff] %vm7808, %v7745
      %7832 = vst.msk [vmem:[#allocation2 + $0xb8] sm:$0xff] %vm7808, %v7747
      %7833 = vst.msk [vmem:[#allocation2 + $0xc0] sm:$0xff] %vm7808, %v7749
      %7834 = vst.msk [vmem:[#allocation2 + $0xc8] sm:$0xff] %vm7808, %v7751
      %7835 = vst.msk [vmem:[#allocation2 + $0xd0] sm:$0xff] %vm7808, %v7753
      %7836 = vst.msk [vmem:[#allocation2 + $0xd8] sm:$0xff] %vm7808, %v7755
      %7837 = vst.msk [vmem:[#allocation2 + $0xe0] sm:$0xff] %vm7808, %v7757
      %7838 = vst.msk [vmem:[#allocation2 + $0xe8] sm:$0xff] %vm7808, %v7759
      %7839 = vst.msk [vmem:[#allocation2 + $0xf0] sm:$0xff] %vm7808, %v7761
      %7840 = vst.msk [vmem:[#allocation2 + $0xf8] sm:$0xff] %vm7808, %v7763
      %7841 = vst.msk [vmem:[#allocation2 + $0x100] sm:$0xff] %vm7808, %v7765
      %7842 = vst.msk [vmem:[#allocation2 + $0x108] sm:$0xff] %vm7808, %v7767
      %7843 = vst.msk [vmem:[#allocation2 + $0x110] sm:$0xff] %vm7808, %v7769
      %7844 = vst.msk [vmem:[#allocation2 + $0x118] sm:$0xff] %vm7808, %v7771
      %s7845 = scalar_lea.vmem %s7, 108
      %v7846 = vld [vmem:[%s7845] sm:$0xf]
      %v7847 = vld [vmem:[%s7845 + $0x4] sm:$0xf]
      %v7848 = vld [vmem:[%s7845 + $0x8] sm:$0xf]
      %v7849 = vld [vmem:[%s7845 + $0xc] sm:$0xf]
      %v7850 = vld [vmem:[%s7845 + $0x10] sm:$0xf]
      %v7851 = vld [vmem:[%s7845 + $0x14] sm:$0xf]
      %v7852 = vld [vmem:[%s7845 + $0x18] sm:$0xf]
      %v7853 = vld [vmem:[%s7845 + $0x1c] sm:$0xf]
      %v7854 = vld [vmem:[%s7845 + $0x20] sm:$0xf]
      %v7855 = vunpack.c.l.bf16 %v7846
      %v7856 = vunpack.c.l.bf16 %v7847
      %v7857 = vunpack.c.l.bf16 %v7848
      %v7858 = vunpack.c.l.bf16 %v7849
      %v7859 = vunpack.c.l.bf16 %v7850
      %v7860 = vunpack.c.l.bf16 %v7851
      %v7861 = vunpack.c.l.bf16 %v7852
      %v7862 = vunpack.c.l.bf16 %v7853
      %v7863 = vunpack.c.l.bf16 %v7854
      %7864 = vrot.lane.b32.xlu0 %v3466, 80
      %v7865 = vpop.permute.xlu0 %7864
      %7866 = vrot.lane.b32.xlu0 %v3467, 80
      %v7867 = vpop.permute.xlu0 %7866
      %7868 = vrot.lane.b32.xlu0 %v3468, 80
      %v7869 = vpop.permute.xlu0 %7868
      %7870 = vrot.lane.b32.xlu0 %v3469, 80
      %v7871 = vpop.permute.xlu0 %7870
      %7872 = vrot.lane.b32.xlu0 %v3470, 80
      %v7873 = vpop.permute.xlu0 %7872
      %7874 = vrot.lane.b32.xlu0 %v3471, 16
      %v7875 = vpop.permute.xlu0 %7874
      %7876 = vrot.lane.b32.xlu0 %v3472, 16
      %v7877 = vpop.permute.xlu0 %7876
      %7878 = vrot.lane.b32.xlu0 %v3473, 16
      %v7879 = vpop.permute.xlu0 %7878
      %7880 = vrot.lane.b32.xlu0 %v3474, 16
      %v7881 = vpop.permute.xlu0 %7880
      %7882 = vrot.lane.b32.xlu0 %v3475, 16
      %v7883 = vpop.permute.xlu0 %7882
      %v7885 = vsel %vm3486, %v7865, 0
      %v7888 = vsel %vm3486, %v7867, 0
      %v7891 = vsel %vm3486, %v7869, 0
      %v7894 = vsel %vm3486, %v7871, 0
      %v7897 = vsel %vm3486, %v7873, 0
      %v7900 = vsel %vm3486, %v7875, 0
      %v7903 = vsel %vm3486, %v7877, 0
      %v7906 = vsel %vm3486, %v7879, 0
      %v7909 = vsel %vm3486, %v7881, 0
      %v7912 = vsel %vm3486, %v7883, 0
      %7914 = vmatprep.subr.bf16.mxu0 0
      %7915 = vmatpush1.bf16.xpose.msra.mxu0 %v7900
      %7916 = vmatprep.subr.bf16.mxu0 0
      %7917 = vmatpush1.bf16.xpose.msra.mxu0 %v7903
      %7918 = vmatprep.subr.bf16.mxu0 0
      %7919 = vmatpush1.bf16.xpose.msra.mxu0 %v7906
      %7920 = vmatprep.subr.bf16.mxu0 0
      %7921 = vmatpush1.bf16.xpose.msra.mxu0 %v7909
      %7922 = vmatprep.subr.bf16.mxu0 0
      %7923 = vmatpush1.bf16.xpose.msra.mxu0 %v7912
      %7924 = vmatprep.subr.bf16.mxu0 0
      %7925 = vmatpush1.bf16.xpose.msra.mxu0 0
      %7926 = vmatprep.subr.bf16.mxu0 0
      %7927 = vmatpush1.bf16.xpose.msra.mxu0 0
      %7928 = vmatprep.subr.bf16.mxu0 0
      %7929 = vmatpush1.bf16.xpose.msra.mxu0 0
      %7930 = vmatprep.subr.bf16.mxu0 0
      %7931 = vmatpush1.bf16.xpose.msra.mxu0 0
      %7932 = vmatprep.subr.bf16.mxu0 0
      %7933 = vmatpush1.bf16.xpose.msra.mxu0 0
      %7934 = vmatprep.subr.bf16.mxu0 0
      %7935 = vmatpush1.bf16.xpose.msra.mxu0 0
      %7936 = vmatprep.subr.bf16.mxu0 0
      %7937 = vmatpush1.bf16.xpose.msra.mxu0 0
      %7938 = vmatprep.subr.bf16.mxu0 0
      %7939 = vmatpush1.bf16.xpose.msra.mxu0 0
      %7940 = vmatprep.subr.bf16.mxu0 0
      %7941 = vmatpush1.bf16.xpose.msra.mxu0 0
      %7942 = vmatprep.subr.bf16.mxu0 0
      %7943 = vmatpush1.bf16.xpose.msra.mxu0 0
      %7944 = vmatprep.subr.bf16.mxu0 0
      %7945 = vmatpush1.bf16.xpose.msra.mxu0 0
      %7946 = vmatprep.mubr.bf16.mxu0 0
      %7947 = vmatmul.mubr.bf16.gmra.mrb[0].mxu0 %v7885
      %v7948 = vpop.f32.mrb[0].mxu0
      %v7949 = vadd.f32 %v7855, %v7948
      %v7950 = vpop.f32.mrb[0].mxu0
      %v7951 = vpop.f32.mrb[0].mxu0
      %v7952 = vadd.f32 %v7856, %v7951
      %v7953 = vpop.f32.mrb[0].mxu0
      %7954 = vmatprep.mubr.bf16.mxu0 0
      %7955 = vmatmul.mubr.bf16.gmra.mrb[0].mxu0 %v7888
      %v7956 = vpop.f32.mrb[0].mxu0
      %v7957 = vadd.f32 %v7857, %v7956
      %v7958 = vpop.f32.mrb[0].mxu0
      %v7959 = vpop.f32.mrb[0].mxu0
      %v7960 = vadd.f32 %v7858, %v7959
      %v7961 = vpop.f32.mrb[0].mxu0
      %7962 = vmatprep.mubr.bf16.mxu0 0
      %7963 = vmatmul.mubr.bf16.gmra.mrb[0].mxu0 %v7891
      %v7964 = vpop.f32.mrb[0].mxu0
      %v7965 = vadd.f32 %v7859, %v7964
      %v7966 = vpop.f32.mrb[0].mxu0
      %v7967 = vpop.f32.mrb[0].mxu0
      %v7968 = vadd.f32 %v7860, %v7967
      %v7969 = vpop.f32.mrb[0].mxu0
      %7970 = vmatprep.mubr.bf16.mxu0 0
      %7971 = vmatmul.mubr.bf16.gmra.mrb[0].mxu0 %v7894
      %v7972 = vpop.f32.mrb[0].mxu0
      %v7973 = vadd.f32 %v7861, %v7972
      %v7974 = vpop.f32.mrb[0].mxu0
      %v7975 = vpop.f32.mrb[0].mxu0
      %v7976 = vadd.f32 %v7862, %v7975
      %v7977 = vpop.f32.mrb[0].mxu0
      %7978 = vmatprep.mubr.bf16.mxu0 0
      %7979 = vmatmul.mubr.bf16.gmra.mrb[0].mxu0 %v7897
      %v7980 = vpop.f32.mrb[0].mxu0
      %v7981 = vadd.f32 %v7863, %v7980
      %v7982 = vpop.f32.mrb[0].mxu0
      %v7983 = vpop.f32.mrb[0].mxu0
      %v7984 = vpop.f32.mrb[0].mxu0
      %7985 = vdwg.mxu0
      %7986 = vrot.lane.b32.xlu0 %v3589, 80
      %v7987 = vpop.permute.xlu0 %7986
      %7988 = vrot.lane.b32.xlu0 %v3590, 80
      %v7989 = vpop.permute.xlu0 %7988
      %7990 = vrot.lane.b32.xlu0 %v3591, 80
      %v7991 = vpop.permute.xlu0 %7990
      %7992 = vrot.lane.b32.xlu0 %v3592, 80
      %v7993 = vpop.permute.xlu0 %7992
      %7994 = vrot.lane.b32.xlu0 %v3593, 80
      %v7995 = vpop.permute.xlu0 %7994
      %7996 = vrot.lane.b32.xlu0 %v3594, 16
      %v7997 = vpop.permute.xlu0 %7996
      %7998 = vrot.lane.b32.xlu0 %v3595, 16
      %v7999 = vpop.permute.xlu0 %7998
      %8000 = vrot.lane.b32.xlu0 %v3596, 16
      %v8001 = vpop.permute.xlu0 %8000
      %8002 = vrot.lane.b32.xlu0 %v3597, 16
      %v8003 = vpop.permute.xlu0 %8002
      %8004 = vrot.lane.b32.xlu0 %v3598, 16
      %v8005 = vpop.permute.xlu0 %8004
      %v8007 = vsel %vm3486, %v7987, 0
      %v8010 = vsel %vm3486, %v7989, 0
      %v8013 = vsel %vm3486, %v7991, 0
      %v8016 = vsel %vm3486, %v7993, 0
      %v8019 = vsel %vm3486, %v7995, 0
      %v8022 = vsel %vm3486, %v7997, 0
      %v8025 = vsel %vm3486, %v7999, 0
      %v8028 = vsel %vm3486, %v8001, 0
      %v8031 = vsel %vm3486, %v8003, 0
      %v8034 = vsel %vm3486, %v8005, 0
      %8036 = vmatprep.subr.bf16.mxu0 0
      %8037 = vmatpush1.bf16.xpose.msra.mxu0 %v8022
      %8038 = vmatprep.subr.bf16.mxu0 0
      %8039 = vmatpush1.bf16.xpose.msra.mxu0 %v8025
      %8040 = vmatprep.subr.bf16.mxu0 0
      %8041 = vmatpush1.bf16.xpose.msra.mxu0 %v8028
      %8042 = vmatprep.subr.bf16.mxu0 0
      %8043 = vmatpush1.bf16.xpose.msra.mxu0 %v8031
      %8044 = vmatprep.subr.bf16.mxu0 0
      %8045 = vmatpush1.bf16.xpose.msra.mxu0 %v8034
      %8046 = vmatprep.subr.bf16.mxu0 0
      %8047 = vmatpush1.bf16.xpose.msra.mxu0 0
      %8048 = vmatprep.subr.bf16.mxu0 0
      %8049 = vmatpush1.bf16.xpose.msra.mxu0 0
      %8050 = vmatprep.subr.bf16.mxu0 0
      %8051 = vmatpush1.bf16.xpose.msra.mxu0 0
      %8052 = vmatprep.subr.bf16.mxu0 0
      %8053 = vmatpush1.bf16.xpose.msra.mxu0 0
      %8054 = vmatprep.subr.bf16.mxu0 0
      %8055 = vmatpush1.bf16.xpose.msra.mxu0 0
      %8056 = vmatprep.subr.bf16.mxu0 0
      %8057 = vmatpush1.bf16.xpose.msra.mxu0 0
      %8058 = vmatprep.subr.bf16.mxu0 0
      %8059 = vmatpush1.bf16.xpose.msra.mxu0 0
      %8060 = vmatprep.subr.bf16.mxu0 0
      %8061 = vmatpush1.bf16.xpose.msra.mxu0 0
      %8062 = vmatprep.subr.bf16.mxu0 0
      %8063 = vmatpush1.bf16.xpose.msra.mxu0 0
      %8064 = vmatprep.subr.bf16.mxu0 0
      %8065 = vmatpush1.bf16.xpose.msra.mxu0 0
      %8066 = vmatprep.subr.bf16.mxu0 0
      %8067 = vmatpush1.bf16.xpose.msra.mxu0 0
      %8068 = vmatprep.mubr.bf16.mxu0 0
      %8069 = vmatmul.mubr.bf16.gmra.mrb[0].mxu0 %v8007
      %v8070 = vpop.f32.mrb[0].mxu0
      %v8071 = vadd.f32 %v7855, %v8070
      %v8072 = vpop.f32.mrb[0].mxu0
      %v8073 = vpop.f32.mrb[0].mxu0
      %v8074 = vadd.f32 %v7856, %v8073
      %v8075 = vpop.f32.mrb[0].mxu0
      %8076 = vmatprep.mubr.bf16.mxu0 0
      %8077 = vmatmul.mubr.bf16.gmra.mrb[0].mxu0 %v8010
      %v8078 = vpop.f32.mrb[0].mxu0
      %v8079 = vadd.f32 %v7857, %v8078
      %v8080 = vpop.f32.mrb[0].mxu0
      %v8081 = vpop.f32.mrb[0].mxu0
      %v8082 = vadd.f32 %v7858, %v8081
      %v8083 = vpop.f32.mrb[0].mxu0
      %8084 = vmatprep.mubr.bf16.mxu0 0
      %8085 = vmatmul.mubr.bf16.gmra.mrb[0].mxu0 %v8013
      %v8086 = vpop.f32.mrb[0].mxu0
      %v8087 = vadd.f32 %v7859, %v8086
      %v8088 = vpop.f32.mrb[0].mxu0
      %v8089 = vpop.f32.mrb[0].mxu0
      %v8090 = vadd.f32 %v7860, %v8089
      %v8091 = vpop.f32.mrb[0].mxu0
      %8092 = vmatprep.mubr.bf16.mxu0 0
      %8093 = vmatmul.mubr.bf16.gmra.mrb[0].mxu0 %v8016
      %v8094 = vpop.f32.mrb[0].mxu0
      %v8095 = vadd.f32 %v7861, %v8094
      %v8096 = vpop.f32.mrb[0].mxu0
      %v8097 = vpop.f32.mrb[0].mxu0
      %v8098 = vadd.f32 %v7862, %v8097
      %v8099 = vpop.f32.mrb[0].mxu0
      %8100 = vmatprep.mubr.bf16.mxu0 0
      %8101 = vmatmul.mubr.bf16.gmra.mrb[0].mxu0 %v8019
      %v8102 = vpop.f32.mrb[0].mxu0
      %v8103 = vadd.f32 %v7863, %v8102
      %v8104 = vpop.f32.mrb[0].mxu0
      %v8105 = vpop.f32.mrb[0].mxu0
      %v8106 = vpop.f32.mrb[0].mxu0
      %8107 = vdwg.mxu0
      %8108 = vrot.lane.b32.xlu0 %v3711, 80
      %v8109 = vpop.permute.xlu0 %8108
      %8110 = vrot.lane.b32.xlu0 %v3712, 80
      %v8111 = vpop.permute.xlu0 %8110
      %8112 = vrot.lane.b32.xlu0 %v3713, 80
      %v8113 = vpop.permute.xlu0 %8112
      %8114 = vrot.lane.b32.xlu0 %v3714, 80
      %v8115 = vpop.permute.xlu0 %8114
      %8116 = vrot.lane.b32.xlu0 %v3715, 80
      %v8117 = vpop.permute.xlu0 %8116
      %8118 = vrot.lane.b32.xlu0 %v3716, 16
      %v8119 = vpop.permute.xlu0 %8118
      %8120 = vrot.lane.b32.xlu0 %v3717, 16
      %v8121 = vpop.permute.xlu0 %8120
      %8122 = vrot.lane.b32.xlu0 %v3718, 16
      %v8123 = vpop.permute.xlu0 %8122
      %8124 = vrot.lane.b32.xlu0 %v3719, 16
      %v8125 = vpop.permute.xlu0 %8124
      %8126 = vrot.lane.b32.xlu0 %v3720, 16
      %v8127 = vpop.permute.xlu0 %8126
      %v8129 = vsel %vm3486, %v8109, 0
      %v8132 = vsel %vm3486, %v8111, 0
      %v8135 = vsel %vm3486, %v8113, 0
      %v8138 = vsel %vm3486, %v8115, 0
      %v8141 = vsel %vm3486, %v8117, 0
      %v8144 = vsel %vm3486, %v8119, 0
      %v8147 = vsel %vm3486, %v8121, 0
      %v8150 = vsel %vm3486, %v8123, 0
      %v8153 = vsel %vm3486, %v8125, 0
      %v8156 = vsel %vm3486, %v8127, 0
      %8158 = vmatprep.subr.bf16.mxu0 0
      %8159 = vmatpush1.bf16.xpose.msra.mxu0 %v8144
      %8160 = vmatprep.subr.bf16.mxu0 0
      %8161 = vmatpush1.bf16.xpose.msra.mxu0 %v8147
      %8162 = vmatprep.subr.bf16.mxu0 0
      %8163 = vmatpush1.bf16.xpose.msra.mxu0 %v8150
      %8164 = vmatprep.subr.bf16.mxu0 0
      %8165 = vmatpush1.bf16.xpose.msra.mxu0 %v8153
      %8166 = vmatprep.subr.bf16.mxu0 0
      %8167 = vmatpush1.bf16.xpose.msra.mxu0 %v8156
      %8168 = vmatprep.subr.bf16.mxu0 0
      %8169 = vmatpush1.bf16.xpose.msra.mxu0 0
      %8170 = vmatprep.subr.bf16.mxu0 0
      %8171 = vmatpush1.bf16.xpose.msra.mxu0 0
      %8172 = vmatprep.subr.bf16.mxu0 0
      %8173 = vmatpush1.bf16.xpose.msra.mxu0 0
      %8174 = vmatprep.subr.bf16.mxu0 0
      %8175 = vmatpush1.bf16.xpose.msra.mxu0 0
      %8176 = vmatprep.subr.bf16.mxu0 0
      %8177 = vmatpush1.bf16.xpose.msra.mxu0 0
      %8178 = vmatprep.subr.bf16.mxu0 0
      %8179 = vmatpush1.bf16.xpose.msra.mxu0 0
      %8180 = vmatprep.subr.bf16.mxu0 0
      %8181 = vmatpush1.bf16.xpose.msra.mxu0 0
      %8182 = vmatprep.subr.bf16.mxu0 0
      %8183 = vmatpush1.bf16.xpose.msra.mxu0 0
      %8184 = vmatprep.subr.bf16.mxu0 0
      %8185 = vmatpush1.bf16.xpose.msra.mxu0 0
      %8186 = vmatprep.subr.bf16.mxu0 0
      %8187 = vmatpush1.bf16.xpose.msra.mxu0 0
      %8188 = vmatprep.subr.bf16.mxu0 0
      %8189 = vmatpush1.bf16.xpose.msra.mxu0 0
      %8190 = vmatprep.mubr.bf16.mxu0 0
      %8191 = vmatmul.mubr.bf16.gmra.mrb[0].mxu0 %v8129
      %v8192 = vpop.f32.mrb[0].mxu0
      %v8193 = vadd.f32 %v7855, %v8192
      %v8194 = vpop.f32.mrb[0].mxu0
      %v8195 = vpop.f32.mrb[0].mxu0
      %v8196 = vadd.f32 %v7856, %v8195
      %v8197 = vpop.f32.mrb[0].mxu0
      %8198 = vmatprep.mubr.bf16.mxu0 0
      %8199 = vmatmul.mubr.bf16.gmra.mrb[0].mxu0 %v8132
      %v8200 = vpop.f32.mrb[0].mxu0
      %v8201 = vadd.f32 %v7857, %v8200
      %v8202 = vpop.f32.mrb[0].mxu0
      %v8203 = vpop.f32.mrb[0].mxu0
      %v8204 = vadd.f32 %v7858, %v8203
      %v8205 = vpop.f32.mrb[0].mxu0
      %8206 = vmatprep.mubr.bf16.mxu0 0
      %8207 = vmatmul.mubr.bf16.gmra.mrb[0].mxu0 %v8135
      %v8208 = vpop.f32.mrb[0].mxu0
      %v8209 = vadd.f32 %v7859, %v8208
      %v8210 = vpop.f32.mrb[0].mxu0
      %v8211 = vpop.f32.mrb[0].mxu0
      %v8212 = vadd.f32 %v7860, %v8211
      %v8213 = vpop.f32.mrb[0].mxu0
      %8214 = vmatprep.mubr.bf16.mxu0 0
      %8215 = vmatmul.mubr.bf16.gmra.mrb[0].mxu0 %v8138
      %v8216 = vpop.f32.mrb[0].mxu0
      %v8217 = vadd.f32 %v7861, %v8216
      %v8218 = vpop.f32.mrb[0].mxu0
      %v8219 = vpop.f32.mrb[0].mxu0
      %v8220 = vadd.f32 %v7862, %v8219
      %v8221 = vpop.f32.mrb[0].mxu0
      %8222 = vmatprep.mubr.bf16.mxu0 0
      %8223 = vmatmul.mubr.bf16.gmra.mrb[0].mxu0 %v8141
      %v8224 = vpop.f32.mrb[0].mxu0
      %v8225 = vadd.f32 %v7863, %v8224
      %v8226 = vpop.f32.mrb[0].mxu0
      %v8227 = vpop.f32.mrb[0].mxu0
      %v8228 = vpop.f32.mrb[0].mxu0
      %8229 = vdwg.mxu0
      %8230 = vrot.lane.b32.xlu0 %v3833, 80
      %v8231 = vpop.permute.xlu0 %8230
      %8232 = vrot.lane.b32.xlu0 %v3834, 80
      %v8233 = vpop.permute.xlu0 %8232
      %8234 = vrot.lane.b32.xlu0 %v3835, 80
      %v8235 = vpop.permute.xlu0 %8234
      %8236 = vrot.lane.b32.xlu0 %v3836, 80
      %v8237 = vpop.permute.xlu0 %8236
      %8238 = vrot.lane.b32.xlu0 %v3837, 80
      %v8239 = vpop.permute.xlu0 %8238
      %8240 = vrot.lane.b32.xlu0 %v3838, 16
      %v8241 = vpop.permute.xlu0 %8240
      %8242 = vrot.lane.b32.xlu0 %v3839, 16
      %v8243 = vpop.permute.xlu0 %8242
      %8244 = vrot.lane.b32.xlu0 %v3840, 16
      %v8245 = vpop.permute.xlu0 %8244
      %8246 = vrot.lane.b32.xlu0 %v3841, 16
      %v8247 = vpop.permute.xlu0 %8246
      %8248 = vrot.lane.b32.xlu0 %v3842, 16
      %v8249 = vpop.permute.xlu0 %8248
      %v8251 = vsel %vm3486, %v8231, 0
      %v8254 = vsel %vm3486, %v8233, 0
      %v8257 = vsel %vm3486, %v8235, 0
      %v8260 = vsel %vm3486, %v8237, 0
      %v8263 = vsel %vm3486, %v8239, 0
      %v8266 = vsel %vm3486, %v8241, 0
      %v8269 = vsel %vm3486, %v8243, 0
      %v8272 = vsel %vm3486, %v8245, 0
      %v8275 = vsel %vm3486, %v8247, 0
      %v8278 = vsel %vm3486, %v8249, 0
      %8280 = vmatprep.subr.bf16.mxu0 0
      %8281 = vmatpush1.bf16.xpose.msra.mxu0 %v8266
      %8282 = vmatprep.subr.bf16.mxu0 0
      %8283 = vmatpush1.bf16.xpose.msra.mxu0 %v8269
      %8284 = vmatprep.subr.bf16.mxu0 0
      %8285 = vmatpush1.bf16.xpose.msra.mxu0 %v8272
      %8286 = vmatprep.subr.bf16.mxu0 0
      %8287 = vmatpush1.bf16.xpose.msra.mxu0 %v8275
      %8288 = vmatprep.subr.bf16.mxu0 0
      %8289 = vmatpush1.bf16.xpose.msra.mxu0 %v8278
      %8290 = vmatprep.subr.bf16.mxu0 0
      %8291 = vmatpush1.bf16.xpose.msra.mxu0 0
      %8292 = vmatprep.subr.bf16.mxu0 0
      %8293 = vmatpush1.bf16.xpose.msra.mxu0 0
      %8294 = vmatprep.subr.bf16.mxu0 0
      %8295 = vmatpush1.bf16.xpose.msra.mxu0 0
      %8296 = vmatprep.subr.bf16.mxu0 0
      %8297 = vmatpush1.bf16.xpose.msra.mxu0 0
      %8298 = vmatprep.subr.bf16.mxu0 0
      %8299 = vmatpush1.bf16.xpose.msra.mxu0 0
      %8300 = vmatprep.subr.bf16.mxu0 0
      %8301 = vmatpush1.bf16.xpose.msra.mxu0 0
      %8302 = vmatprep.subr.bf16.mxu0 0
      %8303 = vmatpush1.bf16.xpose.msra.mxu0 0
      %8304 = vmatprep.subr.bf16.mxu0 0
      %8305 = vmatpush1.bf16.xpose.msra.mxu0 0
      %8306 = vmatprep.subr.bf16.mxu0 0
      %8307 = vmatpush1.bf16.xpose.msra.mxu0 0
      %8308 = vmatprep.subr.bf16.mxu0 0
      %8309 = vmatpush1.bf16.xpose.msra.mxu0 0
      %8310 = vmatprep.subr.bf16.mxu0 0
      %8311 = vmatpush1.bf16.xpose.msra.mxu0 0
      %8312 = vmatprep.mubr.bf16.mxu0 0
      %8313 = vmatmul.mubr.bf16.gmra.mrb[0].mxu0 %v8251
      %v8314 = vpop.f32.mrb[0].mxu0
      %v8315 = vadd.f32 %v7855, %v8314
      %v8316 = vpop.f32.mrb[0].mxu0
      %v8317 = vpop.f32.mrb[0].mxu0
      %v8318 = vadd.f32 %v7856, %v8317
      %v8319 = vpop.f32.mrb[0].mxu0
      %8320 = vmatprep.mubr.bf16.mxu0 0
      %8321 = vmatmul.mubr.bf16.gmra.mrb[0].mxu0 %v8254
      %v8322 = vpop.f32.mrb[0].mxu0
      %v8323 = vadd.f32 %v7857, %v8322
      %v8324 = vpop.f32.mrb[0].mxu0
      %v8325 = vpop.f32.mrb[0].mxu0
      %v8326 = vadd.f32 %v7858, %v8325
      %v8327 = vpop.f32.mrb[0].mxu0
      %8328 = vmatprep.mubr.bf16.mxu0 0
      %8329 = vmatmul.mubr.bf16.gmra.mrb[0].mxu0 %v8257
      %v8330 = vpop.f32.mrb[0].mxu0
      %v8331 = vadd.f32 %v7859, %v8330
      %v8332 = vpop.f32.mrb[0].mxu0
      %v8333 = vpop.f32.mrb[0].mxu0
      %v8334 = vadd.f32 %v7860, %v8333
      %v8335 = vpop.f32.mrb[0].mxu0
      %8336 = vmatprep.mubr.bf16.mxu0 0
      %8337 = vmatmul.mubr.bf16.gmra.mrb[0].mxu0 %v8260
      %v8338 = vpop.f32.mrb[0].mxu0
      %v8339 = vadd.f32 %v7861, %v8338
      %v8340 = vpop.f32.mrb[0].mxu0
      %v8341 = vpop.f32.mrb[0].mxu0
      %v8342 = vadd.f32 %v7862, %v8341
      %v8343 = vpop.f32.mrb[0].mxu0
      %8344 = vmatprep.mubr.bf16.mxu0 0
      %8345 = vmatmul.mubr.bf16.gmra.mrb[0].mxu0 %v8263
      %v8346 = vpop.f32.mrb[0].mxu0
      %v8347 = vadd.f32 %v7863, %v8346
      %v8348 = vpop.f32.mrb[0].mxu0
      %v8349 = vpop.f32.mrb[0].mxu0
      %v8350 = vpop.f32.mrb[0].mxu0
      %8351 = vdwg.mxu0
      %v8352 = vsel %vm3955, %v7949, -inf
      %8353 = vmax.xlane.f32.xlu0 %v8352
      %v8354 = vpop.xlane.xlu0 %8353
      %v8355 = vsel %vm3955, %v7952, -inf
      %8356 = vmax.xlane.f32.xlu0 %v8355
      %v8357 = vpop.xlane.xlu0 %8356
      %v8358 = vsel %vm3955, %v7957, -inf
      %8359 = vmax.xlane.f32.xlu0 %v8358
      %v8360 = vpop.xlane.xlu0 %8359
      %v8361 = vsel %vm3955, %v7960, -inf
      %8362 = vmax.xlane.f32.xlu0 %v8361
      %v8363 = vpop.xlane.xlu0 %8362
      %v8364 = vsel %vm3955, %v7965, -inf
      %8365 = vmax.xlane.f32.xlu0 %v8364
      %v8366 = vpop.xlane.xlu0 %8365
      %v8367 = vsel %vm3955, %v7968, -inf
      %8368 = vmax.xlane.f32.xlu0 %v8367
      %v8369 = vpop.xlane.xlu0 %8368
      %v8370 = vsel %vm3955, %v7973, -inf
      %8371 = vmax.xlane.f32.xlu0 %v8370
      %v8372 = vpop.xlane.xlu0 %8371
      %v8373 = vsel %vm3955, %v7976, -inf
      %8374 = vmax.xlane.f32.xlu0 %v8373
      %v8375 = vpop.xlane.xlu0 %8374
      %v8376 = vsel %vm3955, %v7981, -inf
      %8377 = vmax.xlane.f32.xlu0 %v8376
      %v8378 = vpop.xlane.xlu0 %8377
      %v8379 = vsel %vm3955, %v8071, -inf
      %8380 = vmax.xlane.f32.xlu0 %v8379
      %v8381 = vpop.xlane.xlu0 %8380
      %v8382 = vsel %vm3955, %v8074, -inf
      %8383 = vmax.xlane.f32.xlu0 %v8382
      %v8384 = vpop.xlane.xlu0 %8383
      %v8385 = vsel %vm3955, %v8079, -inf
      %8386 = vmax.xlane.f32.xlu0 %v8385
      %v8387 = vpop.xlane.xlu0 %8386
      %v8388 = vsel %vm3955, %v8082, -inf
      %8389 = vmax.xlane.f32.xlu0 %v8388
      %v8390 = vpop.xlane.xlu0 %8389
      %v8391 = vsel %vm3955, %v8087, -inf
      %8392 = vmax.xlane.f32.xlu0 %v8391
      %v8393 = vpop.xlane.xlu0 %8392
      %v8394 = vsel %vm3955, %v8090, -inf
      %8395 = vmax.xlane.f32.xlu0 %v8394
      %v8396 = vpop.xlane.xlu0 %8395
      %v8397 = vsel %vm3955, %v8095, -inf
      %8398 = vmax.xlane.f32.xlu0 %v8397
      %v8399 = vpop.xlane.xlu0 %8398
      %v8400 = vsel %vm3955, %v8098, -inf
      %8401 = vmax.xlane.f32.xlu0 %v8400
      %v8402 = vpop.xlane.xlu0 %8401
      %v8403 = vsel %vm3955, %v8103, -inf
      %8404 = vmax.xlane.f32.xlu0 %v8403
      %v8405 = vpop.xlane.xlu0 %8404
      %v8406 = vsel %vm3955, %v8193, -inf
      %8407 = vmax.xlane.f32.xlu0 %v8406
      %v8408 = vpop.xlane.xlu0 %8407
      %v8409 = vsel %vm3955, %v8196, -inf
      %8410 = vmax.xlane.f32.xlu0 %v8409
      %v8411 = vpop.xlane.xlu0 %8410
      %v8412 = vsel %vm3955, %v8201, -inf
      %8413 = vmax.xlane.f32.xlu0 %v8412
      %v8414 = vpop.xlane.xlu0 %8413
      %v8415 = vsel %vm3955, %v8204, -inf
      %8416 = vmax.xlane.f32.xlu0 %v8415
      %v8417 = vpop.xlane.xlu0 %8416
      %v8418 = vsel %vm3955, %v8209, -inf
      %8419 = vmax.xlane.f32.xlu0 %v8418
      %v8420 = vpop.xlane.xlu0 %8419
      %v8421 = vsel %vm3955, %v8212, -inf
      %8422 = vmax.xlane.f32.xlu0 %v8421
      %v8423 = vpop.xlane.xlu0 %8422
      %v8424 = vsel %vm3955, %v8217, -inf
      %8425 = vmax.xlane.f32.xlu0 %v8424
      %v8426 = vpop.xlane.xlu0 %8425
      %v8427 = vsel %vm3955, %v8220, -inf
      %8428 = vmax.xlane.f32.xlu0 %v8427
      %v8429 = vpop.xlane.xlu0 %8428
      %v8430 = vsel %vm3955, %v8225, -inf
      %8431 = vmax.xlane.f32.xlu0 %v8430
      %v8432 = vpop.xlane.xlu0 %8431
      %v8433 = vsel %vm3955, %v8315, -inf
      %8434 = vmax.xlane.f32.xlu0 %v8433
      %v8435 = vpop.xlane.xlu0 %8434
      %v8436 = vsel %vm3955, %v8318, -inf
      %8437 = vmax.xlane.f32.xlu0 %v8436
      %v8438 = vpop.xlane.xlu0 %8437
      %v8439 = vsel %vm3955, %v8323, -inf
      %8440 = vmax.xlane.f32.xlu0 %v8439
      %v8441 = vpop.xlane.xlu0 %8440
      %v8442 = vsel %vm3955, %v8326, -inf
      %8443 = vmax.xlane.f32.xlu0 %v8442
      %v8444 = vpop.xlane.xlu0 %8443
      %v8445 = vsel %vm3955, %v8331, -inf
      %8446 = vmax.xlane.f32.xlu0 %v8445
      %v8447 = vpop.xlane.xlu0 %8446
      %v8448 = vsel %vm3955, %v8334, -inf
      %8449 = vmax.xlane.f32.xlu0 %v8448
      %v8450 = vpop.xlane.xlu0 %8449
      %v8451 = vsel %vm3955, %v8339, -inf
      %8452 = vmax.xlane.f32.xlu0 %v8451
      %v8453 = vpop.xlane.xlu0 %8452
      %v8454 = vsel %vm3955, %v8342, -inf
      %8455 = vmax.xlane.f32.xlu0 %v8454
      %v8456 = vpop.xlane.xlu0 %8455
      %v8457 = vsel %vm3955, %v8347, -inf
      %8458 = vmax.xlane.f32.xlu0 %v8457
      %v8459 = vpop.xlane.xlu0 %8458
      %v8460 = vsub.f32 %v7949, %v8354
      %v8461 = vsub.f32 %v7952, %v8357
      %v8462 = vsub.f32 %v7957, %v8360
      %v8463 = vsub.f32 %v7960, %v8363
      %v8464 = vsub.f32 %v7965, %v8366
      %v8465 = vsub.f32 %v7968, %v8369
      %v8466 = vsub.f32 %v7973, %v8372
      %v8467 = vsub.f32 %v7976, %v8375
      %v8468 = vsub.f32 %v7981, %v8378
      %v8469 = vsub.f32 %v8071, %v8381
      %v8470 = vsub.f32 %v8074, %v8384
      %v8471 = vsub.f32 %v8079, %v8387
      %v8472 = vsub.f32 %v8082, %v8390
      %v8473 = vsub.f32 %v8087, %v8393
      %v8474 = vsub.f32 %v8090, %v8396
      %v8475 = vsub.f32 %v8095, %v8399
      %v8476 = vsub.f32 %v8098, %v8402
      %v8477 = vsub.f32 %v8103, %v8405
      %v8478 = vsub.f32 %v8193, %v8408
      %v8479 = vsub.f32 %v8196, %v8411
      %v8480 = vsub.f32 %v8201, %v8414
      %v8481 = vsub.f32 %v8204, %v8417
      %v8482 = vsub.f32 %v8209, %v8420
      %v8483 = vsub.f32 %v8212, %v8423
      %v8484 = vsub.f32 %v8217, %v8426
      %v8485 = vsub.f32 %v8220, %v8429
      %v8486 = vsub.f32 %v8225, %v8432
      %v8487 = vsub.f32 %v8315, %v8435
      %v8488 = vsub.f32 %v8318, %v8438
      %v8489 = vsub.f32 %v8323, %v8441
      %v8490 = vsub.f32 %v8326, %v8444
      %v8491 = vsub.f32 %v8331, %v8447
      %v8492 = vsub.f32 %v8334, %v8450
      %v8493 = vsub.f32 %v8339, %v8453
      %v8494 = vsub.f32 %v8342, %v8456
      %v8495 = vsub.f32 %v8347, %v8459
      %v8496 = vmul.f32 %v8460, 1.442695
      %v8497 = vpow.pop %v8496
      %v8498 = vmul.f32 %v8461, 1.442695
      %v8499 = vpow.pop %v8498
      %v8500 = vmul.f32 %v8462, 1.442695
      %v8501 = vpow.pop %v8500
      %v8502 = vmul.f32 %v8463, 1.442695
      %v8503 = vpow.pop %v8502
      %v8504 = vmul.f32 %v8464, 1.442695
      %v8505 = vpow.pop %v8504
      %v8506 = vmul.f32 %v8465, 1.442695
      %v8507 = vpow.pop %v8506
      %v8508 = vmul.f32 %v8466, 1.442695
      %v8509 = vpow.pop %v8508
      %v8510 = vmul.f32 %v8467, 1.442695
      %v8511 = vpow.pop %v8510
      %v8512 = vmul.f32 %v8468, 1.442695
      %v8513 = vpow.pop %v8512
      %v8514 = vmul.f32 %v8469, 1.442695
      %v8515 = vpow.pop %v8514
      %v8516 = vmul.f32 %v8470, 1.442695
      %v8517 = vpow.pop %v8516
      %v8518 = vmul.f32 %v8471, 1.442695
      %v8519 = vpow.pop %v8518
      %v8520 = vmul.f32 %v8472, 1.442695
      %v8521 = vpow.pop %v8520
      %v8522 = vmul.f32 %v8473, 1.442695
      %v8523 = vpow.pop %v8522
      %v8524 = vmul.f32 %v8474, 1.442695
      %v8525 = vpow.pop %v8524
      %v8526 = vmul.f32 %v8475, 1.442695
      %v8527 = vpow.pop %v8526
      %v8528 = vmul.f32 %v8476, 1.442695
      %v8529 = vpow.pop %v8528
      %v8530 = vmul.f32 %v8477, 1.442695
      %v8531 = vpow.pop %v8530
      %v8532 = vmul.f32 %v8478, 1.442695
      %v8533 = vpow.pop %v8532
      %v8534 = vmul.f32 %v8479, 1.442695
      %v8535 = vpow.pop %v8534
      %v8536 = vmul.f32 %v8480, 1.442695
      %v8537 = vpow.pop %v8536
      %v8538 = vmul.f32 %v8481, 1.442695
      %v8539 = vpow.pop %v8538
      %v8540 = vmul.f32 %v8482, 1.442695
      %v8541 = vpow.pop %v8540
      %v8542 = vmul.f32 %v8483, 1.442695
      %v8543 = vpow.pop %v8542
      %v8544 = vmul.f32 %v8484, 1.442695
      %v8545 = vpow.pop %v8544
      %v8546 = vmul.f32 %v8485, 1.442695
      %v8547 = vpow.pop %v8546
      %v8548 = vmul.f32 %v8486, 1.442695
      %v8549 = vpow.pop %v8548
      %v8550 = vmul.f32 %v8487, 1.442695
      %v8551 = vpow.pop %v8550
      %v8552 = vmul.f32 %v8488, 1.442695
      %v8553 = vpow.pop %v8552
      %v8554 = vmul.f32 %v8489, 1.442695
      %v8555 = vpow.pop %v8554
      %v8556 = vmul.f32 %v8490, 1.442695
      %v8557 = vpow.pop %v8556
      %v8558 = vmul.f32 %v8491, 1.442695
      %v8559 = vpow.pop %v8558
      %v8560 = vmul.f32 %v8492, 1.442695
      %v8561 = vpow.pop %v8560
      %v8562 = vmul.f32 %v8493, 1.442695
      %v8563 = vpow.pop %v8562
      %v8564 = vmul.f32 %v8494, 1.442695
      %v8565 = vpow.pop %v8564
      %v8566 = vmul.f32 %v8495, 1.442695
      %v8567 = vpow.pop %v8566
      %v8568 = vsel %vm3955, %v8497, 0.0
      %8569 = vadd.xlane.f32.xlu0 %v8568
      %v8570 = vpop.xlane.xlu0 %8569
      %v8571 = vsel %vm3955, %v8499, 0.0
      %8572 = vadd.xlane.f32.xlu0 %v8571
      %v8573 = vpop.xlane.xlu0 %8572
      %v8574 = vsel %vm3955, %v8501, 0.0
      %8575 = vadd.xlane.f32.xlu0 %v8574
      %v8576 = vpop.xlane.xlu0 %8575
      %v8577 = vsel %vm3955, %v8503, 0.0
      %8578 = vadd.xlane.f32.xlu0 %v8577
      %v8579 = vpop.xlane.xlu0 %8578
      %v8580 = vsel %vm3955, %v8505, 0.0
      %8581 = vadd.xlane.f32.xlu0 %v8580
      %v8582 = vpop.xlane.xlu0 %8581
      %v8583 = vsel %vm3955, %v8507, 0.0
      %8584 = vadd.xlane.f32.xlu0 %v8583
      %v8585 = vpop.xlane.xlu0 %8584
      %v8586 = vsel %vm3955, %v8509, 0.0
      %8587 = vadd.xlane.f32.xlu0 %v8586
      %v8588 = vpop.xlane.xlu0 %8587
      %v8589 = vsel %vm3955, %v8511, 0.0
      %8590 = vadd.xlane.f32.xlu0 %v8589
      %v8591 = vpop.xlane.xlu0 %8590
      %v8592 = vsel %vm3955, %v8513, 0.0
      %8593 = vadd.xlane.f32.xlu0 %v8592
      %v8594 = vpop.xlane.xlu0 %8593
      %v8595 = vsel %vm3955, %v8515, 0.0
      %8596 = vadd.xlane.f32.xlu0 %v8595
      %v8597 = vpop.xlane.xlu0 %8596
      %v8598 = vsel %vm3955, %v8517, 0.0
      %8599 = vadd.xlane.f32.xlu0 %v8598
      %v8600 = vpop.xlane.xlu0 %8599
      %v8601 = vsel %vm3955, %v8519, 0.0
      %8602 = vadd.xlane.f32.xlu0 %v8601
      %v8603 = vpop.xlane.xlu0 %8602
      %v8604 = vsel %vm3955, %v8521, 0.0
      %8605 = vadd.xlane.f32.xlu0 %v8604
      %v8606 = vpop.xlane.xlu0 %8605
      %v8607 = vsel %vm3955, %v8523, 0.0
      %8608 = vadd.xlane.f32.xlu0 %v8607
      %v8609 = vpop.xlane.xlu0 %8608
      %v8610 = vsel %vm3955, %v8525, 0.0
      %8611 = vadd.xlane.f32.xlu0 %v8610
      %v8612 = vpop.xlane.xlu0 %8611
      %v8613 = vsel %vm3955, %v8527, 0.0
      %8614 = vadd.xlane.f32.xlu0 %v8613
      %v8615 = vpop.xlane.xlu0 %8614
      %v8616 = vsel %vm3955, %v8529, 0.0
      %8617 = vadd.xlane.f32.xlu0 %v8616
      %v8618 = vpop.xlane.xlu0 %8617
      %v8619 = vsel %vm3955, %v8531, 0.0
      %8620 = vadd.xlane.f32.xlu0 %v8619
      %v8621 = vpop.xlane.xlu0 %8620
      %v8622 = vsel %vm3955, %v8533, 0.0
      %8623 = vadd.xlane.f32.xlu0 %v8622
      %v8624 = vpop.xlane.xlu0 %8623
      %v8625 = vsel %vm3955, %v8535, 0.0
      %8626 = vadd.xlane.f32.xlu0 %v8625
      %v8627 = vpop.xlane.xlu0 %8626
      %v8628 = vsel %vm3955, %v8537, 0.0
      %8629 = vadd.xlane.f32.xlu0 %v8628
      %v8630 = vpop.xlane.xlu0 %8629
      %v8631 = vsel %vm3955, %v8539, 0.0
      %8632 = vadd.xlane.f32.xlu0 %v8631
      %v8633 = vpop.xlane.xlu0 %8632
      %v8634 = vsel %vm3955, %v8541, 0.0
      %8635 = vadd.xlane.f32.xlu0 %v8634
      %v8636 = vpop.xlane.xlu0 %8635
      %v8637 = vsel %vm3955, %v8543, 0.0
      %8638 = vadd.xlane.f32.xlu0 %v8637
      %v8639 = vpop.xlane.xlu0 %8638
      %v8640 = vsel %vm3955, %v8545, 0.0
      %8641 = vadd.xlane.f32.xlu0 %v8640
      %v8642 = vpop.xlane.xlu0 %8641
      %v8643 = vsel %vm3955, %v8547, 0.0
      %8644 = vadd.xlane.f32.xlu0 %v8643
      %v8645 = vpop.xlane.xlu0 %8644
      %v8646 = vsel %vm3955, %v8549, 0.0
      %8647 = vadd.xlane.f32.xlu0 %v8646
      %v8648 = vpop.xlane.xlu0 %8647
      %v8649 = vsel %vm3955, %v8551, 0.0
      %8650 = vadd.xlane.f32.xlu0 %v8649
      %v8651 = vpop.xlane.xlu0 %8650
      %v8652 = vsel %vm3955, %v8553, 0.0
      %8653 = vadd.xlane.f32.xlu0 %v8652
      %v8654 = vpop.xlane.xlu0 %8653
      %v8655 = vsel %vm3955, %v8555, 0.0
      %8656 = vadd.xlane.f32.xlu0 %v8655
      %v8657 = vpop.xlane.xlu0 %8656
      %v8658 = vsel %vm3955, %v8557, 0.0
      %8659 = vadd.xlane.f32.xlu0 %v8658
      %v8660 = vpop.xlane.xlu0 %8659
      %v8661 = vsel %vm3955, %v8559, 0.0
      %8662 = vadd.xlane.f32.xlu0 %v8661
      %v8663 = vpop.xlane.xlu0 %8662
      %v8664 = vsel %vm3955, %v8561, 0.0
      %8665 = vadd.xlane.f32.xlu0 %v8664
      %v8666 = vpop.xlane.xlu0 %8665
      %v8667 = vsel %vm3955, %v8563, 0.0
      %8668 = vadd.xlane.f32.xlu0 %v8667
      %v8669 = vpop.xlane.xlu0 %8668
      %v8670 = vsel %vm3955, %v8565, 0.0
      %8671 = vadd.xlane.f32.xlu0 %v8670
      %v8672 = vpop.xlane.xlu0 %8671
      %v8673 = vsel %vm3955, %v8567, 0.0
      %8674 = vadd.xlane.f32.xlu0 %v8673
      %v8675 = vpop.xlane.xlu0 %8674
      %v8676 = vpack.c.bf16 %v8499, %v8497
      %v8677 = vpack.c.bf16 %v8503, %v8501
      %v8678 = vpack.c.bf16 %v8507, %v8505
      %v8679 = vpack.c.bf16 %v8511, %v8509
      %v8680 = vpack.c.bf16 %v8513, %v8513
      %v8681 = vpack.c.bf16 %v8517, %v8515
      %v8682 = vpack.c.bf16 %v8521, %v8519
      %v8683 = vpack.c.bf16 %v8525, %v8523
      %v8684 = vpack.c.bf16 %v8529, %v8527
      %v8685 = vpack.c.bf16 %v8531, %v8531
      %v8686 = vpack.c.bf16 %v8535, %v8533
      %v8687 = vpack.c.bf16 %v8539, %v8537
      %v8688 = vpack.c.bf16 %v8543, %v8541
      %v8689 = vpack.c.bf16 %v8547, %v8545
      %v8690 = vpack.c.bf16 %v8549, %v8549
      %v8691 = vpack.c.bf16 %v8553, %v8551
      %v8692 = vpack.c.bf16 %v8557, %v8555
      %v8693 = vpack.c.bf16 %v8561, %v8559
      %v8694 = vpack.c.bf16 %v8565, %v8563
      %v8695 = vpack.c.bf16 %v8567, %v8567
      %8696 = vrot.lane.b32.xlu0 %v4300, 80
      %v8697 = vpop.permute.xlu0 %8696
      %8698 = vrot.lane.b32.xlu0 %v4301, 80
      %v8699 = vpop.permute.xlu0 %8698
      %8700 = vrot.lane.b32.xlu0 %v4302, 80
      %v8701 = vpop.permute.xlu0 %8700
      %8702 = vrot.lane.b32.xlu0 %v4303, 80
      %v8703 = vpop.permute.xlu0 %8702
      %8704 = vrot.lane.b32.xlu0 %v4304, 80
      %v8705 = vpop.permute.xlu0 %8704
      %v8711 = vsel %vm3955, %v8676, 0
      %v8714 = vsel %vm3955, %v8677, 0
      %v8717 = vsel %vm3955, %v8678, 0
      %v8720 = vsel %vm3955, %v8679, 0
      %v8723 = vsel %vm3955, %v8680, 0
      %v8726 = vsel %vm4324, %v8705, 0
      %8728 = vmatprep.subr.bf16.mxu0 0
      %8729 = vmatpush1.bf16.msra.mxu0 %v8697
      %8730 = vmatprep.subr.bf16.mxu0 0
      %8731 = vmatpush1.bf16.msra.mxu0 %v8699
      %8732 = vmatprep.subr.bf16.mxu0 0
      %8733 = vmatpush1.bf16.msra.mxu0 %v8701
      %8734 = vmatprep.subr.bf16.mxu0 0
      %8735 = vmatpush1.bf16.msra.mxu0 %v8703
      %8736 = vmatprep.subr.bf16.mxu0 0
      %8737 = vmatpush1.bf16.msra.mxu0 %v8726
      %8738 = vmatprep.subr.bf16.mxu0 0
      %8739 = vmatpush1.bf16.msra.mxu0 0
      %8740 = vmatprep.subr.bf16.mxu0 0
      %8741 = vmatpush1.bf16.msra.mxu0 0
      %8742 = vmatprep.subr.bf16.mxu0 0
      %8743 = vmatpush1.bf16.msra.mxu0 0
      %8744 = vmatprep.subr.bf16.mxu0 0
      %8745 = vmatpush1.bf16.msra.mxu0 0
      %8746 = vmatprep.subr.bf16.mxu0 0
      %8747 = vmatpush1.bf16.msra.mxu0 0
      %8748 = vmatprep.subr.bf16.mxu0 0
      %8749 = vmatpush1.bf16.msra.mxu0 0
      %8750 = vmatprep.subr.bf16.mxu0 0
      %8751 = vmatpush1.bf16.msra.mxu0 0
      %8752 = vmatprep.subr.bf16.mxu0 0
      %8753 = vmatpush1.bf16.msra.mxu0 0
      %8754 = vmatprep.subr.bf16.mxu0 0
      %8755 = vmatpush1.bf16.msra.mxu0 0
      %8756 = vmatprep.subr.bf16.mxu0 0
      %8757 = vmatpush1.bf16.msra.mxu0 0
      %8758 = vmatprep.subr.bf16.mxu0 0
      %8759 = vmatpush1.bf16.msra.mxu0 0
      %8760 = vmatprep.mubr.bf16.mxu0 0
      %8761 = vmatmul.mubr.bf16.gmra.mrb[0].mxu0 %v8711
      %v8762 = vpop.f32.mrb[0].mxu0
      %v8763 = vadd.f32 0.0, %v8762
      %v8764 = vpop.f32.mrb[0].mxu0
      %v8765 = vpop.f32.mrb[0].mxu0
      %v8766 = vadd.f32 0.0, %v8765
      %v8767 = vpop.f32.mrb[0].mxu0
      %8768 = vmatprep.mubr.bf16.mxu0 0
      %8769 = vmatmul.mubr.bf16.gmra.mrb[0].mxu0 %v8714
      %v8770 = vpop.f32.mrb[0].mxu0
      %v8771 = vadd.f32 0.0, %v8770
      %v8772 = vpop.f32.mrb[0].mxu0
      %v8773 = vpop.f32.mrb[0].mxu0
      %v8774 = vadd.f32 0.0, %v8773
      %v8775 = vpop.f32.mrb[0].mxu0
      %8776 = vmatprep.mubr.bf16.mxu0 0
      %8777 = vmatmul.mubr.bf16.gmra.mrb[0].mxu0 %v8717
      %v8778 = vpop.f32.mrb[0].mxu0
      %v8779 = vadd.f32 0.0, %v8778
      %v8780 = vpop.f32.mrb[0].mxu0
      %v8781 = vpop.f32.mrb[0].mxu0
      %v8782 = vadd.f32 0.0, %v8781
      %v8783 = vpop.f32.mrb[0].mxu0
      %8784 = vmatprep.mubr.bf16.mxu0 0
      %8785 = vmatmul.mubr.bf16.gmra.mrb[0].mxu0 %v8720
      %v8786 = vpop.f32.mrb[0].mxu0
      %v8787 = vadd.f32 0.0, %v8786
      %v8788 = vpop.f32.mrb[0].mxu0
      %v8789 = vpop.f32.mrb[0].mxu0
      %v8790 = vadd.f32 0.0, %v8789
      %v8791 = vpop.f32.mrb[0].mxu0
      %8792 = vmatprep.mubr.bf16.mxu0 0
      %8793 = vmatmul.mubr.bf16.gmra.mrb[0].mxu0 %v8723
      %v8794 = vpop.f32.mrb[0].mxu0
      %v8795 = vadd.f32 0.0, %v8794
      %v8796 = vpop.f32.mrb[0].mxu0
      %v8797 = vpop.f32.mrb[0].mxu0
      %v8798 = vpop.f32.mrb[0].mxu0
      %8799 = vdwg.mxu0
      %8800 = vrot.lane.b32.xlu0 %v4400, 80
      %v8801 = vpop.permute.xlu0 %8800
      %8802 = vrot.lane.b32.xlu0 %v4401, 80
      %v8803 = vpop.permute.xlu0 %8802
      %8804 = vrot.lane.b32.xlu0 %v4402, 80
      %v8805 = vpop.permute.xlu0 %8804
      %8806 = vrot.lane.b32.xlu0 %v4403, 80
      %v8807 = vpop.permute.xlu0 %8806
      %8808 = vrot.lane.b32.xlu0 %v4404, 80
      %v8809 = vpop.permute.xlu0 %8808
      %v8815 = vsel %vm3955, %v8681, 0
      %v8818 = vsel %vm3955, %v8682, 0
      %v8821 = vsel %vm3955, %v8683, 0
      %v8824 = vsel %vm3955, %v8684, 0
      %v8827 = vsel %vm3955, %v8685, 0
      %v8830 = vsel %vm4324, %v8809, 0
      %8832 = vmatprep.subr.bf16.mxu0 0
      %8833 = vmatpush1.bf16.msra.mxu0 %v8801
      %8834 = vmatprep.subr.bf16.mxu0 0
      %8835 = vmatpush1.bf16.msra.mxu0 %v8803
      %8836 = vmatprep.subr.bf16.mxu0 0
      %8837 = vmatpush1.bf16.msra.mxu0 %v8805
      %8838 = vmatprep.subr.bf16.mxu0 0
      %8839 = vmatpush1.bf16.msra.mxu0 %v8807
      %8840 = vmatprep.subr.bf16.mxu0 0
      %8841 = vmatpush1.bf16.msra.mxu0 %v8830
      %8842 = vmatprep.subr.bf16.mxu0 0
      %8843 = vmatpush1.bf16.msra.mxu0 0
      %8844 = vmatprep.subr.bf16.mxu0 0
      %8845 = vmatpush1.bf16.msra.mxu0 0
      %8846 = vmatprep.subr.bf16.mxu0 0
      %8847 = vmatpush1.bf16.msra.mxu0 0
      %8848 = vmatprep.subr.bf16.mxu0 0
      %8849 = vmatpush1.bf16.msra.mxu0 0
      %8850 = vmatprep.subr.bf16.mxu0 0
      %8851 = vmatpush1.bf16.msra.mxu0 0
      %8852 = vmatprep.subr.bf16.mxu0 0
      %8853 = vmatpush1.bf16.msra.mxu0 0
      %8854 = vmatprep.subr.bf16.mxu0 0
      %8855 = vmatpush1.bf16.msra.mxu0 0
      %8856 = vmatprep.subr.bf16.mxu0 0
      %8857 = vmatpush1.bf16.msra.mxu0 0
      %8858 = vmatprep.subr.bf16.mxu0 0
      %8859 = vmatpush1.bf16.msra.mxu0 0
      %8860 = vmatprep.subr.bf16.mxu0 0
      %8861 = vmatpush1.bf16.msra.mxu0 0
      %8862 = vmatprep.subr.bf16.mxu0 0
      %8863 = vmatpush1.bf16.msra.mxu0 0
      %8864 = vmatprep.mubr.bf16.mxu0 0
      %8865 = vmatmul.mubr.bf16.gmra.mrb[0].mxu0 %v8815
      %v8866 = vpop.f32.mrb[0].mxu0
      %v8867 = vadd.f32 0.0, %v8866
      %v8868 = vpop.f32.mrb[0].mxu0
      %v8869 = vpop.f32.mrb[0].mxu0
      %v8870 = vadd.f32 0.0, %v8869
      %v8871 = vpop.f32.mrb[0].mxu0
      %8872 = vmatprep.mubr.bf16.mxu0 0
      %8873 = vmatmul.mubr.bf16.gmra.mrb[0].mxu0 %v8818
      %v8874 = vpop.f32.mrb[0].mxu0
      %v8875 = vadd.f32 0.0, %v8874
      %v8876 = vpop.f32.mrb[0].mxu0
      %v8877 = vpop.f32.mrb[0].mxu0
      %v8878 = vadd.f32 0.0, %v8877
      %v8879 = vpop.f32.mrb[0].mxu0
      %8880 = vmatprep.mubr.bf16.mxu0 0
      %8881 = vmatmul.mubr.bf16.gmra.mrb[0].mxu0 %v8821
      %v8882 = vpop.f32.mrb[0].mxu0
      %v8883 = vadd.f32 0.0, %v8882
      %v8884 = vpop.f32.mrb[0].mxu0
      %v8885 = vpop.f32.mrb[0].mxu0
      %v8886 = vadd.f32 0.0, %v8885
      %v8887 = vpop.f32.mrb[0].mxu0
      %8888 = vmatprep.mubr.bf16.mxu0 0
      %8889 = vmatmul.mubr.bf16.gmra.mrb[0].mxu0 %v8824
      %v8890 = vpop.f32.mrb[0].mxu0
      %v8891 = vadd.f32 0.0, %v8890
      %v8892 = vpop.f32.mrb[0].mxu0
      %v8893 = vpop.f32.mrb[0].mxu0
      %v8894 = vadd.f32 0.0, %v8893
      %v8895 = vpop.f32.mrb[0].mxu0
      %8896 = vmatprep.mubr.bf16.mxu0 0
      %8897 = vmatmul.mubr.bf16.gmra.mrb[0].mxu0 %v8827
      %v8898 = vpop.f32.mrb[0].mxu0
      %v8899 = vadd.f32 0.0, %v8898
      %v8900 = vpop.f32.mrb[0].mxu0
      %v8901 = vpop.f32.mrb[0].mxu0
      %v8902 = vpop.f32.mrb[0].mxu0
      %8903 = vdwg.mxu0
      %8904 = vrot.lane.b32.xlu0 %v4499, 80
      %v8905 = vpop.permute.xlu0 %8904
      %8906 = vrot.lane.b32.xlu0 %v4500, 80
      %v8907 = vpop.permute.xlu0 %8906
      %8908 = vrot.lane.b32.xlu0 %v4501, 80
      %v8909 = vpop.permute.xlu0 %8908
      %8910 = vrot.lane.b32.xlu0 %v4502, 80
      %v8911 = vpop.permute.xlu0 %8910
      %8912 = vrot.lane.b32.xlu0 %v4503, 80
      %v8913 = vpop.permute.xlu0 %8912
      %v8919 = vsel %vm3955, %v8686, 0
      %v8922 = vsel %vm3955, %v8687, 0
      %v8925 = vsel %vm3955, %v8688, 0
      %v8928 = vsel %vm3955, %v8689, 0
      %v8931 = vsel %vm3955, %v8690, 0
      %v8934 = vsel %vm4324, %v8913, 0
      %8936 = vmatprep.subr.bf16.mxu0 0
      %8937 = vmatpush1.bf16.msra.mxu0 %v8905
      %8938 = vmatprep.subr.bf16.mxu0 0
      %8939 = vmatpush1.bf16.msra.mxu0 %v8907
      %8940 = vmatprep.subr.bf16.mxu0 0
      %8941 = vmatpush1.bf16.msra.mxu0 %v8909
      %8942 = vmatprep.subr.bf16.mxu0 0
      %8943 = vmatpush1.bf16.msra.mxu0 %v8911
      %8944 = vmatprep.subr.bf16.mxu0 0
      %8945 = vmatpush1.bf16.msra.mxu0 %v8934
      %8946 = vmatprep.subr.bf16.mxu0 0
      %8947 = vmatpush1.bf16.msra.mxu0 0
      %8948 = vmatprep.subr.bf16.mxu0 0
      %8949 = vmatpush1.bf16.msra.mxu0 0
      %8950 = vmatprep.subr.bf16.mxu0 0
      %8951 = vmatpush1.bf16.msra.mxu0 0
      %8952 = vmatprep.subr.bf16.mxu0 0
      %8953 = vmatpush1.bf16.msra.mxu0 0
      %8954 = vmatprep.subr.bf16.mxu0 0
      %8955 = vmatpush1.bf16.msra.mxu0 0
      %8956 = vmatprep.subr.bf16.mxu0 0
      %8957 = vmatpush1.bf16.msra.mxu0 0
      %8958 = vmatprep.subr.bf16.mxu0 0
      %8959 = vmatpush1.bf16.msra.mxu0 0
      %8960 = vmatprep.subr.bf16.mxu0 0
      %8961 = vmatpush1.bf16.msra.mxu0 0
      %8962 = vmatprep.subr.bf16.mxu0 0
      %8963 = vmatpush1.bf16.msra.mxu0 0
      %8964 = vmatprep.subr.bf16.mxu0 0
      %8965 = vmatpush1.bf16.msra.mxu0 0
      %8966 = vmatprep.subr.bf16.mxu0 0
      %8967 = vmatpush1.bf16.msra.mxu0 0
      %8968 = vmatprep.mubr.bf16.mxu0 0
      %8969 = vmatmul.mubr.bf16.gmra.mrb[0].mxu0 %v8919
      %v8970 = vpop.f32.mrb[0].mxu0
      %v8971 = vadd.f32 0.0, %v8970
      %v8972 = vpop.f32.mrb[0].mxu0
      %v8973 = vpop.f32.mrb[0].mxu0
      %v8974 = vadd.f32 0.0, %v8973
      %v8975 = vpop.f32.mrb[0].mxu0
      %8976 = vmatprep.mubr.bf16.mxu0 0
      %8977 = vmatmul.mubr.bf16.gmra.mrb[0].mxu0 %v8922
      %v8978 = vpop.f32.mrb[0].mxu0
      %v8979 = vadd.f32 0.0, %v8978
      %v8980 = vpop.f32.mrb[0].mxu0
      %v8981 = vpop.f32.mrb[0].mxu0
      %v8982 = vadd.f32 0.0, %v8981
      %v8983 = vpop.f32.mrb[0].mxu0
      %8984 = vmatprep.mubr.bf16.mxu0 0
      %8985 = vmatmul.mubr.bf16.gmra.mrb[0].mxu0 %v8925
      %v8986 = vpop.f32.mrb[0].mxu0
      %v8987 = vadd.f32 0.0, %v8986
      %v8988 = vpop.f32.mrb[0].mxu0
      %v8989 = vpop.f32.mrb[0].mxu0
      %v8990 = vadd.f32 0.0, %v8989
      %v8991 = vpop.f32.mrb[0].mxu0
      %8992 = vmatprep.mubr.bf16.mxu0 0
      %8993 = vmatmul.mubr.bf16.gmra.mrb[0].mxu0 %v8928
      %v8994 = vpop.f32.mrb[0].mxu0
      %v8995 = vadd.f32 0.0, %v8994
      %v8996 = vpop.f32.mrb[0].mxu0
      %v8997 = vpop.f32.mrb[0].mxu0
      %v8998 = vadd.f32 0.0, %v8997
      %v8999 = vpop.f32.mrb[0].mxu0
      %9000 = vmatprep.mubr.bf16.mxu0 0
      %9001 = vmatmul.mubr.bf16.gmra.mrb[0].mxu0 %v8931
      %v9002 = vpop.f32.mrb[0].mxu0
      %v9003 = vadd.f32 0.0, %v9002
      %v9004 = vpop.f32.mrb[0].mxu0
      %v9005 = vpop.f32.mrb[0].mxu0
      %v9006 = vpop.f32.mrb[0].mxu0
      %9007 = vdwg.mxu0
      %9008 = vrot.lane.b32.xlu0 %v4598, 80
      %v9009 = vpop.permute.xlu0 %9008
      %9010 = vrot.lane.b32.xlu0 %v4599, 80
      %v9011 = vpop.permute.xlu0 %9010
      %9012 = vrot.lane.b32.xlu0 %v4600, 80
      %v9013 = vpop.permute.xlu0 %9012
      %9014 = vrot.lane.b32.xlu0 %v4601, 80
      %v9015 = vpop.permute.xlu0 %9014
      %9016 = vrot.lane.b32.xlu0 %v4602, 80
      %v9017 = vpop.permute.xlu0 %9016
      %v9023 = vsel %vm3955, %v8691, 0
      %v9026 = vsel %vm3955, %v8692, 0
      %v9029 = vsel %vm3955, %v8693, 0
      %v9032 = vsel %vm3955, %v8694, 0
      %v9035 = vsel %vm3955, %v8695, 0
      %v9038 = vsel %vm4324, %v9017, 0
      %9040 = vmatprep.subr.bf16.mxu0 0
      %9041 = vmatpush1.bf16.msra.mxu0 %v9009
      %9042 = vmatprep.subr.bf16.mxu0 0
      %9043 = vmatpush1.bf16.msra.mxu0 %v9011
      %9044 = vmatprep.subr.bf16.mxu0 0
      %9045 = vmatpush1.bf16.msra.mxu0 %v9013
      %9046 = vmatprep.subr.bf16.mxu0 0
      %9047 = vmatpush1.bf16.msra.mxu0 %v9015
      %9048 = vmatprep.subr.bf16.mxu0 0
      %9049 = vmatpush1.bf16.msra.mxu0 %v9038
      %9050 = vmatprep.subr.bf16.mxu0 0
      %9051 = vmatpush1.bf16.msra.mxu0 0
      %9052 = vmatprep.subr.bf16.mxu0 0
      %9053 = vmatpush1.bf16.msra.mxu0 0
      %9054 = vmatprep.subr.bf16.mxu0 0
      %9055 = vmatpush1.bf16.msra.mxu0 0
      %9056 = vmatprep.subr.bf16.mxu0 0
      %9057 = vmatpush1.bf16.msra.mxu0 0
      %9058 = vmatprep.subr.bf16.mxu0 0
      %9059 = vmatpush1.bf16.msra.mxu0 0
      %9060 = vmatprep.subr.bf16.mxu0 0
      %9061 = vmatpush1.bf16.msra.mxu0 0
      %9062 = vmatprep.subr.bf16.mxu0 0
      %9063 = vmatpush1.bf16.msra.mxu0 0
      %9064 = vmatprep.subr.bf16.mxu0 0
      %9065 = vmatpush1.bf16.msra.mxu0 0
      %9066 = vmatprep.subr.bf16.mxu0 0
      %9067 = vmatpush1.bf16.msra.mxu0 0
      %9068 = vmatprep.subr.bf16.mxu0 0
      %9069 = vmatpush1.bf16.msra.mxu0 0
      %9070 = vmatprep.subr.bf16.mxu0 0
      %9071 = vmatpush1.bf16.msra.mxu0 0
      %9072 = vmatprep.mubr.bf16.mxu0 0
      %9073 = vmatmul.mubr.bf16.gmra.mrb[0].mxu0 %v9023
      %v9074 = vpop.f32.mrb[0].mxu0
      %v9075 = vadd.f32 0.0, %v9074
      %v9076 = vpop.f32.mrb[0].mxu0
      %v9077 = vpop.f32.mrb[0].mxu0
      %v9078 = vadd.f32 0.0, %v9077
      %v9079 = vpop.f32.mrb[0].mxu0
      %9080 = vmatprep.mubr.bf16.mxu0 0
      %9081 = vmatmul.mubr.bf16.gmra.mrb[0].mxu0 %v9026
      %v9082 = vpop.f32.mrb[0].mxu0
      %v9083 = vadd.f32 0.0, %v9082
      %v9084 = vpop.f32.mrb[0].mxu0
      %v9085 = vpop.f32.mrb[0].mxu0
      %v9086 = vadd.f32 0.0, %v9085
      %v9087 = vpop.f32.mrb[0].mxu0
      %9088 = vmatprep.mubr.bf16.mxu0 0
      %9089 = vmatmul.mubr.bf16.gmra.mrb[0].mxu0 %v9029
      %v9090 = vpop.f32.mrb[0].mxu0
      %v9091 = vadd.f32 0.0, %v9090
      %v9092 = vpop.f32.mrb[0].mxu0
      %v9093 = vpop.f32.mrb[0].mxu0
      %v9094 = vadd.f32 0.0, %v9093
      %v9095 = vpop.f32.mrb[0].mxu0
      %9096 = vmatprep.mubr.bf16.mxu0 0
      %9097 = vmatmul.mubr.bf16.gmra.mrb[0].mxu0 %v9032
      %v9098 = vpop.f32.mrb[0].mxu0
      %v9099 = vadd.f32 0.0, %v9098
      %v9100 = vpop.f32.mrb[0].mxu0
      %v9101 = vpop.f32.mrb[0].mxu0
      %v9102 = vadd.f32 0.0, %v9101
      %v9103 = vpop.f32.mrb[0].mxu0
      %9104 = vmatprep.mubr.bf16.mxu0 0
      %9105 = vmatmul.mubr.bf16.gmra.mrb[0].mxu0 %v9035
      %v9106 = vpop.f32.mrb[0].mxu0
      %v9107 = vadd.f32 0.0, %v9106
      %v9108 = vpop.f32.mrb[0].mxu0
      %v9109 = vpop.f32.mrb[0].mxu0
      %v9110 = vpop.f32.mrb[0].mxu0
      %9111 = vdwg.mxu0
      %v9112 = vrcp.pop %v8570
      %v9113 = vrcp.pop %v8573
      %v9114 = vrcp.pop %v8576
      %v9115 = vrcp.pop %v8579
      %v9116 = vrcp.pop %v8582
      %v9117 = vrcp.pop %v8585
      %v9118 = vrcp.pop %v8588
      %v9119 = vrcp.pop %v8591
      %v9120 = vrcp.pop %v8594
      %v9121 = vrcp.pop %v8597
      %v9122 = vrcp.pop %v8600
      %v9123 = vrcp.pop %v8603
      %v9124 = vrcp.pop %v8606
      %v9125 = vrcp.pop %v8609
      %v9126 = vrcp.pop %v8612
      %v9127 = vrcp.pop %v8615
      %v9128 = vrcp.pop %v8618
      %v9129 = vrcp.pop %v8621
      %v9130 = vrcp.pop %v8624
      %v9131 = vrcp.pop %v8627
      %v9132 = vrcp.pop %v8630
      %v9133 = vrcp.pop %v8633
      %v9134 = vrcp.pop %v8636
      %v9135 = vrcp.pop %v8639
      %v9136 = vrcp.pop %v8642
      %v9137 = vrcp.pop %v8645
      %v9138 = vrcp.pop %v8648
      %v9139 = vrcp.pop %v8651
      %v9140 = vrcp.pop %v8654
      %v9141 = vrcp.pop %v8657
      %v9142 = vrcp.pop %v8660
      %v9143 = vrcp.pop %v8663
      %v9144 = vrcp.pop %v8666
      %v9145 = vrcp.pop %v8669
      %v9146 = vrcp.pop %v8672
      %v9147 = vrcp.pop %v8675
      %v9148 = vmul.f32 %v8763, %v9112
      %v9149 = vmul.f32 %v8766, %v9113
      %v9150 = vmul.f32 %v8771, %v9114
      %v9151 = vmul.f32 %v8774, %v9115
      %v9152 = vmul.f32 %v8779, %v9116
      %v9153 = vmul.f32 %v8782, %v9117
      %v9154 = vmul.f32 %v8787, %v9118
      %v9155 = vmul.f32 %v8790, %v9119
      %v9156 = vmul.f32 %v8795, %v9120
      %v9157 = vmul.f32 %v8867, %v9121
      %v9158 = vmul.f32 %v8870, %v9122
      %v9159 = vmul.f32 %v8875, %v9123
      %v9160 = vmul.f32 %v8878, %v9124
      %v9161 = vmul.f32 %v8883, %v9125
      %v9162 = vmul.f32 %v8886, %v9126
      %v9163 = vmul.f32 %v8891, %v9127
      %v9164 = vmul.f32 %v8894, %v9128
      %v9165 = vmul.f32 %v8899, %v9129
      %v9166 = vmul.f32 %v8971, %v9130
      %v9167 = vmul.f32 %v8974, %v9131
      %v9168 = vmul.f32 %v8979, %v9132
      %v9169 = vmul.f32 %v8982, %v9133
      %v9170 = vmul.f32 %v8987, %v9134
      %v9171 = vmul.f32 %v8990, %v9135
      %v9172 = vmul.f32 %v8995, %v9136
      %v9173 = vmul.f32 %v8998, %v9137
      %v9174 = vmul.f32 %v9003, %v9138
      %v9175 = vmul.f32 %v9075, %v9139
      %v9176 = vmul.f32 %v9078, %v9140
      %v9177 = vmul.f32 %v9083, %v9141
      %v9178 = vmul.f32 %v9086, %v9142
      %v9179 = vmul.f32 %v9091, %v9143
      %v9180 = vmul.f32 %v9094, %v9144
      %v9181 = vmul.f32 %v9099, %v9145
      %v9182 = vmul.f32 %v9102, %v9146
      %v9183 = vmul.f32 %v9107, %v9147
      %9220 = vrot.lane.b32.xlu0 %v9148, 48
      %v9221 = vpop.permute.xlu0 %9220
      %9222 = vrot.lane.b32.xlu0 %v9149, 48
      %v9223 = vpop.permute.xlu0 %9222
      %9224 = vrot.lane.b32.xlu0 %v9150, 48
      %v9225 = vpop.permute.xlu0 %9224
      %9226 = vrot.lane.b32.xlu0 %v9151, 48
      %v9227 = vpop.permute.xlu0 %9226
      %9228 = vrot.lane.b32.xlu0 %v9152, 48
      %v9229 = vpop.permute.xlu0 %9228
      %9230 = vrot.lane.b32.xlu0 %v9153, 48
      %v9231 = vpop.permute.xlu0 %9230
      %9232 = vrot.lane.b32.xlu0 %v9154, 48
      %v9233 = vpop.permute.xlu0 %9232
      %9234 = vrot.lane.b32.xlu0 %v9155, 48
      %v9235 = vpop.permute.xlu0 %9234
      %9236 = vrot.lane.b32.xlu0 %v9156, 48
      %v9237 = vpop.permute.xlu0 %9236
      %9238 = vrot.lane.b32.xlu0 %v9157, 48
      %v9239 = vpop.permute.xlu0 %9238
      %9240 = vrot.lane.b32.xlu0 %v9158, 48
      %v9241 = vpop.permute.xlu0 %9240
      %9242 = vrot.lane.b32.xlu0 %v9159, 48
      %v9243 = vpop.permute.xlu0 %9242
      %9244 = vrot.lane.b32.xlu0 %v9160, 48
      %v9245 = vpop.permute.xlu0 %9244
      %9246 = vrot.lane.b32.xlu0 %v9161, 48
      %v9247 = vpop.permute.xlu0 %9246
      %9248 = vrot.lane.b32.xlu0 %v9162, 48
      %v9249 = vpop.permute.xlu0 %9248
      %9250 = vrot.lane.b32.xlu0 %v9163, 48
      %v9251 = vpop.permute.xlu0 %9250
      %9252 = vrot.lane.b32.xlu0 %v9164, 48
      %v9253 = vpop.permute.xlu0 %9252
      %9254 = vrot.lane.b32.xlu0 %v9165, 48
      %v9255 = vpop.permute.xlu0 %9254
      %9256 = vrot.lane.b32.xlu0 %v9166, 48
      %v9257 = vpop.permute.xlu0 %9256
      %9258 = vrot.lane.b32.xlu0 %v9167, 48
      %v9259 = vpop.permute.xlu0 %9258
      %9260 = vrot.lane.b32.xlu0 %v9168, 48
      %v9261 = vpop.permute.xlu0 %9260
      %9262 = vrot.lane.b32.xlu0 %v9169, 48
      %v9263 = vpop.permute.xlu0 %9262
      %9264 = vrot.lane.b32.xlu0 %v9170, 48
      %v9265 = vpop.permute.xlu0 %9264
      %9266 = vrot.lane.b32.xlu0 %v9171, 48
      %v9267 = vpop.permute.xlu0 %9266
      %9268 = vrot.lane.b32.xlu0 %v9172, 48
      %v9269 = vpop.permute.xlu0 %9268
      %9270 = vrot.lane.b32.xlu0 %v9173, 48
      %v9271 = vpop.permute.xlu0 %9270
      %9272 = vrot.lane.b32.xlu0 %v9174, 48
      %v9273 = vpop.permute.xlu0 %9272
      %9274 = vrot.lane.b32.xlu0 %v9175, 48
      %v9275 = vpop.permute.xlu0 %9274
      %9276 = vrot.lane.b32.xlu0 %v9176, 48
      %v9277 = vpop.permute.xlu0 %9276
      %9278 = vrot.lane.b32.xlu0 %v9177, 48
      %v9279 = vpop.permute.xlu0 %9278
      %9280 = vrot.lane.b32.xlu0 %v9178, 48
      %v9281 = vpop.permute.xlu0 %9280
      %9282 = vrot.lane.b32.xlu0 %v9179, 48
      %v9283 = vpop.permute.xlu0 %9282
      %9284 = vrot.lane.b32.xlu0 %v9180, 48
      %v9285 = vpop.permute.xlu0 %9284
      %9286 = vrot.lane.b32.xlu0 %v9181, 48
      %v9287 = vpop.permute.xlu0 %9286
      %9288 = vrot.lane.b32.xlu0 %v9182, 48
      %v9289 = vpop.permute.xlu0 %9288
      %9290 = vrot.lane.b32.xlu0 %v9183, 48
      %v9291 = vpop.permute.xlu0 %9290
      %vm9328 = vcmask 523648
      %9329 = vst.msk [vmem:[#allocation2] sm:$0xff] %vm9328, %v9221
      %9330 = vst.msk [vmem:[#allocation2 + $0x8] sm:$0xff] %vm9328, %v9223
      %9331 = vst.msk [vmem:[#allocation2 + $0x10] sm:$0xff] %vm9328, %v9225
      %9332 = vst.msk [vmem:[#allocation2 + $0x18] sm:$0xff] %vm9328, %v9227
      %9333 = vst.msk [vmem:[#allocation2 + $0x20] sm:$0xff] %vm9328, %v9229
      %9334 = vst.msk [vmem:[#allocation2 + $0x28] sm:$0xff] %vm9328, %v9231
      %9335 = vst.msk [vmem:[#allocation2 + $0x30] sm:$0xff] %vm9328, %v9233
      %9336 = vst.msk [vmem:[#allocation2 + $0x38] sm:$0xff] %vm9328, %v9235
      %9337 = vst.msk [vmem:[#allocation2 + $0x40] sm:$0xff] %vm9328, %v9237
      %9338 = vst.msk [vmem:[#allocation2 + $0x48] sm:$0xff] %vm9328, %v9239
      %9339 = vst.msk [vmem:[#allocation2 + $0x50] sm:$0xff] %vm9328, %v9241
      %9340 = vst.msk [vmem:[#allocation2 + $0x58] sm:$0xff] %vm9328, %v9243
      %9341 = vst.msk [vmem:[#allocation2 + $0x60] sm:$0xff] %vm9328, %v9245
      %9342 = vst.msk [vmem:[#allocation2 + $0x68] sm:$0xff] %vm9328, %v9247
      %9343 = vst.msk [vmem:[#allocation2 + $0x70] sm:$0xff] %vm9328, %v9249
      %9344 = vst.msk [vmem:[#allocation2 + $0x78] sm:$0xff] %vm9328, %v9251
      %9345 = vst.msk [vmem:[#allocation2 + $0x80] sm:$0xff] %vm9328, %v9253
      %9346 = vst.msk [vmem:[#allocation2 + $0x88] sm:$0xff] %vm9328, %v9255
      %9347 = vst.msk [vmem:[#allocation2 + $0x90] sm:$0xff] %vm9328, %v9257
      %9348 = vst.msk [vmem:[#allocation2 + $0x98] sm:$0xff] %vm9328, %v9259
      %9349 = vst.msk [vmem:[#allocation2 + $0xa0] sm:$0xff] %vm9328, %v9261
      %9350 = vst.msk [vmem:[#allocation2 + $0xa8] sm:$0xff] %vm9328, %v9263
      %9351 = vst.msk [vmem:[#allocation2 + $0xb0] sm:$0xff] %vm9328, %v9265
      %9352 = vst.msk [vmem:[#allocation2 + $0xb8] sm:$0xff] %vm9328, %v9267
      %9353 = vst.msk [vmem:[#allocation2 + $0xc0] sm:$0xff] %vm9328, %v9269
      %9354 = vst.msk [vmem:[#allocation2 + $0xc8] sm:$0xff] %vm9328, %v9271
      %9355 = vst.msk [vmem:[#allocation2 + $0xd0] sm:$0xff] %vm9328, %v9273
      %9356 = vst.msk [vmem:[#allocation2 + $0xd8] sm:$0xff] %vm9328, %v9275
      %9357 = vst.msk [vmem:[#allocation2 + $0xe0] sm:$0xff] %vm9328, %v9277
      %9358 = vst.msk [vmem:[#allocation2 + $0xe8] sm:$0xff] %vm9328, %v9279
      %9359 = vst.msk [vmem:[#allocation2 + $0xf0] sm:$0xff] %vm9328, %v9281
      %9360 = vst.msk [vmem:[#allocation2 + $0xf8] sm:$0xff] %vm9328, %v9283
      %9361 = vst.msk [vmem:[#allocation2 + $0x100] sm:$0xff] %vm9328, %v9285
      %9362 = vst.msk [vmem:[#allocation2 + $0x108] sm:$0xff] %vm9328, %v9287
      %9363 = vst.msk [vmem:[#allocation2 + $0x110] sm:$0xff] %vm9328, %v9289
      %9364 = vst.msk [vmem:[#allocation2 + $0x118] sm:$0xff] %vm9328, %v9291
      %v9365 = vld [vmem:[#allocation2] sm:$0xff]
      %v9366 = vld [vmem:[#allocation2 + $0x8] sm:$0xff]
      %v9367 = vld [vmem:[#allocation2 + $0x10] sm:$0xff]
      %v9368 = vld [vmem:[#allocation2 + $0x18] sm:$0xff]
      %v9369 = vld [vmem:[#allocation2 + $0x20] sm:$0xff]
      %v9370 = vld [vmem:[#allocation2 + $0x28] sm:$0xff]
      %v9371 = vld [vmem:[#allocation2 + $0x30] sm:$0xff]
      %v9372 = vld [vmem:[#allocation2 + $0x38] sm:$0xff]
      %v9373 = vld [vmem:[#allocation2 + $0x40] sm:$0xff]
      %v9374 = vld [vmem:[#allocation2 + $0x48] sm:$0xff]
      %v9375 = vld [vmem:[#allocation2 + $0x50] sm:$0xff]
      %v9376 = vld [vmem:[#allocation2 + $0x58] sm:$0xff]
      %v9377 = vld [vmem:[#allocation2 + $0x60] sm:$0xff]
      %v9378 = vld [vmem:[#allocation2 + $0x68] sm:$0xff]
      %v9379 = vld [vmem:[#allocation2 + $0x70] sm:$0xff]
      %v9380 = vld [vmem:[#allocation2 + $0x78] sm:$0xff]
      %v9381 = vld [vmem:[#allocation2 + $0x80] sm:$0xff]
      %v9382 = vld [vmem:[#allocation2 + $0x88] sm:$0xff]
      %v9383 = vld [vmem:[#allocation2 + $0x90] sm:$0xff]
      %v9384 = vld [vmem:[#allocation2 + $0x98] sm:$0xff]
      %v9385 = vld [vmem:[#allocation2 + $0xa0] sm:$0xff]
      %v9386 = vld [vmem:[#allocation2 + $0xa8] sm:$0xff]
      %v9387 = vld [vmem:[#allocation2 + $0xb0] sm:$0xff]
      %v9388 = vld [vmem:[#allocation2 + $0xb8] sm:$0xff]
      %v9389 = vld [vmem:[#allocation2 + $0xc0] sm:$0xff]
      %v9390 = vld [vmem:[#allocation2 + $0xc8] sm:$0xff]
      %v9391 = vld [vmem:[#allocation2 + $0xd0] sm:$0xff]
      %v9392 = vld [vmem:[#allocation2 + $0xd8] sm:$0xff]
      %v9393 = vld [vmem:[#allocation2 + $0xe0] sm:$0xff]
      %v9394 = vld [vmem:[#allocation2 + $0xe8] sm:$0xff]
      %v9395 = vld [vmem:[#allocation2 + $0xf0] sm:$0xff]
      %v9396 = vld [vmem:[#allocation2 + $0xf8] sm:$0xff]
      %v9397 = vld [vmem:[#allocation2 + $0x100] sm:$0xff]
      %v9398 = vld [vmem:[#allocation2 + $0x108] sm:$0xff]
      %v9399 = vld [vmem:[#allocation2 + $0x110] sm:$0xff]
      %v9400 = vld [vmem:[#allocation2 + $0x118] sm:$0xff]
      %v9401 = vpack.c.bf16 %v9366, %v9365
      %v9402 = vpack.c.bf16 %v9368, %v9367
      %v9403 = vpack.c.bf16 %v9370, %v9369
      %v9404 = vpack.c.bf16 %v9372, %v9371
      %v9405 = vpack.c.bf16 %v9373, %v9373
      %v9406 = vpack.c.bf16 %v9375, %v9374
      %v9407 = vpack.c.bf16 %v9377, %v9376
      %v9408 = vpack.c.bf16 %v9379, %v9378
      %v9409 = vpack.c.bf16 %v9381, %v9380
      %v9410 = vpack.c.bf16 %v9382, %v9382
      %v9411 = vpack.c.bf16 %v9384, %v9383
      %v9412 = vpack.c.bf16 %v9386, %v9385
      %v9413 = vpack.c.bf16 %v9388, %v9387
      %v9414 = vpack.c.bf16 %v9390, %v9389
      %v9415 = vpack.c.bf16 %v9391, %v9391
      %v9416 = vpack.c.bf16 %v9393, %v9392
      %v9417 = vpack.c.bf16 %v9395, %v9394
      %v9418 = vpack.c.bf16 %v9397, %v9396
      %v9419 = vpack.c.bf16 %v9399, %v9398
      %v9420 = vpack.c.bf16 %v9400, %v9400
      %v9441 = vunpack.c.l.b16 %v9401
      %v9442 = vunpack.c.h.b16 %v9401
      %v9443 = vunpack.c.l.b16 %v9402
      %v9444 = vunpack.c.h.b16 %v9402
      %v9445 = vunpack.c.l.b16 %v9403
      %v9446 = vunpack.c.h.b16 %v9403
      %v9447 = vunpack.c.l.b16 %v9404
      %v9448 = vunpack.c.h.b16 %v9404
      %v9449 = vunpack.c.l.b16 %v9405
      %v9450 = vunpack.c.l.b16 %v9406
      %v9451 = vunpack.c.h.b16 %v9406
      %v9452 = vunpack.c.l.b16 %v9407
      %v9453 = vunpack.c.h.b16 %v9407
      %v9454 = vunpack.c.l.b16 %v9408
      %v9455 = vunpack.c.h.b16 %v9408
      %v9456 = vunpack.c.l.b16 %v9409
      %v9457 = vunpack.c.h.b16 %v9409
      %v9458 = vunpack.c.l.b16 %v9410
      %v9459 = vunpack.c.l.b16 %v9411
      %v9460 = vunpack.c.h.b16 %v9411
      %v9461 = vunpack.c.l.b16 %v9412
      %v9462 = vunpack.c.h.b16 %v9412
      %v9463 = vunpack.c.l.b16 %v9413
      %v9464 = vunpack.c.h.b16 %v9413
      %v9465 = vunpack.c.l.b16 %v9414
      %v9466 = vunpack.c.h.b16 %v9414
      %v9467 = vunpack.c.l.b16 %v9415
      %v9468 = vunpack.c.l.b16 %v9416
      %v9469 = vunpack.c.h.b16 %v9416
      %v9470 = vunpack.c.l.b16 %v9417
      %v9471 = vunpack.c.h.b16 %v9417
      %v9472 = vunpack.c.l.b16 %v9418
      %v9473 = vunpack.c.h.b16 %v9418
      %v9474 = vunpack.c.l.b16 %v9419
      %v9475 = vunpack.c.h.b16 %v9419
      %v9476 = vunpack.c.l.b16 %v9420
      %v9477 = vld [vmem:[%s8] sm:$0xf]
      %v9478 = vld [vmem:[%s8 + $0x4] sm:$0xf]
      %v9479 = vld [vmem:[%s8 + $0x8] sm:$0xf]
      %v9480 = vld [vmem:[%s8 + $0xc] sm:$0xf]
      %v9481 = vld [vmem:[%s8 + $0x10] sm:$0xf]
      %v9482 = vld [vmem:[%s8 + $0x14] sm:$0xf]
      %v9483 = vld [vmem:[%s8 + $0x18] sm:$0xf]
      %v9484 = vld [vmem:[%s8 + $0x1c] sm:$0xf]
      %v9485 = vpack.c.b16 %v9442, %v9441
      %v9486 = vpack.c.b16 %v9444, %v9443
      %v9487 = vpack.c.b16 %v9446, %v9445
      %v9488 = vpack.c.b16 %v9448, %v9447
      %v9489 = vpack.c.b16 %v9450, %v9449
      %v9490 = vpack.c.b16 %v9452, %v9451
      %v9491 = vpack.c.b16 %v9454, %v9453
      %v9492 = vpack.c.b16 %v9456, %v9455
      %v9493 = vpack.c.b16 %v9458, %v9457
      %v9494 = vpack.c.b16 %v9460, %v9459
      %v9495 = vpack.c.b16 %v9462, %v9461
      %v9496 = vpack.c.b16 %v9464, %v9463
      %v9497 = vpack.c.b16 %v9466, %v9465
      %v9498 = vpack.c.b16 %v9468, %v9467
      %v9499 = vpack.c.b16 %v9470, %v9469
      %v9500 = vpack.c.b16 %v9472, %v9471
      %v9501 = vpack.c.b16 %v9474, %v9473
      %v9502 = vpack.c.b16 %v9476, %v9475
      %v9511 = vunpack.c.l.b16 %v9477
      %v9512 = vunpack.c.l.b16 %v9478
      %v9513 = vunpack.c.l.b16 %v9479
      %v9514 = vunpack.c.l.b16 %v9480
      %v9515 = vunpack.c.l.b16 %v9481
      %v9516 = vunpack.c.l.b16 %v9482
      %v9517 = vunpack.c.l.b16 %v9483
      %v9518 = vunpack.c.l.b16 %v9484
      %v9519 = vpack.c.b16 %v9512, %v9511
      %v9520 = vpack.c.b16 %v9514, %v9513
      %v9521 = vpack.c.b16 %v9516, %v9515
      %v9522 = vpack.c.b16 %v9518, %v9517
      %v9528 = vsel %vm378, %v9485, 0
      %v9531 = vsel %vm378, %v9486, 0
      %v9534 = vsel %vm378, %v9487, 0
      %v9537 = vsel %vm378, %v9488, 0
      %v9540 = vsel %vm378, %v9489, 0
      %v9543 = vsel %vm378, %v9490, 0
      %v9546 = vsel %vm378, %v9491, 0
      %v9549 = vsel %vm378, %v9492, 0
      %v9552 = vsel %vm378, %v9493, 0
      %v9555 = vsel %vm378, %v9494, 0
      %v9558 = vsel %vm378, %v9495, 0
      %v9561 = vsel %vm378, %v9496, 0
      %v9564 = vsel %vm378, %v9497, 0
      %v9567 = vsel %vm378, %v9498, 0
      %v9570 = vsel %vm378, %v9499, 0
      %v9573 = vsel %vm378, %v9500, 0
      %v9576 = vsel %vm378, %v9501, 0
      %v9579 = vsel %vm378, %v9502, 0
      %9581 = vmatprep.subr.bf16.mxu0 0
      %9582 = vmatpush1.bf16.msra.mxu0 %v9519
      %9583 = vmatprep.subr.bf16.mxu0 0
      %9584 = vmatpush1.bf16.msra.mxu0 %v9520
      %9585 = vmatprep.subr.bf16.mxu0 0
      %9586 = vmatpush1.bf16.msra.mxu0 %v9521
      %9587 = vmatprep.subr.bf16.mxu0 0
      %9588 = vmatpush1.bf16.msra.mxu0 %v9522
      %9589 = vmatprep.subr.bf16.mxu0 0
      %9590 = vmatpush1.bf16.msra.mxu0 0
      %9591 = vmatprep.subr.bf16.mxu0 0
      %9592 = vmatpush1.bf16.msra.mxu0 0
      %9593 = vmatprep.subr.bf16.mxu0 0
      %9594 = vmatpush1.bf16.msra.mxu0 0
      %9595 = vmatprep.subr.bf16.mxu0 0
      %9596 = vmatpush1.bf16.msra.mxu0 0
      %9597 = vmatprep.subr.bf16.mxu0 0
      %9598 = vmatpush1.bf16.msra.mxu0 0
      %9599 = vmatprep.subr.bf16.mxu0 0
      %9600 = vmatpush1.bf16.msra.mxu0 0
      %9601 = vmatprep.subr.bf16.mxu0 0
      %9602 = vmatpush1.bf16.msra.mxu0 0
      %9603 = vmatprep.subr.bf16.mxu0 0
      %9604 = vmatpush1.bf16.msra.mxu0 0
      %9605 = vmatprep.subr.bf16.mxu0 0
      %9606 = vmatpush1.bf16.msra.mxu0 0
      %9607 = vmatprep.subr.bf16.mxu0 0
      %9608 = vmatpush1.bf16.msra.mxu0 0
      %9609 = vmatprep.subr.bf16.mxu0 0
      %9610 = vmatpush1.bf16.msra.mxu0 0
      %9611 = vmatprep.subr.bf16.mxu0 0
      %9612 = vmatpush1.bf16.msra.mxu0 0
      %9613 = vmatprep.mubr.bf16.mxu0 0
      %9614 = vmatmul.mubr.bf16.gmra.mrb[0].mxu0 %v9528
      %v9615 = vpop.f32.mrb[0].mxu0
      %v9616 = vadd.f32 0.0, %v9615
      %v9617 = vpop.f32.mrb[0].mxu0
      %v9618 = vpop.f32.mrb[0].mxu0
      %v9619 = vadd.f32 0.0, %v9618
      %v9620 = vpop.f32.mrb[0].mxu0
      %9621 = vmatprep.mubr.bf16.mxu0 0
      %9622 = vmatmul.mubr.bf16.gmra.mrb[0].mxu0 %v9531
      %v9623 = vpop.f32.mrb[0].mxu0
      %v9624 = vadd.f32 0.0, %v9623
      %v9625 = vpop.f32.mrb[0].mxu0
      %v9626 = vpop.f32.mrb[0].mxu0
      %v9627 = vadd.f32 0.0, %v9626
      %v9628 = vpop.f32.mrb[0].mxu0
      %9629 = vmatprep.mubr.bf16.mxu0 0
      %9630 = vmatmul.mubr.bf16.gmra.mrb[0].mxu0 %v9534
      %v9631 = vpop.f32.mrb[0].mxu0
      %v9632 = vadd.f32 0.0, %v9631
      %v9633 = vpop.f32.mrb[0].mxu0
      %v9634 = vpop.f32.mrb[0].mxu0
      %v9635 = vadd.f32 0.0, %v9634
      %v9636 = vpop.f32.mrb[0].mxu0
      %9637 = vmatprep.mubr.bf16.mxu0 0
      %9638 = vmatmul.mubr.bf16.gmra.mrb[0].mxu0 %v9537
      %v9639 = vpop.f32.mrb[0].mxu0
      %v9640 = vadd.f32 0.0, %v9639
      %v9641 = vpop.f32.mrb[0].mxu0
      %v9642 = vpop.f32.mrb[0].mxu0
      %v9643 = vadd.f32 0.0, %v9642
      %v9644 = vpop.f32.mrb[0].mxu0
      %9645 = vmatprep.mubr.bf16.mxu0 0
      %9646 = vmatmul.mubr.bf16.gmra.mrb[0].mxu0 %v9540
      %v9647 = vpop.f32.mrb[0].mxu0
      %v9648 = vadd.f32 0.0, %v9647
      %v9649 = vpop.f32.mrb[0].mxu0
      %v9650 = vpop.f32.mrb[0].mxu0
      %v9651 = vadd.f32 0.0, %v9650
      %v9652 = vpop.f32.mrb[0].mxu0
      %9653 = vmatprep.mubr.bf16.mxu0 0
      %9654 = vmatmul.mubr.bf16.gmra.mrb[0].mxu0 %v9543
      %v9655 = vpop.f32.mrb[0].mxu0
      %v9656 = vadd.f32 0.0, %v9655
      %v9657 = vpop.f32.mrb[0].mxu0
      %v9658 = vpop.f32.mrb[0].mxu0
      %v9659 = vadd.f32 0.0, %v9658
      %v9660 = vpop.f32.mrb[0].mxu0
      %9661 = vmatprep.mubr.bf16.mxu0 0
      %9662 = vmatmul.mubr.bf16.gmra.mrb[0].mxu0 %v9546
      %v9663 = vpop.f32.mrb[0].mxu0
      %v9664 = vadd.f32 0.0, %v9663
      %v9665 = vpop.f32.mrb[0].mxu0
      %v9666 = vpop.f32.mrb[0].mxu0
      %v9667 = vadd.f32 0.0, %v9666
      %v9668 = vpop.f32.mrb[0].mxu0
      %9669 = vmatprep.mubr.bf16.mxu0 0
      %9670 = vmatmul.mubr.bf16.gmra.mrb[0].mxu0 %v9549
      %v9671 = vpop.f32.mrb[0].mxu0
      %v9672 = vadd.f32 0.0, %v9671
      %v9673 = vpop.f32.mrb[0].mxu0
      %v9674 = vpop.f32.mrb[0].mxu0
      %v9675 = vadd.f32 0.0, %v9674
      %v9676 = vpop.f32.mrb[0].mxu0
      %9677 = vmatprep.mubr.bf16.mxu0 0
      %9678 = vmatmul.mubr.bf16.gmra.mrb[0].mxu0 %v9552
      %v9679 = vpop.f32.mrb[0].mxu0
      %v9680 = vadd.f32 0.0, %v9679
      %v9681 = vpop.f32.mrb[0].mxu0
      %v9682 = vpop.f32.mrb[0].mxu0
      %v9683 = vadd.f32 0.0, %v9682
      %v9684 = vpop.f32.mrb[0].mxu0
      %9685 = vmatprep.mubr.bf16.mxu0 0
      %9686 = vmatmul.mubr.bf16.gmra.mrb[0].mxu0 %v9555
      %v9687 = vpop.f32.mrb[0].mxu0
      %v9688 = vadd.f32 0.0, %v9687
      %v9689 = vpop.f32.mrb[0].mxu0
      %v9690 = vpop.f32.mrb[0].mxu0
      %v9691 = vadd.f32 0.0, %v9690
      %v9692 = vpop.f32.mrb[0].mxu0
      %9693 = vmatprep.mubr.bf16.mxu0 0
      %9694 = vmatmul.mubr.bf16.gmra.mrb[0].mxu0 %v9558
      %v9695 = vpop.f32.mrb[0].mxu0
      %v9696 = vadd.f32 0.0, %v9695
      %v9697 = vpop.f32.mrb[0].mxu0
      %v9698 = vpop.f32.mrb[0].mxu0
      %v9699 = vadd.f32 0.0, %v9698
      %v9700 = vpop.f32.mrb[0].mxu0
      %9701 = vmatprep.mubr.bf16.mxu0 0
      %9702 = vmatmul.mubr.bf16.gmra.mrb[0].mxu0 %v9561
      %v9703 = vpop.f32.mrb[0].mxu0
      %v9704 = vadd.f32 0.0, %v9703
      %v9705 = vpop.f32.mrb[0].mxu0
      %v9706 = vpop.f32.mrb[0].mxu0
      %v9707 = vadd.f32 0.0, %v9706
      %v9708 = vpop.f32.mrb[0].mxu0
      %9709 = vmatprep.mubr.bf16.mxu0 0
      %9710 = vmatmul.mubr.bf16.gmra.mrb[0].mxu0 %v9564
      %v9711 = vpop.f32.mrb[0].mxu0
      %v9712 = vadd.f32 0.0, %v9711
      %v9713 = vpop.f32.mrb[0].mxu0
      %v9714 = vpop.f32.mrb[0].mxu0
      %v9715 = vadd.f32 0.0, %v9714
      %v9716 = vpop.f32.mrb[0].mxu0
      %9717 = vmatprep.mubr.bf16.mxu0 0
      %9718 = vmatmul.mubr.bf16.gmra.mrb[0].mxu0 %v9567
      %v9719 = vpop.f32.mrb[0].mxu0
      %v9720 = vadd.f32 0.0, %v9719
      %v9721 = vpop.f32.mrb[0].mxu0
      %v9722 = vpop.f32.mrb[0].mxu0
      %v9723 = vadd.f32 0.0, %v9722
      %v9724 = vpop.f32.mrb[0].mxu0
      %9725 = vmatprep.mubr.bf16.mxu0 0
      %9726 = vmatmul.mubr.bf16.gmra.mrb[0].mxu0 %v9570
      %v9727 = vpop.f32.mrb[0].mxu0
      %v9728 = vadd.f32 0.0, %v9727
      %v9729 = vpop.f32.mrb[0].mxu0
      %v9730 = vpop.f32.mrb[0].mxu0
      %v9731 = vadd.f32 0.0, %v9730
      %v9732 = vpop.f32.mrb[0].mxu0
      %9733 = vmatprep.mubr.bf16.mxu0 0
      %9734 = vmatmul.mubr.bf16.gmra.mrb[0].mxu0 %v9573
      %v9735 = vpop.f32.mrb[0].mxu0
      %v9736 = vadd.f32 0.0, %v9735
      %v9737 = vpop.f32.mrb[0].mxu0
      %v9738 = vpop.f32.mrb[0].mxu0
      %v9739 = vadd.f32 0.0, %v9738
      %v9740 = vpop.f32.mrb[0].mxu0
      %9741 = vmatprep.mubr.bf16.mxu0 0
      %9742 = vmatmul.mubr.bf16.gmra.mrb[0].mxu0 %v9576
      %v9743 = vpop.f32.mrb[0].mxu0
      %v9744 = vadd.f32 0.0, %v9743
      %v9745 = vpop.f32.mrb[0].mxu0
      %v9746 = vpop.f32.mrb[0].mxu0
      %v9747 = vadd.f32 0.0, %v9746
      %v9748 = vpop.f32.mrb[0].mxu0
      %9749 = vmatprep.mubr.bf16.mxu0 0
      %9750 = vmatmul.mubr.bf16.gmra.mrb[0].mxu0 %v9579
      %v9751 = vpop.f32.mrb[0].mxu0
      %v9752 = vadd.f32 0.0, %v9751
      %v9753 = vpop.f32.mrb[0].mxu0
      %v9754 = vpop.f32.mrb[0].mxu0
      %v9755 = vadd.f32 0.0, %v9754
      %v9756 = vpop.f32.mrb[0].mxu0
      %9757 = vdwg.mxu0
      %9758 = vst.msk [vmem:[%s339] sm:$0xff] %vm378, %v9616
      %9759 = vst.msk [vmem:[%s339 + $0x8] sm:$0xff] %vm378, %v9619
      %9760 = vst.msk [vmem:[%s339 + $0x10] sm:$0xff] %vm378, %v9624
      %9761 = vst.msk [vmem:[%s339 + $0x18] sm:$0xff] %vm378, %v9627
      %9762 = vst.msk [vmem:[%s339 + $0x20] sm:$0xff] %vm378, %v9632
      %9763 = vst.msk [vmem:[%s339 + $0x28] sm:$0xff] %vm378, %v9635
      %9764 = vst.msk [vmem:[%s339 + $0x30] sm:$0xff] %vm378, %v9640
      %9765 = vst.msk [vmem:[%s339 + $0x38] sm:$0xff] %vm378, %v9643
      %9766 = vst.msk [vmem:[%s339 + $0x40] sm:$0xff] %vm378, %v9648
      %9767 = vst.msk [vmem:[%s339 + $0x48] sm:$0xff] %vm378, %v9651
      %9768 = vst.msk [vmem:[%s339 + $0x50] sm:$0xff] %vm378, %v9656
      %9769 = vst.msk [vmem:[%s339 + $0x58] sm:$0xff] %vm378, %v9659
      %9770 = vst.msk [vmem:[%s339 + $0x60] sm:$0xff] %vm378, %v9664
      %9771 = vst.msk [vmem:[%s339 + $0x68] sm:$0xff] %vm378, %v9667
      %9772 = vst.msk [vmem:[%s339 + $0x70] sm:$0xff] %vm378, %v9672
      %9773 = vst.msk [vmem:[%s339 + $0x78] sm:$0xff] %vm378, %v9675
      %9774 = vst.msk [vmem:[%s339 + $0x80] sm:$0xff] %vm378, %v9680
      %9775 = vst.msk [vmem:[%s339 + $0x88] sm:$0xff] %vm378, %v9683
      %9776 = vst.msk [vmem:[%s339 + $0x90] sm:$0xff] %vm378, %v9688
      %9777 = vst.msk [vmem:[%s339 + $0x98] sm:$0xff] %vm378, %v9691
      %9778 = vst.msk [vmem:[%s339 + $0xa0] sm:$0xff] %vm378, %v9696
      %9779 = vst.msk [vmem:[%s339 + $0xa8] sm:$0xff] %vm378, %v9699
      %9780 = vst.msk [vmem:[%s339 + $0xb0] sm:$0xff] %vm378, %v9704
      %9781 = vst.msk [vmem:[%s339 + $0xb8] sm:$0xff] %vm378, %v9707
      %9782 = vst.msk [vmem:[%s339 + $0xc0] sm:$0xff] %vm378, %v9712
      %9783 = vst.msk [vmem:[%s339 + $0xc8] sm:$0xff] %vm378, %v9715
      %9784 = vst.msk [vmem:[%s339 + $0xd0] sm:$0xff] %vm378, %v9720
      %9785 = vst.msk [vmem:[%s339 + $0xd8] sm:$0xff] %vm378, %v9723
      %9786 = vst.msk [vmem:[%s339 + $0xe0] sm:$0xff] %vm378, %v9728
      %9787 = vst.msk [vmem:[%s339 + $0xe8] sm:$0xff] %vm378, %v9731
      %9788 = vst.msk [vmem:[%s339 + $0xf0] sm:$0xff] %vm378, %v9736
      %9789 = vst.msk [vmem:[%s339 + $0xf8] sm:$0xff] %vm378, %v9739
      %9790 = vst.msk [vmem:[%s339 + $0x100] sm:$0xff] %vm378, %v9744
      %9791 = vst.msk [vmem:[%s339 + $0x108] sm:$0xff] %vm378, %v9747
      %9792 = vst.msk [vmem:[%s339 + $0x110] sm:$0xff] %vm378, %v9752
      %9793 = vst.msk [vmem:[%s339 + $0x118] sm:$0xff] %vm378, %v9755
      %s9794 = smul.u32 4, %s20
      %p9795 = scmp.lt.s32.totalorder %s9794, 7
      %s9796 = scalar_select %p9795, %s9794, 7
      %s9797 = smul.addr %s9796, 9
      %s9798 = smul.addr %s9797, 8
      %s9799 = scalar_lea.vmem %s9, %s9798
      // Predicated region
      $region57: #{tpu_custom_call.1} parent=55 // pred_check
        %p9800 = pneg %p232
      $region58: #{tpu_custom_call.1} parent=55 // pred_check_branch
        %9802 = sbr.rel (%p9800) target = $region60
      $region59: #{tpu_custom_call.1} parent=55 // pred_region
        %s9803 = smul.u32 4, %s20
      $region60: #{tpu_custom_call.1} parent=55 // pred_fallthru
        _
    $region56: #{tpu_custom_call.1} parent=5 // pred_fallthru
      _
    %p9804 = scmp.le.s32.totalorder 2, %s15
    // Predicated region
    $region61: #{tpu_custom_call.1} parent=5 // pred_check
      %p9805 = pneg %p9804
    $region62: #{tpu_custom_call.1} parent=5 // pred_check_branch
      %9807 = sbr.rel (%p9805) target = $region64
    $region63: #{tpu_custom_call.1} parent=5 // pred_region
      %s9808 = ssub.s32 %s15, 2
      // Predicated region
      $region65: #{tpu_custom_call.1} parent=63 // pred_check
        %p9809 = pneg %p238
      $region66: #{tpu_custom_call.1} parent=63 // pred_check_branch
        %9811 = sbr.rel (%p9809) target = $region68
      $region67: #{tpu_custom_call.1} parent=63 // pred_region
        %s9812 = smul.u32 4, %s21
        %p9813 = scmp.lt.s32.totalorder %s9812, 7
        %s9814 = scalar_select %p9813, %s9812, 7
        %s9815 = smul.addr %s9814, 9
        %s9816 = smul.addr %s9815, 8
        %s9817 = scalar_lea.vmem %s9, %s9816
      $region68: #{tpu_custom_call.1} parent=63 // pred_fallthru
        _
    $region64: #{tpu_custom_call.1} parent=5 // pred_fallthru
      _
  $region6: #{tpu_custom_call.1} parent=0 // loop_footer
    %s19 = sadd.s32 1, %s15
  $region7: #{tpu_custom_call.1} parent=0 // loop_footer_branch
    %14 = sbr.rel target = $region3
  $region8: #{tpu_custom_call.1} parent=0 // loop_exit
    _

</llo_original>
